<compile_context>
chip_gen: v5e
topology: v5e:2x2
jax: 0.10.0
libtpu: 0.0.40
codegen_flags: <defaults>
</compile_context>

<pallas_src>
import functools

import jax
import jax.numpy as jnp
from jax.experimental import pallas as pl
from jax.experimental.pallas import tpu as pltpu


# ----------------------------------------------------------------------------- helpers

def _round_up(x, m):
    return (x + m - 1) // m * m


def _is_dual_tensorcore():
    # Only split the batch "parallel" axis on a 2-TensorCore part (v7x).
    try:
        kind = jax.devices()[0].device_kind.lower()
    except Exception:
        return False
    return "v7" in kind


def _resident_spec(shape):
    """BlockSpec for an operand resident in VMEM for the whole grid.

    The block index never changes, so request single buffering (no dead
    double-buffer allocation). Falls back to the default on older jax.
    """
    idx = lambda b, t: (0,) * len(shape)
    try:
        return pl.BlockSpec(shape, idx, pipeline_mode=pl.Buffered(1))
    except Exception:  # pipeline_mode / Buffered not available
        return pl.BlockSpec(shape, idx)


def _vmem_need_bytes(tc, bc, fp0, hp, num_layers, n_act):
    stream = 2 * tc * bc * fp0 * 2                                  # 2x-buffered bf16 input chunk
    weights = (fp0 * 3 * hp + (num_layers - 1) * hp * 3 * hp
               + num_layers * hp * 3 * hp) * 2                      # bf16 gate weights
    weights += (num_layers * 3 * hp + num_layers * hp + hp + 1) * 4  # f32 biases + fc
    scratch = num_layers * bc * hp * 4                              # recurrent states
    scratch += tc * bc * 3 * hp * 4                                 # gi chunk (f32)
    scratch += n_act * tc * bc * hp * 2                             # inter-layer act (bf16)
    return stream + weights + scratch


# ----------------------------------------------------------------------------- kernel

def _build_fused_gru_kernel(num_layers, n_act, tc, nt, t_true):
    """Fused multi-layer GRU + fc + sigmoid over one (tc, bc, F) time chunk."""

    def kernel(*refs):
        if num_layers > 1:
            (x_ref, wih0_ref, wihr_ref, whh_ref, bcomb_ref, bhn_ref,
             wfc_ref, bfc_ref, out_ref, h_ref, gi_ref, act_ref) = refs
        else:
            (x_ref, wih0_ref, whh_ref, bcomb_ref, bhn_ref,
             wfc_ref, bfc_ref, out_ref, h_ref, gi_ref, act_ref) = refs
            wihr_ref = None

        Hp = h_ref.shape[-1]
        Bc = h_ref.shape[-2]
        t_chunk = pl.program_id(1)

        @pl.when(t_chunk == 0)
        def _():
            h_ref[...] = jnp.zeros_like(h_ref)

        # Steps t >= always_valid can be time-padding (only in the last chunk).
        always_valid = t_true - (nt - 1) * tc

        for l in range(num_layers):
            if l == 0:
                xin = x_ref[...]                              # (tc, bc, Fp0) bf16
                w_ih = wih0_ref[...]
            else:
                xin = act_ref[(l - 1) % n_act]                # (tc, bc, Hp) bf16
                w_ih = wihr_ref[l - 1]
            fin = xin.shape[-1]

            # Hoisted input projection: one big MXU GEMM for the whole chunk,
            # bias added once, result parked in VMEM scratch (bounded live range).
            gi = jnp.dot(xin.reshape(tc * Bc, fin), w_ih,
                         preferred_element_type=jnp.float32)
            gi_ref[...] = (gi + bcomb_ref[l]).reshape(tc, Bc, 3 * Hp)

            w_hh = whh_ref[l]                                 # (Hp, 3Hp) bf16
            b_hn = bhn_ref[l]                                 # (1, Hp)   f32
            h = h_ref[l]                                      # (bc, Hp)  f32
            last_layer = l == num_layers - 1

            # Statically unrolled serial recurrence (tc <= 32).
            # TODO(synk): keep w_hh resident across steps via pltpu.matmul_push_rhs /
            # matmul_acc_lhs when Bc << MXU width (explicit MXU driving not used here).
            for t in range(tc):
                gi_t = gi_ref[t]                              # (bc, 3Hp) f32
                gh = jnp.dot(h.astype(w_hh.dtype), w_hh,
                             preferred_element_type=jnp.float32)
                r = jax.nn.sigmoid(gi_t[:, 0:Hp] + gh[:, 0:Hp])
                z = jax.nn.sigmoid(gi_t[:, Hp:2 * Hp] + gh[:, Hp:2 * Hp])
                n = jnp.tanh(gi_t[:, 2 * Hp:3 * Hp] + r * (gh[:, 2 * Hp:3 * Hp] + b_hn))
                h_new = (1.0 - z) * n + z * h
                if t >= always_valid:
                    # Possibly a padded timestep (last chunk only): keep h unchanged.
                    valid = ((t_chunk * tc + t) < t_true).astype(jnp.float32)
                    h = h + valid * (h_new - h)
                else:
                    h = h_new
                if not last_layer:
                    act_ref[l % n_act, t] = h.astype(act_ref.dtype)
            h_ref[l] = h

        @pl.when(t_chunk == nt - 1)
        def _():
            # fc as VPU multiply + XLU row reduction (N=1 matmul would waste MXU).
            # Padded lanes of h and w_fc are exactly zero by construction.
            h_last = h_ref[num_layers - 1]
            logits = jnp.sum(h_last * wfc_ref[...], axis=1, keepdims=True) + bfc_ref[...]
            out_ref[...] = jax.nn.sigmoid(logits)

    return kernel


# ----------------------------------------------------------------------------- wrapper

def _fused_gru_call(x_tbf, params, num_layers, *, tc, bc, t_true):
    T_pad, Bp, Fp0 = x_tbf.shape
    Hp = params["w_hh"].shape[1]
    nb = Bp // bc
    nt = T_pad // tc
    n_act = 1 if num_layers <= 2 else 2

    in_specs = [pl.BlockSpec((tc, bc, Fp0), lambda b, t: (t, b, 0))]   # streamed input
    args = [x_tbf]

    in_specs.append(_resident_spec((Fp0, 3 * Hp)))
    args.append(params["w_ih0"])
    if num_layers > 1:
        in_specs.append(_resident_spec((num_layers - 1, Hp, 3 * Hp)))
        args.append(params["w_ih_rest"])
    in_specs += [
        _resident_spec((num_layers, Hp, 3 * Hp)),     # w_hh (all layers)
        _resident_spec((num_layers, 1, 3 * Hp)),      # combined biases
        _resident_spec((num_layers, 1, Hp)),          # b_hn
        _resident_spec((1, Hp)),                      # w_fc
        _resident_spec((1, 1)),                       # b_fc
    ]
    args += [params["w_hh"], params["b_comb"], params["b_hn"],
             params["w_fc"], params["b_fc"]]

    need = _vmem_need_bytes(tc, bc, Fp0, Hp, num_layers, n_act)
    vmem_limit = int(min(max(need + (4 << 20), 16 << 20), 48 << 20))

    kernel = _build_fused_gru_kernel(num_layers, n_act, tc, nt, t_true)

    return pl.pallas_call(
        kernel,
        out_shape=jax.ShapeDtypeStruct((Bp, 1), jnp.float32),
        grid=(nb, nt),
        in_specs=in_specs,
        out_specs=pl.BlockSpec((bc, 1), lambda b, t: (b, 0)),
        scratch_shapes=[
            pltpu.VMEM((num_layers, bc, Hp), jnp.float32),      # per-layer recurrent h
            pltpu.VMEM((tc, bc, 3 * Hp), jnp.float32),          # chunk input-projection gi
            pltpu.VMEM((n_act, tc, bc, Hp), jnp.bfloat16),      # inter-layer act ping-pong
        ],
        compiler_params=pltpu.CompilerParams(
            dimension_semantics=("parallel", "arbitrary"),
            vmem_limit_bytes=vmem_limit,
        ),
    )(*args)


@functools.partial(jax.jit, static_argnames=("num_layers",))
def gru_classifier_forward(x_ids, params, num_layers):
    B, T = x_ids.shape
    Hp = params["w_hh"].shape[1]
    Fp0 = params["embedding"].shape[1]

    # Batch padded to a bf16-vreg-full multiple of 16 sublanes; pad rows use token 0.
    Bp = _round_up(max(B, 16), 16)
    ids = jnp.pad(x_ids, ((0, Bp - B), (0, 0)))

    # Time-major embedding gather straight from the bf16 table (no transpose pass).
    x = jnp.take(params["embedding"], ids.T, axis=0)            # (T, Bp, Fp0) bf16

    # Generation-aware batch chunking: split only on 2-TC parts when each half
    # still fills >=256 MXU rows; otherwise keep the whole batch per step.
    bc = Bp
    if _is_dual_tensorcore() and Bp % 32 == 0 and Bp // 2 >= 256:
        bc = Bp // 2

    # Fixed MXU-friendly time chunk; shrink only if fused VMEM footprint would
    # overflow (~40 MiB budget fits v7x's 64 MiB physical VMEM with headroom).
    n_act = 1 if num_layers <= 2 else 2
    tc = min(32, _round_up(T, 8))
    while tc > 8 and _vmem_need_bytes(tc, bc, Fp0, Hp, num_layers, n_act) > (40 << 20):
        tc -= 8
    T_pad = _round_up(T, tc)
    if T_pad != T:
        x = jnp.pad(x, ((0, T_pad - T), (0, 0), (0, 0)))        # padded steps masked in-kernel

    out = _fused_gru_call(x, params, num_layers, tc=tc, bc=bc, t_true=T)
    return out[:B]                                              # (B, 1) probabilities


# ----------------------------------------------------------------------------- params

def init_params(key, vocab_size, embedding_dim, hidden_size, num_layers):
    H = hidden_size
    Fp0 = _round_up(embedding_dim, 128)
    Hp = _round_up(hidden_size, 128)
    keys = jax.random.split(key, 1 + 4 * num_layers + 2)
    ki = iter(keys)
    scale = 1.0 / float(hidden_size) ** 0.5

    emb = jax.random.normal(next(ki), (vocab_size, embedding_dim), jnp.float32) * 0.1
    emb = emb.at[0].set(0.0)                                    # padding_idx=0
    emb_p = jnp.zeros((vocab_size, Fp0), jnp.float32).at[:, :embedding_dim].set(emb)

    def pack_gates(w, in_dim, in_pad):
        # torch (3H, in_dim), gate order (r, z, n) -> (in_pad, 3*Hp) bf16 with each
        # gate transposed into its own lane-aligned Hp block; pad lanes stay zero.
        out = jnp.zeros((in_pad, 3 * Hp), jnp.float32)
        for g in range(3):
            out = out.at[:in_dim, g * Hp:g * Hp + H].set(w[g * H:(g + 1) * H, :].T)
        return out.astype(jnp.bfloat16)

    w_ih0 = None
    w_ih_rest, w_hh_all, b_comb_all, b_hn_all = [], [], [], []
    for layer in range(num_layers):
        in_dim = embedding_dim if layer == 0 else hidden_size
        in_pad = Fp0 if layer == 0 else Hp
        w_ih = jax.random.uniform(next(ki), (3 * H, in_dim), jnp.float32, -scale, scale)
        w_hh = jax.random.uniform(next(ki), (3 * H, H), jnp.float32, -scale, scale)
        b_ih = jax.random.uniform(next(ki), (3 * H,), jnp.float32, -scale, scale)
        b_hh = jax.random.uniform(next(ki), (3 * H,), jnp.float32, -scale, scale)

        # Pre-combined biases: r,z use b_ih+b_hh; n keeps only b_in here while
        # b_hn stays separate (it sits inside the r-gate multiply).
        b_comb = jnp.zeros((1, 3 * Hp), jnp.float32)
        b_comb = b_comb.at[0, 0 * Hp:0 * Hp + H].set(b_ih[0:H] + b_hh[0:H])
        b_comb = b_comb.at[0, 1 * Hp:1 * Hp + H].set(b_ih[H:2 * H] + b_hh[H:2 * H])
        b_comb = b_comb.at[0, 2 * Hp:2 * Hp + H].set(b_ih[2 * H:3 * H])
        b_hn = jnp.zeros((1, Hp), jnp.float32).at[0, :H].set(b_hh[2 * H:3 * H])

        packed_ih = pack_gates(w_ih, in_dim, in_pad)
        if layer == 0:
            w_ih0 = packed_ih
        else:
            w_ih_rest.append(packed_ih)
        w_hh_all.append(pack_gates(w_hh, H, Hp))
        b_comb_all.append(b_comb)
        b_hn_all.append(b_hn)

    w_fc = jax.random.uniform(next(ki), (1, H), jnp.float32, -scale, scale)
    b_fc = jax.random.uniform(next(ki), (1,), jnp.float32, -scale, scale)
    w_fc_p = jnp.zeros((1, Hp), jnp.float32).at[0, :H].set(w_fc[0])

    params = {
        "embedding": emb_p.astype(jnp.bfloat16),                # (vocab, Fp0)    bf16
        "w_ih0": w_ih0,                                         # (Fp0, 3Hp)      bf16
        "w_hh": jnp.stack(w_hh_all),                            # (L, Hp, 3Hp)    bf16
        "b_comb": jnp.stack(b_comb_all),                        # (L, 1, 3Hp)     f32
        "b_hn": jnp.stack(b_hn_all),                            # (L, 1, Hp)      f32
        "w_fc": w_fc_p,                                         # (1, Hp)         f32
        "b_fc": b_fc.reshape(1, 1),                             # (1, 1)          f32
    }
    if num_layers > 1:
        params["w_ih_rest"] = jnp.stack(w_ih_rest)              # (L-1, Hp, 3Hp)  bf16
    return params


# ----------------------------------------------------------------------------- demo

if __name__ == "__main__":
    vocab_size = 50
    embedding_dim = 32
    hidden_size = 32
    num_layers = 2
    batch = 2
    seq_len = 10   # deliberately not a multiple of the time chunk -> exercises T padding + mask

    key = jax.random.PRNGKey(0)
    k_param, k_data = jax.random.split(key)

    params = init_params(k_param, vocab_size, embedding_dim, hidden_size, num_layers)

    # token ids, with trailing padding (0) tokens
    # TODO(synk): like torch nn.GRU without pack_padded_sequence, trailing pad
    # tokens are still fed through the recurrence (matches the reference).
    x_ids = jax.random.randint(k_data, (batch, seq_len), 0, vocab_size, jnp.int32)
    x_ids = x_ids.at[:, -1].set(0)

    out = gru_classifier_forward(x_ids, params, num_layers)
    out = jax.block_until_ready(out)
    assert out.shape == (batch, 1) and out.dtype == jnp.float32
    assert bool(jnp.all(jnp.isfinite(out)))
    assert bool(jnp.all((out >= 0.0) & (out <= 1.0)))
    print("KERNEL_OK")
</pallas_src>

<mosaic_0001>
module attributes {stable_mosaic.version = 11 : i64} {
  func.func @kernel(%arg0: i32, %arg1: i32, %arg2: memref<16x16x128xbf16, #tpu.memory_space<vmem>>, %arg3: memref<128x384xbf16, #tpu.memory_space<vmem>>, %arg4: memref<1x128x384xbf16, #tpu.memory_space<vmem>>, %arg5: memref<2x128x384xbf16, #tpu.memory_space<vmem>>, %arg6: memref<2x1x384xf32, #tpu.memory_space<vmem>>, %arg7: memref<2x1x128xf32, #tpu.memory_space<vmem>>, %arg8: memref<1x128xf32, #tpu.memory_space<vmem>>, %arg9: memref<1x1xf32, #tpu.memory_space<vmem>>, %arg10: memref<16x1xf32, #tpu.memory_space<vmem>>, %arg11: memref<2x16x128xf32, #tpu.memory_space<vmem>>, %arg12: memref<16x16x384xf32, #tpu.memory_space<vmem>>, %arg13: memref<1x16x16x128xbf16, #tpu.memory_space<vmem>>) attributes {dimension_semantics = [#tpu.dimension_semantics<parallel>, #tpu.dimension_semantics<arbitrary>], iteration_bounds = array<i64: 1, 1>, scalar_prefetch = 0 : i64, scratch_operands = 3 : i64, tpu.core_type = #tpu.core_type<tc>, window_params = [{transform_indices = @transform_0, window_bounds = array<i64: 16, 16, 128>}, {pipeline_mode = #tpu.pipeline_mode<synchronous>, transform_indices = @transform_1, window_bounds = array<i64: 128, 384>}, {pipeline_mode = #tpu.pipeline_mode<synchronous>, transform_indices = @transform_2, window_bounds = array<i64: 1, 128, 384>}, {pipeline_mode = #tpu.pipeline_mode<synchronous>, transform_indices = @transform_3, window_bounds = array<i64: 2, 128, 384>}, {pipeline_mode = #tpu.pipeline_mode<synchronous>, transform_indices = @transform_4, window_bounds = array<i64: 2, 1, 384>}, {pipeline_mode = #tpu.pipeline_mode<synchronous>, transform_indices = @transform_5, window_bounds = array<i64: 2, 1, 128>}, {pipeline_mode = #tpu.pipeline_mode<synchronous>, transform_indices = @transform_6, window_bounds = array<i64: 1, 128>}, {pipeline_mode = #tpu.pipeline_mode<synchronous>, transform_indices = @transform_7, window_bounds = array<i64: 1, 1>}, {transform_indices = @transform_8, window_bounds = array<i64: 16, 1>}]} {
    %c0_i32 = arith.constant 0 : i32
    %0 = arith.cmpi eq, %arg1, %c0_i32 : i32
    %1 = arith.extui %0 : i1 to i32
    %c0_i32_0 = arith.constant 0 : i32
    %2 = arith.cmpi ne, %1, %c0_i32_0 : i32
    scf.if %2 {
      %cst_353 = arith.constant 0.000000e+00 : f32
      %1242 = vector.broadcast %cst_353 : f32 to vector<2x16x128xf32>
      %c0_354 = arith.constant 0 : index
      %c0_355 = arith.constant 0 : index
      %c0_356 = arith.constant 0 : index
      %1243 = vector.load %arg11[%c0_354, %c0_355, %c0_356] : memref<2x16x128xf32, #tpu.memory_space<vmem>>, vector<2x16x128xf32>
      tpu.vector_store %arg11[%c0_354, %c0_355, %c0_356], %1242 {strides = array<i32>} : memref<2x16x128xf32, #tpu.memory_space<vmem>>, vector<2x16x128xf32>,
    } else {
    }
    %c0 = arith.constant 0 : index
    %c0_1 = arith.constant 0 : index
    %c0_2 = arith.constant 0 : index
    %3 = vector.load %arg2[%c0, %c0_1, %c0_2] : memref<16x16x128xbf16, #tpu.memory_space<vmem>>, vector<16x16x128xbf16>
    %c0_3 = arith.constant 0 : index
    %c0_4 = arith.constant 0 : index
    %4 = vector.load %arg3[%c0_3, %c0_4] : memref<128x384xbf16, #tpu.memory_space<vmem>>, vector<128x384xbf16>
    %5 = vector.shape_cast %3 : vector<16x16x128xbf16> to vector<256x128xbf16>
    %cst = arith.constant dense<0.000000e+00> : vector<256x384xf32>
    %6 = tpu.matmul %5, %4, %cst {dimension_numbers = #tpu.dot_dimension_numbers<[1], [0], [0], [1], [0, 0, 1, 1], [], []>} : vector<256x128xbf16>, vector<128x384xbf16>, vector<256x384xf32> -> vector<256x384xf32>
    %c0_5 = arith.constant 0 : index
    %c0_6 = arith.constant 0 : index
    %c0_7 = arith.constant 0 : index
    %7 = vector.load %arg6[%c0_5, %c0_6, %c0_7] : memref<2x1x384xf32, #tpu.memory_space<vmem>>, vector<1x1x384xf32>
    %8 = vector.shape_cast %7 : vector<1x1x384xf32> to vector<1x384xf32>
    %9 = vector.broadcast %8 : vector<1x384xf32> to vector<256x384xf32>
    %10 = arith.addf %6, %9 : vector<256x384xf32>
    %11 = vector.shape_cast %10 : vector<256x384xf32> to vector<16x16x384xf32>
    %c0_8 = arith.constant 0 : index
    %c0_9 = arith.constant 0 : index
    %c0_10 = arith.constant 0 : index
    %12 = vector.load %arg12[%c0_8, %c0_9, %c0_10] : memref<16x16x384xf32, #tpu.memory_space<vmem>>, vector<16x16x384xf32>
    tpu.vector_store %arg12[%c0_8, %c0_9, %c0_10], %11 {strides = array<i32>} : memref<16x16x384xf32, #tpu.memory_space<vmem>>, vector<16x16x384xf32>,
    %c0_11 = arith.constant 0 : index
    %c0_12 = arith.constant 0 : index
    %c0_13 = arith.constant 0 : index
    %13 = vector.load %arg5[%c0_11, %c0_12, %c0_13] : memref<2x128x384xbf16, #tpu.memory_space<vmem>>, vector<1x128x384xbf16>
    %14 = vector.shape_cast %13 : vector<1x128x384xbf16> to vector<128x384xbf16>
    %c0_14 = arith.constant 0 : index
    %c0_15 = arith.constant 0 : index
    %c0_16 = arith.constant 0 : index
    %15 = vector.load %arg7[%c0_14, %c0_15, %c0_16] : memref<2x1x128xf32, #tpu.memory_space<vmem>>, vector<1x1x128xf32>
    %16 = vector.shape_cast %15 : vector<1x1x128xf32> to vector<1x128xf32>
    %c0_17 = arith.constant 0 : index
    %c0_18 = arith.constant 0 : index
    %c0_19 = arith.constant 0 : index
    %17 = vector.load %arg11[%c0_17, %c0_18, %c0_19] : memref<2x16x128xf32, #tpu.memory_space<vmem>>, vector<1x16x128xf32>
    %18 = vector.shape_cast %17 : vector<1x16x128xf32> to vector<16x128xf32>
    %c0_20 = arith.constant 0 : index
    %c0_21 = arith.constant 0 : index
    %c0_22 = arith.constant 0 : index
    %19 = vector.load %arg12[%c0_20, %c0_21, %c0_22] : memref<16x16x384xf32, #tpu.memory_space<vmem>>, vector<1x16x384xf32>
    %20 = vector.shape_cast %19 : vector<1x16x384xf32> to vector<16x384xf32>
    %21 = arith.truncf %18 : vector<16x128xf32> to vector<16x128xbf16>
    %cst_23 = arith.constant dense<0.000000e+00> : vector<16x384xf32>
    %22 = tpu.matmul %21, %14, %cst_23 {dimension_numbers = #tpu.dot_dimension_numbers<[1], [0], [0], [1], [0, 0, 1, 1], [], []>} : vector<16x128xbf16>, vector<128x384xbf16>, vector<16x384xf32> -> vector<16x384xf32>
    %23 = vector.extract_strided_slice %20 {offsets = [0, 0], sizes = [16, 128], strides = [1, 1]} : vector<16x384xf32> to vector<16x128xf32>
    %24 = vector.extract_strided_slice %22 {offsets = [0, 0], sizes = [16, 128], strides = [1, 1]} : vector<16x384xf32> to vector<16x128xf32>
    %25 = arith.addf %23, %24 : vector<16x128xf32>
    %26 = arith.negf %25 : vector<16x128xf32>
    %27 = math.exp %26 : vector<16x128xf32>
    %cst_24 = arith.constant 1.000000e+00 : f32
    %28 = vector.broadcast %cst_24 : f32 to vector<16x128xf32>
    %29 = arith.addf %28, %27 : vector<16x128xf32>
    %30 = arith.divf %28, %29 : vector<16x128xf32>
    %31 = vector.extract_strided_slice %20 {offsets = [0, 128], sizes = [16, 128], strides = [1, 1]} : vector<16x384xf32> to vector<16x128xf32>
    %32 = vector.extract_strided_slice %22 {offsets = [0, 128], sizes = [16, 128], strides = [1, 1]} : vector<16x384xf32> to vector<16x128xf32>
    %33 = arith.addf %31, %32 : vector<16x128xf32>
    %34 = arith.negf %33 : vector<16x128xf32>
    %35 = math.exp %34 : vector<16x128xf32>
    %cst_25 = arith.constant 1.000000e+00 : f32
    %36 = vector.broadcast %cst_25 : f32 to vector<16x128xf32>
    %37 = arith.addf %36, %35 : vector<16x128xf32>
    %38 = arith.divf %36, %37 : vector<16x128xf32>
    %39 = vector.extract_strided_slice %20 {offsets = [0, 256], sizes = [16, 128], strides = [1, 1]} : vector<16x384xf32> to vector<16x128xf32>
    %40 = vector.extract_strided_slice %22 {offsets = [0, 256], sizes = [16, 128], strides = [1, 1]} : vector<16x384xf32> to vector<16x128xf32>
    %41 = vector.broadcast %16 : vector<1x128xf32> to vector<16x128xf32>
    %42 = arith.addf %40, %41 : vector<16x128xf32>
    %43 = arith.mulf %30, %42 : vector<16x128xf32>
    %44 = arith.addf %39, %43 : vector<16x128xf32>
    %45 = math.tanh %44 : vector<16x128xf32>
    %cst_26 = arith.constant 1.000000e+00 : f32
    %46 = vector.broadcast %cst_26 : f32 to vector<16x128xf32>
    %47 = arith.subf %46, %38 : vector<16x128xf32>
    %48 = arith.mulf %47, %45 : vector<16x128xf32>
    %49 = arith.mulf %38, %18 : vector<16x128xf32>
    %50 = arith.addf %48, %49 : vector<16x128xf32>
    %51 = arith.truncf %50 : vector<16x128xf32> to vector<16x128xbf16>
    %c0_27 = arith.constant 0 : index
    %c0_28 = arith.constant 0 : index
    %c0_29 = arith.constant 0 : index
    %c0_30 = arith.constant 0 : index
    %52 = vector.load %arg13[%c0_27, %c0_28, %c0_29, %c0_30] : memref<1x16x16x128xbf16, #tpu.memory_space<vmem>>, vector<1x1x16x128xbf16>
    %53 = vector.shape_cast %52 : vector<1x1x16x128xbf16> to vector<16x128xbf16>
    %54 = vector.shape_cast %51 : vector<16x128xbf16> to vector<1x1x16x128xbf16>
    tpu.vector_store %arg13[%c0_27, %c0_28, %c0_29, %c0_30], %54 {strides = array<i32>} : memref<1x16x16x128xbf16, #tpu.memory_space<vmem>>, vector<1x1x16x128xbf16>,
    %c1 = arith.constant 1 : index
    %c0_31 = arith.constant 0 : index
    %c0_32 = arith.constant 0 : index
    %55 = vector.load %arg12[%c1, %c0_31, %c0_32] : memref<16x16x384xf32, #tpu.memory_space<vmem>>, vector<1x16x384xf32>
    %56 = vector.shape_cast %55 : vector<1x16x384xf32> to vector<16x384xf32>
    %57 = arith.truncf %50 : vector<16x128xf32> to vector<16x128xbf16>
    %cst_33 = arith.constant dense<0.000000e+00> : vector<16x384xf32>
    %58 = tpu.matmul %57, %14, %cst_33 {dimension_numbers = #tpu.dot_dimension_numbers<[1], [0], [0], [1], [0, 0, 1, 1], [], []>} : vector<16x128xbf16>, vector<128x384xbf16>, vector<16x384xf32> -> vector<16x384xf32>
    %59 = vector.extract_strided_slice %56 {offsets = [0, 0], sizes = [16, 128], strides = [1, 1]} : vector<16x384xf32> to vector<16x128xf32>
    %60 = vector.extract_strided_slice %58 {offsets = [0, 0], sizes = [16, 128], strides = [1, 1]} : vector<16x384xf32> to vector<16x128xf32>
    %61 = arith.addf %59, %60 : vector<16x128xf32>
    %62 = arith.negf %61 : vector<16x128xf32>
    %63 = math.exp %62 : vector<16x128xf32>
    %cst_34 = arith.constant 1.000000e+00 : f32
    %64 = vector.broadcast %cst_34 : f32 to vector<16x128xf32>
    %65 = arith.addf %64, %63 : vector<16x128xf32>
    %66 = arith.divf %64, %65 : vector<16x128xf32>
    %67 = vector.extract_strided_slice %56 {offsets = [0, 128], sizes = [16, 128], strides = [1, 1]} : vector<16x384xf32> to vector<16x128xf32>
    %68 = vector.extract_strided_slice %58 {offsets = [0, 128], sizes = [16, 128], strides = [1, 1]} : vector<16x384xf32> to vector<16x128xf32>
    %69 = arith.addf %67, %68 : vector<16x128xf32>
    %70 = arith.negf %69 : vector<16x128xf32>
    %71 = math.exp %70 : vector<16x128xf32>
    %cst_35 = arith.constant 1.000000e+00 : f32
    %72 = vector.broadcast %cst_35 : f32 to vector<16x128xf32>
    %73 = arith.addf %72, %71 : vector<16x128xf32>
    %74 = arith.divf %72, %73 : vector<16x128xf32>
    %75 = vector.extract_strided_slice %56 {offsets = [0, 256], sizes = [16, 128], strides = [1, 1]} : vector<16x384xf32> to vector<16x128xf32>
    %76 = vector.extract_strided_slice %58 {offsets = [0, 256], sizes = [16, 128], strides = [1, 1]} : vector<16x384xf32> to vector<16x128xf32>
    %77 = vector.broadcast %16 : vector<1x128xf32> to vector<16x128xf32>
    %78 = arith.addf %76, %77 : vector<16x128xf32>
    %79 = arith.mulf %66, %78 : vector<16x128xf32>
    %80 = arith.addf %75, %79 : vector<16x128xf32>
    %81 = math.tanh %80 : vector<16x128xf32>
    %cst_36 = arith.constant 1.000000e+00 : f32
    %82 = vector.broadcast %cst_36 : f32 to vector<16x128xf32>
    %83 = arith.subf %82, %74 : vector<16x128xf32>
    %84 = arith.mulf %83, %81 : vector<16x128xf32>
    %85 = arith.mulf %74, %50 : vector<16x128xf32>
    %86 = arith.addf %84, %85 : vector<16x128xf32>
    %87 = arith.truncf %86 : vector<16x128xf32> to vector<16x128xbf16>
    %c0_37 = arith.constant 0 : index
    %c1_38 = arith.constant 1 : index
    %c0_39 = arith.constant 0 : index
    %c0_40 = arith.constant 0 : index
    %88 = vector.load %arg13[%c0_37, %c1_38, %c0_39, %c0_40] : memref<1x16x16x128xbf16, #tpu.memory_space<vmem>>, vector<1x1x16x128xbf16>
    %89 = vector.shape_cast %88 : vector<1x1x16x128xbf16> to vector<16x128xbf16>
    %90 = vector.shape_cast %87 : vector<16x128xbf16> to vector<1x1x16x128xbf16>
    tpu.vector_store %arg13[%c0_37, %c1_38, %c0_39, %c0_40], %90 {strides = array<i32>} : memref<1x16x16x128xbf16, #tpu.memory_space<vmem>>, vector<1x1x16x128xbf16>,
    %c2 = arith.constant 2 : index
    %c0_41 = arith.constant 0 : index
    %c0_42 = arith.constant 0 : index
    %91 = vector.load %arg12[%c2, %c0_41, %c0_42] : memref<16x16x384xf32, #tpu.memory_space<vmem>>, vector<1x16x384xf32>
    %92 = vector.shape_cast %91 : vector<1x16x384xf32> to vector<16x384xf32>
    %93 = arith.truncf %86 : vector<16x128xf32> to vector<16x128xbf16>
    %cst_43 = arith.constant dense<0.000000e+00> : vector<16x384xf32>
    %94 = tpu.matmul %93, %14, %cst_43 {dimension_numbers = #tpu.dot_dimension_numbers<[1], [0], [0], [1], [0, 0, 1, 1], [], []>} : vector<16x128xbf16>, vector<128x384xbf16>, vector<16x384xf32> -> vector<16x384xf32>
    %95 = vector.extract_strided_slice %92 {offsets = [0, 0], sizes = [16, 128], strides = [1, 1]} : vector<16x384xf32> to vector<16x128xf32>
    %96 = vector.extract_strided_slice %94 {offsets = [0, 0], sizes = [16, 128], strides = [1, 1]} : vector<16x384xf32> to vector<16x128xf32>
    %97 = arith.addf %95, %96 : vector<16x128xf32>
    %98 = arith.negf %97 : vector<16x128xf32>
    %99 = math.exp %98 : vector<16x128xf32>
    %cst_44 = arith.constant 1.000000e+00 : f32
    %100 = vector.broadcast %cst_44 : f32 to vector<16x128xf32>
    %101 = arith.addf %100, %99 : vector<16x128xf32>
    %102 = arith.divf %100, %101 : vector<16x128xf32>
    %103 = vector.extract_strided_slice %92 {offsets = [0, 128], sizes = [16, 128], strides = [1, 1]} : vector<16x384xf32> to vector<16x128xf32>
    %104 = vector.extract_strided_slice %94 {offsets = [0, 128], sizes = [16, 128], strides = [1, 1]} : vector<16x384xf32> to vector<16x128xf32>
    %105 = arith.addf %103, %104 : vector<16x128xf32>
    %106 = arith.negf %105 : vector<16x128xf32>
    %107 = math.exp %106 : vector<16x128xf32>
    %cst_45 = arith.constant 1.000000e+00 : f32
    %108 = vector.broadcast %cst_45 : f32 to vector<16x128xf32>
    %109 = arith.addf %108, %107 : vector<16x128xf32>
    %110 = arith.divf %108, %109 : vector<16x128xf32>
    %111 = vector.extract_strided_slice %92 {offsets = [0, 256], sizes = [16, 128], strides = [1, 1]} : vector<16x384xf32> to vector<16x128xf32>
    %112 = vector.extract_strided_slice %94 {offsets = [0, 256], sizes = [16, 128], strides = [1, 1]} : vector<16x384xf32> to vector<16x128xf32>
    %113 = vector.broadcast %16 : vector<1x128xf32> to vector<16x128xf32>
    %114 = arith.addf %112, %113 : vector<16x128xf32>
    %115 = arith.mulf %102, %114 : vector<16x128xf32>
    %116 = arith.addf %111, %115 : vector<16x128xf32>
    %117 = math.tanh %116 : vector<16x128xf32>
    %cst_46 = arith.constant 1.000000e+00 : f32
    %118 = vector.broadcast %cst_46 : f32 to vector<16x128xf32>
    %119 = arith.subf %118, %110 : vector<16x128xf32>
    %120 = arith.mulf %119, %117 : vector<16x128xf32>
    %121 = arith.mulf %110, %86 : vector<16x128xf32>
    %122 = arith.addf %120, %121 : vector<16x128xf32>
    %123 = arith.truncf %122 : vector<16x128xf32> to vector<16x128xbf16>
    %c0_47 = arith.constant 0 : index
    %c2_48 = arith.constant 2 : index
    %c0_49 = arith.constant 0 : index
    %c0_50 = arith.constant 0 : index
    %124 = vector.load %arg13[%c0_47, %c2_48, %c0_49, %c0_50] : memref<1x16x16x128xbf16, #tpu.memory_space<vmem>>, vector<1x1x16x128xbf16>
    %125 = vector.shape_cast %124 : vector<1x1x16x128xbf16> to vector<16x128xbf16>
    %126 = vector.shape_cast %123 : vector<16x128xbf16> to vector<1x1x16x128xbf16>
    tpu.vector_store %arg13[%c0_47, %c2_48, %c0_49, %c0_50], %126 {strides = array<i32>} : memref<1x16x16x128xbf16, #tpu.memory_space<vmem>>, vector<1x1x16x128xbf16>,
    %c3 = arith.constant 3 : index
    %c0_51 = arith.constant 0 : index
    %c0_52 = arith.constant 0 : index
    %127 = vector.load %arg12[%c3, %c0_51, %c0_52] : memref<16x16x384xf32, #tpu.memory_space<vmem>>, vector<1x16x384xf32>
    %128 = vector.shape_cast %127 : vector<1x16x384xf32> to vector<16x384xf32>
    %129 = arith.truncf %122 : vector<16x128xf32> to vector<16x128xbf16>
    %cst_53 = arith.constant dense<0.000000e+00> : vector<16x384xf32>
    %130 = tpu.matmul %129, %14, %cst_53 {dimension_numbers = #tpu.dot_dimension_numbers<[1], [0], [0], [1], [0, 0, 1, 1], [], []>} : vector<16x128xbf16>, vector<128x384xbf16>, vector<16x384xf32> -> vector<16x384xf32>
    %131 = vector.extract_strided_slice %128 {offsets = [0, 0], sizes = [16, 128], strides = [1, 1]} : vector<16x384xf32> to vector<16x128xf32>
    %132 = vector.extract_strided_slice %130 {offsets = [0, 0], sizes = [16, 128], strides = [1, 1]} : vector<16x384xf32> to vector<16x128xf32>
    %133 = arith.addf %131, %132 : vector<16x128xf32>
    %134 = arith.negf %133 : vector<16x128xf32>
    %135 = math.exp %134 : vector<16x128xf32>
    %cst_54 = arith.constant 1.000000e+00 : f32
    %136 = vector.broadcast %cst_54 : f32 to vector<16x128xf32>
    %137 = arith.addf %136, %135 : vector<16x128xf32>
    %138 = arith.divf %136, %137 : vector<16x128xf32>
    %139 = vector.extract_strided_slice %128 {offsets = [0, 128], sizes = [16, 128], strides = [1, 1]} : vector<16x384xf32> to vector<16x128xf32>
    %140 = vector.extract_strided_slice %130 {offsets = [0, 128], sizes = [16, 128], strides = [1, 1]} : vector<16x384xf32> to vector<16x128xf32>
    %141 = arith.addf %139, %140 : vector<16x128xf32>
    %142 = arith.negf %141 : vector<16x128xf32>
    %143 = math.exp %142 : vector<16x128xf32>
    %cst_55 = arith.constant 1.000000e+00 : f32
    %144 = vector.broadcast %cst_55 : f32 to vector<16x128xf32>
    %145 = arith.addf %144, %143 : vector<16x128xf32>
    %146 = arith.divf %144, %145 : vector<16x128xf32>
    %147 = vector.extract_strided_slice %128 {offsets = [0, 256], sizes = [16, 128], strides = [1, 1]} : vector<16x384xf32> to vector<16x128xf32>
    %148 = vector.extract_strided_slice %130 {offsets = [0, 256], sizes = [16, 128], strides = [1, 1]} : vector<16x384xf32> to vector<16x128xf32>
    %149 = vector.broadcast %16 : vector<1x128xf32> to vector<16x128xf32>
    %150 = arith.addf %148, %149 : vector<16x128xf32>
    %151 = arith.mulf %138, %150 : vector<16x128xf32>
    %152 = arith.addf %147, %151 : vector<16x128xf32>
    %153 = math.tanh %152 : vector<16x128xf32>
    %cst_56 = arith.constant 1.000000e+00 : f32
    %154 = vector.broadcast %cst_56 : f32 to vector<16x128xf32>
    %155 = arith.subf %154, %146 : vector<16x128xf32>
    %156 = arith.mulf %155, %153 : vector<16x128xf32>
    %157 = arith.mulf %146, %122 : vector<16x128xf32>
    %158 = arith.addf %156, %157 : vector<16x128xf32>
    %159 = arith.truncf %158 : vector<16x128xf32> to vector<16x128xbf16>
    %c0_57 = arith.constant 0 : index
    %c3_58 = arith.constant 3 : index
    %c0_59 = arith.constant 0 : index
    %c0_60 = arith.constant 0 : index
    %160 = vector.load %arg13[%c0_57, %c3_58, %c0_59, %c0_60] : memref<1x16x16x128xbf16, #tpu.memory_space<vmem>>, vector<1x1x16x128xbf16>
    %161 = vector.shape_cast %160 : vector<1x1x16x128xbf16> to vector<16x128xbf16>
    %162 = vector.shape_cast %159 : vector<16x128xbf16> to vector<1x1x16x128xbf16>
    tpu.vector_store %arg13[%c0_57, %c3_58, %c0_59, %c0_60], %162 {strides = array<i32>} : memref<1x16x16x128xbf16, #tpu.memory_space<vmem>>, vector<1x1x16x128xbf16>,
    %c4 = arith.constant 4 : index
    %c0_61 = arith.constant 0 : index
    %c0_62 = arith.constant 0 : index
    %163 = vector.load %arg12[%c4, %c0_61, %c0_62] : memref<16x16x384xf32, #tpu.memory_space<vmem>>, vector<1x16x384xf32>
    %164 = vector.shape_cast %163 : vector<1x16x384xf32> to vector<16x384xf32>
    %165 = arith.truncf %158 : vector<16x128xf32> to vector<16x128xbf16>
    %cst_63 = arith.constant dense<0.000000e+00> : vector<16x384xf32>
    %166 = tpu.matmul %165, %14, %cst_63 {dimension_numbers = #tpu.dot_dimension_numbers<[1], [0], [0], [1], [0, 0, 1, 1], [], []>} : vector<16x128xbf16>, vector<128x384xbf16>, vector<16x384xf32> -> vector<16x384xf32>
    %167 = vector.extract_strided_slice %164 {offsets = [0, 0], sizes = [16, 128], strides = [1, 1]} : vector<16x384xf32> to vector<16x128xf32>
    %168 = vector.extract_strided_slice %166 {offsets = [0, 0], sizes = [16, 128], strides = [1, 1]} : vector<16x384xf32> to vector<16x128xf32>
    %169 = arith.addf %167, %168 : vector<16x128xf32>
    %170 = arith.negf %169 : vector<16x128xf32>
    %171 = math.exp %170 : vector<16x128xf32>
    %cst_64 = arith.constant 1.000000e+00 : f32
    %172 = vector.broadcast %cst_64 : f32 to vector<16x128xf32>
    %173 = arith.addf %172, %171 : vector<16x128xf32>
    %174 = arith.divf %172, %173 : vector<16x128xf32>
    %175 = vector.extract_strided_slice %164 {offsets = [0, 128], sizes = [16, 128], strides = [1, 1]} : vector<16x384xf32> to vector<16x128xf32>
    %176 = vector.extract_strided_slice %166 {offsets = [0, 128], sizes = [16, 128], strides = [1, 1]} : vector<16x384xf32> to vector<16x128xf32>
    %177 = arith.addf %175, %176 : vector<16x128xf32>
    %178 = arith.negf %177 : vector<16x128xf32>
    %179 = math.exp %178 : vector<16x128xf32>
    %cst_65 = arith.constant 1.000000e+00 : f32
    %180 = vector.broadcast %cst_65 : f32 to vector<16x128xf32>
    %181 = arith.addf %180, %179 : vector<16x128xf32>
    %182 = arith.divf %180, %181 : vector<16x128xf32>
    %183 = vector.extract_strided_slice %164 {offsets = [0, 256], sizes = [16, 128], strides = [1, 1]} : vector<16x384xf32> to vector<16x128xf32>
    %184 = vector.extract_strided_slice %166 {offsets = [0, 256], sizes = [16, 128], strides = [1, 1]} : vector<16x384xf32> to vector<16x128xf32>
    %185 = vector.broadcast %16 : vector<1x128xf32> to vector<16x128xf32>
    %186 = arith.addf %184, %185 : vector<16x128xf32>
    %187 = arith.mulf %174, %186 : vector<16x128xf32>
    %188 = arith.addf %183, %187 : vector<16x128xf32>
    %189 = math.tanh %188 : vector<16x128xf32>
    %cst_66 = arith.constant 1.000000e+00 : f32
    %190 = vector.broadcast %cst_66 : f32 to vector<16x128xf32>
    %191 = arith.subf %190, %182 : vector<16x128xf32>
    %192 = arith.mulf %191, %189 : vector<16x128xf32>
    %193 = arith.mulf %182, %158 : vector<16x128xf32>
    %194 = arith.addf %192, %193 : vector<16x128xf32>
    %195 = arith.truncf %194 : vector<16x128xf32> to vector<16x128xbf16>
    %c0_67 = arith.constant 0 : index
    %c4_68 = arith.constant 4 : index
    %c0_69 = arith.constant 0 : index
    %c0_70 = arith.constant 0 : index
    %196 = vector.load %arg13[%c0_67, %c4_68, %c0_69, %c0_70] : memref<1x16x16x128xbf16, #tpu.memory_space<vmem>>, vector<1x1x16x128xbf16>
    %197 = vector.shape_cast %196 : vector<1x1x16x128xbf16> to vector<16x128xbf16>
    %198 = vector.shape_cast %195 : vector<16x128xbf16> to vector<1x1x16x128xbf16>
    tpu.vector_store %arg13[%c0_67, %c4_68, %c0_69, %c0_70], %198 {strides = array<i32>} : memref<1x16x16x128xbf16, #tpu.memory_space<vmem>>, vector<1x1x16x128xbf16>,
    %c5 = arith.constant 5 : index
    %c0_71 = arith.constant 0 : index
    %c0_72 = arith.constant 0 : index
    %199 = vector.load %arg12[%c5, %c0_71, %c0_72] : memref<16x16x384xf32, #tpu.memory_space<vmem>>, vector<1x16x384xf32>
    %200 = vector.shape_cast %199 : vector<1x16x384xf32> to vector<16x384xf32>
    %201 = arith.truncf %194 : vector<16x128xf32> to vector<16x128xbf16>
    %cst_73 = arith.constant dense<0.000000e+00> : vector<16x384xf32>
    %202 = tpu.matmul %201, %14, %cst_73 {dimension_numbers = #tpu.dot_dimension_numbers<[1], [0], [0], [1], [0, 0, 1, 1], [], []>} : vector<16x128xbf16>, vector<128x384xbf16>, vector<16x384xf32> -> vector<16x384xf32>
    %203 = vector.extract_strided_slice %200 {offsets = [0, 0], sizes = [16, 128], strides = [1, 1]} : vector<16x384xf32> to vector<16x128xf32>
    %204 = vector.extract_strided_slice %202 {offsets = [0, 0], sizes = [16, 128], strides = [1, 1]} : vector<16x384xf32> to vector<16x128xf32>
    %205 = arith.addf %203, %204 : vector<16x128xf32>
    %206 = arith.negf %205 : vector<16x128xf32>
    %207 = math.exp %206 : vector<16x128xf32>
    %cst_74 = arith.constant 1.000000e+00 : f32
    %208 = vector.broadcast %cst_74 : f32 to vector<16x128xf32>
    %209 = arith.addf %208, %207 : vector<16x128xf32>
    %210 = arith.divf %208, %209 : vector<16x128xf32>
    %211 = vector.extract_strided_slice %200 {offsets = [0, 128], sizes = [16, 128], strides = [1, 1]} : vector<16x384xf32> to vector<16x128xf32>
    %212 = vector.extract_strided_slice %202 {offsets = [0, 128], sizes = [16, 128], strides = [1, 1]} : vector<16x384xf32> to vector<16x128xf32>
    %213 = arith.addf %211, %212 : vector<16x128xf32>
    %214 = arith.negf %213 : vector<16x128xf32>
    %215 = math.exp %214 : vector<16x128xf32>
    %cst_75 = arith.constant 1.000000e+00 : f32
    %216 = vector.broadcast %cst_75 : f32 to vector<16x128xf32>
    %217 = arith.addf %216, %215 : vector<16x128xf32>
    %218 = arith.divf %216, %217 : vector<16x128xf32>
    %219 = vector.extract_strided_slice %200 {offsets = [0, 256], sizes = [16, 128], strides = [1, 1]} : vector<16x384xf32> to vector<16x128xf32>
    %220 = vector.extract_strided_slice %202 {offsets = [0, 256], sizes = [16, 128], strides = [1, 1]} : vector<16x384xf32> to vector<16x128xf32>
    %221 = vector.broadcast %16 : vector<1x128xf32> to vector<16x128xf32>
    %222 = arith.addf %220, %221 : vector<16x128xf32>
    %223 = arith.mulf %210, %222 : vector<16x128xf32>
    %224 = arith.addf %219, %223 : vector<16x128xf32>
    %225 = math.tanh %224 : vector<16x128xf32>
    %cst_76 = arith.constant 1.000000e+00 : f32
    %226 = vector.broadcast %cst_76 : f32 to vector<16x128xf32>
    %227 = arith.subf %226, %218 : vector<16x128xf32>
    %228 = arith.mulf %227, %225 : vector<16x128xf32>
    %229 = arith.mulf %218, %194 : vector<16x128xf32>
    %230 = arith.addf %228, %229 : vector<16x128xf32>
    %231 = arith.truncf %230 : vector<16x128xf32> to vector<16x128xbf16>
    %c0_77 = arith.constant 0 : index
    %c5_78 = arith.constant 5 : index
    %c0_79 = arith.constant 0 : index
    %c0_80 = arith.constant 0 : index
    %232 = vector.load %arg13[%c0_77, %c5_78, %c0_79, %c0_80] : memref<1x16x16x128xbf16, #tpu.memory_space<vmem>>, vector<1x1x16x128xbf16>
    %233 = vector.shape_cast %232 : vector<1x1x16x128xbf16> to vector<16x128xbf16>
    %234 = vector.shape_cast %231 : vector<16x128xbf16> to vector<1x1x16x128xbf16>
    tpu.vector_store %arg13[%c0_77, %c5_78, %c0_79, %c0_80], %234 {strides = array<i32>} : memref<1x16x16x128xbf16, #tpu.memory_space<vmem>>, vector<1x1x16x128xbf16>,
    %c6 = arith.constant 6 : index
    %c0_81 = arith.constant 0 : index
    %c0_82 = arith.constant 0 : index
    %235 = vector.load %arg12[%c6, %c0_81, %c0_82] : memref<16x16x384xf32, #tpu.memory_space<vmem>>, vector<1x16x384xf32>
    %236 = vector.shape_cast %235 : vector<1x16x384xf32> to vector<16x384xf32>
    %237 = arith.truncf %230 : vector<16x128xf32> to vector<16x128xbf16>
    %cst_83 = arith.constant dense<0.000000e+00> : vector<16x384xf32>
    %238 = tpu.matmul %237, %14, %cst_83 {dimension_numbers = #tpu.dot_dimension_numbers<[1], [0], [0], [1], [0, 0, 1, 1], [], []>} : vector<16x128xbf16>, vector<128x384xbf16>, vector<16x384xf32> -> vector<16x384xf32>
    %239 = vector.extract_strided_slice %236 {offsets = [0, 0], sizes = [16, 128], strides = [1, 1]} : vector<16x384xf32> to vector<16x128xf32>
    %240 = vector.extract_strided_slice %238 {offsets = [0, 0], sizes = [16, 128], strides = [1, 1]} : vector<16x384xf32> to vector<16x128xf32>
    %241 = arith.addf %239, %240 : vector<16x128xf32>
    %242 = arith.negf %241 : vector<16x128xf32>
    %243 = math.exp %242 : vector<16x128xf32>
    %cst_84 = arith.constant 1.000000e+00 : f32
    %244 = vector.broadcast %cst_84 : f32 to vector<16x128xf32>
    %245 = arith.addf %244, %243 : vector<16x128xf32>
    %246 = arith.divf %244, %245 : vector<16x128xf32>
    %247 = vector.extract_strided_slice %236 {offsets = [0, 128], sizes = [16, 128], strides = [1, 1]} : vector<16x384xf32> to vector<16x128xf32>
    %248 = vector.extract_strided_slice %238 {offsets = [0, 128], sizes = [16, 128], strides = [1, 1]} : vector<16x384xf32> to vector<16x128xf32>
    %249 = arith.addf %247, %248 : vector<16x128xf32>
    %250 = arith.negf %249 : vector<16x128xf32>
    %251 = math.exp %250 : vector<16x128xf32>
    %cst_85 = arith.constant 1.000000e+00 : f32
    %252 = vector.broadcast %cst_85 : f32 to vector<16x128xf32>
    %253 = arith.addf %252, %251 : vector<16x128xf32>
    %254 = arith.divf %252, %253 : vector<16x128xf32>
    %255 = vector.extract_strided_slice %236 {offsets = [0, 256], sizes = [16, 128], strides = [1, 1]} : vector<16x384xf32> to vector<16x128xf32>
    %256 = vector.extract_strided_slice %238 {offsets = [0, 256], sizes = [16, 128], strides = [1, 1]} : vector<16x384xf32> to vector<16x128xf32>
    %257 = vector.broadcast %16 : vector<1x128xf32> to vector<16x128xf32>
    %258 = arith.addf %256, %257 : vector<16x128xf32>
    %259 = arith.mulf %246, %258 : vector<16x128xf32>
    %260 = arith.addf %255, %259 : vector<16x128xf32>
    %261 = math.tanh %260 : vector<16x128xf32>
    %cst_86 = arith.constant 1.000000e+00 : f32
    %262 = vector.broadcast %cst_86 : f32 to vector<16x128xf32>
    %263 = arith.subf %262, %254 : vector<16x128xf32>
    %264 = arith.mulf %263, %261 : vector<16x128xf32>
    %265 = arith.mulf %254, %230 : vector<16x128xf32>
    %266 = arith.addf %264, %265 : vector<16x128xf32>
    %267 = arith.truncf %266 : vector<16x128xf32> to vector<16x128xbf16>
    %c0_87 = arith.constant 0 : index
    %c6_88 = arith.constant 6 : index
    %c0_89 = arith.constant 0 : index
    %c0_90 = arith.constant 0 : index
    %268 = vector.load %arg13[%c0_87, %c6_88, %c0_89, %c0_90] : memref<1x16x16x128xbf16, #tpu.memory_space<vmem>>, vector<1x1x16x128xbf16>
    %269 = vector.shape_cast %268 : vector<1x1x16x128xbf16> to vector<16x128xbf16>
    %270 = vector.shape_cast %267 : vector<16x128xbf16> to vector<1x1x16x128xbf16>
    tpu.vector_store %arg13[%c0_87, %c6_88, %c0_89, %c0_90], %270 {strides = array<i32>} : memref<1x16x16x128xbf16, #tpu.memory_space<vmem>>, vector<1x1x16x128xbf16>,
    %c7 = arith.constant 7 : index
    %c0_91 = arith.constant 0 : index
    %c0_92 = arith.constant 0 : index
    %271 = vector.load %arg12[%c7, %c0_91, %c0_92] : memref<16x16x384xf32, #tpu.memory_space<vmem>>, vector<1x16x384xf32>
    %272 = vector.shape_cast %271 : vector<1x16x384xf32> to vector<16x384xf32>
    %273 = arith.truncf %266 : vector<16x128xf32> to vector<16x128xbf16>
    %cst_93 = arith.constant dense<0.000000e+00> : vector<16x384xf32>
    %274 = tpu.matmul %273, %14, %cst_93 {dimension_numbers = #tpu.dot_dimension_numbers<[1], [0], [0], [1], [0, 0, 1, 1], [], []>} : vector<16x128xbf16>, vector<128x384xbf16>, vector<16x384xf32> -> vector<16x384xf32>
    %275 = vector.extract_strided_slice %272 {offsets = [0, 0], sizes = [16, 128], strides = [1, 1]} : vector<16x384xf32> to vector<16x128xf32>
    %276 = vector.extract_strided_slice %274 {offsets = [0, 0], sizes = [16, 128], strides = [1, 1]} : vector<16x384xf32> to vector<16x128xf32>
    %277 = arith.addf %275, %276 : vector<16x128xf32>
    %278 = arith.negf %277 : vector<16x128xf32>
    %279 = math.exp %278 : vector<16x128xf32>
    %cst_94 = arith.constant 1.000000e+00 : f32
    %280 = vector.broadcast %cst_94 : f32 to vector<16x128xf32>
    %281 = arith.addf %280, %279 : vector<16x128xf32>
    %282 = arith.divf %280, %281 : vector<16x128xf32>
    %283 = vector.extract_strided_slice %272 {offsets = [0, 128], sizes = [16, 128], strides = [1, 1]} : vector<16x384xf32> to vector<16x128xf32>
    %284 = vector.extract_strided_slice %274 {offsets = [0, 128], sizes = [16, 128], strides = [1, 1]} : vector<16x384xf32> to vector<16x128xf32>
    %285 = arith.addf %283, %284 : vector<16x128xf32>
    %286 = arith.negf %285 : vector<16x128xf32>
    %287 = math.exp %286 : vector<16x128xf32>
    %cst_95 = arith.constant 1.000000e+00 : f32
    %288 = vector.broadcast %cst_95 : f32 to vector<16x128xf32>
    %289 = arith.addf %288, %287 : vector<16x128xf32>
    %290 = arith.divf %288, %289 : vector<16x128xf32>
    %291 = vector.extract_strided_slice %272 {offsets = [0, 256], sizes = [16, 128], strides = [1, 1]} : vector<16x384xf32> to vector<16x128xf32>
    %292 = vector.extract_strided_slice %274 {offsets = [0, 256], sizes = [16, 128], strides = [1, 1]} : vector<16x384xf32> to vector<16x128xf32>
    %293 = vector.broadcast %16 : vector<1x128xf32> to vector<16x128xf32>
    %294 = arith.addf %292, %293 : vector<16x128xf32>
    %295 = arith.mulf %282, %294 : vector<16x128xf32>
    %296 = arith.addf %291, %295 : vector<16x128xf32>
    %297 = math.tanh %296 : vector<16x128xf32>
    %cst_96 = arith.constant 1.000000e+00 : f32
    %298 = vector.broadcast %cst_96 : f32 to vector<16x128xf32>
    %299 = arith.subf %298, %290 : vector<16x128xf32>
    %300 = arith.mulf %299, %297 : vector<16x128xf32>
    %301 = arith.mulf %290, %266 : vector<16x128xf32>
    %302 = arith.addf %300, %301 : vector<16x128xf32>
    %303 = arith.truncf %302 : vector<16x128xf32> to vector<16x128xbf16>
    %c0_97 = arith.constant 0 : index
    %c7_98 = arith.constant 7 : index
    %c0_99 = arith.constant 0 : index
    %c0_100 = arith.constant 0 : index
    %304 = vector.load %arg13[%c0_97, %c7_98, %c0_99, %c0_100] : memref<1x16x16x128xbf16, #tpu.memory_space<vmem>>, vector<1x1x16x128xbf16>
    %305 = vector.shape_cast %304 : vector<1x1x16x128xbf16> to vector<16x128xbf16>
    %306 = vector.shape_cast %303 : vector<16x128xbf16> to vector<1x1x16x128xbf16>
    tpu.vector_store %arg13[%c0_97, %c7_98, %c0_99, %c0_100], %306 {strides = array<i32>} : memref<1x16x16x128xbf16, #tpu.memory_space<vmem>>, vector<1x1x16x128xbf16>,
    %c8 = arith.constant 8 : index
    %c0_101 = arith.constant 0 : index
    %c0_102 = arith.constant 0 : index
    %307 = vector.load %arg12[%c8, %c0_101, %c0_102] : memref<16x16x384xf32, #tpu.memory_space<vmem>>, vector<1x16x384xf32>
    %308 = vector.shape_cast %307 : vector<1x16x384xf32> to vector<16x384xf32>
    %309 = arith.truncf %302 : vector<16x128xf32> to vector<16x128xbf16>
    %cst_103 = arith.constant dense<0.000000e+00> : vector<16x384xf32>
    %310 = tpu.matmul %309, %14, %cst_103 {dimension_numbers = #tpu.dot_dimension_numbers<[1], [0], [0], [1], [0, 0, 1, 1], [], []>} : vector<16x128xbf16>, vector<128x384xbf16>, vector<16x384xf32> -> vector<16x384xf32>
    %311 = vector.extract_strided_slice %308 {offsets = [0, 0], sizes = [16, 128], strides = [1, 1]} : vector<16x384xf32> to vector<16x128xf32>
    %312 = vector.extract_strided_slice %310 {offsets = [0, 0], sizes = [16, 128], strides = [1, 1]} : vector<16x384xf32> to vector<16x128xf32>
    %313 = arith.addf %311, %312 : vector<16x128xf32>
    %314 = arith.negf %313 : vector<16x128xf32>
    %315 = math.exp %314 : vector<16x128xf32>
    %cst_104 = arith.constant 1.000000e+00 : f32
    %316 = vector.broadcast %cst_104 : f32 to vector<16x128xf32>
    %317 = arith.addf %316, %315 : vector<16x128xf32>
    %318 = arith.divf %316, %317 : vector<16x128xf32>
    %319 = vector.extract_strided_slice %308 {offsets = [0, 128], sizes = [16, 128], strides = [1, 1]} : vector<16x384xf32> to vector<16x128xf32>
    %320 = vector.extract_strided_slice %310 {offsets = [0, 128], sizes = [16, 128], strides = [1, 1]} : vector<16x384xf32> to vector<16x128xf32>
    %321 = arith.addf %319, %320 : vector<16x128xf32>
    %322 = arith.negf %321 : vector<16x128xf32>
    %323 = math.exp %322 : vector<16x128xf32>
    %cst_105 = arith.constant 1.000000e+00 : f32
    %324 = vector.broadcast %cst_105 : f32 to vector<16x128xf32>
    %325 = arith.addf %324, %323 : vector<16x128xf32>
    %326 = arith.divf %324, %325 : vector<16x128xf32>
    %327 = vector.extract_strided_slice %308 {offsets = [0, 256], sizes = [16, 128], strides = [1, 1]} : vector<16x384xf32> to vector<16x128xf32>
    %328 = vector.extract_strided_slice %310 {offsets = [0, 256], sizes = [16, 128], strides = [1, 1]} : vector<16x384xf32> to vector<16x128xf32>
    %329 = vector.broadcast %16 : vector<1x128xf32> to vector<16x128xf32>
    %330 = arith.addf %328, %329 : vector<16x128xf32>
    %331 = arith.mulf %318, %330 : vector<16x128xf32>
    %332 = arith.addf %327, %331 : vector<16x128xf32>
    %333 = math.tanh %332 : vector<16x128xf32>
    %cst_106 = arith.constant 1.000000e+00 : f32
    %334 = vector.broadcast %cst_106 : f32 to vector<16x128xf32>
    %335 = arith.subf %334, %326 : vector<16x128xf32>
    %336 = arith.mulf %335, %333 : vector<16x128xf32>
    %337 = arith.mulf %326, %302 : vector<16x128xf32>
    %338 = arith.addf %336, %337 : vector<16x128xf32>
    %339 = arith.truncf %338 : vector<16x128xf32> to vector<16x128xbf16>
    %c0_107 = arith.constant 0 : index
    %c8_108 = arith.constant 8 : index
    %c0_109 = arith.constant 0 : index
    %c0_110 = arith.constant 0 : index
    %340 = vector.load %arg13[%c0_107, %c8_108, %c0_109, %c0_110] : memref<1x16x16x128xbf16, #tpu.memory_space<vmem>>, vector<1x1x16x128xbf16>
    %341 = vector.shape_cast %340 : vector<1x1x16x128xbf16> to vector<16x128xbf16>
    %342 = vector.shape_cast %339 : vector<16x128xbf16> to vector<1x1x16x128xbf16>
    tpu.vector_store %arg13[%c0_107, %c8_108, %c0_109, %c0_110], %342 {strides = array<i32>} : memref<1x16x16x128xbf16, #tpu.memory_space<vmem>>, vector<1x1x16x128xbf16>,
    %c9 = arith.constant 9 : index
    %c0_111 = arith.constant 0 : index
    %c0_112 = arith.constant 0 : index
    %343 = vector.load %arg12[%c9, %c0_111, %c0_112] : memref<16x16x384xf32, #tpu.memory_space<vmem>>, vector<1x16x384xf32>
    %344 = vector.shape_cast %343 : vector<1x16x384xf32> to vector<16x384xf32>
    %345 = arith.truncf %338 : vector<16x128xf32> to vector<16x128xbf16>
    %cst_113 = arith.constant dense<0.000000e+00> : vector<16x384xf32>
    %346 = tpu.matmul %345, %14, %cst_113 {dimension_numbers = #tpu.dot_dimension_numbers<[1], [0], [0], [1], [0, 0, 1, 1], [], []>} : vector<16x128xbf16>, vector<128x384xbf16>, vector<16x384xf32> -> vector<16x384xf32>
    %347 = vector.extract_strided_slice %344 {offsets = [0, 0], sizes = [16, 128], strides = [1, 1]} : vector<16x384xf32> to vector<16x128xf32>
    %348 = vector.extract_strided_slice %346 {offsets = [0, 0], sizes = [16, 128], strides = [1, 1]} : vector<16x384xf32> to vector<16x128xf32>
    %349 = arith.addf %347, %348 : vector<16x128xf32>
    %350 = arith.negf %349 : vector<16x128xf32>
    %351 = math.exp %350 : vector<16x128xf32>
    %cst_114 = arith.constant 1.000000e+00 : f32
    %352 = vector.broadcast %cst_114 : f32 to vector<16x128xf32>
    %353 = arith.addf %352, %351 : vector<16x128xf32>
    %354 = arith.divf %352, %353 : vector<16x128xf32>
    %355 = vector.extract_strided_slice %344 {offsets = [0, 128], sizes = [16, 128], strides = [1, 1]} : vector<16x384xf32> to vector<16x128xf32>
    %356 = vector.extract_strided_slice %346 {offsets = [0, 128], sizes = [16, 128], strides = [1, 1]} : vector<16x384xf32> to vector<16x128xf32>
    %357 = arith.addf %355, %356 : vector<16x128xf32>
    %358 = arith.negf %357 : vector<16x128xf32>
    %359 = math.exp %358 : vector<16x128xf32>
    %cst_115 = arith.constant 1.000000e+00 : f32
    %360 = vector.broadcast %cst_115 : f32 to vector<16x128xf32>
    %361 = arith.addf %360, %359 : vector<16x128xf32>
    %362 = arith.divf %360, %361 : vector<16x128xf32>
    %363 = vector.extract_strided_slice %344 {offsets = [0, 256], sizes = [16, 128], strides = [1, 1]} : vector<16x384xf32> to vector<16x128xf32>
    %364 = vector.extract_strided_slice %346 {offsets = [0, 256], sizes = [16, 128], strides = [1, 1]} : vector<16x384xf32> to vector<16x128xf32>
    %365 = vector.broadcast %16 : vector<1x128xf32> to vector<16x128xf32>
    %366 = arith.addf %364, %365 : vector<16x128xf32>
    %367 = arith.mulf %354, %366 : vector<16x128xf32>
    %368 = arith.addf %363, %367 : vector<16x128xf32>
    %369 = math.tanh %368 : vector<16x128xf32>
    %cst_116 = arith.constant 1.000000e+00 : f32
    %370 = vector.broadcast %cst_116 : f32 to vector<16x128xf32>
    %371 = arith.subf %370, %362 : vector<16x128xf32>
    %372 = arith.mulf %371, %369 : vector<16x128xf32>
    %373 = arith.mulf %362, %338 : vector<16x128xf32>
    %374 = arith.addf %372, %373 : vector<16x128xf32>
    %375 = arith.truncf %374 : vector<16x128xf32> to vector<16x128xbf16>
    %c0_117 = arith.constant 0 : index
    %c9_118 = arith.constant 9 : index
    %c0_119 = arith.constant 0 : index
    %c0_120 = arith.constant 0 : index
    %376 = vector.load %arg13[%c0_117, %c9_118, %c0_119, %c0_120] : memref<1x16x16x128xbf16, #tpu.memory_space<vmem>>, vector<1x1x16x128xbf16>
    %377 = vector.shape_cast %376 : vector<1x1x16x128xbf16> to vector<16x128xbf16>
    %378 = vector.shape_cast %375 : vector<16x128xbf16> to vector<1x1x16x128xbf16>
    tpu.vector_store %arg13[%c0_117, %c9_118, %c0_119, %c0_120], %378 {strides = array<i32>} : memref<1x16x16x128xbf16, #tpu.memory_space<vmem>>, vector<1x1x16x128xbf16>,
    %c10 = arith.constant 10 : index
    %c0_121 = arith.constant 0 : index
    %c0_122 = arith.constant 0 : index
    %379 = vector.load %arg12[%c10, %c0_121, %c0_122] : memref<16x16x384xf32, #tpu.memory_space<vmem>>, vector<1x16x384xf32>
    %380 = vector.shape_cast %379 : vector<1x16x384xf32> to vector<16x384xf32>
    %381 = arith.truncf %374 : vector<16x128xf32> to vector<16x128xbf16>
    %cst_123 = arith.constant dense<0.000000e+00> : vector<16x384xf32>
    %382 = tpu.matmul %381, %14, %cst_123 {dimension_numbers = #tpu.dot_dimension_numbers<[1], [0], [0], [1], [0, 0, 1, 1], [], []>} : vector<16x128xbf16>, vector<128x384xbf16>, vector<16x384xf32> -> vector<16x384xf32>
    %383 = vector.extract_strided_slice %380 {offsets = [0, 0], sizes = [16, 128], strides = [1, 1]} : vector<16x384xf32> to vector<16x128xf32>
    %384 = vector.extract_strided_slice %382 {offsets = [0, 0], sizes = [16, 128], strides = [1, 1]} : vector<16x384xf32> to vector<16x128xf32>
    %385 = arith.addf %383, %384 : vector<16x128xf32>
    %386 = arith.negf %385 : vector<16x128xf32>
    %387 = math.exp %386 : vector<16x128xf32>
    %cst_124 = arith.constant 1.000000e+00 : f32
    %388 = vector.broadcast %cst_124 : f32 to vector<16x128xf32>
    %389 = arith.addf %388, %387 : vector<16x128xf32>
    %390 = arith.divf %388, %389 : vector<16x128xf32>
    %391 = vector.extract_strided_slice %380 {offsets = [0, 128], sizes = [16, 128], strides = [1, 1]} : vector<16x384xf32> to vector<16x128xf32>
    %392 = vector.extract_strided_slice %382 {offsets = [0, 128], sizes = [16, 128], strides = [1, 1]} : vector<16x384xf32> to vector<16x128xf32>
    %393 = arith.addf %391, %392 : vector<16x128xf32>
    %394 = arith.negf %393 : vector<16x128xf32>
    %395 = math.exp %394 : vector<16x128xf32>
    %cst_125 = arith.constant 1.000000e+00 : f32
    %396 = vector.broadcast %cst_125 : f32 to vector<16x128xf32>
    %397 = arith.addf %396, %395 : vector<16x128xf32>
    %398 = arith.divf %396, %397 : vector<16x128xf32>
    %399 = vector.extract_strided_slice %380 {offsets = [0, 256], sizes = [16, 128], strides = [1, 1]} : vector<16x384xf32> to vector<16x128xf32>
    %400 = vector.extract_strided_slice %382 {offsets = [0, 256], sizes = [16, 128], strides = [1, 1]} : vector<16x384xf32> to vector<16x128xf32>
    %401 = vector.broadcast %16 : vector<1x128xf32> to vector<16x128xf32>
    %402 = arith.addf %400, %401 : vector<16x128xf32>
    %403 = arith.mulf %390, %402 : vector<16x128xf32>
    %404 = arith.addf %399, %403 : vector<16x128xf32>
    %405 = math.tanh %404 : vector<16x128xf32>
    %cst_126 = arith.constant 1.000000e+00 : f32
    %406 = vector.broadcast %cst_126 : f32 to vector<16x128xf32>
    %407 = arith.subf %406, %398 : vector<16x128xf32>
    %408 = arith.mulf %407, %405 : vector<16x128xf32>
    %409 = arith.mulf %398, %374 : vector<16x128xf32>
    %410 = arith.addf %408, %409 : vector<16x128xf32>
    %c16_i32 = arith.constant 16 : i32
    %411 = arith.muli %arg1, %c16_i32 : i32
    %c10_i32 = arith.constant 10 : i32
    %412 = arith.addi %411, %c10_i32 : i32
    %c10_i32_127 = arith.constant 10 : i32
    %413 = arith.cmpi slt, %412, %c10_i32_127 : i32
    %414 = arith.extui %413 : i1 to i32
    %415 = arith.sitofp %414 : i32 to f32
    %416 = arith.subf %410, %374 : vector<16x128xf32>
    %417 = vector.broadcast %415 : f32 to vector<16x128xf32>
    %418 = arith.mulf %417, %416 : vector<16x128xf32>
    %419 = arith.addf %374, %418 : vector<16x128xf32>
    %420 = arith.truncf %419 : vector<16x128xf32> to vector<16x128xbf16>
    %c0_128 = arith.constant 0 : index
    %c10_129 = arith.constant 10 : index
    %c0_130 = arith.constant 0 : index
    %c0_131 = arith.constant 0 : index
    %421 = vector.load %arg13[%c0_128, %c10_129, %c0_130, %c0_131] : memref<1x16x16x128xbf16, #tpu.memory_space<vmem>>, vector<1x1x16x128xbf16>
    %422 = vector.shape_cast %421 : vector<1x1x16x128xbf16> to vector<16x128xbf16>
    %423 = vector.shape_cast %420 : vector<16x128xbf16> to vector<1x1x16x128xbf16>
    tpu.vector_store %arg13[%c0_128, %c10_129, %c0_130, %c0_131], %423 {strides = array<i32>} : memref<1x16x16x128xbf16, #tpu.memory_space<vmem>>, vector<1x1x16x128xbf16>,
    %c11 = arith.constant 11 : index
    %c0_132 = arith.constant 0 : index
    %c0_133 = arith.constant 0 : index
    %424 = vector.load %arg12[%c11, %c0_132, %c0_133] : memref<16x16x384xf32, #tpu.memory_space<vmem>>, vector<1x16x384xf32>
    %425 = vector.shape_cast %424 : vector<1x16x384xf32> to vector<16x384xf32>
    %426 = arith.truncf %419 : vector<16x128xf32> to vector<16x128xbf16>
    %cst_134 = arith.constant dense<0.000000e+00> : vector<16x384xf32>
    %427 = tpu.matmul %426, %14, %cst_134 {dimension_numbers = #tpu.dot_dimension_numbers<[1], [0], [0], [1], [0, 0, 1, 1], [], []>} : vector<16x128xbf16>, vector<128x384xbf16>, vector<16x384xf32> -> vector<16x384xf32>
    %428 = vector.extract_strided_slice %425 {offsets = [0, 0], sizes = [16, 128], strides = [1, 1]} : vector<16x384xf32> to vector<16x128xf32>
    %429 = vector.extract_strided_slice %427 {offsets = [0, 0], sizes = [16, 128], strides = [1, 1]} : vector<16x384xf32> to vector<16x128xf32>
    %430 = arith.addf %428, %429 : vector<16x128xf32>
    %431 = arith.negf %430 : vector<16x128xf32>
    %432 = math.exp %431 : vector<16x128xf32>
    %cst_135 = arith.constant 1.000000e+00 : f32
    %433 = vector.broadcast %cst_135 : f32 to vector<16x128xf32>
    %434 = arith.addf %433, %432 : vector<16x128xf32>
    %435 = arith.divf %433, %434 : vector<16x128xf32>
    %436 = vector.extract_strided_slice %425 {offsets = [0, 128], sizes = [16, 128], strides = [1, 1]} : vector<16x384xf32> to vector<16x128xf32>
    %437 = vector.extract_strided_slice %427 {offsets = [0, 128], sizes = [16, 128], strides = [1, 1]} : vector<16x384xf32> to vector<16x128xf32>
    %438 = arith.addf %436, %437 : vector<16x128xf32>
    %439 = arith.negf %438 : vector<16x128xf32>
    %440 = math.exp %439 : vector<16x128xf32>
    %cst_136 = arith.constant 1.000000e+00 : f32
    %441 = vector.broadcast %cst_136 : f32 to vector<16x128xf32>
    %442 = arith.addf %441, %440 : vector<16x128xf32>
    %443 = arith.divf %441, %442 : vector<16x128xf32>
    %444 = vector.extract_strided_slice %425 {offsets = [0, 256], sizes = [16, 128], strides = [1, 1]} : vector<16x384xf32> to vector<16x128xf32>
    %445 = vector.extract_strided_slice %427 {offsets = [0, 256], sizes = [16, 128], strides = [1, 1]} : vector<16x384xf32> to vector<16x128xf32>
    %446 = vector.broadcast %16 : vector<1x128xf32> to vector<16x128xf32>
    %447 = arith.addf %445, %446 : vector<16x128xf32>
    %448 = arith.mulf %435, %447 : vector<16x128xf32>
    %449 = arith.addf %444, %448 : vector<16x128xf32>
    %450 = math.tanh %449 : vector<16x128xf32>
    %cst_137 = arith.constant 1.000000e+00 : f32
    %451 = vector.broadcast %cst_137 : f32 to vector<16x128xf32>
    %452 = arith.subf %451, %443 : vector<16x128xf32>
    %453 = arith.mulf %452, %450 : vector<16x128xf32>
    %454 = arith.mulf %443, %419 : vector<16x128xf32>
    %455 = arith.addf %453, %454 : vector<16x128xf32>
    %c16_i32_138 = arith.constant 16 : i32
    %456 = arith.muli %arg1, %c16_i32_138 : i32
    %c11_i32 = arith.constant 11 : i32
    %457 = arith.addi %456, %c11_i32 : i32
    %c10_i32_139 = arith.constant 10 : i32
    %458 = arith.cmpi slt, %457, %c10_i32_139 : i32
    %459 = arith.extui %458 : i1 to i32
    %460 = arith.sitofp %459 : i32 to f32
    %461 = arith.subf %455, %419 : vector<16x128xf32>
    %462 = vector.broadcast %460 : f32 to vector<16x128xf32>
    %463 = arith.mulf %462, %461 : vector<16x128xf32>
    %464 = arith.addf %419, %463 : vector<16x128xf32>
    %465 = arith.truncf %464 : vector<16x128xf32> to vector<16x128xbf16>
    %c0_140 = arith.constant 0 : index
    %c11_141 = arith.constant 11 : index
    %c0_142 = arith.constant 0 : index
    %c0_143 = arith.constant 0 : index
    %466 = vector.load %arg13[%c0_140, %c11_141, %c0_142, %c0_143] : memref<1x16x16x128xbf16, #tpu.memory_space<vmem>>, vector<1x1x16x128xbf16>
    %467 = vector.shape_cast %466 : vector<1x1x16x128xbf16> to vector<16x128xbf16>
    %468 = vector.shape_cast %465 : vector<16x128xbf16> to vector<1x1x16x128xbf16>
    tpu.vector_store %arg13[%c0_140, %c11_141, %c0_142, %c0_143], %468 {strides = array<i32>} : memref<1x16x16x128xbf16, #tpu.memory_space<vmem>>, vector<1x1x16x128xbf16>,
    %c12 = arith.constant 12 : index
    %c0_144 = arith.constant 0 : index
    %c0_145 = arith.constant 0 : index
    %469 = vector.load %arg12[%c12, %c0_144, %c0_145] : memref<16x16x384xf32, #tpu.memory_space<vmem>>, vector<1x16x384xf32>
    %470 = vector.shape_cast %469 : vector<1x16x384xf32> to vector<16x384xf32>
    %471 = arith.truncf %464 : vector<16x128xf32> to vector<16x128xbf16>
    %cst_146 = arith.constant dense<0.000000e+00> : vector<16x384xf32>
    %472 = tpu.matmul %471, %14, %cst_146 {dimension_numbers = #tpu.dot_dimension_numbers<[1], [0], [0], [1], [0, 0, 1, 1], [], []>} : vector<16x128xbf16>, vector<128x384xbf16>, vector<16x384xf32> -> vector<16x384xf32>
    %473 = vector.extract_strided_slice %470 {offsets = [0, 0], sizes = [16, 128], strides = [1, 1]} : vector<16x384xf32> to vector<16x128xf32>
    %474 = vector.extract_strided_slice %472 {offsets = [0, 0], sizes = [16, 128], strides = [1, 1]} : vector<16x384xf32> to vector<16x128xf32>
    %475 = arith.addf %473, %474 : vector<16x128xf32>
    %476 = arith.negf %475 : vector<16x128xf32>
    %477 = math.exp %476 : vector<16x128xf32>
    %cst_147 = arith.constant 1.000000e+00 : f32
    %478 = vector.broadcast %cst_147 : f32 to vector<16x128xf32>
    %479 = arith.addf %478, %477 : vector<16x128xf32>
    %480 = arith.divf %478, %479 : vector<16x128xf32>
    %481 = vector.extract_strided_slice %470 {offsets = [0, 128], sizes = [16, 128], strides = [1, 1]} : vector<16x384xf32> to vector<16x128xf32>
    %482 = vector.extract_strided_slice %472 {offsets = [0, 128], sizes = [16, 128], strides = [1, 1]} : vector<16x384xf32> to vector<16x128xf32>
    %483 = arith.addf %481, %482 : vector<16x128xf32>
    %484 = arith.negf %483 : vector<16x128xf32>
    %485 = math.exp %484 : vector<16x128xf32>
    %cst_148 = arith.constant 1.000000e+00 : f32
    %486 = vector.broadcast %cst_148 : f32 to vector<16x128xf32>
    %487 = arith.addf %486, %485 : vector<16x128xf32>
    %488 = arith.divf %486, %487 : vector<16x128xf32>
    %489 = vector.extract_strided_slice %470 {offsets = [0, 256], sizes = [16, 128], strides = [1, 1]} : vector<16x384xf32> to vector<16x128xf32>
    %490 = vector.extract_strided_slice %472 {offsets = [0, 256], sizes = [16, 128], strides = [1, 1]} : vector<16x384xf32> to vector<16x128xf32>
    %491 = vector.broadcast %16 : vector<1x128xf32> to vector<16x128xf32>
    %492 = arith.addf %490, %491 : vector<16x128xf32>
    %493 = arith.mulf %480, %492 : vector<16x128xf32>
    %494 = arith.addf %489, %493 : vector<16x128xf32>
    %495 = math.tanh %494 : vector<16x128xf32>
    %cst_149 = arith.constant 1.000000e+00 : f32
    %496 = vector.broadcast %cst_149 : f32 to vector<16x128xf32>
    %497 = arith.subf %496, %488 : vector<16x128xf32>
    %498 = arith.mulf %497, %495 : vector<16x128xf32>
    %499 = arith.mulf %488, %464 : vector<16x128xf32>
    %500 = arith.addf %498, %499 : vector<16x128xf32>
    %c16_i32_150 = arith.constant 16 : i32
    %501 = arith.muli %arg1, %c16_i32_150 : i32
    %c12_i32 = arith.constant 12 : i32
    %502 = arith.addi %501, %c12_i32 : i32
    %c10_i32_151 = arith.constant 10 : i32
    %503 = arith.cmpi slt, %502, %c10_i32_151 : i32
    %504 = arith.extui %503 : i1 to i32
    %505 = arith.sitofp %504 : i32 to f32
    %506 = arith.subf %500, %464 : vector<16x128xf32>
    %507 = vector.broadcast %505 : f32 to vector<16x128xf32>
    %508 = arith.mulf %507, %506 : vector<16x128xf32>
    %509 = arith.addf %464, %508 : vector<16x128xf32>
    %510 = arith.truncf %509 : vector<16x128xf32> to vector<16x128xbf16>
    %c0_152 = arith.constant 0 : index
    %c12_153 = arith.constant 12 : index
    %c0_154 = arith.constant 0 : index
    %c0_155 = arith.constant 0 : index
    %511 = vector.load %arg13[%c0_152, %c12_153, %c0_154, %c0_155] : memref<1x16x16x128xbf16, #tpu.memory_space<vmem>>, vector<1x1x16x128xbf16>
    %512 = vector.shape_cast %511 : vector<1x1x16x128xbf16> to vector<16x128xbf16>
    %513 = vector.shape_cast %510 : vector<16x128xbf16> to vector<1x1x16x128xbf16>
    tpu.vector_store %arg13[%c0_152, %c12_153, %c0_154, %c0_155], %513 {strides = array<i32>} : memref<1x16x16x128xbf16, #tpu.memory_space<vmem>>, vector<1x1x16x128xbf16>,
    %c13 = arith.constant 13 : index
    %c0_156 = arith.constant 0 : index
    %c0_157 = arith.constant 0 : index
    %514 = vector.load %arg12[%c13, %c0_156, %c0_157] : memref<16x16x384xf32, #tpu.memory_space<vmem>>, vector<1x16x384xf32>
    %515 = vector.shape_cast %514 : vector<1x16x384xf32> to vector<16x384xf32>
    %516 = arith.truncf %509 : vector<16x128xf32> to vector<16x128xbf16>
    %cst_158 = arith.constant dense<0.000000e+00> : vector<16x384xf32>
    %517 = tpu.matmul %516, %14, %cst_158 {dimension_numbers = #tpu.dot_dimension_numbers<[1], [0], [0], [1], [0, 0, 1, 1], [], []>} : vector<16x128xbf16>, vector<128x384xbf16>, vector<16x384xf32> -> vector<16x384xf32>
    %518 = vector.extract_strided_slice %515 {offsets = [0, 0], sizes = [16, 128], strides = [1, 1]} : vector<16x384xf32> to vector<16x128xf32>
    %519 = vector.extract_strided_slice %517 {offsets = [0, 0], sizes = [16, 128], strides = [1, 1]} : vector<16x384xf32> to vector<16x128xf32>
    %520 = arith.addf %518, %519 : vector<16x128xf32>
    %521 = arith.negf %520 : vector<16x128xf32>
    %522 = math.exp %521 : vector<16x128xf32>
    %cst_159 = arith.constant 1.000000e+00 : f32
    %523 = vector.broadcast %cst_159 : f32 to vector<16x128xf32>
    %524 = arith.addf %523, %522 : vector<16x128xf32>
    %525 = arith.divf %523, %524 : vector<16x128xf32>
    %526 = vector.extract_strided_slice %515 {offsets = [0, 128], sizes = [16, 128], strides = [1, 1]} : vector<16x384xf32> to vector<16x128xf32>
    %527 = vector.extract_strided_slice %517 {offsets = [0, 128], sizes = [16, 128], strides = [1, 1]} : vector<16x384xf32> to vector<16x128xf32>
    %528 = arith.addf %526, %527 : vector<16x128xf32>
    %529 = arith.negf %528 : vector<16x128xf32>
    %530 = math.exp %529 : vector<16x128xf32>
    %cst_160 = arith.constant 1.000000e+00 : f32
    %531 = vector.broadcast %cst_160 : f32 to vector<16x128xf32>
    %532 = arith.addf %531, %530 : vector<16x128xf32>
    %533 = arith.divf %531, %532 : vector<16x128xf32>
    %534 = vector.extract_strided_slice %515 {offsets = [0, 256], sizes = [16, 128], strides = [1, 1]} : vector<16x384xf32> to vector<16x128xf32>
    %535 = vector.extract_strided_slice %517 {offsets = [0, 256], sizes = [16, 128], strides = [1, 1]} : vector<16x384xf32> to vector<16x128xf32>
    %536 = vector.broadcast %16 : vector<1x128xf32> to vector<16x128xf32>
    %537 = arith.addf %535, %536 : vector<16x128xf32>
    %538 = arith.mulf %525, %537 : vector<16x128xf32>
    %539 = arith.addf %534, %538 : vector<16x128xf32>
    %540 = math.tanh %539 : vector<16x128xf32>
    %cst_161 = arith.constant 1.000000e+00 : f32
    %541 = vector.broadcast %cst_161 : f32 to vector<16x128xf32>
    %542 = arith.subf %541, %533 : vector<16x128xf32>
    %543 = arith.mulf %542, %540 : vector<16x128xf32>
    %544 = arith.mulf %533, %509 : vector<16x128xf32>
    %545 = arith.addf %543, %544 : vector<16x128xf32>
    %c16_i32_162 = arith.constant 16 : i32
    %546 = arith.muli %arg1, %c16_i32_162 : i32
    %c13_i32 = arith.constant 13 : i32
    %547 = arith.addi %546, %c13_i32 : i32
    %c10_i32_163 = arith.constant 10 : i32
    %548 = arith.cmpi slt, %547, %c10_i32_163 : i32
    %549 = arith.extui %548 : i1 to i32
    %550 = arith.sitofp %549 : i32 to f32
    %551 = arith.subf %545, %509 : vector<16x128xf32>
    %552 = vector.broadcast %550 : f32 to vector<16x128xf32>
    %553 = arith.mulf %552, %551 : vector<16x128xf32>
    %554 = arith.addf %509, %553 : vector<16x128xf32>
    %555 = arith.truncf %554 : vector<16x128xf32> to vector<16x128xbf16>
    %c0_164 = arith.constant 0 : index
    %c13_165 = arith.constant 13 : index
    %c0_166 = arith.constant 0 : index
    %c0_167 = arith.constant 0 : index
    %556 = vector.load %arg13[%c0_164, %c13_165, %c0_166, %c0_167] : memref<1x16x16x128xbf16, #tpu.memory_space<vmem>>, vector<1x1x16x128xbf16>
    %557 = vector.shape_cast %556 : vector<1x1x16x128xbf16> to vector<16x128xbf16>
    %558 = vector.shape_cast %555 : vector<16x128xbf16> to vector<1x1x16x128xbf16>
    tpu.vector_store %arg13[%c0_164, %c13_165, %c0_166, %c0_167], %558 {strides = array<i32>} : memref<1x16x16x128xbf16, #tpu.memory_space<vmem>>, vector<1x1x16x128xbf16>,
    %c14 = arith.constant 14 : index
    %c0_168 = arith.constant 0 : index
    %c0_169 = arith.constant 0 : index
    %559 = vector.load %arg12[%c14, %c0_168, %c0_169] : memref<16x16x384xf32, #tpu.memory_space<vmem>>, vector<1x16x384xf32>
    %560 = vector.shape_cast %559 : vector<1x16x384xf32> to vector<16x384xf32>
    %561 = arith.truncf %554 : vector<16x128xf32> to vector<16x128xbf16>
    %cst_170 = arith.constant dense<0.000000e+00> : vector<16x384xf32>
    %562 = tpu.matmul %561, %14, %cst_170 {dimension_numbers = #tpu.dot_dimension_numbers<[1], [0], [0], [1], [0, 0, 1, 1], [], []>} : vector<16x128xbf16>, vector<128x384xbf16>, vector<16x384xf32> -> vector<16x384xf32>
    %563 = vector.extract_strided_slice %560 {offsets = [0, 0], sizes = [16, 128], strides = [1, 1]} : vector<16x384xf32> to vector<16x128xf32>
    %564 = vector.extract_strided_slice %562 {offsets = [0, 0], sizes = [16, 128], strides = [1, 1]} : vector<16x384xf32> to vector<16x128xf32>
    %565 = arith.addf %563, %564 : vector<16x128xf32>
    %566 = arith.negf %565 : vector<16x128xf32>
    %567 = math.exp %566 : vector<16x128xf32>
    %cst_171 = arith.constant 1.000000e+00 : f32
    %568 = vector.broadcast %cst_171 : f32 to vector<16x128xf32>
    %569 = arith.addf %568, %567 : vector<16x128xf32>
    %570 = arith.divf %568, %569 : vector<16x128xf32>
    %571 = vector.extract_strided_slice %560 {offsets = [0, 128], sizes = [16, 128], strides = [1, 1]} : vector<16x384xf32> to vector<16x128xf32>
    %572 = vector.extract_strided_slice %562 {offsets = [0, 128], sizes = [16, 128], strides = [1, 1]} : vector<16x384xf32> to vector<16x128xf32>
    %573 = arith.addf %571, %572 : vector<16x128xf32>
    %574 = arith.negf %573 : vector<16x128xf32>
    %575 = math.exp %574 : vector<16x128xf32>
    %cst_172 = arith.constant 1.000000e+00 : f32
    %576 = vector.broadcast %cst_172 : f32 to vector<16x128xf32>
    %577 = arith.addf %576, %575 : vector<16x128xf32>
    %578 = arith.divf %576, %577 : vector<16x128xf32>
    %579 = vector.extract_strided_slice %560 {offsets = [0, 256], sizes = [16, 128], strides = [1, 1]} : vector<16x384xf32> to vector<16x128xf32>
    %580 = vector.extract_strided_slice %562 {offsets = [0, 256], sizes = [16, 128], strides = [1, 1]} : vector<16x384xf32> to vector<16x128xf32>
    %581 = vector.broadcast %16 : vector<1x128xf32> to vector<16x128xf32>
    %582 = arith.addf %580, %581 : vector<16x128xf32>
    %583 = arith.mulf %570, %582 : vector<16x128xf32>
    %584 = arith.addf %579, %583 : vector<16x128xf32>
    %585 = math.tanh %584 : vector<16x128xf32>
    %cst_173 = arith.constant 1.000000e+00 : f32
    %586 = vector.broadcast %cst_173 : f32 to vector<16x128xf32>
    %587 = arith.subf %586, %578 : vector<16x128xf32>
    %588 = arith.mulf %587, %585 : vector<16x128xf32>
    %589 = arith.mulf %578, %554 : vector<16x128xf32>
    %590 = arith.addf %588, %589 : vector<16x128xf32>
    %c16_i32_174 = arith.constant 16 : i32
    %591 = arith.muli %arg1, %c16_i32_174 : i32
    %c14_i32 = arith.constant 14 : i32
    %592 = arith.addi %591, %c14_i32 : i32
    %c10_i32_175 = arith.constant 10 : i32
    %593 = arith.cmpi slt, %592, %c10_i32_175 : i32
    %594 = arith.extui %593 : i1 to i32
    %595 = arith.sitofp %594 : i32 to f32
    %596 = arith.subf %590, %554 : vector<16x128xf32>
    %597 = vector.broadcast %595 : f32 to vector<16x128xf32>
    %598 = arith.mulf %597, %596 : vector<16x128xf32>
    %599 = arith.addf %554, %598 : vector<16x128xf32>
    %600 = arith.truncf %599 : vector<16x128xf32> to vector<16x128xbf16>
    %c0_176 = arith.constant 0 : index
    %c14_177 = arith.constant 14 : index
    %c0_178 = arith.constant 0 : index
    %c0_179 = arith.constant 0 : index
    %601 = vector.load %arg13[%c0_176, %c14_177, %c0_178, %c0_179] : memref<1x16x16x128xbf16, #tpu.memory_space<vmem>>, vector<1x1x16x128xbf16>
    %602 = vector.shape_cast %601 : vector<1x1x16x128xbf16> to vector<16x128xbf16>
    %603 = vector.shape_cast %600 : vector<16x128xbf16> to vector<1x1x16x128xbf16>
    tpu.vector_store %arg13[%c0_176, %c14_177, %c0_178, %c0_179], %603 {strides = array<i32>} : memref<1x16x16x128xbf16, #tpu.memory_space<vmem>>, vector<1x1x16x128xbf16>,
    %c15 = arith.constant 15 : index
    %c0_180 = arith.constant 0 : index
    %c0_181 = arith.constant 0 : index
    %604 = vector.load %arg12[%c15, %c0_180, %c0_181] : memref<16x16x384xf32, #tpu.memory_space<vmem>>, vector<1x16x384xf32>
    %605 = vector.shape_cast %604 : vector<1x16x384xf32> to vector<16x384xf32>
    %606 = arith.truncf %599 : vector<16x128xf32> to vector<16x128xbf16>
    %cst_182 = arith.constant dense<0.000000e+00> : vector<16x384xf32>
    %607 = tpu.matmul %606, %14, %cst_182 {dimension_numbers = #tpu.dot_dimension_numbers<[1], [0], [0], [1], [0, 0, 1, 1], [], []>} : vector<16x128xbf16>, vector<128x384xbf16>, vector<16x384xf32> -> vector<16x384xf32>
    %608 = vector.extract_strided_slice %605 {offsets = [0, 0], sizes = [16, 128], strides = [1, 1]} : vector<16x384xf32> to vector<16x128xf32>
    %609 = vector.extract_strided_slice %607 {offsets = [0, 0], sizes = [16, 128], strides = [1, 1]} : vector<16x384xf32> to vector<16x128xf32>
    %610 = arith.addf %608, %609 : vector<16x128xf32>
    %611 = arith.negf %610 : vector<16x128xf32>
    %612 = math.exp %611 : vector<16x128xf32>
    %cst_183 = arith.constant 1.000000e+00 : f32
    %613 = vector.broadcast %cst_183 : f32 to vector<16x128xf32>
    %614 = arith.addf %613, %612 : vector<16x128xf32>
    %615 = arith.divf %613, %614 : vector<16x128xf32>
    %616 = vector.extract_strided_slice %605 {offsets = [0, 128], sizes = [16, 128], strides = [1, 1]} : vector<16x384xf32> to vector<16x128xf32>
    %617 = vector.extract_strided_slice %607 {offsets = [0, 128], sizes = [16, 128], strides = [1, 1]} : vector<16x384xf32> to vector<16x128xf32>
    %618 = arith.addf %616, %617 : vector<16x128xf32>
    %619 = arith.negf %618 : vector<16x128xf32>
    %620 = math.exp %619 : vector<16x128xf32>
    %cst_184 = arith.constant 1.000000e+00 : f32
    %621 = vector.broadcast %cst_184 : f32 to vector<16x128xf32>
    %622 = arith.addf %621, %620 : vector<16x128xf32>
    %623 = arith.divf %621, %622 : vector<16x128xf32>
    %624 = vector.extract_strided_slice %605 {offsets = [0, 256], sizes = [16, 128], strides = [1, 1]} : vector<16x384xf32> to vector<16x128xf32>
    %625 = vector.extract_strided_slice %607 {offsets = [0, 256], sizes = [16, 128], strides = [1, 1]} : vector<16x384xf32> to vector<16x128xf32>
    %626 = vector.broadcast %16 : vector<1x128xf32> to vector<16x128xf32>
    %627 = arith.addf %625, %626 : vector<16x128xf32>
    %628 = arith.mulf %615, %627 : vector<16x128xf32>
    %629 = arith.addf %624, %628 : vector<16x128xf32>
    %630 = math.tanh %629 : vector<16x128xf32>
    %cst_185 = arith.constant 1.000000e+00 : f32
    %631 = vector.broadcast %cst_185 : f32 to vector<16x128xf32>
    %632 = arith.subf %631, %623 : vector<16x128xf32>
    %633 = arith.mulf %632, %630 : vector<16x128xf32>
    %634 = arith.mulf %623, %599 : vector<16x128xf32>
    %635 = arith.addf %633, %634 : vector<16x128xf32>
    %c16_i32_186 = arith.constant 16 : i32
    %636 = arith.muli %arg1, %c16_i32_186 : i32
    %c15_i32 = arith.constant 15 : i32
    %637 = arith.addi %636, %c15_i32 : i32
    %c10_i32_187 = arith.constant 10 : i32
    %638 = arith.cmpi slt, %637, %c10_i32_187 : i32
    %639 = arith.extui %638 : i1 to i32
    %640 = arith.sitofp %639 : i32 to f32
    %641 = arith.subf %635, %599 : vector<16x128xf32>
    %642 = vector.broadcast %640 : f32 to vector<16x128xf32>
    %643 = arith.mulf %642, %641 : vector<16x128xf32>
    %644 = arith.addf %599, %643 : vector<16x128xf32>
    %645 = arith.truncf %644 : vector<16x128xf32> to vector<16x128xbf16>
    %c0_188 = arith.constant 0 : index
    %c15_189 = arith.constant 15 : index
    %c0_190 = arith.constant 0 : index
    %c0_191 = arith.constant 0 : index
    %646 = vector.load %arg13[%c0_188, %c15_189, %c0_190, %c0_191] : memref<1x16x16x128xbf16, #tpu.memory_space<vmem>>, vector<1x1x16x128xbf16>
    %647 = vector.shape_cast %646 : vector<1x1x16x128xbf16> to vector<16x128xbf16>
    %648 = vector.shape_cast %645 : vector<16x128xbf16> to vector<1x1x16x128xbf16>
    tpu.vector_store %arg13[%c0_188, %c15_189, %c0_190, %c0_191], %648 {strides = array<i32>} : memref<1x16x16x128xbf16, #tpu.memory_space<vmem>>, vector<1x1x16x128xbf16>,
    %c0_192 = arith.constant 0 : index
    %c0_193 = arith.constant 0 : index
    %c0_194 = arith.constant 0 : index
    %649 = vector.load %arg11[%c0_192, %c0_193, %c0_194] : memref<2x16x128xf32, #tpu.memory_space<vmem>>, vector<1x16x128xf32>
    %650 = vector.shape_cast %649 : vector<1x16x128xf32> to vector<16x128xf32>
    %651 = vector.shape_cast %644 : vector<16x128xf32> to vector<1x16x128xf32>
    tpu.vector_store %arg11[%c0_192, %c0_193, %c0_194], %651 {strides = array<i32>} : memref<2x16x128xf32, #tpu.memory_space<vmem>>, vector<1x16x128xf32>,
    %c0_195 = arith.constant 0 : index
    %c0_196 = arith.constant 0 : index
    %c0_197 = arith.constant 0 : index
    %c0_198 = arith.constant 0 : index
    %652 = vector.load %arg13[%c0_195, %c0_196, %c0_197, %c0_198] : memref<1x16x16x128xbf16, #tpu.memory_space<vmem>>, vector<1x16x16x128xbf16>
    %653 = vector.shape_cast %652 : vector<1x16x16x128xbf16> to vector<16x16x128xbf16>
    %c0_199 = arith.constant 0 : index
    %c0_200 = arith.constant 0 : index
    %c0_201 = arith.constant 0 : index
    %654 = vector.load %arg4[%c0_199, %c0_200, %c0_201] : memref<1x128x384xbf16, #tpu.memory_space<vmem>>, vector<1x128x384xbf16>
    %655 = vector.shape_cast %654 : vector<1x128x384xbf16> to vector<128x384xbf16>
    %656 = vector.shape_cast %653 : vector<16x16x128xbf16> to vector<256x128xbf16>
    %cst_202 = arith.constant dense<0.000000e+00> : vector<256x384xf32>
    %657 = tpu.matmul %656, %655, %cst_202 {dimension_numbers = #tpu.dot_dimension_numbers<[1], [0], [0], [1], [0, 0, 1, 1], [], []>} : vector<256x128xbf16>, vector<128x384xbf16>, vector<256x384xf32> -> vector<256x384xf32>
    %c1_203 = arith.constant 1 : index
    %c0_204 = arith.constant 0 : index
    %c0_205 = arith.constant 0 : index
    %658 = vector.load %arg6[%c1_203, %c0_204, %c0_205] : memref<2x1x384xf32, #tpu.memory_space<vmem>>, vector<1x1x384xf32>
    %659 = vector.shape_cast %658 : vector<1x1x384xf32> to vector<1x384xf32>
    %660 = vector.broadcast %659 : vector<1x384xf32> to vector<256x384xf32>
    %661 = arith.addf %657, %660 : vector<256x384xf32>
    %662 = vector.shape_cast %661 : vector<256x384xf32> to vector<16x16x384xf32>
    %c0_206 = arith.constant 0 : index
    %c0_207 = arith.constant 0 : index
    %c0_208 = arith.constant 0 : index
    %663 = vector.load %arg12[%c0_206, %c0_207, %c0_208] : memref<16x16x384xf32, #tpu.memory_space<vmem>>, vector<16x16x384xf32>
    tpu.vector_store %arg12[%c0_206, %c0_207, %c0_208], %662 {strides = array<i32>} : memref<16x16x384xf32, #tpu.memory_space<vmem>>, vector<16x16x384xf32>,
    %c1_209 = arith.constant 1 : index
    %c0_210 = arith.constant 0 : index
    %c0_211 = arith.constant 0 : index
    %664 = vector.load %arg5[%c1_209, %c0_210, %c0_211] : memref<2x128x384xbf16, #tpu.memory_space<vmem>>, vector<1x128x384xbf16>
    %665 = vector.shape_cast %664 : vector<1x128x384xbf16> to vector<128x384xbf16>
    %c1_212 = arith.constant 1 : index
    %c0_213 = arith.constant 0 : index
    %c0_214 = arith.constant 0 : index
    %666 = vector.load %arg7[%c1_212, %c0_213, %c0_214] : memref<2x1x128xf32, #tpu.memory_space<vmem>>, vector<1x1x128xf32>
    %667 = vector.shape_cast %666 : vector<1x1x128xf32> to vector<1x128xf32>
    %c1_215 = arith.constant 1 : index
    %c0_216 = arith.constant 0 : index
    %c0_217 = arith.constant 0 : index
    %668 = vector.load %arg11[%c1_215, %c0_216, %c0_217] : memref<2x16x128xf32, #tpu.memory_space<vmem>>, vector<1x16x128xf32>
    %669 = vector.shape_cast %668 : vector<1x16x128xf32> to vector<16x128xf32>
    %c0_218 = arith.constant 0 : index
    %c0_219 = arith.constant 0 : index
    %c0_220 = arith.constant 0 : index
    %670 = vector.load %arg12[%c0_218, %c0_219, %c0_220] : memref<16x16x384xf32, #tpu.memory_space<vmem>>, vector<1x16x384xf32>
    %671 = vector.shape_cast %670 : vector<1x16x384xf32> to vector<16x384xf32>
    %672 = arith.truncf %669 : vector<16x128xf32> to vector<16x128xbf16>
    %cst_221 = arith.constant dense<0.000000e+00> : vector<16x384xf32>
    %673 = tpu.matmul %672, %665, %cst_221 {dimension_numbers = #tpu.dot_dimension_numbers<[1], [0], [0], [1], [0, 0, 1, 1], [], []>} : vector<16x128xbf16>, vector<128x384xbf16>, vector<16x384xf32> -> vector<16x384xf32>
    %674 = vector.extract_strided_slice %671 {offsets = [0, 0], sizes = [16, 128], strides = [1, 1]} : vector<16x384xf32> to vector<16x128xf32>
    %675 = vector.extract_strided_slice %673 {offsets = [0, 0], sizes = [16, 128], strides = [1, 1]} : vector<16x384xf32> to vector<16x128xf32>
    %676 = arith.addf %674, %675 : vector<16x128xf32>
    %677 = arith.negf %676 : vector<16x128xf32>
    %678 = math.exp %677 : vector<16x128xf32>
    %cst_222 = arith.constant 1.000000e+00 : f32
    %679 = vector.broadcast %cst_222 : f32 to vector<16x128xf32>
    %680 = arith.addf %679, %678 : vector<16x128xf32>
    %681 = arith.divf %679, %680 : vector<16x128xf32>
    %682 = vector.extract_strided_slice %671 {offsets = [0, 128], sizes = [16, 128], strides = [1, 1]} : vector<16x384xf32> to vector<16x128xf32>
    %683 = vector.extract_strided_slice %673 {offsets = [0, 128], sizes = [16, 128], strides = [1, 1]} : vector<16x384xf32> to vector<16x128xf32>
    %684 = arith.addf %682, %683 : vector<16x128xf32>
    %685 = arith.negf %684 : vector<16x128xf32>
    %686 = math.exp %685 : vector<16x128xf32>
    %cst_223 = arith.constant 1.000000e+00 : f32
    %687 = vector.broadcast %cst_223 : f32 to vector<16x128xf32>
    %688 = arith.addf %687, %686 : vector<16x128xf32>
    %689 = arith.divf %687, %688 : vector<16x128xf32>
    %690 = vector.extract_strided_slice %671 {offsets = [0, 256], sizes = [16, 128], strides = [1, 1]} : vector<16x384xf32> to vector<16x128xf32>
    %691 = vector.extract_strided_slice %673 {offsets = [0, 256], sizes = [16, 128], strides = [1, 1]} : vector<16x384xf32> to vector<16x128xf32>
    %692 = vector.broadcast %667 : vector<1x128xf32> to vector<16x128xf32>
    %693 = arith.addf %691, %692 : vector<16x128xf32>
    %694 = arith.mulf %681, %693 : vector<16x128xf32>
    %695 = arith.addf %690, %694 : vector<16x128xf32>
    %696 = math.tanh %695 : vector<16x128xf32>
    %cst_224 = arith.constant 1.000000e+00 : f32
    %697 = vector.broadcast %cst_224 : f32 to vector<16x128xf32>
    %698 = arith.subf %697, %689 : vector<16x128xf32>
    %699 = arith.mulf %698, %696 : vector<16x128xf32>
    %700 = arith.mulf %689, %669 : vector<16x128xf32>
    %701 = arith.addf %699, %700 : vector<16x128xf32>
    %c1_225 = arith.constant 1 : index
    %c0_226 = arith.constant 0 : index
    %c0_227 = arith.constant 0 : index
    %702 = vector.load %arg12[%c1_225, %c0_226, %c0_227] : memref<16x16x384xf32, #tpu.memory_space<vmem>>, vector<1x16x384xf32>
    %703 = vector.shape_cast %702 : vector<1x16x384xf32> to vector<16x384xf32>
    %704 = arith.truncf %701 : vector<16x128xf32> to vector<16x128xbf16>
    %cst_228 = arith.constant dense<0.000000e+00> : vector<16x384xf32>
    %705 = tpu.matmul %704, %665, %cst_228 {dimension_numbers = #tpu.dot_dimension_numbers<[1], [0], [0], [1], [0, 0, 1, 1], [], []>} : vector<16x128xbf16>, vector<128x384xbf16>, vector<16x384xf32> -> vector<16x384xf32>
    %706 = vector.extract_strided_slice %703 {offsets = [0, 0], sizes = [16, 128], strides = [1, 1]} : vector<16x384xf32> to vector<16x128xf32>
    %707 = vector.extract_strided_slice %705 {offsets = [0, 0], sizes = [16, 128], strides = [1, 1]} : vector<16x384xf32> to vector<16x128xf32>
    %708 = arith.addf %706, %707 : vector<16x128xf32>
    %709 = arith.negf %708 : vector<16x128xf32>
    %710 = math.exp %709 : vector<16x128xf32>
    %cst_229 = arith.constant 1.000000e+00 : f32
    %711 = vector.broadcast %cst_229 : f32 to vector<16x128xf32>
    %712 = arith.addf %711, %710 : vector<16x128xf32>
    %713 = arith.divf %711, %712 : vector<16x128xf32>
    %714 = vector.extract_strided_slice %703 {offsets = [0, 128], sizes = [16, 128], strides = [1, 1]} : vector<16x384xf32> to vector<16x128xf32>
    %715 = vector.extract_strided_slice %705 {offsets = [0, 128], sizes = [16, 128], strides = [1, 1]} : vector<16x384xf32> to vector<16x128xf32>
    %716 = arith.addf %714, %715 : vector<16x128xf32>
    %717 = arith.negf %716 : vector<16x128xf32>
    %718 = math.exp %717 : vector<16x128xf32>
    %cst_230 = arith.constant 1.000000e+00 : f32
    %719 = vector.broadcast %cst_230 : f32 to vector<16x128xf32>
    %720 = arith.addf %719, %718 : vector<16x128xf32>
    %721 = arith.divf %719, %720 : vector<16x128xf32>
    %722 = vector.extract_strided_slice %703 {offsets = [0, 256], sizes = [16, 128], strides = [1, 1]} : vector<16x384xf32> to vector<16x128xf32>
    %723 = vector.extract_strided_slice %705 {offsets = [0, 256], sizes = [16, 128], strides = [1, 1]} : vector<16x384xf32> to vector<16x128xf32>
    %724 = vector.broadcast %667 : vector<1x128xf32> to vector<16x128xf32>
    %725 = arith.addf %723, %724 : vector<16x128xf32>
    %726 = arith.mulf %713, %725 : vector<16x128xf32>
    %727 = arith.addf %722, %726 : vector<16x128xf32>
    %728 = math.tanh %727 : vector<16x128xf32>
    %cst_231 = arith.constant 1.000000e+00 : f32
    %729 = vector.broadcast %cst_231 : f32 to vector<16x128xf32>
    %730 = arith.subf %729, %721 : vector<16x128xf32>
    %731 = arith.mulf %730, %728 : vector<16x128xf32>
    %732 = arith.mulf %721, %701 : vector<16x128xf32>
    %733 = arith.addf %731, %732 : vector<16x128xf32>
    %c2_232 = arith.constant 2 : index
    %c0_233 = arith.constant 0 : index
    %c0_234 = arith.constant 0 : index
    %734 = vector.load %arg12[%c2_232, %c0_233, %c0_234] : memref<16x16x384xf32, #tpu.memory_space<vmem>>, vector<1x16x384xf32>
    %735 = vector.shape_cast %734 : vector<1x16x384xf32> to vector<16x384xf32>
    %736 = arith.truncf %733 : vector<16x128xf32> to vector<16x128xbf16>
    %cst_235 = arith.constant dense<0.000000e+00> : vector<16x384xf32>
    %737 = tpu.matmul %736, %665, %cst_235 {dimension_numbers = #tpu.dot_dimension_numbers<[1], [0], [0], [1], [0, 0, 1, 1], [], []>} : vector<16x128xbf16>, vector<128x384xbf16>, vector<16x384xf32> -> vector<16x384xf32>
    %738 = vector.extract_strided_slice %735 {offsets = [0, 0], sizes = [16, 128], strides = [1, 1]} : vector<16x384xf32> to vector<16x128xf32>
    %739 = vector.extract_strided_slice %737 {offsets = [0, 0], sizes = [16, 128], strides = [1, 1]} : vector<16x384xf32> to vector<16x128xf32>
    %740 = arith.addf %738, %739 : vector<16x128xf32>
    %741 = arith.negf %740 : vector<16x128xf32>
    %742 = math.exp %741 : vector<16x128xf32>
    %cst_236 = arith.constant 1.000000e+00 : f32
    %743 = vector.broadcast %cst_236 : f32 to vector<16x128xf32>
    %744 = arith.addf %743, %742 : vector<16x128xf32>
    %745 = arith.divf %743, %744 : vector<16x128xf32>
    %746 = vector.extract_strided_slice %735 {offsets = [0, 128], sizes = [16, 128], strides = [1, 1]} : vector<16x384xf32> to vector<16x128xf32>
    %747 = vector.extract_strided_slice %737 {offsets = [0, 128], sizes = [16, 128], strides = [1, 1]} : vector<16x384xf32> to vector<16x128xf32>
    %748 = arith.addf %746, %747 : vector<16x128xf32>
    %749 = arith.negf %748 : vector<16x128xf32>
    %750 = math.exp %749 : vector<16x128xf32>
    %cst_237 = arith.constant 1.000000e+00 : f32
    %751 = vector.broadcast %cst_237 : f32 to vector<16x128xf32>
    %752 = arith.addf %751, %750 : vector<16x128xf32>
    %753 = arith.divf %751, %752 : vector<16x128xf32>
    %754 = vector.extract_strided_slice %735 {offsets = [0, 256], sizes = [16, 128], strides = [1, 1]} : vector<16x384xf32> to vector<16x128xf32>
    %755 = vector.extract_strided_slice %737 {offsets = [0, 256], sizes = [16, 128], strides = [1, 1]} : vector<16x384xf32> to vector<16x128xf32>
    %756 = vector.broadcast %667 : vector<1x128xf32> to vector<16x128xf32>
    %757 = arith.addf %755, %756 : vector<16x128xf32>
    %758 = arith.mulf %745, %757 : vector<16x128xf32>
    %759 = arith.addf %754, %758 : vector<16x128xf32>
    %760 = math.tanh %759 : vector<16x128xf32>
    %cst_238 = arith.constant 1.000000e+00 : f32
    %761 = vector.broadcast %cst_238 : f32 to vector<16x128xf32>
    %762 = arith.subf %761, %753 : vector<16x128xf32>
    %763 = arith.mulf %762, %760 : vector<16x128xf32>
    %764 = arith.mulf %753, %733 : vector<16x128xf32>
    %765 = arith.addf %763, %764 : vector<16x128xf32>
    %c3_239 = arith.constant 3 : index
    %c0_240 = arith.constant 0 : index
    %c0_241 = arith.constant 0 : index
    %766 = vector.load %arg12[%c3_239, %c0_240, %c0_241] : memref<16x16x384xf32, #tpu.memory_space<vmem>>, vector<1x16x384xf32>
    %767 = vector.shape_cast %766 : vector<1x16x384xf32> to vector<16x384xf32>
    %768 = arith.truncf %765 : vector<16x128xf32> to vector<16x128xbf16>
    %cst_242 = arith.constant dense<0.000000e+00> : vector<16x384xf32>
    %769 = tpu.matmul %768, %665, %cst_242 {dimension_numbers = #tpu.dot_dimension_numbers<[1], [0], [0], [1], [0, 0, 1, 1], [], []>} : vector<16x128xbf16>, vector<128x384xbf16>, vector<16x384xf32> -> vector<16x384xf32>
    %770 = vector.extract_strided_slice %767 {offsets = [0, 0], sizes = [16, 128], strides = [1, 1]} : vector<16x384xf32> to vector<16x128xf32>
    %771 = vector.extract_strided_slice %769 {offsets = [0, 0], sizes = [16, 128], strides = [1, 1]} : vector<16x384xf32> to vector<16x128xf32>
    %772 = arith.addf %770, %771 : vector<16x128xf32>
    %773 = arith.negf %772 : vector<16x128xf32>
    %774 = math.exp %773 : vector<16x128xf32>
    %cst_243 = arith.constant 1.000000e+00 : f32
    %775 = vector.broadcast %cst_243 : f32 to vector<16x128xf32>
    %776 = arith.addf %775, %774 : vector<16x128xf32>
    %777 = arith.divf %775, %776 : vector<16x128xf32>
    %778 = vector.extract_strided_slice %767 {offsets = [0, 128], sizes = [16, 128], strides = [1, 1]} : vector<16x384xf32> to vector<16x128xf32>
    %779 = vector.extract_strided_slice %769 {offsets = [0, 128], sizes = [16, 128], strides = [1, 1]} : vector<16x384xf32> to vector<16x128xf32>
    %780 = arith.addf %778, %779 : vector<16x128xf32>
    %781 = arith.negf %780 : vector<16x128xf32>
    %782 = math.exp %781 : vector<16x128xf32>
    %cst_244 = arith.constant 1.000000e+00 : f32
    %783 = vector.broadcast %cst_244 : f32 to vector<16x128xf32>
    %784 = arith.addf %783, %782 : vector<16x128xf32>
    %785 = arith.divf %783, %784 : vector<16x128xf32>
    %786 = vector.extract_strided_slice %767 {offsets = [0, 256], sizes = [16, 128], strides = [1, 1]} : vector<16x384xf32> to vector<16x128xf32>
    %787 = vector.extract_strided_slice %769 {offsets = [0, 256], sizes = [16, 128], strides = [1, 1]} : vector<16x384xf32> to vector<16x128xf32>
    %788 = vector.broadcast %667 : vector<1x128xf32> to vector<16x128xf32>
    %789 = arith.addf %787, %788 : vector<16x128xf32>
    %790 = arith.mulf %777, %789 : vector<16x128xf32>
    %791 = arith.addf %786, %790 : vector<16x128xf32>
    %792 = math.tanh %791 : vector<16x128xf32>
    %cst_245 = arith.constant 1.000000e+00 : f32
    %793 = vector.broadcast %cst_245 : f32 to vector<16x128xf32>
    %794 = arith.subf %793, %785 : vector<16x128xf32>
    %795 = arith.mulf %794, %792 : vector<16x128xf32>
    %796 = arith.mulf %785, %765 : vector<16x128xf32>
    %797 = arith.addf %795, %796 : vector<16x128xf32>
    %c4_246 = arith.constant 4 : index
    %c0_247 = arith.constant 0 : index
    %c0_248 = arith.constant 0 : index
    %798 = vector.load %arg12[%c4_246, %c0_247, %c0_248] : memref<16x16x384xf32, #tpu.memory_space<vmem>>, vector<1x16x384xf32>
    %799 = vector.shape_cast %798 : vector<1x16x384xf32> to vector<16x384xf32>
    %800 = arith.truncf %797 : vector<16x128xf32> to vector<16x128xbf16>
    %cst_249 = arith.constant dense<0.000000e+00> : vector<16x384xf32>
    %801 = tpu.matmul %800, %665, %cst_249 {dimension_numbers = #tpu.dot_dimension_numbers<[1], [0], [0], [1], [0, 0, 1, 1], [], []>} : vector<16x128xbf16>, vector<128x384xbf16>, vector<16x384xf32> -> vector<16x384xf32>
    %802 = vector.extract_strided_slice %799 {offsets = [0, 0], sizes = [16, 128], strides = [1, 1]} : vector<16x384xf32> to vector<16x128xf32>
    %803 = vector.extract_strided_slice %801 {offsets = [0, 0], sizes = [16, 128], strides = [1, 1]} : vector<16x384xf32> to vector<16x128xf32>
    %804 = arith.addf %802, %803 : vector<16x128xf32>
    %805 = arith.negf %804 : vector<16x128xf32>
    %806 = math.exp %805 : vector<16x128xf32>
    %cst_250 = arith.constant 1.000000e+00 : f32
    %807 = vector.broadcast %cst_250 : f32 to vector<16x128xf32>
    %808 = arith.addf %807, %806 : vector<16x128xf32>
    %809 = arith.divf %807, %808 : vector<16x128xf32>
    %810 = vector.extract_strided_slice %799 {offsets = [0, 128], sizes = [16, 128], strides = [1, 1]} : vector<16x384xf32> to vector<16x128xf32>
    %811 = vector.extract_strided_slice %801 {offsets = [0, 128], sizes = [16, 128], strides = [1, 1]} : vector<16x384xf32> to vector<16x128xf32>
    %812 = arith.addf %810, %811 : vector<16x128xf32>
    %813 = arith.negf %812 : vector<16x128xf32>
    %814 = math.exp %813 : vector<16x128xf32>
    %cst_251 = arith.constant 1.000000e+00 : f32
    %815 = vector.broadcast %cst_251 : f32 to vector<16x128xf32>
    %816 = arith.addf %815, %814 : vector<16x128xf32>
    %817 = arith.divf %815, %816 : vector<16x128xf32>
    %818 = vector.extract_strided_slice %799 {offsets = [0, 256], sizes = [16, 128], strides = [1, 1]} : vector<16x384xf32> to vector<16x128xf32>
    %819 = vector.extract_strided_slice %801 {offsets = [0, 256], sizes = [16, 128], strides = [1, 1]} : vector<16x384xf32> to vector<16x128xf32>
    %820 = vector.broadcast %667 : vector<1x128xf32> to vector<16x128xf32>
    %821 = arith.addf %819, %820 : vector<16x128xf32>
    %822 = arith.mulf %809, %821 : vector<16x128xf32>
    %823 = arith.addf %818, %822 : vector<16x128xf32>
    %824 = math.tanh %823 : vector<16x128xf32>
    %cst_252 = arith.constant 1.000000e+00 : f32
    %825 = vector.broadcast %cst_252 : f32 to vector<16x128xf32>
    %826 = arith.subf %825, %817 : vector<16x128xf32>
    %827 = arith.mulf %826, %824 : vector<16x128xf32>
    %828 = arith.mulf %817, %797 : vector<16x128xf32>
    %829 = arith.addf %827, %828 : vector<16x128xf32>
    %c5_253 = arith.constant 5 : index
    %c0_254 = arith.constant 0 : index
    %c0_255 = arith.constant 0 : index
    %830 = vector.load %arg12[%c5_253, %c0_254, %c0_255] : memref<16x16x384xf32, #tpu.memory_space<vmem>>, vector<1x16x384xf32>
    %831 = vector.shape_cast %830 : vector<1x16x384xf32> to vector<16x384xf32>
    %832 = arith.truncf %829 : vector<16x128xf32> to vector<16x128xbf16>
    %cst_256 = arith.constant dense<0.000000e+00> : vector<16x384xf32>
    %833 = tpu.matmul %832, %665, %cst_256 {dimension_numbers = #tpu.dot_dimension_numbers<[1], [0], [0], [1], [0, 0, 1, 1], [], []>} : vector<16x128xbf16>, vector<128x384xbf16>, vector<16x384xf32> -> vector<16x384xf32>
    %834 = vector.extract_strided_slice %831 {offsets = [0, 0], sizes = [16, 128], strides = [1, 1]} : vector<16x384xf32> to vector<16x128xf32>
    %835 = vector.extract_strided_slice %833 {offsets = [0, 0], sizes = [16, 128], strides = [1, 1]} : vector<16x384xf32> to vector<16x128xf32>
    %836 = arith.addf %834, %835 : vector<16x128xf32>
    %837 = arith.negf %836 : vector<16x128xf32>
    %838 = math.exp %837 : vector<16x128xf32>
    %cst_257 = arith.constant 1.000000e+00 : f32
    %839 = vector.broadcast %cst_257 : f32 to vector<16x128xf32>
    %840 = arith.addf %839, %838 : vector<16x128xf32>
    %841 = arith.divf %839, %840 : vector<16x128xf32>
    %842 = vector.extract_strided_slice %831 {offsets = [0, 128], sizes = [16, 128], strides = [1, 1]} : vector<16x384xf32> to vector<16x128xf32>
    %843 = vector.extract_strided_slice %833 {offsets = [0, 128], sizes = [16, 128], strides = [1, 1]} : vector<16x384xf32> to vector<16x128xf32>
    %844 = arith.addf %842, %843 : vector<16x128xf32>
    %845 = arith.negf %844 : vector<16x128xf32>
    %846 = math.exp %845 : vector<16x128xf32>
    %cst_258 = arith.constant 1.000000e+00 : f32
    %847 = vector.broadcast %cst_258 : f32 to vector<16x128xf32>
    %848 = arith.addf %847, %846 : vector<16x128xf32>
    %849 = arith.divf %847, %848 : vector<16x128xf32>
    %850 = vector.extract_strided_slice %831 {offsets = [0, 256], sizes = [16, 128], strides = [1, 1]} : vector<16x384xf32> to vector<16x128xf32>
    %851 = vector.extract_strided_slice %833 {offsets = [0, 256], sizes = [16, 128], strides = [1, 1]} : vector<16x384xf32> to vector<16x128xf32>
    %852 = vector.broadcast %667 : vector<1x128xf32> to vector<16x128xf32>
    %853 = arith.addf %851, %852 : vector<16x128xf32>
    %854 = arith.mulf %841, %853 : vector<16x128xf32>
    %855 = arith.addf %850, %854 : vector<16x128xf32>
    %856 = math.tanh %855 : vector<16x128xf32>
    %cst_259 = arith.constant 1.000000e+00 : f32
    %857 = vector.broadcast %cst_259 : f32 to vector<16x128xf32>
    %858 = arith.subf %857, %849 : vector<16x128xf32>
    %859 = arith.mulf %858, %856 : vector<16x128xf32>
    %860 = arith.mulf %849, %829 : vector<16x128xf32>
    %861 = arith.addf %859, %860 : vector<16x128xf32>
    %c6_260 = arith.constant 6 : index
    %c0_261 = arith.constant 0 : index
    %c0_262 = arith.constant 0 : index
    %862 = vector.load %arg12[%c6_260, %c0_261, %c0_262] : memref<16x16x384xf32, #tpu.memory_space<vmem>>, vector<1x16x384xf32>
    %863 = vector.shape_cast %862 : vector<1x16x384xf32> to vector<16x384xf32>
    %864 = arith.truncf %861 : vector<16x128xf32> to vector<16x128xbf16>
    %cst_263 = arith.constant dense<0.000000e+00> : vector<16x384xf32>
    %865 = tpu.matmul %864, %665, %cst_263 {dimension_numbers = #tpu.dot_dimension_numbers<[1], [0], [0], [1], [0, 0, 1, 1], [], []>} : vector<16x128xbf16>, vector<128x384xbf16>, vector<16x384xf32> -> vector<16x384xf32>
    %866 = vector.extract_strided_slice %863 {offsets = [0, 0], sizes = [16, 128], strides = [1, 1]} : vector<16x384xf32> to vector<16x128xf32>
    %867 = vector.extract_strided_slice %865 {offsets = [0, 0], sizes = [16, 128], strides = [1, 1]} : vector<16x384xf32> to vector<16x128xf32>
    %868 = arith.addf %866, %867 : vector<16x128xf32>
    %869 = arith.negf %868 : vector<16x128xf32>
    %870 = math.exp %869 : vector<16x128xf32>
    %cst_264 = arith.constant 1.000000e+00 : f32
    %871 = vector.broadcast %cst_264 : f32 to vector<16x128xf32>
    %872 = arith.addf %871, %870 : vector<16x128xf32>
    %873 = arith.divf %871, %872 : vector<16x128xf32>
    %874 = vector.extract_strided_slice %863 {offsets = [0, 128], sizes = [16, 128], strides = [1, 1]} : vector<16x384xf32> to vector<16x128xf32>
    %875 = vector.extract_strided_slice %865 {offsets = [0, 128], sizes = [16, 128], strides = [1, 1]} : vector<16x384xf32> to vector<16x128xf32>
    %876 = arith.addf %874, %875 : vector<16x128xf32>
    %877 = arith.negf %876 : vector<16x128xf32>
    %878 = math.exp %877 : vector<16x128xf32>
    %cst_265 = arith.constant 1.000000e+00 : f32
    %879 = vector.broadcast %cst_265 : f32 to vector<16x128xf32>
    %880 = arith.addf %879, %878 : vector<16x128xf32>
    %881 = arith.divf %879, %880 : vector<16x128xf32>
    %882 = vector.extract_strided_slice %863 {offsets = [0, 256], sizes = [16, 128], strides = [1, 1]} : vector<16x384xf32> to vector<16x128xf32>
    %883 = vector.extract_strided_slice %865 {offsets = [0, 256], sizes = [16, 128], strides = [1, 1]} : vector<16x384xf32> to vector<16x128xf32>
    %884 = vector.broadcast %667 : vector<1x128xf32> to vector<16x128xf32>
    %885 = arith.addf %883, %884 : vector<16x128xf32>
    %886 = arith.mulf %873, %885 : vector<16x128xf32>
    %887 = arith.addf %882, %886 : vector<16x128xf32>
    %888 = math.tanh %887 : vector<16x128xf32>
    %cst_266 = arith.constant 1.000000e+00 : f32
    %889 = vector.broadcast %cst_266 : f32 to vector<16x128xf32>
    %890 = arith.subf %889, %881 : vector<16x128xf32>
    %891 = arith.mulf %890, %888 : vector<16x128xf32>
    %892 = arith.mulf %881, %861 : vector<16x128xf32>
    %893 = arith.addf %891, %892 : vector<16x128xf32>
    %c7_267 = arith.constant 7 : index
    %c0_268 = arith.constant 0 : index
    %c0_269 = arith.constant 0 : index
    %894 = vector.load %arg12[%c7_267, %c0_268, %c0_269] : memref<16x16x384xf32, #tpu.memory_space<vmem>>, vector<1x16x384xf32>
    %895 = vector.shape_cast %894 : vector<1x16x384xf32> to vector<16x384xf32>
    %896 = arith.truncf %893 : vector<16x128xf32> to vector<16x128xbf16>
    %cst_270 = arith.constant dense<0.000000e+00> : vector<16x384xf32>
    %897 = tpu.matmul %896, %665, %cst_270 {dimension_numbers = #tpu.dot_dimension_numbers<[1], [0], [0], [1], [0, 0, 1, 1], [], []>} : vector<16x128xbf16>, vector<128x384xbf16>, vector<16x384xf32> -> vector<16x384xf32>
    %898 = vector.extract_strided_slice %895 {offsets = [0, 0], sizes = [16, 128], strides = [1, 1]} : vector<16x384xf32> to vector<16x128xf32>
    %899 = vector.extract_strided_slice %897 {offsets = [0, 0], sizes = [16, 128], strides = [1, 1]} : vector<16x384xf32> to vector<16x128xf32>
    %900 = arith.addf %898, %899 : vector<16x128xf32>
    %901 = arith.negf %900 : vector<16x128xf32>
    %902 = math.exp %901 : vector<16x128xf32>
    %cst_271 = arith.constant 1.000000e+00 : f32
    %903 = vector.broadcast %cst_271 : f32 to vector<16x128xf32>
    %904 = arith.addf %903, %902 : vector<16x128xf32>
    %905 = arith.divf %903, %904 : vector<16x128xf32>
    %906 = vector.extract_strided_slice %895 {offsets = [0, 128], sizes = [16, 128], strides = [1, 1]} : vector<16x384xf32> to vector<16x128xf32>
    %907 = vector.extract_strided_slice %897 {offsets = [0, 128], sizes = [16, 128], strides = [1, 1]} : vector<16x384xf32> to vector<16x128xf32>
    %908 = arith.addf %906, %907 : vector<16x128xf32>
    %909 = arith.negf %908 : vector<16x128xf32>
    %910 = math.exp %909 : vector<16x128xf32>
    %cst_272 = arith.constant 1.000000e+00 : f32
    %911 = vector.broadcast %cst_272 : f32 to vector<16x128xf32>
    %912 = arith.addf %911, %910 : vector<16x128xf32>
    %913 = arith.divf %911, %912 : vector<16x128xf32>
    %914 = vector.extract_strided_slice %895 {offsets = [0, 256], sizes = [16, 128], strides = [1, 1]} : vector<16x384xf32> to vector<16x128xf32>
    %915 = vector.extract_strided_slice %897 {offsets = [0, 256], sizes = [16, 128], strides = [1, 1]} : vector<16x384xf32> to vector<16x128xf32>
    %916 = vector.broadcast %667 : vector<1x128xf32> to vector<16x128xf32>
    %917 = arith.addf %915, %916 : vector<16x128xf32>
    %918 = arith.mulf %905, %917 : vector<16x128xf32>
    %919 = arith.addf %914, %918 : vector<16x128xf32>
    %920 = math.tanh %919 : vector<16x128xf32>
    %cst_273 = arith.constant 1.000000e+00 : f32
    %921 = vector.broadcast %cst_273 : f32 to vector<16x128xf32>
    %922 = arith.subf %921, %913 : vector<16x128xf32>
    %923 = arith.mulf %922, %920 : vector<16x128xf32>
    %924 = arith.mulf %913, %893 : vector<16x128xf32>
    %925 = arith.addf %923, %924 : vector<16x128xf32>
    %c8_274 = arith.constant 8 : index
    %c0_275 = arith.constant 0 : index
    %c0_276 = arith.constant 0 : index
    %926 = vector.load %arg12[%c8_274, %c0_275, %c0_276] : memref<16x16x384xf32, #tpu.memory_space<vmem>>, vector<1x16x384xf32>
    %927 = vector.shape_cast %926 : vector<1x16x384xf32> to vector<16x384xf32>
    %928 = arith.truncf %925 : vector<16x128xf32> to vector<16x128xbf16>
    %cst_277 = arith.constant dense<0.000000e+00> : vector<16x384xf32>
    %929 = tpu.matmul %928, %665, %cst_277 {dimension_numbers = #tpu.dot_dimension_numbers<[1], [0], [0], [1], [0, 0, 1, 1], [], []>} : vector<16x128xbf16>, vector<128x384xbf16>, vector<16x384xf32> -> vector<16x384xf32>
    %930 = vector.extract_strided_slice %927 {offsets = [0, 0], sizes = [16, 128], strides = [1, 1]} : vector<16x384xf32> to vector<16x128xf32>
    %931 = vector.extract_strided_slice %929 {offsets = [0, 0], sizes = [16, 128], strides = [1, 1]} : vector<16x384xf32> to vector<16x128xf32>
    %932 = arith.addf %930, %931 : vector<16x128xf32>
    %933 = arith.negf %932 : vector<16x128xf32>
    %934 = math.exp %933 : vector<16x128xf32>
    %cst_278 = arith.constant 1.000000e+00 : f32
    %935 = vector.broadcast %cst_278 : f32 to vector<16x128xf32>
    %936 = arith.addf %935, %934 : vector<16x128xf32>
    %937 = arith.divf %935, %936 : vector<16x128xf32>
    %938 = vector.extract_strided_slice %927 {offsets = [0, 128], sizes = [16, 128], strides = [1, 1]} : vector<16x384xf32> to vector<16x128xf32>
    %939 = vector.extract_strided_slice %929 {offsets = [0, 128], sizes = [16, 128], strides = [1, 1]} : vector<16x384xf32> to vector<16x128xf32>
    %940 = arith.addf %938, %939 : vector<16x128xf32>
    %941 = arith.negf %940 : vector<16x128xf32>
    %942 = math.exp %941 : vector<16x128xf32>
    %cst_279 = arith.constant 1.000000e+00 : f32
    %943 = vector.broadcast %cst_279 : f32 to vector<16x128xf32>
    %944 = arith.addf %943, %942 : vector<16x128xf32>
    %945 = arith.divf %943, %944 : vector<16x128xf32>
    %946 = vector.extract_strided_slice %927 {offsets = [0, 256], sizes = [16, 128], strides = [1, 1]} : vector<16x384xf32> to vector<16x128xf32>
    %947 = vector.extract_strided_slice %929 {offsets = [0, 256], sizes = [16, 128], strides = [1, 1]} : vector<16x384xf32> to vector<16x128xf32>
    %948 = vector.broadcast %667 : vector<1x128xf32> to vector<16x128xf32>
    %949 = arith.addf %947, %948 : vector<16x128xf32>
    %950 = arith.mulf %937, %949 : vector<16x128xf32>
    %951 = arith.addf %946, %950 : vector<16x128xf32>
    %952 = math.tanh %951 : vector<16x128xf32>
    %cst_280 = arith.constant 1.000000e+00 : f32
    %953 = vector.broadcast %cst_280 : f32 to vector<16x128xf32>
    %954 = arith.subf %953, %945 : vector<16x128xf32>
    %955 = arith.mulf %954, %952 : vector<16x128xf32>
    %956 = arith.mulf %945, %925 : vector<16x128xf32>
    %957 = arith.addf %955, %956 : vector<16x128xf32>
    %c9_281 = arith.constant 9 : index
    %c0_282 = arith.constant 0 : index
    %c0_283 = arith.constant 0 : index
    %958 = vector.load %arg12[%c9_281, %c0_282, %c0_283] : memref<16x16x384xf32, #tpu.memory_space<vmem>>, vector<1x16x384xf32>
    %959 = vector.shape_cast %958 : vector<1x16x384xf32> to vector<16x384xf32>
    %960 = arith.truncf %957 : vector<16x128xf32> to vector<16x128xbf16>
    %cst_284 = arith.constant dense<0.000000e+00> : vector<16x384xf32>
    %961 = tpu.matmul %960, %665, %cst_284 {dimension_numbers = #tpu.dot_dimension_numbers<[1], [0], [0], [1], [0, 0, 1, 1], [], []>} : vector<16x128xbf16>, vector<128x384xbf16>, vector<16x384xf32> -> vector<16x384xf32>
    %962 = vector.extract_strided_slice %959 {offsets = [0, 0], sizes = [16, 128], strides = [1, 1]} : vector<16x384xf32> to vector<16x128xf32>
    %963 = vector.extract_strided_slice %961 {offsets = [0, 0], sizes = [16, 128], strides = [1, 1]} : vector<16x384xf32> to vector<16x128xf32>
    %964 = arith.addf %962, %963 : vector<16x128xf32>
    %965 = arith.negf %964 : vector<16x128xf32>
    %966 = math.exp %965 : vector<16x128xf32>
    %cst_285 = arith.constant 1.000000e+00 : f32
    %967 = vector.broadcast %cst_285 : f32 to vector<16x128xf32>
    %968 = arith.addf %967, %966 : vector<16x128xf32>
    %969 = arith.divf %967, %968 : vector<16x128xf32>
    %970 = vector.extract_strided_slice %959 {offsets = [0, 128], sizes = [16, 128], strides = [1, 1]} : vector<16x384xf32> to vector<16x128xf32>
    %971 = vector.extract_strided_slice %961 {offsets = [0, 128], sizes = [16, 128], strides = [1, 1]} : vector<16x384xf32> to vector<16x128xf32>
    %972 = arith.addf %970, %971 : vector<16x128xf32>
    %973 = arith.negf %972 : vector<16x128xf32>
    %974 = math.exp %973 : vector<16x128xf32>
    %cst_286 = arith.constant 1.000000e+00 : f32
    %975 = vector.broadcast %cst_286 : f32 to vector<16x128xf32>
    %976 = arith.addf %975, %974 : vector<16x128xf32>
    %977 = arith.divf %975, %976 : vector<16x128xf32>
    %978 = vector.extract_strided_slice %959 {offsets = [0, 256], sizes = [16, 128], strides = [1, 1]} : vector<16x384xf32> to vector<16x128xf32>
    %979 = vector.extract_strided_slice %961 {offsets = [0, 256], sizes = [16, 128], strides = [1, 1]} : vector<16x384xf32> to vector<16x128xf32>
    %980 = vector.broadcast %667 : vector<1x128xf32> to vector<16x128xf32>
    %981 = arith.addf %979, %980 : vector<16x128xf32>
    %982 = arith.mulf %969, %981 : vector<16x128xf32>
    %983 = arith.addf %978, %982 : vector<16x128xf32>
    %984 = math.tanh %983 : vector<16x128xf32>
    %cst_287 = arith.constant 1.000000e+00 : f32
    %985 = vector.broadcast %cst_287 : f32 to vector<16x128xf32>
    %986 = arith.subf %985, %977 : vector<16x128xf32>
    %987 = arith.mulf %986, %984 : vector<16x128xf32>
    %988 = arith.mulf %977, %957 : vector<16x128xf32>
    %989 = arith.addf %987, %988 : vector<16x128xf32>
    %c10_288 = arith.constant 10 : index
    %c0_289 = arith.constant 0 : index
    %c0_290 = arith.constant 0 : index
    %990 = vector.load %arg12[%c10_288, %c0_289, %c0_290] : memref<16x16x384xf32, #tpu.memory_space<vmem>>, vector<1x16x384xf32>
    %991 = vector.shape_cast %990 : vector<1x16x384xf32> to vector<16x384xf32>
    %992 = arith.truncf %989 : vector<16x128xf32> to vector<16x128xbf16>
    %cst_291 = arith.constant dense<0.000000e+00> : vector<16x384xf32>
    %993 = tpu.matmul %992, %665, %cst_291 {dimension_numbers = #tpu.dot_dimension_numbers<[1], [0], [0], [1], [0, 0, 1, 1], [], []>} : vector<16x128xbf16>, vector<128x384xbf16>, vector<16x384xf32> -> vector<16x384xf32>
    %994 = vector.extract_strided_slice %991 {offsets = [0, 0], sizes = [16, 128], strides = [1, 1]} : vector<16x384xf32> to vector<16x128xf32>
    %995 = vector.extract_strided_slice %993 {offsets = [0, 0], sizes = [16, 128], strides = [1, 1]} : vector<16x384xf32> to vector<16x128xf32>
    %996 = arith.addf %994, %995 : vector<16x128xf32>
    %997 = arith.negf %996 : vector<16x128xf32>
    %998 = math.exp %997 : vector<16x128xf32>
    %cst_292 = arith.constant 1.000000e+00 : f32
    %999 = vector.broadcast %cst_292 : f32 to vector<16x128xf32>
    %1000 = arith.addf %999, %998 : vector<16x128xf32>
    %1001 = arith.divf %999, %1000 : vector<16x128xf32>
    %1002 = vector.extract_strided_slice %991 {offsets = [0, 128], sizes = [16, 128], strides = [1, 1]} : vector<16x384xf32> to vector<16x128xf32>
    %1003 = vector.extract_strided_slice %993 {offsets = [0, 128], sizes = [16, 128], strides = [1, 1]} : vector<16x384xf32> to vector<16x128xf32>
    %1004 = arith.addf %1002, %1003 : vector<16x128xf32>
    %1005 = arith.negf %1004 : vector<16x128xf32>
    %1006 = math.exp %1005 : vector<16x128xf32>
    %cst_293 = arith.constant 1.000000e+00 : f32
    %1007 = vector.broadcast %cst_293 : f32 to vector<16x128xf32>
    %1008 = arith.addf %1007, %1006 : vector<16x128xf32>
    %1009 = arith.divf %1007, %1008 : vector<16x128xf32>
    %1010 = vector.extract_strided_slice %991 {offsets = [0, 256], sizes = [16, 128], strides = [1, 1]} : vector<16x384xf32> to vector<16x128xf32>
    %1011 = vector.extract_strided_slice %993 {offsets = [0, 256], sizes = [16, 128], strides = [1, 1]} : vector<16x384xf32> to vector<16x128xf32>
    %1012 = vector.broadcast %667 : vector<1x128xf32> to vector<16x128xf32>
    %1013 = arith.addf %1011, %1012 : vector<16x128xf32>
    %1014 = arith.mulf %1001, %1013 : vector<16x128xf32>
    %1015 = arith.addf %1010, %1014 : vector<16x128xf32>
    %1016 = math.tanh %1015 : vector<16x128xf32>
    %cst_294 = arith.constant 1.000000e+00 : f32
    %1017 = vector.broadcast %cst_294 : f32 to vector<16x128xf32>
    %1018 = arith.subf %1017, %1009 : vector<16x128xf32>
    %1019 = arith.mulf %1018, %1016 : vector<16x128xf32>
    %1020 = arith.mulf %1009, %989 : vector<16x128xf32>
    %1021 = arith.addf %1019, %1020 : vector<16x128xf32>
    %c16_i32_295 = arith.constant 16 : i32
    %1022 = arith.muli %arg1, %c16_i32_295 : i32
    %c10_i32_296 = arith.constant 10 : i32
    %1023 = arith.addi %1022, %c10_i32_296 : i32
    %c10_i32_297 = arith.constant 10 : i32
    %1024 = arith.cmpi slt, %1023, %c10_i32_297 : i32
    %1025 = arith.extui %1024 : i1 to i32
    %1026 = arith.sitofp %1025 : i32 to f32
    %1027 = arith.subf %1021, %989 : vector<16x128xf32>
    %1028 = vector.broadcast %1026 : f32 to vector<16x128xf32>
    %1029 = arith.mulf %1028, %1027 : vector<16x128xf32>
    %1030 = arith.addf %989, %1029 : vector<16x128xf32>
    %c11_298 = arith.constant 11 : index
    %c0_299 = arith.constant 0 : index
    %c0_300 = arith.constant 0 : index
    %1031 = vector.load %arg12[%c11_298, %c0_299, %c0_300] : memref<16x16x384xf32, #tpu.memory_space<vmem>>, vector<1x16x384xf32>
    %1032 = vector.shape_cast %1031 : vector<1x16x384xf32> to vector<16x384xf32>
    %1033 = arith.truncf %1030 : vector<16x128xf32> to vector<16x128xbf16>
    %cst_301 = arith.constant dense<0.000000e+00> : vector<16x384xf32>
    %1034 = tpu.matmul %1033, %665, %cst_301 {dimension_numbers = #tpu.dot_dimension_numbers<[1], [0], [0], [1], [0, 0, 1, 1], [], []>} : vector<16x128xbf16>, vector<128x384xbf16>, vector<16x384xf32> -> vector<16x384xf32>
    %1035 = vector.extract_strided_slice %1032 {offsets = [0, 0], sizes = [16, 128], strides = [1, 1]} : vector<16x384xf32> to vector<16x128xf32>
    %1036 = vector.extract_strided_slice %1034 {offsets = [0, 0], sizes = [16, 128], strides = [1, 1]} : vector<16x384xf32> to vector<16x128xf32>
    %1037 = arith.addf %1035, %1036 : vector<16x128xf32>
    %1038 = arith.negf %1037 : vector<16x128xf32>
    %1039 = math.exp %1038 : vector<16x128xf32>
    %cst_302 = arith.constant 1.000000e+00 : f32
    %1040 = vector.broadcast %cst_302 : f32 to vector<16x128xf32>
    %1041 = arith.addf %1040, %1039 : vector<16x128xf32>
    %1042 = arith.divf %1040, %1041 : vector<16x128xf32>
    %1043 = vector.extract_strided_slice %1032 {offsets = [0, 128], sizes = [16, 128], strides = [1, 1]} : vector<16x384xf32> to vector<16x128xf32>
    %1044 = vector.extract_strided_slice %1034 {offsets = [0, 128], sizes = [16, 128], strides = [1, 1]} : vector<16x384xf32> to vector<16x128xf32>
    %1045 = arith.addf %1043, %1044 : vector<16x128xf32>
    %1046 = arith.negf %1045 : vector<16x128xf32>
    %1047 = math.exp %1046 : vector<16x128xf32>
    %cst_303 = arith.constant 1.000000e+00 : f32
    %1048 = vector.broadcast %cst_303 : f32 to vector<16x128xf32>
    %1049 = arith.addf %1048, %1047 : vector<16x128xf32>
    %1050 = arith.divf %1048, %1049 : vector<16x128xf32>
    %1051 = vector.extract_strided_slice %1032 {offsets = [0, 256], sizes = [16, 128], strides = [1, 1]} : vector<16x384xf32> to vector<16x128xf32>
    %1052 = vector.extract_strided_slice %1034 {offsets = [0, 256], sizes = [16, 128], strides = [1, 1]} : vector<16x384xf32> to vector<16x128xf32>
    %1053 = vector.broadcast %667 : vector<1x128xf32> to vector<16x128xf32>
    %1054 = arith.addf %1052, %1053 : vector<16x128xf32>
    %1055 = arith.mulf %1042, %1054 : vector<16x128xf32>
    %1056 = arith.addf %1051, %1055 : vector<16x128xf32>
    %1057 = math.tanh %1056 : vector<16x128xf32>
    %cst_304 = arith.constant 1.000000e+00 : f32
    %1058 = vector.broadcast %cst_304 : f32 to vector<16x128xf32>
    %1059 = arith.subf %1058, %1050 : vector<16x128xf32>
    %1060 = arith.mulf %1059, %1057 : vector<16x128xf32>
    %1061 = arith.mulf %1050, %1030 : vector<16x128xf32>
    %1062 = arith.addf %1060, %1061 : vector<16x128xf32>
    %c16_i32_305 = arith.constant 16 : i32
    %1063 = arith.muli %arg1, %c16_i32_305 : i32
    %c11_i32_306 = arith.constant 11 : i32
    %1064 = arith.addi %1063, %c11_i32_306 : i32
    %c10_i32_307 = arith.constant 10 : i32
    %1065 = arith.cmpi slt, %1064, %c10_i32_307 : i32
    %1066 = arith.extui %1065 : i1 to i32
    %1067 = arith.sitofp %1066 : i32 to f32
    %1068 = arith.subf %1062, %1030 : vector<16x128xf32>
    %1069 = vector.broadcast %1067 : f32 to vector<16x128xf32>
    %1070 = arith.mulf %1069, %1068 : vector<16x128xf32>
    %1071 = arith.addf %1030, %1070 : vector<16x128xf32>
    %c12_308 = arith.constant 12 : index
    %c0_309 = arith.constant 0 : index
    %c0_310 = arith.constant 0 : index
    %1072 = vector.load %arg12[%c12_308, %c0_309, %c0_310] : memref<16x16x384xf32, #tpu.memory_space<vmem>>, vector<1x16x384xf32>
    %1073 = vector.shape_cast %1072 : vector<1x16x384xf32> to vector<16x384xf32>
    %1074 = arith.truncf %1071 : vector<16x128xf32> to vector<16x128xbf16>
    %cst_311 = arith.constant dense<0.000000e+00> : vector<16x384xf32>
    %1075 = tpu.matmul %1074, %665, %cst_311 {dimension_numbers = #tpu.dot_dimension_numbers<[1], [0], [0], [1], [0, 0, 1, 1], [], []>} : vector<16x128xbf16>, vector<128x384xbf16>, vector<16x384xf32> -> vector<16x384xf32>
    %1076 = vector.extract_strided_slice %1073 {offsets = [0, 0], sizes = [16, 128], strides = [1, 1]} : vector<16x384xf32> to vector<16x128xf32>
    %1077 = vector.extract_strided_slice %1075 {offsets = [0, 0], sizes = [16, 128], strides = [1, 1]} : vector<16x384xf32> to vector<16x128xf32>
    %1078 = arith.addf %1076, %1077 : vector<16x128xf32>
    %1079 = arith.negf %1078 : vector<16x128xf32>
    %1080 = math.exp %1079 : vector<16x128xf32>
    %cst_312 = arith.constant 1.000000e+00 : f32
    %1081 = vector.broadcast %cst_312 : f32 to vector<16x128xf32>
    %1082 = arith.addf %1081, %1080 : vector<16x128xf32>
    %1083 = arith.divf %1081, %1082 : vector<16x128xf32>
    %1084 = vector.extract_strided_slice %1073 {offsets = [0, 128], sizes = [16, 128], strides = [1, 1]} : vector<16x384xf32> to vector<16x128xf32>
    %1085 = vector.extract_strided_slice %1075 {offsets = [0, 128], sizes = [16, 128], strides = [1, 1]} : vector<16x384xf32> to vector<16x128xf32>
    %1086 = arith.addf %1084, %1085 : vector<16x128xf32>
    %1087 = arith.negf %1086 : vector<16x128xf32>
    %1088 = math.exp %1087 : vector<16x128xf32>
    %cst_313 = arith.constant 1.000000e+00 : f32
    %1089 = vector.broadcast %cst_313 : f32 to vector<16x128xf32>
    %1090 = arith.addf %1089, %1088 : vector<16x128xf32>
    %1091 = arith.divf %1089, %1090 : vector<16x128xf32>
    %1092 = vector.extract_strided_slice %1073 {offsets = [0, 256], sizes = [16, 128], strides = [1, 1]} : vector<16x384xf32> to vector<16x128xf32>
    %1093 = vector.extract_strided_slice %1075 {offsets = [0, 256], sizes = [16, 128], strides = [1, 1]} : vector<16x384xf32> to vector<16x128xf32>
    %1094 = vector.broadcast %667 : vector<1x128xf32> to vector<16x128xf32>
    %1095 = arith.addf %1093, %1094 : vector<16x128xf32>
    %1096 = arith.mulf %1083, %1095 : vector<16x128xf32>
    %1097 = arith.addf %1092, %1096 : vector<16x128xf32>
    %1098 = math.tanh %1097 : vector<16x128xf32>
    %cst_314 = arith.constant 1.000000e+00 : f32
    %1099 = vector.broadcast %cst_314 : f32 to vector<16x128xf32>
    %1100 = arith.subf %1099, %1091 : vector<16x128xf32>
    %1101 = arith.mulf %1100, %1098 : vector<16x128xf32>
    %1102 = arith.mulf %1091, %1071 : vector<16x128xf32>
    %1103 = arith.addf %1101, %1102 : vector<16x128xf32>
    %c16_i32_315 = arith.constant 16 : i32
    %1104 = arith.muli %arg1, %c16_i32_315 : i32
    %c12_i32_316 = arith.constant 12 : i32
    %1105 = arith.addi %1104, %c12_i32_316 : i32
    %c10_i32_317 = arith.constant 10 : i32
    %1106 = arith.cmpi slt, %1105, %c10_i32_317 : i32
    %1107 = arith.extui %1106 : i1 to i32
    %1108 = arith.sitofp %1107 : i32 to f32
    %1109 = arith.subf %1103, %1071 : vector<16x128xf32>
    %1110 = vector.broadcast %1108 : f32 to vector<16x128xf32>
    %1111 = arith.mulf %1110, %1109 : vector<16x128xf32>
    %1112 = arith.addf %1071, %1111 : vector<16x128xf32>
    %c13_318 = arith.constant 13 : index
    %c0_319 = arith.constant 0 : index
    %c0_320 = arith.constant 0 : index
    %1113 = vector.load %arg12[%c13_318, %c0_319, %c0_320] : memref<16x16x384xf32, #tpu.memory_space<vmem>>, vector<1x16x384xf32>
    %1114 = vector.shape_cast %1113 : vector<1x16x384xf32> to vector<16x384xf32>
    %1115 = arith.truncf %1112 : vector<16x128xf32> to vector<16x128xbf16>
    %cst_321 = arith.constant dense<0.000000e+00> : vector<16x384xf32>
    %1116 = tpu.matmul %1115, %665, %cst_321 {dimension_numbers = #tpu.dot_dimension_numbers<[1], [0], [0], [1], [0, 0, 1, 1], [], []>} : vector<16x128xbf16>, vector<128x384xbf16>, vector<16x384xf32> -> vector<16x384xf32>
    %1117 = vector.extract_strided_slice %1114 {offsets = [0, 0], sizes = [16, 128], strides = [1, 1]} : vector<16x384xf32> to vector<16x128xf32>
    %1118 = vector.extract_strided_slice %1116 {offsets = [0, 0], sizes = [16, 128], strides = [1, 1]} : vector<16x384xf32> to vector<16x128xf32>
    %1119 = arith.addf %1117, %1118 : vector<16x128xf32>
    %1120 = arith.negf %1119 : vector<16x128xf32>
    %1121 = math.exp %1120 : vector<16x128xf32>
    %cst_322 = arith.constant 1.000000e+00 : f32
    %1122 = vector.broadcast %cst_322 : f32 to vector<16x128xf32>
    %1123 = arith.addf %1122, %1121 : vector<16x128xf32>
    %1124 = arith.divf %1122, %1123 : vector<16x128xf32>
    %1125 = vector.extract_strided_slice %1114 {offsets = [0, 128], sizes = [16, 128], strides = [1, 1]} : vector<16x384xf32> to vector<16x128xf32>
    %1126 = vector.extract_strided_slice %1116 {offsets = [0, 128], sizes = [16, 128], strides = [1, 1]} : vector<16x384xf32> to vector<16x128xf32>
    %1127 = arith.addf %1125, %1126 : vector<16x128xf32>
    %1128 = arith.negf %1127 : vector<16x128xf32>
    %1129 = math.exp %1128 : vector<16x128xf32>
    %cst_323 = arith.constant 1.000000e+00 : f32
    %1130 = vector.broadcast %cst_323 : f32 to vector<16x128xf32>
    %1131 = arith.addf %1130, %1129 : vector<16x128xf32>
    %1132 = arith.divf %1130, %1131 : vector<16x128xf32>
    %1133 = vector.extract_strided_slice %1114 {offsets = [0, 256], sizes = [16, 128], strides = [1, 1]} : vector<16x384xf32> to vector<16x128xf32>
    %1134 = vector.extract_strided_slice %1116 {offsets = [0, 256], sizes = [16, 128], strides = [1, 1]} : vector<16x384xf32> to vector<16x128xf32>
    %1135 = vector.broadcast %667 : vector<1x128xf32> to vector<16x128xf32>
    %1136 = arith.addf %1134, %1135 : vector<16x128xf32>
    %1137 = arith.mulf %1124, %1136 : vector<16x128xf32>
    %1138 = arith.addf %1133, %1137 : vector<16x128xf32>
    %1139 = math.tanh %1138 : vector<16x128xf32>
    %cst_324 = arith.constant 1.000000e+00 : f32
    %1140 = vector.broadcast %cst_324 : f32 to vector<16x128xf32>
    %1141 = arith.subf %1140, %1132 : vector<16x128xf32>
    %1142 = arith.mulf %1141, %1139 : vector<16x128xf32>
    %1143 = arith.mulf %1132, %1112 : vector<16x128xf32>
    %1144 = arith.addf %1142, %1143 : vector<16x128xf32>
    %c16_i32_325 = arith.constant 16 : i32
    %1145 = arith.muli %arg1, %c16_i32_325 : i32
    %c13_i32_326 = arith.constant 13 : i32
    %1146 = arith.addi %1145, %c13_i32_326 : i32
    %c10_i32_327 = arith.constant 10 : i32
    %1147 = arith.cmpi slt, %1146, %c10_i32_327 : i32
    %1148 = arith.extui %1147 : i1 to i32
    %1149 = arith.sitofp %1148 : i32 to f32
    %1150 = arith.subf %1144, %1112 : vector<16x128xf32>
    %1151 = vector.broadcast %1149 : f32 to vector<16x128xf32>
    %1152 = arith.mulf %1151, %1150 : vector<16x128xf32>
    %1153 = arith.addf %1112, %1152 : vector<16x128xf32>
    %c14_328 = arith.constant 14 : index
    %c0_329 = arith.constant 0 : index
    %c0_330 = arith.constant 0 : index
    %1154 = vector.load %arg12[%c14_328, %c0_329, %c0_330] : memref<16x16x384xf32, #tpu.memory_space<vmem>>, vector<1x16x384xf32>
    %1155 = vector.shape_cast %1154 : vector<1x16x384xf32> to vector<16x384xf32>
    %1156 = arith.truncf %1153 : vector<16x128xf32> to vector<16x128xbf16>
    %cst_331 = arith.constant dense<0.000000e+00> : vector<16x384xf32>
    %1157 = tpu.matmul %1156, %665, %cst_331 {dimension_numbers = #tpu.dot_dimension_numbers<[1], [0], [0], [1], [0, 0, 1, 1], [], []>} : vector<16x128xbf16>, vector<128x384xbf16>, vector<16x384xf32> -> vector<16x384xf32>
    %1158 = vector.extract_strided_slice %1155 {offsets = [0, 0], sizes = [16, 128], strides = [1, 1]} : vector<16x384xf32> to vector<16x128xf32>
    %1159 = vector.extract_strided_slice %1157 {offsets = [0, 0], sizes = [16, 128], strides = [1, 1]} : vector<16x384xf32> to vector<16x128xf32>
    %1160 = arith.addf %1158, %1159 : vector<16x128xf32>
    %1161 = arith.negf %1160 : vector<16x128xf32>
    %1162 = math.exp %1161 : vector<16x128xf32>
    %cst_332 = arith.constant 1.000000e+00 : f32
    %1163 = vector.broadcast %cst_332 : f32 to vector<16x128xf32>
    %1164 = arith.addf %1163, %1162 : vector<16x128xf32>
    %1165 = arith.divf %1163, %1164 : vector<16x128xf32>
    %1166 = vector.extract_strided_slice %1155 {offsets = [0, 128], sizes = [16, 128], strides = [1, 1]} : vector<16x384xf32> to vector<16x128xf32>
    %1167 = vector.extract_strided_slice %1157 {offsets = [0, 128], sizes = [16, 128], strides = [1, 1]} : vector<16x384xf32> to vector<16x128xf32>
    %1168 = arith.addf %1166, %1167 : vector<16x128xf32>
    %1169 = arith.negf %1168 : vector<16x128xf32>
    %1170 = math.exp %1169 : vector<16x128xf32>
    %cst_333 = arith.constant 1.000000e+00 : f32
    %1171 = vector.broadcast %cst_333 : f32 to vector<16x128xf32>
    %1172 = arith.addf %1171, %1170 : vector<16x128xf32>
    %1173 = arith.divf %1171, %1172 : vector<16x128xf32>
    %1174 = vector.extract_strided_slice %1155 {offsets = [0, 256], sizes = [16, 128], strides = [1, 1]} : vector<16x384xf32> to vector<16x128xf32>
    %1175 = vector.extract_strided_slice %1157 {offsets = [0, 256], sizes = [16, 128], strides = [1, 1]} : vector<16x384xf32> to vector<16x128xf32>
    %1176 = vector.broadcast %667 : vector<1x128xf32> to vector<16x128xf32>
    %1177 = arith.addf %1175, %1176 : vector<16x128xf32>
    %1178 = arith.mulf %1165, %1177 : vector<16x128xf32>
    %1179 = arith.addf %1174, %1178 : vector<16x128xf32>
    %1180 = math.tanh %1179 : vector<16x128xf32>
    %cst_334 = arith.constant 1.000000e+00 : f32
    %1181 = vector.broadcast %cst_334 : f32 to vector<16x128xf32>
    %1182 = arith.subf %1181, %1173 : vector<16x128xf32>
    %1183 = arith.mulf %1182, %1180 : vector<16x128xf32>
    %1184 = arith.mulf %1173, %1153 : vector<16x128xf32>
    %1185 = arith.addf %1183, %1184 : vector<16x128xf32>
    %c16_i32_335 = arith.constant 16 : i32
    %1186 = arith.muli %arg1, %c16_i32_335 : i32
    %c14_i32_336 = arith.constant 14 : i32
    %1187 = arith.addi %1186, %c14_i32_336 : i32
    %c10_i32_337 = arith.constant 10 : i32
    %1188 = arith.cmpi slt, %1187, %c10_i32_337 : i32
    %1189 = arith.extui %1188 : i1 to i32
    %1190 = arith.sitofp %1189 : i32 to f32
    %1191 = arith.subf %1185, %1153 : vector<16x128xf32>
    %1192 = vector.broadcast %1190 : f32 to vector<16x128xf32>
    %1193 = arith.mulf %1192, %1191 : vector<16x128xf32>
    %1194 = arith.addf %1153, %1193 : vector<16x128xf32>
    %c15_338 = arith.constant 15 : index
    %c0_339 = arith.constant 0 : index
    %c0_340 = arith.constant 0 : index
    %1195 = vector.load %arg12[%c15_338, %c0_339, %c0_340] : memref<16x16x384xf32, #tpu.memory_space<vmem>>, vector<1x16x384xf32>
    %1196 = vector.shape_cast %1195 : vector<1x16x384xf32> to vector<16x384xf32>
    %1197 = arith.truncf %1194 : vector<16x128xf32> to vector<16x128xbf16>
    %cst_341 = arith.constant dense<0.000000e+00> : vector<16x384xf32>
    %1198 = tpu.matmul %1197, %665, %cst_341 {dimension_numbers = #tpu.dot_dimension_numbers<[1], [0], [0], [1], [0, 0, 1, 1], [], []>} : vector<16x128xbf16>, vector<128x384xbf16>, vector<16x384xf32> -> vector<16x384xf32>
    %1199 = vector.extract_strided_slice %1196 {offsets = [0, 0], sizes = [16, 128], strides = [1, 1]} : vector<16x384xf32> to vector<16x128xf32>
    %1200 = vector.extract_strided_slice %1198 {offsets = [0, 0], sizes = [16, 128], strides = [1, 1]} : vector<16x384xf32> to vector<16x128xf32>
    %1201 = arith.addf %1199, %1200 : vector<16x128xf32>
    %1202 = arith.negf %1201 : vector<16x128xf32>
    %1203 = math.exp %1202 : vector<16x128xf32>
    %cst_342 = arith.constant 1.000000e+00 : f32
    %1204 = vector.broadcast %cst_342 : f32 to vector<16x128xf32>
    %1205 = arith.addf %1204, %1203 : vector<16x128xf32>
    %1206 = arith.divf %1204, %1205 : vector<16x128xf32>
    %1207 = vector.extract_strided_slice %1196 {offsets = [0, 128], sizes = [16, 128], strides = [1, 1]} : vector<16x384xf32> to vector<16x128xf32>
    %1208 = vector.extract_strided_slice %1198 {offsets = [0, 128], sizes = [16, 128], strides = [1, 1]} : vector<16x384xf32> to vector<16x128xf32>
    %1209 = arith.addf %1207, %1208 : vector<16x128xf32>
    %1210 = arith.negf %1209 : vector<16x128xf32>
    %1211 = math.exp %1210 : vector<16x128xf32>
    %cst_343 = arith.constant 1.000000e+00 : f32
    %1212 = vector.broadcast %cst_343 : f32 to vector<16x128xf32>
    %1213 = arith.addf %1212, %1211 : vector<16x128xf32>
    %1214 = arith.divf %1212, %1213 : vector<16x128xf32>
    %1215 = vector.extract_strided_slice %1196 {offsets = [0, 256], sizes = [16, 128], strides = [1, 1]} : vector<16x384xf32> to vector<16x128xf32>
    %1216 = vector.extract_strided_slice %1198 {offsets = [0, 256], sizes = [16, 128], strides = [1, 1]} : vector<16x384xf32> to vector<16x128xf32>
    %1217 = vector.broadcast %667 : vector<1x128xf32> to vector<16x128xf32>
    %1218 = arith.addf %1216, %1217 : vector<16x128xf32>
    %1219 = arith.mulf %1206, %1218 : vector<16x128xf32>
    %1220 = arith.addf %1215, %1219 : vector<16x128xf32>
    %1221 = math.tanh %1220 : vector<16x128xf32>
    %cst_344 = arith.constant 1.000000e+00 : f32
    %1222 = vector.broadcast %cst_344 : f32 to vector<16x128xf32>
    %1223 = arith.subf %1222, %1214 : vector<16x128xf32>
    %1224 = arith.mulf %1223, %1221 : vector<16x128xf32>
    %1225 = arith.mulf %1214, %1194 : vector<16x128xf32>
    %1226 = arith.addf %1224, %1225 : vector<16x128xf32>
    %c16_i32_345 = arith.constant 16 : i32
    %1227 = arith.muli %arg1, %c16_i32_345 : i32
    %c15_i32_346 = arith.constant 15 : i32
    %1228 = arith.addi %1227, %c15_i32_346 : i32
    %c10_i32_347 = arith.constant 10 : i32
    %1229 = arith.cmpi slt, %1228, %c10_i32_347 : i32
    %1230 = arith.extui %1229 : i1 to i32
    %1231 = arith.sitofp %1230 : i32 to f32
    %1232 = arith.subf %1226, %1194 : vector<16x128xf32>
    %1233 = vector.broadcast %1231 : f32 to vector<16x128xf32>
    %1234 = arith.mulf %1233, %1232 : vector<16x128xf32>
    %1235 = arith.addf %1194, %1234 : vector<16x128xf32>
    %c1_348 = arith.constant 1 : index
    %c0_349 = arith.constant 0 : index
    %c0_350 = arith.constant 0 : index
    %1236 = vector.load %arg11[%c1_348, %c0_349, %c0_350] : memref<2x16x128xf32, #tpu.memory_space<vmem>>, vector<1x16x128xf32>
    %1237 = vector.shape_cast %1236 : vector<1x16x128xf32> to vector<16x128xf32>
    %1238 = vector.shape_cast %1235 : vector<16x128xf32> to vector<1x16x128xf32>
    tpu.vector_store %arg11[%c1_348, %c0_349, %c0_350], %1238 {strides = array<i32>} : memref<2x16x128xf32, #tpu.memory_space<vmem>>, vector<1x16x128xf32>,
    %c0_i32_351 = arith.constant 0 : i32
    %1239 = arith.cmpi eq, %arg1, %c0_i32_351 : i32
    %1240 = arith.extui %1239 : i1 to i32
    %c0_i32_352 = arith.constant 0 : i32
    %1241 = arith.cmpi ne, %1240, %c0_i32_352 : i32
    scf.if %1241 {
      %c1_353 = arith.constant 1 : index
      %c0_354 = arith.constant 0 : index
      %c0_355 = arith.constant 0 : index
      %1242 = vector.load %arg11[%c1_353, %c0_354, %c0_355] : memref<2x16x128xf32, #tpu.memory_space<vmem>>, vector<1x16x128xf32>
      %1243 = vector.shape_cast %1242 : vector<1x16x128xf32> to vector<16x128xf32>
      %c0_356 = arith.constant 0 : index
      %c0_357 = arith.constant 0 : index
      %1244 = vector.load %arg8[%c0_356, %c0_357] : memref<1x128xf32, #tpu.memory_space<vmem>>, vector<1x128xf32>
      %1245 = vector.broadcast %1244 : vector<1x128xf32> to vector<16x128xf32>
      %1246 = arith.mulf %1243, %1245 : vector<16x128xf32>
      %cst_358 = arith.constant dense<0.000000e+00> : vector<16xf32>
      %1247 = vector.multi_reduction <add>, %1246, %cst_358 [1] : vector<16x128xf32> to vector<16xf32>
      %1248 = vector.shape_cast %1247 : vector<16xf32> to vector<16x1xf32>
      %c0_359 = arith.constant 0 : index
      %c0_360 = arith.constant 0 : index
      %1249 = vector.load %arg9[%c0_359, %c0_360] : memref<1x1xf32, #tpu.memory_space<vmem>>, vector<1x1xf32>
      %1250 = vector.broadcast %1249 : vector<1x1xf32> to vector<16x1xf32>
      %1251 = arith.addf %1248, %1250 : vector<16x1xf32>
      %1252 = arith.negf %1251 : vector<16x1xf32>
      %1253 = math.exp %1252 : vector<16x1xf32>
      %cst_361 = arith.constant 1.000000e+00 : f32
      %1254 = vector.broadcast %cst_361 : f32 to vector<16x1xf32>
      %1255 = arith.addf %1254, %1253 : vector<16x1xf32>
      %1256 = arith.divf %1254, %1255 : vector<16x1xf32>
      %c0_362 = arith.constant 0 : index
      %c0_363 = arith.constant 0 : index
      %1257 = vector.load %arg10[%c0_362, %c0_363] : memref<16x1xf32, #tpu.memory_space<vmem>>, vector<16x1xf32>
      tpu.vector_store %arg10[%c0_362, %c0_363], %1256 {strides = array<i32>} : memref<16x1xf32, #tpu.memory_space<vmem>>, vector<16x1xf32>,
    } else {
    }
    return
  }
  func.func @transform_0(%arg0: i32, %arg1: i32) -> (i32, i32, i32) {
    %c0_i32 = arith.constant 0 : i32
    %c0_i32_0 = arith.constant 0 : i32
    return %arg1, %arg0, %c0_i32 : i32, i32, i32
  }
  func.func @transform_1(%arg0: i32, %arg1: i32) -> (i32, i32) {
    %c0_i32 = arith.constant 0 : i32
    %c0_i32_0 = arith.constant 0 : i32
    %c0_i32_1 = arith.constant 0 : i32
    return %c0_i32, %c0_i32_0 : i32, i32
  }
  func.func @transform_2(%arg0: i32, %arg1: i32) -> (i32, i32, i32) {
    %c0_i32 = arith.constant 0 : i32
    %c0_i32_0 = arith.constant 0 : i32
    %c0_i32_1 = arith.constant 0 : i32
    %c0_i32_2 = arith.constant 0 : i32
    return %c0_i32, %c0_i32_0, %c0_i32_1 : i32, i32, i32
  }
  func.func @transform_3(%arg0: i32, %arg1: i32) -> (i32, i32, i32) {
    %c0_i32 = arith.constant 0 : i32
    %c0_i32_0 = arith.constant 0 : i32
    %c0_i32_1 = arith.constant 0 : i32
    %c0_i32_2 = arith.constant 0 : i32
    return %c0_i32, %c0_i32_0, %c0_i32_1 : i32, i32, i32
  }
  func.func @transform_4(%arg0: i32, %arg1: i32) -> (i32, i32, i32) {
    %c0_i32 = arith.constant 0 : i32
    %c0_i32_0 = arith.constant 0 : i32
    %c0_i32_1 = arith.constant 0 : i32
    %c0_i32_2 = arith.constant 0 : i32
    return %c0_i32, %c0_i32_0, %c0_i32_1 : i32, i32, i32
  }
  func.func @transform_5(%arg0: i32, %arg1: i32) -> (i32, i32, i32) {
    %c0_i32 = arith.constant 0 : i32
    %c0_i32_0 = arith.constant 0 : i32
    %c0_i32_1 = arith.constant 0 : i32
    %c0_i32_2 = arith.constant 0 : i32
    return %c0_i32, %c0_i32_0, %c0_i32_1 : i32, i32, i32
  }
  func.func @transform_6(%arg0: i32, %arg1: i32) -> (i32, i32) {
    %c0_i32 = arith.constant 0 : i32
    %c0_i32_0 = arith.constant 0 : i32
    %c0_i32_1 = arith.constant 0 : i32
    return %c0_i32, %c0_i32_0 : i32, i32
  }
  func.func @transform_7(%arg0: i32, %arg1: i32) -> (i32, i32) {
    %c0_i32 = arith.constant 0 : i32
    %c0_i32_0 = arith.constant 0 : i32
    %c0_i32_1 = arith.constant 0 : i32
    return %c0_i32, %c0_i32_0 : i32, i32
  }
  func.func @transform_8(%arg0: i32, %arg1: i32) -> (i32, i32) {
    %c0_i32 = arith.constant 0 : i32
    %c0_i32_0 = arith.constant 0 : i32
    return %arg0, %c0_i32 : i32, i32
  }
}

</mosaic_0001>

<llo_original>
// kernel: gru_classifier_forward.1
$region0: #{gru_classifier_forward.1}
  #allocation0 [shape = 'u32[]', space=smem, size = 0x4, offset = 0x4, fixed_abs, tag = 'smem constant byte address 0x4 - core index']
  #allocation1 [shape = 'u32[72,128]{1,0:T(1,128)}', space=vmem, size = 0x9000, scoped, tag = 'internal scratch']
  #allocation2 [shape = 'f32[2,16,128]{2,1,0:T(8,128)}', space=vmem, size = 0x4000, scoped, tag = 'scratch operand']
  #allocation3 [shape = 'f32[16,16,384]{2,1,0:T(8,128)}', space=vmem, size = 0x60000, scoped, tag = 'scratch operand']
  #allocation4 [shape = 'bf16[1,16,16,128]{3,2,1,0:T(8,128)(2,1)}', space=vmem, size = 0x10000, scoped, tag = 'scratch operand']
  #allocation5 [shape = 'f32[1,1]{1,0:T(1,128)S(1)}', space=vmem, size = 0x200, scoped, tag = 'scoped memory for gru_classifier_forward.1']
  %s0 = inlined_call_operand.vmem [shape: bf16[16,16,128], index: 0, kind: input, shape index: {}]
  %s1 = inlined_call_operand.vmem [shape: bf16[128,384], index: 1, kind: input, shape index: {}]
  %s2 = inlined_call_operand.vmem [shape: bf16[1,128,384], index: 2, kind: input, shape index: {}]
  %s3 = inlined_call_operand.vmem [shape: bf16[2,128,384], index: 3, kind: input, shape index: {}]
  %s4 = inlined_call_operand.vmem [shape: f32[2,1,384], index: 4, kind: input, shape index: {}]
  %s5 = inlined_call_operand.vmem [shape: f32[2,1,128], index: 5, kind: input, shape index: {}]
  %s6 = inlined_call_operand.vmem [shape: f32[1,128], index: 6, kind: input, shape index: {}]
  %s7 = inlined_call_operand.<no memory space> [shape: f32[1,1], index: 7, kind: input, shape index: {}]
  %s8 = inlined_call_operand.vmem [shape: f32[16,1], index: 8, kind: output, shape index: {}]
  %s9 = sld [smem:[#allocation0]]
  $region50: #{gru_classifier_forward.1} parent=0
    _
  %s11 = ssub.s32 1, %s9
  %s12 = scalar_select 0, %s11, %s9
  %v13 = vstv %s7
  %14 = vst [vmem:[#allocation5] sm:$0x1] %v13
  // Predicated region
  $region2: #{gru_classifier_forward.1} parent=0 // pred_check
    _
  $region3: #{gru_classifier_forward.1} parent=0 // pred_check_branch
    %16 = sbr.rel (0) target = $region5
  $region4: #{gru_classifier_forward.1} parent=0 // pred_region
    _
  $region5: #{gru_classifier_forward.1} parent=0 // pred_fallthru
    _
  // Predicated region
  $region6: #{gru_classifier_forward.1} parent=0 // pred_check
    _
  $region7: #{gru_classifier_forward.1} parent=0 // pred_check_branch
    %18 = sbr.rel (0) target = $region9
  $region8: #{gru_classifier_forward.1} parent=0 // pred_region
    _
  $region9: #{gru_classifier_forward.1} parent=0 // pred_fallthru
    _
  // Predicated region
  $region10: #{gru_classifier_forward.1} parent=0 // pred_check
    _
  $region11: #{gru_classifier_forward.1} parent=0 // pred_check_branch
    %20 = sbr.rel (0) target = $region13
  $region12: #{gru_classifier_forward.1} parent=0 // pred_region
    _
  $region13: #{gru_classifier_forward.1} parent=0 // pred_fallthru
    _
  // Predicated region
  $region14: #{gru_classifier_forward.1} parent=0 // pred_check
    _
  $region15: #{gru_classifier_forward.1} parent=0 // pred_check_branch
    %22 = sbr.rel (0) target = $region17
  $region16: #{gru_classifier_forward.1} parent=0 // pred_region
    _
  $region17: #{gru_classifier_forward.1} parent=0 // pred_fallthru
    _
  // Predicated region
  $region18: #{gru_classifier_forward.1} parent=0 // pred_check
    _
  $region19: #{gru_classifier_forward.1} parent=0 // pred_check_branch
    %24 = sbr.rel (0) target = $region21
  $region20: #{gru_classifier_forward.1} parent=0 // pred_region
    _
  $region21: #{gru_classifier_forward.1} parent=0 // pred_fallthru
    _
  // Predicated region
  $region22: #{gru_classifier_forward.1} parent=0 // pred_check
    _
  $region23: #{gru_classifier_forward.1} parent=0 // pred_check_branch
    %26 = sbr.rel (0) target = $region25
  $region24: #{gru_classifier_forward.1} parent=0 // pred_region
    _
  $region25: #{gru_classifier_forward.1} parent=0 // pred_fallthru
    _
  // Predicated region
  $region26: #{gru_classifier_forward.1} parent=0 // pred_check
    _
  $region27: #{gru_classifier_forward.1} parent=0 // pred_check_branch
    %28 = sbr.rel (0) target = $region29
  $region28: #{gru_classifier_forward.1} parent=0 // pred_region
    _
  $region29: #{gru_classifier_forward.1} parent=0 // pred_fallthru
    _
  // Predicated region
  $region30: #{gru_classifier_forward.1} parent=0 // pred_check
    _
  $region31: #{gru_classifier_forward.1} parent=0 // pred_check_branch
    %30 = sbr.rel (0) target = $region33
  $region32: #{gru_classifier_forward.1} parent=0 // pred_region
    _
  $region33: #{gru_classifier_forward.1} parent=0 // pred_fallthru
    _
  %p31 = scmp.eq.s32.totalorder 0, 0
  // Predicated region
  $region34: #{gru_classifier_forward.1} parent=0 // pred_check
    %p32 = pneg %p31
  $region35: #{gru_classifier_forward.1} parent=0 // pred_check_branch
    %34 = sbr.rel (%p32) target = $region37
  $region36: #{gru_classifier_forward.1} parent=0 // pred_region
    %35 = vst [vmem:[#allocation2] sm:$0xff] 0.0
    %36 = vst [vmem:[#allocation2 + $0x8] sm:$0xff] 0.0
    %37 = vst [vmem:[#allocation2 + $0x10] sm:$0xff] 0.0
    %38 = vst [vmem:[#allocation2 + $0x18] sm:$0xff] 0.0
  $region37: #{gru_classifier_forward.1} parent=0 // pred_fallthru
    _
  %v39 = vld [vmem:[%s0] sm:$0xf]
  %v40 = vld [vmem:[%s0 + $0x4] sm:$0xf]
  %v41 = vld [vmem:[%s0 + $0x8] sm:$0xf]
  %v42 = vld [vmem:[%s0 + $0xc] sm:$0xf]
  %v43 = vld [vmem:[%s0 + $0x10] sm:$0xf]
  %v44 = vld [vmem:[%s0 + $0x14] sm:$0xf]
  %v45 = vld [vmem:[%s0 + $0x18] sm:$0xf]
  %v46 = vld [vmem:[%s0 + $0x1c] sm:$0xf]
  %v47 = vld [vmem:[%s0 + $0x20] sm:$0xf]
  %v48 = vld [vmem:[%s0 + $0x24] sm:$0xf]
  %v49 = vld [vmem:[%s0 + $0x28] sm:$0xf]
  %v50 = vld [vmem:[%s0 + $0x2c] sm:$0xf]
  %v51 = vld [vmem:[%s0 + $0x30] sm:$0xf]
  %v52 = vld [vmem:[%s0 + $0x34] sm:$0xf]
  %v53 = vld [vmem:[%s0 + $0x38] sm:$0xf]
  %v54 = vld [vmem:[%s0 + $0x3c] sm:$0xf]
  %v55 = vld [vmem:[%s0 + $0x40] sm:$0xf]
  %v56 = vld [vmem:[%s0 + $0x44] sm:$0xf]
  %v57 = vld [vmem:[%s0 + $0x48] sm:$0xf]
  %v58 = vld [vmem:[%s0 + $0x4c] sm:$0xf]
  %v59 = vld [vmem:[%s0 + $0x50] sm:$0xf]
  %v60 = vld [vmem:[%s0 + $0x54] sm:$0xf]
  %v61 = vld [vmem:[%s0 + $0x58] sm:$0xf]
  %v62 = vld [vmem:[%s0 + $0x5c] sm:$0xf]
  %v63 = vld [vmem:[%s0 + $0x60] sm:$0xf]
  %v64 = vld [vmem:[%s0 + $0x64] sm:$0xf]
  %v65 = vld [vmem:[%s0 + $0x68] sm:$0xf]
  %v66 = vld [vmem:[%s0 + $0x6c] sm:$0xf]
  %v67 = vld [vmem:[%s0 + $0x70] sm:$0xf]
  %v68 = vld [vmem:[%s0 + $0x74] sm:$0xf]
  %v69 = vld [vmem:[%s0 + $0x78] sm:$0xf]
  %v70 = vld [vmem:[%s0 + $0x7c] sm:$0xf]
  %v71 = vld [vmem:[%s1] sm:$0xff]
  %v72 = vld [vmem:[%s1 + $0x8] sm:$0xf]
  %v73 = vld [vmem:[%s1 + $0xc] sm:$0xff]
  %v74 = vld [vmem:[%s1 + $0x14] sm:$0xf]
  %v75 = vld [vmem:[%s1 + $0x18] sm:$0xff]
  %v76 = vld [vmem:[%s1 + $0x20] sm:$0xf]
  %v77 = vld [vmem:[%s1 + $0x24] sm:$0xff]
  %v78 = vld [vmem:[%s1 + $0x2c] sm:$0xf]
  %v79 = vld [vmem:[%s1 + $0x30] sm:$0xff]
  %v80 = vld [vmem:[%s1 + $0x38] sm:$0xf]
  %v81 = vld [vmem:[%s1 + $0x3c] sm:$0xff]
  %v82 = vld [vmem:[%s1 + $0x44] sm:$0xf]
  %v83 = vld [vmem:[%s1 + $0x48] sm:$0xff]
  %v84 = vld [vmem:[%s1 + $0x50] sm:$0xf]
  %v85 = vld [vmem:[%s1 + $0x54] sm:$0xff]
  %v86 = vld [vmem:[%s1 + $0x5c] sm:$0xf]
  %v87 = vld [vmem:[%s1 + $0x60] sm:$0xff]
  %v88 = vld [vmem:[%s1 + $0x68] sm:$0xf]
  %v89 = vld [vmem:[%s1 + $0x6c] sm:$0xff]
  %v90 = vld [vmem:[%s1 + $0x74] sm:$0xf]
  %v91 = vld [vmem:[%s1 + $0x78] sm:$0xff]
  %v92 = vld [vmem:[%s1 + $0x80] sm:$0xf]
  %v93 = vld [vmem:[%s1 + $0x84] sm:$0xff]
  %v94 = vld [vmem:[%s1 + $0x8c] sm:$0xf]
  %v95 = vld [vmem:[%s1 + $0x90] sm:$0xff]
  %v96 = vld [vmem:[%s1 + $0x98] sm:$0xf]
  %v97 = vld [vmem:[%s1 + $0x9c] sm:$0xff]
  %v98 = vld [vmem:[%s1 + $0xa4] sm:$0xf]
  %v99 = vld [vmem:[%s1 + $0xa8] sm:$0xff]
  %v100 = vld [vmem:[%s1 + $0xb0] sm:$0xf]
  %v101 = vld [vmem:[%s1 + $0xb4] sm:$0xff]
  %v102 = vld [vmem:[%s1 + $0xbc] sm:$0xf]
  %v103 = vld [vmem:[%s4] sm:$0x7]
  %v105 = vperm.slane %v103, 0
  %v106 = vperm.slane %v103, 1
  %v107 = vperm.slane %v103, 2
  %v143 = vunpack.c.l.b16 %v39
  %v144 = vunpack.c.l.b16 %v40
  %v145 = vunpack.c.l.b16 %v41
  %v146 = vunpack.c.l.b16 %v42
  %v147 = vunpack.c.l.b16 %v43
  %v148 = vunpack.c.l.b16 %v44
  %v149 = vunpack.c.l.b16 %v45
  %v150 = vunpack.c.l.b16 %v46
  %v151 = vunpack.c.l.b16 %v47
  %v152 = vunpack.c.l.b16 %v48
  %v153 = vunpack.c.l.b16 %v49
  %v154 = vunpack.c.l.b16 %v50
  %v155 = vunpack.c.l.b16 %v51
  %v156 = vunpack.c.l.b16 %v52
  %v157 = vunpack.c.l.b16 %v53
  %v158 = vunpack.c.l.b16 %v54
  %v159 = vunpack.c.l.b16 %v55
  %v160 = vunpack.c.l.b16 %v56
  %v161 = vunpack.c.l.b16 %v57
  %v162 = vunpack.c.l.b16 %v58
  %v163 = vunpack.c.l.b16 %v59
  %v164 = vunpack.c.l.b16 %v60
  %v165 = vunpack.c.l.b16 %v61
  %v166 = vunpack.c.l.b16 %v62
  %v167 = vunpack.c.l.b16 %v63
  %v168 = vunpack.c.l.b16 %v64
  %v169 = vunpack.c.l.b16 %v65
  %v170 = vunpack.c.l.b16 %v66
  %v171 = vunpack.c.l.b16 %v67
  %v172 = vunpack.c.l.b16 %v68
  %v173 = vunpack.c.l.b16 %v69
  %v174 = vunpack.c.l.b16 %v70
  %v175 = vpack.c.b16 %v144, %v143
  %v176 = vpack.c.b16 %v146, %v145
  %v177 = vpack.c.b16 %v148, %v147
  %v178 = vpack.c.b16 %v150, %v149
  %v179 = vpack.c.b16 %v152, %v151
  %v180 = vpack.c.b16 %v154, %v153
  %v181 = vpack.c.b16 %v156, %v155
  %v182 = vpack.c.b16 %v158, %v157
  %v183 = vpack.c.b16 %v160, %v159
  %v184 = vpack.c.b16 %v162, %v161
  %v185 = vpack.c.b16 %v164, %v163
  %v186 = vpack.c.b16 %v166, %v165
  %v187 = vpack.c.b16 %v168, %v167
  %v188 = vpack.c.b16 %v170, %v169
  %v189 = vpack.c.b16 %v172, %v171
  %v190 = vpack.c.b16 %v174, %v173
  %v239 = vunpack.c.l.b16 %v71
  %v240 = vunpack.c.h.b16 %v71
  %v241 = vunpack.c.l.b16 %v72
  %v242 = vunpack.c.l.b16 %v73
  %v243 = vunpack.c.h.b16 %v73
  %v244 = vunpack.c.l.b16 %v74
  %v245 = vunpack.c.l.b16 %v75
  %v246 = vunpack.c.h.b16 %v75
  %v247 = vunpack.c.l.b16 %v76
  %v248 = vunpack.c.l.b16 %v77
  %v249 = vunpack.c.h.b16 %v77
  %v250 = vunpack.c.l.b16 %v78
  %v251 = vunpack.c.l.b16 %v79
  %v252 = vunpack.c.h.b16 %v79
  %v253 = vunpack.c.l.b16 %v80
  %v254 = vunpack.c.l.b16 %v81
  %v255 = vunpack.c.h.b16 %v81
  %v256 = vunpack.c.l.b16 %v82
  %v257 = vunpack.c.l.b16 %v83
  %v258 = vunpack.c.h.b16 %v83
  %v259 = vunpack.c.l.b16 %v84
  %v260 = vunpack.c.l.b16 %v85
  %v261 = vunpack.c.h.b16 %v85
  %v262 = vunpack.c.l.b16 %v86
  %v263 = vunpack.c.l.b16 %v87
  %v264 = vunpack.c.h.b16 %v87
  %v265 = vunpack.c.l.b16 %v88
  %v266 = vunpack.c.l.b16 %v89
  %v267 = vunpack.c.h.b16 %v89
  %v268 = vunpack.c.l.b16 %v90
  %v269 = vunpack.c.l.b16 %v91
  %v270 = vunpack.c.h.b16 %v91
  %v271 = vunpack.c.l.b16 %v92
  %v272 = vunpack.c.l.b16 %v93
  %v273 = vunpack.c.h.b16 %v93
  %v274 = vunpack.c.l.b16 %v94
  %v275 = vunpack.c.l.b16 %v95
  %v276 = vunpack.c.h.b16 %v95
  %v277 = vunpack.c.l.b16 %v96
  %v278 = vunpack.c.l.b16 %v97
  %v279 = vunpack.c.h.b16 %v97
  %v280 = vunpack.c.l.b16 %v98
  %v281 = vunpack.c.l.b16 %v99
  %v282 = vunpack.c.h.b16 %v99
  %v283 = vunpack.c.l.b16 %v100
  %v284 = vunpack.c.l.b16 %v101
  %v285 = vunpack.c.h.b16 %v101
  %v286 = vunpack.c.l.b16 %v102
  %v287 = vpack.c.b16 %v242, %v239
  %v288 = vpack.c.b16 %v243, %v240
  %v289 = vpack.c.b16 %v244, %v241
  %v290 = vpack.c.b16 %v248, %v245
  %v291 = vpack.c.b16 %v249, %v246
  %v292 = vpack.c.b16 %v250, %v247
  %v293 = vpack.c.b16 %v254, %v251
  %v294 = vpack.c.b16 %v255, %v252
  %v295 = vpack.c.b16 %v256, %v253
  %v296 = vpack.c.b16 %v260, %v257
  %v297 = vpack.c.b16 %v261, %v258
  %v298 = vpack.c.b16 %v262, %v259
  %v299 = vpack.c.b16 %v266, %v263
  %v300 = vpack.c.b16 %v267, %v264
  %v301 = vpack.c.b16 %v268, %v265
  %v302 = vpack.c.b16 %v272, %v269
  %v303 = vpack.c.b16 %v273, %v270
  %v304 = vpack.c.b16 %v274, %v271
  %v305 = vpack.c.b16 %v278, %v275
  %v306 = vpack.c.b16 %v279, %v276
  %v307 = vpack.c.b16 %v280, %v277
  %v308 = vpack.c.b16 %v284, %v281
  %v309 = vpack.c.b16 %v285, %v282
  %v310 = vpack.c.b16 %v286, %v283
  %335 = vmatpush.bf16.msra.mxu0 %v308
  %336 = vmatpush.bf16.msra.mxu0 %v305
  %337 = vmatpush.bf16.msra.mxu0 %v302
  %338 = vmatpush.bf16.msra.mxu0 %v299
  %339 = vmatpush.bf16.msra.mxu0 %v296
  %340 = vmatpush.bf16.msra.mxu0 %v293
  %341 = vmatpush.bf16.msra.mxu0 %v290
  %342 = vmatpush.bf16.msra.mxu0 %v287
  %343 = vmatmul.bf16.gmra.mxu0 %v175
  %v344 = vpop.f32.mrf.mxu0
  %v345 = vadd.f32 %v105, %v344
  %v346 = vpop.f32.mrf.mxu0
  %v347 = vadd.f32 %v105, %v346
  %348 = vmatmul.bf16.gmra.mxu0 %v176
  %v349 = vpop.f32.mrf.mxu0
  %v350 = vadd.f32 %v105, %v349
  %v351 = vpop.f32.mrf.mxu0
  %v352 = vadd.f32 %v105, %v351
  %353 = vmatmul.bf16.gmra.mxu0 %v177
  %v354 = vpop.f32.mrf.mxu0
  %v355 = vadd.f32 %v105, %v354
  %v356 = vpop.f32.mrf.mxu0
  %v357 = vadd.f32 %v105, %v356
  %358 = vmatmul.bf16.gmra.mxu0 %v178
  %v359 = vpop.f32.mrf.mxu0
  %v360 = vadd.f32 %v105, %v359
  %v361 = vpop.f32.mrf.mxu0
  %v362 = vadd.f32 %v105, %v361
  %363 = vmatmul.bf16.gmra.mxu0 %v179
  %v364 = vpop.f32.mrf.mxu0
  %v365 = vadd.f32 %v105, %v364
  %v366 = vpop.f32.mrf.mxu0
  %v367 = vadd.f32 %v105, %v366
  %368 = vmatmul.bf16.gmra.mxu0 %v180
  %v369 = vpop.f32.mrf.mxu0
  %v370 = vadd.f32 %v105, %v369
  %v371 = vpop.f32.mrf.mxu0
  %v372 = vadd.f32 %v105, %v371
  %373 = vmatmul.bf16.gmra.mxu0 %v181
  %v374 = vpop.f32.mrf.mxu0
  %v375 = vadd.f32 %v105, %v374
  %v376 = vpop.f32.mrf.mxu0
  %v377 = vadd.f32 %v105, %v376
  %378 = vmatmul.bf16.gmra.mxu0 %v182
  %v379 = vpop.f32.mrf.mxu0
  %v380 = vadd.f32 %v105, %v379
  %v381 = vpop.f32.mrf.mxu0
  %v382 = vadd.f32 %v105, %v381
  %383 = vmatmul.bf16.gmra.mxu0 %v183
  %v384 = vpop.f32.mrf.mxu0
  %v385 = vadd.f32 %v105, %v384
  %v386 = vpop.f32.mrf.mxu0
  %v387 = vadd.f32 %v105, %v386
  %388 = vmatmul.bf16.gmra.mxu0 %v184
  %v389 = vpop.f32.mrf.mxu0
  %v390 = vadd.f32 %v105, %v389
  %v391 = vpop.f32.mrf.mxu0
  %v392 = vadd.f32 %v105, %v391
  %393 = vmatmul.bf16.gmra.mxu0 %v185
  %v394 = vpop.f32.mrf.mxu0
  %v395 = vadd.f32 %v105, %v394
  %v396 = vpop.f32.mrf.mxu0
  %v397 = vadd.f32 %v105, %v396
  %398 = vmatmul.bf16.gmra.mxu0 %v186
  %v399 = vpop.f32.mrf.mxu0
  %v400 = vadd.f32 %v105, %v399
  %v401 = vpop.f32.mrf.mxu0
  %v402 = vadd.f32 %v105, %v401
  %403 = vmatmul.bf16.gmra.mxu0 %v187
  %v404 = vpop.f32.mrf.mxu0
  %v405 = vadd.f32 %v105, %v404
  %v406 = vpop.f32.mrf.mxu0
  %v407 = vadd.f32 %v105, %v406
  %408 = vmatmul.bf16.gmra.mxu0 %v188
  %v409 = vpop.f32.mrf.mxu0
  %v410 = vadd.f32 %v105, %v409
  %v411 = vpop.f32.mrf.mxu0
  %v412 = vadd.f32 %v105, %v411
  %413 = vmatmul.bf16.gmra.mxu0 %v189
  %v414 = vpop.f32.mrf.mxu0
  %v415 = vadd.f32 %v105, %v414
  %v416 = vpop.f32.mrf.mxu0
  %v417 = vadd.f32 %v105, %v416
  %418 = vmatmul.bf16.gmra.mxu0 %v190
  %v419 = vpop.f32.mrf.mxu0
  %v420 = vadd.f32 %v105, %v419
  %v421 = vpop.f32.mrf.mxu0
  %v422 = vadd.f32 %v105, %v421
  %423 = vdwg.mxu0
  %424 = vmatpush.bf16.msra.mxu0 %v309
  %425 = vmatpush.bf16.msra.mxu0 %v306
  %426 = vmatpush.bf16.msra.mxu0 %v303
  %427 = vmatpush.bf16.msra.mxu0 %v300
  %428 = vmatpush.bf16.msra.mxu0 %v297
  %429 = vmatpush.bf16.msra.mxu0 %v294
  %430 = vmatpush.bf16.msra.mxu0 %v291
  %431 = vmatpush.bf16.msra.mxu0 %v288
  %432 = vmatmul.bf16.gmra.mxu0 %v175
  %v433 = vpop.f32.mrf.mxu0
  %v434 = vadd.f32 %v106, %v433
  %v435 = vpop.f32.mrf.mxu0
  %v436 = vadd.f32 %v106, %v435
  %437 = vmatmul.bf16.gmra.mxu0 %v176
  %v438 = vpop.f32.mrf.mxu0
  %v439 = vadd.f32 %v106, %v438
  %v440 = vpop.f32.mrf.mxu0
  %v441 = vadd.f32 %v106, %v440
  %442 = vmatmul.bf16.gmra.mxu0 %v177
  %v443 = vpop.f32.mrf.mxu0
  %v444 = vadd.f32 %v106, %v443
  %v445 = vpop.f32.mrf.mxu0
  %v446 = vadd.f32 %v106, %v445
  %447 = vmatmul.bf16.gmra.mxu0 %v178
  %v448 = vpop.f32.mrf.mxu0
  %v449 = vadd.f32 %v106, %v448
  %v450 = vpop.f32.mrf.mxu0
  %v451 = vadd.f32 %v106, %v450
  %452 = vmatmul.bf16.gmra.mxu0 %v179
  %v453 = vpop.f32.mrf.mxu0
  %v454 = vadd.f32 %v106, %v453
  %v455 = vpop.f32.mrf.mxu0
  %v456 = vadd.f32 %v106, %v455
  %457 = vmatmul.bf16.gmra.mxu0 %v180
  %v458 = vpop.f32.mrf.mxu0
  %v459 = vadd.f32 %v106, %v458
  %v460 = vpop.f32.mrf.mxu0
  %v461 = vadd.f32 %v106, %v460
  %462 = vmatmul.bf16.gmra.mxu0 %v181
  %v463 = vpop.f32.mrf.mxu0
  %v464 = vadd.f32 %v106, %v463
  %v465 = vpop.f32.mrf.mxu0
  %v466 = vadd.f32 %v106, %v465
  %467 = vmatmul.bf16.gmra.mxu0 %v182
  %v468 = vpop.f32.mrf.mxu0
  %v469 = vadd.f32 %v106, %v468
  %v470 = vpop.f32.mrf.mxu0
  %v471 = vadd.f32 %v106, %v470
  %472 = vmatmul.bf16.gmra.mxu0 %v183
  %v473 = vpop.f32.mrf.mxu0
  %v474 = vadd.f32 %v106, %v473
  %v475 = vpop.f32.mrf.mxu0
  %v476 = vadd.f32 %v106, %v475
  %477 = vmatmul.bf16.gmra.mxu0 %v184
  %v478 = vpop.f32.mrf.mxu0
  %v479 = vadd.f32 %v106, %v478
  %v480 = vpop.f32.mrf.mxu0
  %v481 = vadd.f32 %v106, %v480
  %482 = vmatmul.bf16.gmra.mxu0 %v185
  %v483 = vpop.f32.mrf.mxu0
  %v484 = vadd.f32 %v106, %v483
  %v485 = vpop.f32.mrf.mxu0
  %v486 = vadd.f32 %v106, %v485
  %487 = vmatmul.bf16.gmra.mxu0 %v186
  %v488 = vpop.f32.mrf.mxu0
  %v489 = vadd.f32 %v106, %v488
  %v490 = vpop.f32.mrf.mxu0
  %v491 = vadd.f32 %v106, %v490
  %492 = vmatmul.bf16.gmra.mxu0 %v187
  %v493 = vpop.f32.mrf.mxu0
  %v494 = vadd.f32 %v106, %v493
  %v495 = vpop.f32.mrf.mxu0
  %v496 = vadd.f32 %v106, %v495
  %497 = vmatmul.bf16.gmra.mxu0 %v188
  %v498 = vpop.f32.mrf.mxu0
  %v499 = vadd.f32 %v106, %v498
  %v500 = vpop.f32.mrf.mxu0
  %v501 = vadd.f32 %v106, %v500
  %502 = vmatmul.bf16.gmra.mxu0 %v189
  %v503 = vpop.f32.mrf.mxu0
  %v504 = vadd.f32 %v106, %v503
  %v505 = vpop.f32.mrf.mxu0
  %v506 = vadd.f32 %v106, %v505
  %507 = vmatmul.bf16.gmra.mxu0 %v190
  %v508 = vpop.f32.mrf.mxu0
  %v509 = vadd.f32 %v106, %v508
  %v510 = vpop.f32.mrf.mxu0
  %v511 = vadd.f32 %v106, %v510
  %512 = vdwg.mxu0
  %513 = vmatpush.bf16.msra.mxu0 %v310
  %514 = vmatpush.bf16.msra.mxu0 %v307
  %515 = vmatpush.bf16.msra.mxu0 %v304
  %516 = vmatpush.bf16.msra.mxu0 %v301
  %517 = vmatpush.bf16.msra.mxu0 %v298
  %518 = vmatpush.bf16.msra.mxu0 %v295
  %519 = vmatpush.bf16.msra.mxu0 %v292
  %520 = vmatpush.bf16.msra.mxu0 %v289
  %521 = vmatmul.bf16.gmra.mxu0 %v175
  %v522 = vpop.f32.mrf.mxu0
  %v523 = vadd.f32 %v107, %v522
  %v524 = vpop.f32.mrf.mxu0
  %v525 = vadd.f32 %v107, %v524
  %526 = vmatmul.bf16.gmra.mxu0 %v176
  %v527 = vpop.f32.mrf.mxu0
  %v528 = vadd.f32 %v107, %v527
  %v529 = vpop.f32.mrf.mxu0
  %v530 = vadd.f32 %v107, %v529
  %531 = vmatmul.bf16.gmra.mxu0 %v177
  %v532 = vpop.f32.mrf.mxu0
  %v533 = vadd.f32 %v107, %v532
  %v534 = vpop.f32.mrf.mxu0
  %v535 = vadd.f32 %v107, %v534
  %536 = vmatmul.bf16.gmra.mxu0 %v178
  %v537 = vpop.f32.mrf.mxu0
  %v538 = vadd.f32 %v107, %v537
  %v539 = vpop.f32.mrf.mxu0
  %v540 = vadd.f32 %v107, %v539
  %541 = vmatmul.bf16.gmra.mxu0 %v179
  %v542 = vpop.f32.mrf.mxu0
  %v543 = vadd.f32 %v107, %v542
  %v544 = vpop.f32.mrf.mxu0
  %v545 = vadd.f32 %v107, %v544
  %546 = vmatmul.bf16.gmra.mxu0 %v180
  %v547 = vpop.f32.mrf.mxu0
  %v548 = vadd.f32 %v107, %v547
  %v549 = vpop.f32.mrf.mxu0
  %v550 = vadd.f32 %v107, %v549
  %551 = vmatmul.bf16.gmra.mxu0 %v181
  %v552 = vpop.f32.mrf.mxu0
  %v553 = vadd.f32 %v107, %v552
  %v554 = vpop.f32.mrf.mxu0
  %v555 = vadd.f32 %v107, %v554
  %556 = vmatmul.bf16.gmra.mxu0 %v182
  %v557 = vpop.f32.mrf.mxu0
  %v558 = vadd.f32 %v107, %v557
  %v559 = vpop.f32.mrf.mxu0
  %v560 = vadd.f32 %v107, %v559
  %561 = vmatmul.bf16.gmra.mxu0 %v183
  %v562 = vpop.f32.mrf.mxu0
  %v563 = vadd.f32 %v107, %v562
  %v564 = vpop.f32.mrf.mxu0
  %v565 = vadd.f32 %v107, %v564
  %566 = vmatmul.bf16.gmra.mxu0 %v184
  %v567 = vpop.f32.mrf.mxu0
  %v568 = vadd.f32 %v107, %v567
  %v569 = vpop.f32.mrf.mxu0
  %v570 = vadd.f32 %v107, %v569
  %571 = vmatmul.bf16.gmra.mxu0 %v185
  %v572 = vpop.f32.mrf.mxu0
  %v573 = vadd.f32 %v107, %v572
  %v574 = vpop.f32.mrf.mxu0
  %v575 = vadd.f32 %v107, %v574
  %576 = vmatmul.bf16.gmra.mxu0 %v186
  %v577 = vpop.f32.mrf.mxu0
  %v578 = vadd.f32 %v107, %v577
  %v579 = vpop.f32.mrf.mxu0
  %v580 = vadd.f32 %v107, %v579
  %581 = vmatmul.bf16.gmra.mxu0 %v187
  %v582 = vpop.f32.mrf.mxu0
  %v583 = vadd.f32 %v107, %v582
  %v584 = vpop.f32.mrf.mxu0
  %v585 = vadd.f32 %v107, %v584
  %586 = vmatmul.bf16.gmra.mxu0 %v188
  %v587 = vpop.f32.mrf.mxu0
  %v588 = vadd.f32 %v107, %v587
  %v589 = vpop.f32.mrf.mxu0
  %v590 = vadd.f32 %v107, %v589
  %591 = vmatmul.bf16.gmra.mxu0 %v189
  %v592 = vpop.f32.mrf.mxu0
  %v593 = vadd.f32 %v107, %v592
  %v594 = vpop.f32.mrf.mxu0
  %v595 = vadd.f32 %v107, %v594
  %596 = vmatmul.bf16.gmra.mxu0 %v190
  %v597 = vpop.f32.mrf.mxu0
  %v598 = vadd.f32 %v107, %v597
  %v599 = vpop.f32.mrf.mxu0
  %v600 = vadd.f32 %v107, %v599
  %601 = vdwg.mxu0
  %602 = vst [vmem:[#allocation3] sm:$0xff] %v345
  %603 = vst [vmem:[#allocation3 + $0x8] sm:$0xff] %v434
  %604 = vst [vmem:[#allocation3 + $0x10] sm:$0xff] %v523
  %605 = vst [vmem:[#allocation3 + $0x18] sm:$0xff] %v347
  %606 = vst [vmem:[#allocation3 + $0x20] sm:$0xff] %v436
  %607 = vst [vmem:[#allocation3 + $0x28] sm:$0xff] %v525
  %608 = vst [vmem:[#allocation3 + $0x30] sm:$0xff] %v350
  %609 = vst [vmem:[#allocation3 + $0x38] sm:$0xff] %v439
  %610 = vst [vmem:[#allocation3 + $0x40] sm:$0xff] %v528
  %611 = vst [vmem:[#allocation3 + $0x48] sm:$0xff] %v352
  %612 = vst [vmem:[#allocation3 + $0x50] sm:$0xff] %v441
  %613 = vst [vmem:[#allocation3 + $0x58] sm:$0xff] %v530
  %614 = vst [vmem:[#allocation3 + $0x60] sm:$0xff] %v355
  %615 = vst [vmem:[#allocation3 + $0x68] sm:$0xff] %v444
  %616 = vst [vmem:[#allocation3 + $0x70] sm:$0xff] %v533
  %617 = vst [vmem:[#allocation3 + $0x78] sm:$0xff] %v357
  %618 = vst [vmem:[#allocation3 + $0x80] sm:$0xff] %v446
  %619 = vst [vmem:[#allocation3 + $0x88] sm:$0xff] %v535
  %620 = vst [vmem:[#allocation3 + $0x90] sm:$0xff] %v360
  %621 = vst [vmem:[#allocation3 + $0x98] sm:$0xff] %v449
  %622 = vst [vmem:[#allocation3 + $0xa0] sm:$0xff] %v538
  %623 = vst [vmem:[#allocation3 + $0xa8] sm:$0xff] %v362
  %624 = vst [vmem:[#allocation3 + $0xb0] sm:$0xff] %v451
  %625 = vst [vmem:[#allocation3 + $0xb8] sm:$0xff] %v540
  %626 = vst [vmem:[#allocation3 + $0xc0] sm:$0xff] %v365
  %627 = vst [vmem:[#allocation3 + $0xc8] sm:$0xff] %v454
  %628 = vst [vmem:[#allocation3 + $0xd0] sm:$0xff] %v543
  %629 = vst [vmem:[#allocation3 + $0xd8] sm:$0xff] %v367
  %630 = vst [vmem:[#allocation3 + $0xe0] sm:$0xff] %v456
  %631 = vst [vmem:[#allocation3 + $0xe8] sm:$0xff] %v545
  %632 = vst [vmem:[#allocation3 + $0xf0] sm:$0xff] %v370
  %633 = vst [vmem:[#allocation3 + $0xf8] sm:$0xff] %v459
  %634 = vst [vmem:[#allocation3 + $0x100] sm:$0xff] %v548
  %635 = vst [vmem:[#allocation3 + $0x108] sm:$0xff] %v372
  %636 = vst [vmem:[#allocation3 + $0x110] sm:$0xff] %v461
  %637 = vst [vmem:[#allocation3 + $0x118] sm:$0xff] %v550
  %638 = vst [vmem:[#allocation3 + $0x120] sm:$0xff] %v375
  %639 = vst [vmem:[#allocation3 + $0x128] sm:$0xff] %v464
  %640 = vst [vmem:[#allocation3 + $0x130] sm:$0xff] %v553
  %641 = vst [vmem:[#allocation3 + $0x138] sm:$0xff] %v377
  %642 = vst [vmem:[#allocation3 + $0x140] sm:$0xff] %v466
  %643 = vst [vmem:[#allocation3 + $0x148] sm:$0xff] %v555
  %644 = vst [vmem:[#allocation3 + $0x150] sm:$0xff] %v380
  %645 = vst [vmem:[#allocation3 + $0x158] sm:$0xff] %v469
  %646 = vst [vmem:[#allocation3 + $0x160] sm:$0xff] %v558
  %647 = vst [vmem:[#allocation3 + $0x168] sm:$0xff] %v382
  %648 = vst [vmem:[#allocation3 + $0x170] sm:$0xff] %v471
  %649 = vst [vmem:[#allocation3 + $0x178] sm:$0xff] %v560
  %650 = vst [vmem:[#allocation3 + $0x180] sm:$0xff] %v385
  %651 = vst [vmem:[#allocation3 + $0x188] sm:$0xff] %v474
  %652 = vst [vmem:[#allocation3 + $0x190] sm:$0xff] %v563
  %653 = vst [vmem:[#allocation3 + $0x198] sm:$0xff] %v387
  %654 = vst [vmem:[#allocation3 + $0x1a0] sm:$0xff] %v476
  %655 = vst [vmem:[#allocation3 + $0x1a8] sm:$0xff] %v565
  %656 = vst [vmem:[#allocation3 + $0x1b0] sm:$0xff] %v390
  %657 = vst [vmem:[#allocation3 + $0x1b8] sm:$0xff] %v479
  %658 = vst [vmem:[#allocation3 + $0x1c0] sm:$0xff] %v568
  %659 = vst [vmem:[#allocation3 + $0x1c8] sm:$0xff] %v392
  %660 = vst [vmem:[#allocation3 + $0x1d0] sm:$0xff] %v481
  %661 = vst [vmem:[#allocation3 + $0x1d8] sm:$0xff] %v570
  %662 = vst [vmem:[#allocation3 + $0x1e0] sm:$0xff] %v395
  %663 = vst [vmem:[#allocation3 + $0x1e8] sm:$0xff] %v484
  %664 = vst [vmem:[#allocation3 + $0x1f0] sm:$0xff] %v573
  %665 = vst [vmem:[#allocation3 + $0x1f8] sm:$0xff] %v397
  %666 = vst [vmem:[#allocation3 + $0x200] sm:$0xff] %v486
  %667 = vst [vmem:[#allocation3 + $0x208] sm:$0xff] %v575
  %668 = vst [vmem:[#allocation3 + $0x210] sm:$0xff] %v400
  %669 = vst [vmem:[#allocation3 + $0x218] sm:$0xff] %v489
  %670 = vst [vmem:[#allocation3 + $0x220] sm:$0xff] %v578
  %671 = vst [vmem:[#allocation3 + $0x228] sm:$0xff] %v402
  %672 = vst [vmem:[#allocation3 + $0x230] sm:$0xff] %v491
  %673 = vst [vmem:[#allocation3 + $0x238] sm:$0xff] %v580
  %674 = vst [vmem:[#allocation3 + $0x240] sm:$0xff] %v405
  %675 = vst [vmem:[#allocation3 + $0x248] sm:$0xff] %v494
  %676 = vst [vmem:[#allocation3 + $0x250] sm:$0xff] %v583
  %677 = vst [vmem:[#allocation3 + $0x258] sm:$0xff] %v407
  %678 = vst [vmem:[#allocation3 + $0x260] sm:$0xff] %v496
  %679 = vst [vmem:[#allocation3 + $0x268] sm:$0xff] %v585
  %680 = vst [vmem:[#allocation3 + $0x270] sm:$0xff] %v410
  %681 = vst [vmem:[#allocation3 + $0x278] sm:$0xff] %v499
  %682 = vst [vmem:[#allocation3 + $0x280] sm:$0xff] %v588
  %683 = vst [vmem:[#allocation3 + $0x288] sm:$0xff] %v412
  %684 = vst [vmem:[#allocation3 + $0x290] sm:$0xff] %v501
  %685 = vst [vmem:[#allocation3 + $0x298] sm:$0xff] %v590
  %686 = vst [vmem:[#allocation3 + $0x2a0] sm:$0xff] %v415
  %687 = vst [vmem:[#allocation3 + $0x2a8] sm:$0xff] %v504
  %688 = vst [vmem:[#allocation3 + $0x2b0] sm:$0xff] %v593
  %689 = vst [vmem:[#allocation3 + $0x2b8] sm:$0xff] %v417
  %690 = vst [vmem:[#allocation3 + $0x2c0] sm:$0xff] %v506
  %691 = vst [vmem:[#allocation3 + $0x2c8] sm:$0xff] %v595
  %692 = vst [vmem:[#allocation3 + $0x2d0] sm:$0xff] %v420
  %693 = vst [vmem:[#allocation3 + $0x2d8] sm:$0xff] %v509
  %694 = vst [vmem:[#allocation3 + $0x2e0] sm:$0xff] %v598
  %695 = vst [vmem:[#allocation3 + $0x2e8] sm:$0xff] %v422
  %696 = vst [vmem:[#allocation3 + $0x2f0] sm:$0xff] %v511
  %697 = vst [vmem:[#allocation3 + $0x2f8] sm:$0xff] %v600
  %v698 = vld [vmem:[%s3] sm:$0xff]
  %v699 = vld [vmem:[%s3 + $0x8] sm:$0xf]
  %v700 = vld [vmem:[%s3 + $0xc] sm:$0xff]
  %v701 = vld [vmem:[%s3 + $0x14] sm:$0xf]
  %v702 = vld [vmem:[%s3 + $0x18] sm:$0xff]
  %v703 = vld [vmem:[%s3 + $0x20] sm:$0xf]
  %v704 = vld [vmem:[%s3 + $0x24] sm:$0xff]
  %v705 = vld [vmem:[%s3 + $0x2c] sm:$0xf]
  %v706 = vld [vmem:[%s3 + $0x30] sm:$0xff]
  %v707 = vld [vmem:[%s3 + $0x38] sm:$0xf]
  %v708 = vld [vmem:[%s3 + $0x3c] sm:$0xff]
  %v709 = vld [vmem:[%s3 + $0x44] sm:$0xf]
  %v710 = vld [vmem:[%s3 + $0x48] sm:$0xff]
  %v711 = vld [vmem:[%s3 + $0x50] sm:$0xf]
  %v712 = vld [vmem:[%s3 + $0x54] sm:$0xff]
  %v713 = vld [vmem:[%s3 + $0x5c] sm:$0xf]
  %v714 = vld [vmem:[%s3 + $0x60] sm:$0xff]
  %v715 = vld [vmem:[%s3 + $0x68] sm:$0xf]
  %v716 = vld [vmem:[%s3 + $0x6c] sm:$0xff]
  %v717 = vld [vmem:[%s3 + $0x74] sm:$0xf]
  %v718 = vld [vmem:[%s3 + $0x78] sm:$0xff]
  %v719 = vld [vmem:[%s3 + $0x80] sm:$0xf]
  %v720 = vld [vmem:[%s3 + $0x84] sm:$0xff]
  %v721 = vld [vmem:[%s3 + $0x8c] sm:$0xf]
  %v722 = vld [vmem:[%s3 + $0x90] sm:$0xff]
  %v723 = vld [vmem:[%s3 + $0x98] sm:$0xf]
  %v724 = vld [vmem:[%s3 + $0x9c] sm:$0xff]
  %v725 = vld [vmem:[%s3 + $0xa4] sm:$0xf]
  %v726 = vld [vmem:[%s3 + $0xa8] sm:$0xff]
  %v727 = vld [vmem:[%s3 + $0xb0] sm:$0xf]
  %v728 = vld [vmem:[%s3 + $0xb4] sm:$0xff]
  %v729 = vld [vmem:[%s3 + $0xbc] sm:$0xf]
  %v730 = vld [vmem:[%s5] sm:$0x1]
  %v731 = vld [vmem:[#allocation2] sm:$0xff]
  %v732 = vld [vmem:[#allocation2 + $0x8] sm:$0xff]
  %v733 = vld [vmem:[#allocation3] sm:$0xff]
  %v734 = vld [vmem:[#allocation3 + $0x8] sm:$0xff]
  %v735 = vld [vmem:[#allocation3 + $0x10] sm:$0xff]
  %v736 = vld [vmem:[#allocation3 + $0x18] sm:$0xff]
  %v737 = vld [vmem:[#allocation3 + $0x20] sm:$0xff]
  %v738 = vld [vmem:[#allocation3 + $0x28] sm:$0xff]
  %v739 = vpack.c.bf16 %v732, %v731
  %v772 = vunpack.c.l.b16 %v698
  %v773 = vunpack.c.h.b16 %v698
  %v774 = vunpack.c.l.b16 %v699
  %v775 = vunpack.c.l.b16 %v700
  %v776 = vunpack.c.h.b16 %v700
  %v777 = vunpack.c.l.b16 %v701
  %v778 = vunpack.c.l.b16 %v702
  %v779 = vunpack.c.h.b16 %v702
  %v780 = vunpack.c.l.b16 %v703
  %v781 = vunpack.c.l.b16 %v704
  %v782 = vunpack.c.h.b16 %v704
  %v783 = vunpack.c.l.b16 %v705
  %v784 = vunpack.c.l.b16 %v706
  %v785 = vunpack.c.h.b16 %v706
  %v786 = vunpack.c.l.b16 %v707
  %v787 = vunpack.c.l.b16 %v708
  %v788 = vunpack.c.h.b16 %v708
  %v789 = vunpack.c.l.b16 %v709
  %v790 = vunpack.c.l.b16 %v710
  %v791 = vunpack.c.h.b16 %v710
  %v792 = vunpack.c.l.b16 %v711
  %v793 = vunpack.c.l.b16 %v712
  %v794 = vunpack.c.h.b16 %v712
  %v795 = vunpack.c.l.b16 %v713
  %v796 = vunpack.c.l.b16 %v714
  %v797 = vunpack.c.h.b16 %v714
  %v798 = vunpack.c.l.b16 %v715
  %v799 = vunpack.c.l.b16 %v716
  %v800 = vunpack.c.h.b16 %v716
  %v801 = vunpack.c.l.b16 %v717
  %v802 = vunpack.c.l.b16 %v718
  %v803 = vunpack.c.h.b16 %v718
  %v804 = vunpack.c.l.b16 %v719
  %v805 = vunpack.c.l.b16 %v720
  %v806 = vunpack.c.h.b16 %v720
  %v807 = vunpack.c.l.b16 %v721
  %v808 = vunpack.c.l.b16 %v722
  %v809 = vunpack.c.h.b16 %v722
  %v810 = vunpack.c.l.b16 %v723
  %v811 = vunpack.c.l.b16 %v724
  %v812 = vunpack.c.h.b16 %v724
  %v813 = vunpack.c.l.b16 %v725
  %v814 = vunpack.c.l.b16 %v726
  %v815 = vunpack.c.h.b16 %v726
  %v816 = vunpack.c.l.b16 %v727
  %v817 = vunpack.c.l.b16 %v728
  %v818 = vunpack.c.h.b16 %v728
  %v819 = vunpack.c.l.b16 %v729
  %v820 = vpack.c.b16 %v775, %v772
  %v821 = vpack.c.b16 %v776, %v773
  %v822 = vpack.c.b16 %v777, %v774
  %v823 = vpack.c.b16 %v781, %v778
  %v824 = vpack.c.b16 %v782, %v779
  %v825 = vpack.c.b16 %v783, %v780
  %v826 = vpack.c.b16 %v787, %v784
  %v827 = vpack.c.b16 %v788, %v785
  %v828 = vpack.c.b16 %v789, %v786
  %v829 = vpack.c.b16 %v793, %v790
  %v830 = vpack.c.b16 %v794, %v791
  %v831 = vpack.c.b16 %v795, %v792
  %v832 = vpack.c.b16 %v799, %v796
  %v833 = vpack.c.b16 %v800, %v797
  %v834 = vpack.c.b16 %v801, %v798
  %v835 = vpack.c.b16 %v805, %v802
  %v836 = vpack.c.b16 %v806, %v803
  %v837 = vpack.c.b16 %v807, %v804
  %v838 = vpack.c.b16 %v811, %v808
  %v839 = vpack.c.b16 %v812, %v809
  %v840 = vpack.c.b16 %v813, %v810
  %v841 = vpack.c.b16 %v817, %v814
  %v842 = vpack.c.b16 %v818, %v815
  %v843 = vpack.c.b16 %v819, %v816
  %868 = vmatpush.bf16.msra.mxu0 %v841
  %869 = vmatpush.bf16.msra.mxu0 %v838
  %870 = vmatpush.bf16.msra.mxu0 %v835
  %871 = vmatpush.bf16.msra.mxu0 %v832
  %872 = vmatpush.bf16.msra.mxu0 %v829
  %873 = vmatpush.bf16.msra.mxu0 %v826
  %874 = vmatpush.bf16.msra.mxu0 %v823
  %875 = vmatpush.bf16.msra.mxu0 %v820
  %876 = vmatmul.bf16.gmra.mxu0 %v739
  %v877 = vpop.f32.mrf.mxu0
  %v878 = vadd.f32 0.0, %v877
  %v879 = vpop.f32.mrf.mxu0
  %v880 = vadd.f32 0.0, %v879
  %881 = vdwg.mxu0
  %882 = vmatpush.bf16.msra.mxu0 %v842
  %883 = vmatpush.bf16.msra.mxu0 %v839
  %884 = vmatpush.bf16.msra.mxu0 %v836
  %885 = vmatpush.bf16.msra.mxu0 %v833
  %886 = vmatpush.bf16.msra.mxu0 %v830
  %887 = vmatpush.bf16.msra.mxu0 %v827
  %888 = vmatpush.bf16.msra.mxu0 %v824
  %889 = vmatpush.bf16.msra.mxu0 %v821
  %890 = vmatmul.bf16.gmra.mxu0 %v739
  %v891 = vpop.f32.mrf.mxu0
  %v892 = vadd.f32 0.0, %v891
  %v893 = vpop.f32.mrf.mxu0
  %v894 = vadd.f32 0.0, %v893
  %895 = vdwg.mxu0
  %896 = vmatpush.bf16.msra.mxu0 %v843
  %897 = vmatpush.bf16.msra.mxu0 %v840
  %898 = vmatpush.bf16.msra.mxu0 %v837
  %899 = vmatpush.bf16.msra.mxu0 %v834
  %900 = vmatpush.bf16.msra.mxu0 %v831
  %901 = vmatpush.bf16.msra.mxu0 %v828
  %902 = vmatpush.bf16.msra.mxu0 %v825
  %903 = vmatpush.bf16.msra.mxu0 %v822
  %904 = vmatmul.bf16.gmra.mxu0 %v739
  %v905 = vpop.f32.mrf.mxu0
  %v906 = vadd.f32 0.0, %v905
  %v907 = vpop.f32.mrf.mxu0
  %v908 = vadd.f32 0.0, %v907
  %909 = vdwg.mxu0
  %v910 = vadd.f32 %v733, %v878
  %v911 = vadd.f32 %v736, %v880
  %v912 = vxor.u32 %v910, 2147483648
  %v913 = vxor.u32 %v911, 2147483648
  %v914 = vmul.f32 %v912, 1.442695
  %v915 = vpow.pop %v914
  %v916 = vmul.f32 %v913, 1.442695
  %v917 = vpow.pop %v916
  %v918 = vadd.f32 %v915, 1.0
  %v919 = vadd.f32 %v917, 1.0
  %v920 = vrcp.pop %v918
  %v921 = vmul.f32 %v918, %v920
  %v922 = vsub.f32 1.0, %v921
  %v923 = vmul.f32 %v920, %v922
  %v924 = vadd.f32 %v920, %v923
  %vm925 = vweird.f32 %v918
  %vm926 = vweird.f32 %v920
  %vm927 = vmor %vm925, %vm926
  %v928 = vsel %vm927, %v920, %v924
  %v929 = vand.u32 2147483647, %v918
  %vm930 = vcmp.eq.f32.partialorder %v929, 8.507059e+37
  %v931 = vand.u32 %v918, 2147483648
  %v932 = vor.u32 1.1754944e-38, %v931
  %v933 = vsel %vm930, %v932, %v928
  %v934 = vmul.f32 1.0, %v933
  %v935 = vrcp.pop %v919
  %v936 = vmul.f32 %v919, %v935
  %v937 = vsub.f32 1.0, %v936
  %v938 = vmul.f32 %v935, %v937
  %v939 = vadd.f32 %v935, %v938
  %vm940 = vweird.f32 %v919
  %vm941 = vweird.f32 %v935
  %vm942 = vmor %vm940, %vm941
  %v943 = vsel %vm942, %v935, %v939
  %v944 = vand.u32 2147483647, %v919
  %vm945 = vcmp.eq.f32.partialorder %v944, 8.507059e+37
  %v946 = vand.u32 %v919, 2147483648
  %v947 = vor.u32 1.1754944e-38, %v946
  %v948 = vsel %vm945, %v947, %v943
  %v949 = vmul.f32 1.0, %v948
  %v950 = vadd.f32 %v734, %v892
  %v951 = vadd.f32 %v737, %v894
  %v952 = vxor.u32 %v950, 2147483648
  %v953 = vxor.u32 %v951, 2147483648
  %v954 = vmul.f32 %v952, 1.442695
  %v955 = vpow.pop %v954
  %v956 = vmul.f32 %v953, 1.442695
  %v957 = vpow.pop %v956
  %v958 = vadd.f32 %v955, 1.0
  %v959 = vadd.f32 %v957, 1.0
  %v960 = vrcp.pop %v958
  %v961 = vmul.f32 %v958, %v960
  %v962 = vsub.f32 1.0, %v961
  %v963 = vmul.f32 %v960, %v962
  %v964 = vadd.f32 %v960, %v963
  %vm965 = vweird.f32 %v958
  %vm966 = vweird.f32 %v960
  %vm967 = vmor %vm965, %vm966
  %v968 = vsel %vm967, %v960, %v964
  %v969 = vand.u32 2147483647, %v958
  %vm970 = vcmp.eq.f32.partialorder %v969, 8.507059e+37
  %v971 = vand.u32 %v958, 2147483648
  %v972 = vor.u32 1.1754944e-38, %v971
  %v973 = vsel %vm970, %v972, %v968
  %v974 = vmul.f32 1.0, %v973
  %v975 = vrcp.pop %v959
  %v976 = vmul.f32 %v959, %v975
  %v977 = vsub.f32 1.0, %v976
  %v978 = vmul.f32 %v975, %v977
  %v979 = vadd.f32 %v975, %v978
  %vm980 = vweird.f32 %v959
  %vm981 = vweird.f32 %v975
  %vm982 = vmor %vm980, %vm981
  %v983 = vsel %vm982, %v975, %v979
  %v984 = vand.u32 2147483647, %v959
  %vm985 = vcmp.eq.f32.partialorder %v984, 8.507059e+37
  %v986 = vand.u32 %v959, 2147483648
  %v987 = vor.u32 1.1754944e-38, %v986
  %v988 = vsel %vm985, %v987, %v983
  %v989 = vmul.f32 1.0, %v988
  %v991 = vperm.slane %v730, 0
  %v993 = vadd.f32 %v906, %v991
  %v994 = vadd.f32 %v908, %v991
  %v995 = vmul.f32 %v934, %v993
  %v996 = vmul.f32 %v949, %v994
  %v997 = vadd.f32 %v735, %v995
  %v998 = vadd.f32 %v738, %v996
  %v999 = vtanh.pop %v997
  %v1000 = vtanh.pop %v998
  %v1001 = vsub.f32 1.0, %v974
  %v1002 = vsub.f32 1.0, %v989
  %v1003 = vmul.f32 %v1001, %v999
  %v1004 = vmul.f32 %v1002, %v1000
  %v1005 = vmul.f32 %v974, %v731
  %v1006 = vmul.f32 %v989, %v732
  %v1007 = vadd.f32 %v1003, %v1005
  %v1008 = vadd.f32 %v1004, %v1006
  %v1009 = vpack.c.bf16 %v1007, %v1007
  %v1010 = vpack.c.bf16 %v1008, %v1008
  %1011 = vst [vmem:[#allocation4] sm:$0xf] %v1009
  %1012 = vst [vmem:[#allocation4 + $0x4] sm:$0xf] %v1010
  %s1013 = scalar_lea.vmem [#allocation3], 48
  %v1014 = vld [vmem:[%s1013] sm:$0xff]
  %v1015 = vld [vmem:[%s1013 + $0x8] sm:$0xff]
  %v1016 = vld [vmem:[%s1013 + $0x10] sm:$0xff]
  %v1017 = vld [vmem:[%s1013 + $0x18] sm:$0xff]
  %v1018 = vld [vmem:[%s1013 + $0x20] sm:$0xff]
  %v1019 = vld [vmem:[%s1013 + $0x28] sm:$0xff]
  %v1022 = vunpack.c.l.b16 %v1009
  %v1023 = vunpack.c.l.b16 %v1010
  %v1024 = vpack.c.b16 %v1023, %v1022
  %1026 = vmatpush.bf16.msra.mxu0 %v841
  %1027 = vmatpush.bf16.msra.mxu0 %v838
  %1028 = vmatpush.bf16.msra.mxu0 %v835
  %1029 = vmatpush.bf16.msra.mxu0 %v832
  %1030 = vmatpush.bf16.msra.mxu0 %v829
  %1031 = vmatpush.bf16.msra.mxu0 %v826
  %1032 = vmatpush.bf16.msra.mxu0 %v823
  %1033 = vmatpush.bf16.msra.mxu0 %v820
  %1034 = vmatmul.bf16.gmra.mxu0 %v1024
  %v1035 = vpop.f32.mrf.mxu0
  %v1036 = vadd.f32 0.0, %v1035
  %v1037 = vpop.f32.mrf.mxu0
  %v1038 = vadd.f32 0.0, %v1037
  %1039 = vdwg.mxu0
  %1040 = vmatpush.bf16.msra.mxu0 %v842
  %1041 = vmatpush.bf16.msra.mxu0 %v839
  %1042 = vmatpush.bf16.msra.mxu0 %v836
  %1043 = vmatpush.bf16.msra.mxu0 %v833
  %1044 = vmatpush.bf16.msra.mxu0 %v830
  %1045 = vmatpush.bf16.msra.mxu0 %v827
  %1046 = vmatpush.bf16.msra.mxu0 %v824
  %1047 = vmatpush.bf16.msra.mxu0 %v821
  %1048 = vmatmul.bf16.gmra.mxu0 %v1024
  %v1049 = vpop.f32.mrf.mxu0
  %v1050 = vadd.f32 0.0, %v1049
  %v1051 = vpop.f32.mrf.mxu0
  %v1052 = vadd.f32 0.0, %v1051
  %1053 = vdwg.mxu0
  %1054 = vmatpush.bf16.msra.mxu0 %v843
  %1055 = vmatpush.bf16.msra.mxu0 %v840
  %1056 = vmatpush.bf16.msra.mxu0 %v837
  %1057 = vmatpush.bf16.msra.mxu0 %v834
  %1058 = vmatpush.bf16.msra.mxu0 %v831
  %1059 = vmatpush.bf16.msra.mxu0 %v828
  %1060 = vmatpush.bf16.msra.mxu0 %v825
  %1061 = vmatpush.bf16.msra.mxu0 %v822
  %1062 = vmatmul.bf16.gmra.mxu0 %v1024
  %v1063 = vpop.f32.mrf.mxu0
  %v1064 = vadd.f32 0.0, %v1063
  %v1065 = vpop.f32.mrf.mxu0
  %v1066 = vadd.f32 0.0, %v1065
  %1067 = vdwg.mxu0
  %v1068 = vadd.f32 %v1014, %v1036
  %v1069 = vadd.f32 %v1017, %v1038
  %v1070 = vxor.u32 %v1068, 2147483648
  %v1071 = vxor.u32 %v1069, 2147483648
  %v1072 = vmul.f32 %v1070, 1.442695
  %v1073 = vpow.pop %v1072
  %v1074 = vmul.f32 %v1071, 1.442695
  %v1075 = vpow.pop %v1074
  %v1076 = vadd.f32 %v1073, 1.0
  %v1077 = vadd.f32 %v1075, 1.0
  %v1078 = vrcp.pop %v1076
  %v1079 = vmul.f32 %v1076, %v1078
  %v1080 = vsub.f32 1.0, %v1079
  %v1081 = vmul.f32 %v1078, %v1080
  %v1082 = vadd.f32 %v1078, %v1081
  %vm1083 = vweird.f32 %v1076
  %vm1084 = vweird.f32 %v1078
  %vm1085 = vmor %vm1083, %vm1084
  %v1086 = vsel %vm1085, %v1078, %v1082
  %v1087 = vand.u32 2147483647, %v1076
  %vm1088 = vcmp.eq.f32.partialorder %v1087, 8.507059e+37
  %v1089 = vand.u32 %v1076, 2147483648
  %v1090 = vor.u32 1.1754944e-38, %v1089
  %v1091 = vsel %vm1088, %v1090, %v1086
  %v1092 = vmul.f32 1.0, %v1091
  %v1093 = vrcp.pop %v1077
  %v1094 = vmul.f32 %v1077, %v1093
  %v1095 = vsub.f32 1.0, %v1094
  %v1096 = vmul.f32 %v1093, %v1095
  %v1097 = vadd.f32 %v1093, %v1096
  %vm1098 = vweird.f32 %v1077
  %vm1099 = vweird.f32 %v1093
  %vm1100 = vmor %vm1098, %vm1099
  %v1101 = vsel %vm1100, %v1093, %v1097
  %v1102 = vand.u32 2147483647, %v1077
  %vm1103 = vcmp.eq.f32.partialorder %v1102, 8.507059e+37
  %v1104 = vand.u32 %v1077, 2147483648
  %v1105 = vor.u32 1.1754944e-38, %v1104
  %v1106 = vsel %vm1103, %v1105, %v1101
  %v1107 = vmul.f32 1.0, %v1106
  %v1108 = vadd.f32 %v1015, %v1050
  %v1109 = vadd.f32 %v1018, %v1052
  %v1110 = vxor.u32 %v1108, 2147483648
  %v1111 = vxor.u32 %v1109, 2147483648
  %v1112 = vmul.f32 %v1110, 1.442695
  %v1113 = vpow.pop %v1112
  %v1114 = vmul.f32 %v1111, 1.442695
  %v1115 = vpow.pop %v1114
  %v1116 = vadd.f32 %v1113, 1.0
  %v1117 = vadd.f32 %v1115, 1.0
  %v1118 = vrcp.pop %v1116
  %v1119 = vmul.f32 %v1116, %v1118
  %v1120 = vsub.f32 1.0, %v1119
  %v1121 = vmul.f32 %v1118, %v1120
  %v1122 = vadd.f32 %v1118, %v1121
  %vm1123 = vweird.f32 %v1116
  %vm1124 = vweird.f32 %v1118
  %vm1125 = vmor %vm1123, %vm1124
  %v1126 = vsel %vm1125, %v1118, %v1122
  %v1127 = vand.u32 2147483647, %v1116
  %vm1128 = vcmp.eq.f32.partialorder %v1127, 8.507059e+37
  %v1129 = vand.u32 %v1116, 2147483648
  %v1130 = vor.u32 1.1754944e-38, %v1129
  %v1131 = vsel %vm1128, %v1130, %v1126
  %v1132 = vmul.f32 1.0, %v1131
  %v1133 = vrcp.pop %v1117
  %v1134 = vmul.f32 %v1117, %v1133
  %v1135 = vsub.f32 1.0, %v1134
  %v1136 = vmul.f32 %v1133, %v1135
  %v1137 = vadd.f32 %v1133, %v1136
  %vm1138 = vweird.f32 %v1117
  %vm1139 = vweird.f32 %v1133
  %vm1140 = vmor %vm1138, %vm1139
  %v1141 = vsel %vm1140, %v1133, %v1137
  %v1142 = vand.u32 2147483647, %v1117
  %vm1143 = vcmp.eq.f32.partialorder %v1142, 8.507059e+37
  %v1144 = vand.u32 %v1117, 2147483648
  %v1145 = vor.u32 1.1754944e-38, %v1144
  %v1146 = vsel %vm1143, %v1145, %v1141
  %v1147 = vmul.f32 1.0, %v1146
  %v1148 = vadd.f32 %v1064, %v991
  %v1149 = vadd.f32 %v1066, %v991
  %v1150 = vmul.f32 %v1092, %v1148
  %v1151 = vmul.f32 %v1107, %v1149
  %v1152 = vadd.f32 %v1016, %v1150
  %v1153 = vadd.f32 %v1019, %v1151
  %v1154 = vtanh.pop %v1152
  %v1155 = vtanh.pop %v1153
  %v1156 = vsub.f32 1.0, %v1132
  %v1157 = vsub.f32 1.0, %v1147
  %v1158 = vmul.f32 %v1156, %v1154
  %v1159 = vmul.f32 %v1157, %v1155
  %v1160 = vmul.f32 %v1132, %v1007
  %v1161 = vmul.f32 %v1147, %v1008
  %v1162 = vadd.f32 %v1158, %v1160
  %v1163 = vadd.f32 %v1159, %v1161
  %v1164 = vpack.c.bf16 %v1162, %v1162
  %v1165 = vpack.c.bf16 %v1163, %v1163
  %s1166 = scalar_lea.vmem [#allocation4], 8
  %1167 = vst [vmem:[%s1166] sm:$0xf] %v1164
  %1168 = vst [vmem:[%s1166 + $0x4] sm:$0xf] %v1165
  %s1169 = scalar_lea.vmem [#allocation3], 96
  %v1170 = vld [vmem:[%s1169] sm:$0xff]
  %v1171 = vld [vmem:[%s1169 + $0x8] sm:$0xff]
  %v1172 = vld [vmem:[%s1169 + $0x10] sm:$0xff]
  %v1173 = vld [vmem:[%s1169 + $0x18] sm:$0xff]
  %v1174 = vld [vmem:[%s1169 + $0x20] sm:$0xff]
  %v1175 = vld [vmem:[%s1169 + $0x28] sm:$0xff]
  %v1178 = vunpack.c.l.b16 %v1164
  %v1179 = vunpack.c.l.b16 %v1165
  %v1180 = vpack.c.b16 %v1179, %v1178
  %1182 = vmatpush.bf16.msra.mxu0 %v841
  %1183 = vmatpush.bf16.msra.mxu0 %v838
  %1184 = vmatpush.bf16.msra.mxu0 %v835
  %1185 = vmatpush.bf16.msra.mxu0 %v832
  %1186 = vmatpush.bf16.msra.mxu0 %v829
  %1187 = vmatpush.bf16.msra.mxu0 %v826
  %1188 = vmatpush.bf16.msra.mxu0 %v823
  %1189 = vmatpush.bf16.msra.mxu0 %v820
  %1190 = vmatmul.bf16.gmra.mxu0 %v1180
  %v1191 = vpop.f32.mrf.mxu0
  %v1192 = vadd.f32 0.0, %v1191
  %v1193 = vpop.f32.mrf.mxu0
  %v1194 = vadd.f32 0.0, %v1193
  %1195 = vdwg.mxu0
  %1196 = vmatpush.bf16.msra.mxu0 %v842
  %1197 = vmatpush.bf16.msra.mxu0 %v839
  %1198 = vmatpush.bf16.msra.mxu0 %v836
  %1199 = vmatpush.bf16.msra.mxu0 %v833
  %1200 = vmatpush.bf16.msra.mxu0 %v830
  %1201 = vmatpush.bf16.msra.mxu0 %v827
  %1202 = vmatpush.bf16.msra.mxu0 %v824
  %1203 = vmatpush.bf16.msra.mxu0 %v821
  %1204 = vmatmul.bf16.gmra.mxu0 %v1180
  %v1205 = vpop.f32.mrf.mxu0
  %v1206 = vadd.f32 0.0, %v1205
  %v1207 = vpop.f32.mrf.mxu0
  %v1208 = vadd.f32 0.0, %v1207
  %1209 = vdwg.mxu0
  %1210 = vmatpush.bf16.msra.mxu0 %v843
  %1211 = vmatpush.bf16.msra.mxu0 %v840
  %1212 = vmatpush.bf16.msra.mxu0 %v837
  %1213 = vmatpush.bf16.msra.mxu0 %v834
  %1214 = vmatpush.bf16.msra.mxu0 %v831
  %1215 = vmatpush.bf16.msra.mxu0 %v828
  %1216 = vmatpush.bf16.msra.mxu0 %v825
  %1217 = vmatpush.bf16.msra.mxu0 %v822
  %1218 = vmatmul.bf16.gmra.mxu0 %v1180
  %v1219 = vpop.f32.mrf.mxu0
  %v1220 = vadd.f32 0.0, %v1219
  %v1221 = vpop.f32.mrf.mxu0
  %v1222 = vadd.f32 0.0, %v1221
  %1223 = vdwg.mxu0
  %v1224 = vadd.f32 %v1170, %v1192
  %v1225 = vadd.f32 %v1173, %v1194
  %v1226 = vxor.u32 %v1224, 2147483648
  %v1227 = vxor.u32 %v1225, 2147483648
  %v1228 = vmul.f32 %v1226, 1.442695
  %v1229 = vpow.pop %v1228
  %v1230 = vmul.f32 %v1227, 1.442695
  %v1231 = vpow.pop %v1230
  %v1232 = vadd.f32 %v1229, 1.0
  %v1233 = vadd.f32 %v1231, 1.0
  %v1234 = vrcp.pop %v1232
  %v1235 = vmul.f32 %v1232, %v1234
  %v1236 = vsub.f32 1.0, %v1235
  %v1237 = vmul.f32 %v1234, %v1236
  %v1238 = vadd.f32 %v1234, %v1237
  %vm1239 = vweird.f32 %v1232
  %vm1240 = vweird.f32 %v1234
  %vm1241 = vmor %vm1239, %vm1240
  %v1242 = vsel %vm1241, %v1234, %v1238
  %v1243 = vand.u32 2147483647, %v1232
  %vm1244 = vcmp.eq.f32.partialorder %v1243, 8.507059e+37
  %v1245 = vand.u32 %v1232, 2147483648
  %v1246 = vor.u32 1.1754944e-38, %v1245
  %v1247 = vsel %vm1244, %v1246, %v1242
  %v1248 = vmul.f32 1.0, %v1247
  %v1249 = vrcp.pop %v1233
  %v1250 = vmul.f32 %v1233, %v1249
  %v1251 = vsub.f32 1.0, %v1250
  %v1252 = vmul.f32 %v1249, %v1251
  %v1253 = vadd.f32 %v1249, %v1252
  %vm1254 = vweird.f32 %v1233
  %vm1255 = vweird.f32 %v1249
  %vm1256 = vmor %vm1254, %vm1255
  %v1257 = vsel %vm1256, %v1249, %v1253
  %v1258 = vand.u32 2147483647, %v1233
  %vm1259 = vcmp.eq.f32.partialorder %v1258, 8.507059e+37
  %v1260 = vand.u32 %v1233, 2147483648
  %v1261 = vor.u32 1.1754944e-38, %v1260
  %v1262 = vsel %vm1259, %v1261, %v1257
  %v1263 = vmul.f32 1.0, %v1262
  %v1264 = vadd.f32 %v1171, %v1206
  %v1265 = vadd.f32 %v1174, %v1208
  %v1266 = vxor.u32 %v1264, 2147483648
  %v1267 = vxor.u32 %v1265, 2147483648
  %v1268 = vmul.f32 %v1266, 1.442695
  %v1269 = vpow.pop %v1268
  %v1270 = vmul.f32 %v1267, 1.442695
  %v1271 = vpow.pop %v1270
  %v1272 = vadd.f32 %v1269, 1.0
  %v1273 = vadd.f32 %v1271, 1.0
  %v1274 = vrcp.pop %v1272
  %v1275 = vmul.f32 %v1272, %v1274
  %v1276 = vsub.f32 1.0, %v1275
  %v1277 = vmul.f32 %v1274, %v1276
  %v1278 = vadd.f32 %v1274, %v1277
  %vm1279 = vweird.f32 %v1272
  %vm1280 = vweird.f32 %v1274
  %vm1281 = vmor %vm1279, %vm1280
  %v1282 = vsel %vm1281, %v1274, %v1278
  %v1283 = vand.u32 2147483647, %v1272
  %vm1284 = vcmp.eq.f32.partialorder %v1283, 8.507059e+37
  %v1285 = vand.u32 %v1272, 2147483648
  %v1286 = vor.u32 1.1754944e-38, %v1285
  %v1287 = vsel %vm1284, %v1286, %v1282
  %v1288 = vmul.f32 1.0, %v1287
  %v1289 = vrcp.pop %v1273
  %v1290 = vmul.f32 %v1273, %v1289
  %v1291 = vsub.f32 1.0, %v1290
  %v1292 = vmul.f32 %v1289, %v1291
  %v1293 = vadd.f32 %v1289, %v1292
  %vm1294 = vweird.f32 %v1273
  %vm1295 = vweird.f32 %v1289
  %vm1296 = vmor %vm1294, %vm1295
  %v1297 = vsel %vm1296, %v1289, %v1293
  %v1298 = vand.u32 2147483647, %v1273
  %vm1299 = vcmp.eq.f32.partialorder %v1298, 8.507059e+37
  %v1300 = vand.u32 %v1273, 2147483648
  %v1301 = vor.u32 1.1754944e-38, %v1300
  %v1302 = vsel %vm1299, %v1301, %v1297
  %v1303 = vmul.f32 1.0, %v1302
  %v1304 = vadd.f32 %v1220, %v991
  %v1305 = vadd.f32 %v1222, %v991
  %v1306 = vmul.f32 %v1248, %v1304
  %v1307 = vmul.f32 %v1263, %v1305
  %v1308 = vadd.f32 %v1172, %v1306
  %v1309 = vadd.f32 %v1175, %v1307
  %v1310 = vtanh.pop %v1308
  %v1311 = vtanh.pop %v1309
  %v1312 = vsub.f32 1.0, %v1288
  %v1313 = vsub.f32 1.0, %v1303
  %v1314 = vmul.f32 %v1312, %v1310
  %v1315 = vmul.f32 %v1313, %v1311
  %v1316 = vmul.f32 %v1288, %v1162
  %v1317 = vmul.f32 %v1303, %v1163
  %v1318 = vadd.f32 %v1314, %v1316
  %v1319 = vadd.f32 %v1315, %v1317
  %v1320 = vpack.c.bf16 %v1318, %v1318
  %v1321 = vpack.c.bf16 %v1319, %v1319
  %s1322 = scalar_lea.vmem [#allocation4], 16
  %1323 = vst [vmem:[%s1322] sm:$0xf] %v1320
  %1324 = vst [vmem:[%s1322 + $0x4] sm:$0xf] %v1321
  %s1325 = scalar_lea.vmem [#allocation3], 144
  %v1326 = vld [vmem:[%s1325] sm:$0xff]
  %v1327 = vld [vmem:[%s1325 + $0x8] sm:$0xff]
  %v1328 = vld [vmem:[%s1325 + $0x10] sm:$0xff]
  %v1329 = vld [vmem:[%s1325 + $0x18] sm:$0xff]
  %v1330 = vld [vmem:[%s1325 + $0x20] sm:$0xff]
  %v1331 = vld [vmem:[%s1325 + $0x28] sm:$0xff]
  %v1334 = vunpack.c.l.b16 %v1320
  %v1335 = vunpack.c.l.b16 %v1321
  %v1336 = vpack.c.b16 %v1335, %v1334
  %1338 = vmatpush.bf16.msra.mxu0 %v841
  %1339 = vmatpush.bf16.msra.mxu0 %v838
  %1340 = vmatpush.bf16.msra.mxu0 %v835
  %1341 = vmatpush.bf16.msra.mxu0 %v832
  %1342 = vmatpush.bf16.msra.mxu0 %v829
  %1343 = vmatpush.bf16.msra.mxu0 %v826
  %1344 = vmatpush.bf16.msra.mxu0 %v823
  %1345 = vmatpush.bf16.msra.mxu0 %v820
  %1346 = vmatmul.bf16.gmra.mxu0 %v1336
  %v1347 = vpop.f32.mrf.mxu0
  %v1348 = vadd.f32 0.0, %v1347
  %v1349 = vpop.f32.mrf.mxu0
  %v1350 = vadd.f32 0.0, %v1349
  %1351 = vdwg.mxu0
  %1352 = vmatpush.bf16.msra.mxu0 %v842
  %1353 = vmatpush.bf16.msra.mxu0 %v839
  %1354 = vmatpush.bf16.msra.mxu0 %v836
  %1355 = vmatpush.bf16.msra.mxu0 %v833
  %1356 = vmatpush.bf16.msra.mxu0 %v830
  %1357 = vmatpush.bf16.msra.mxu0 %v827
  %1358 = vmatpush.bf16.msra.mxu0 %v824
  %1359 = vmatpush.bf16.msra.mxu0 %v821
  %1360 = vmatmul.bf16.gmra.mxu0 %v1336
  %v1361 = vpop.f32.mrf.mxu0
  %v1362 = vadd.f32 0.0, %v1361
  %v1363 = vpop.f32.mrf.mxu0
  %v1364 = vadd.f32 0.0, %v1363
  %1365 = vdwg.mxu0
  %1366 = vmatpush.bf16.msra.mxu0 %v843
  %1367 = vmatpush.bf16.msra.mxu0 %v840
  %1368 = vmatpush.bf16.msra.mxu0 %v837
  %1369 = vmatpush.bf16.msra.mxu0 %v834
  %1370 = vmatpush.bf16.msra.mxu0 %v831
  %1371 = vmatpush.bf16.msra.mxu0 %v828
  %1372 = vmatpush.bf16.msra.mxu0 %v825
  %1373 = vmatpush.bf16.msra.mxu0 %v822
  %1374 = vmatmul.bf16.gmra.mxu0 %v1336
  %v1375 = vpop.f32.mrf.mxu0
  %v1376 = vadd.f32 0.0, %v1375
  %v1377 = vpop.f32.mrf.mxu0
  %v1378 = vadd.f32 0.0, %v1377
  %1379 = vdwg.mxu0
  %v1380 = vadd.f32 %v1326, %v1348
  %v1381 = vadd.f32 %v1329, %v1350
  %v1382 = vxor.u32 %v1380, 2147483648
  %v1383 = vxor.u32 %v1381, 2147483648
  %v1384 = vmul.f32 %v1382, 1.442695
  %v1385 = vpow.pop %v1384
  %v1386 = vmul.f32 %v1383, 1.442695
  %v1387 = vpow.pop %v1386
  %v1388 = vadd.f32 %v1385, 1.0
  %v1389 = vadd.f32 %v1387, 1.0
  %v1390 = vrcp.pop %v1388
  %v1391 = vmul.f32 %v1388, %v1390
  %v1392 = vsub.f32 1.0, %v1391
  %v1393 = vmul.f32 %v1390, %v1392
  %v1394 = vadd.f32 %v1390, %v1393
  %vm1395 = vweird.f32 %v1388
  %vm1396 = vweird.f32 %v1390
  %vm1397 = vmor %vm1395, %vm1396
  %v1398 = vsel %vm1397, %v1390, %v1394
  %v1399 = vand.u32 2147483647, %v1388
  %vm1400 = vcmp.eq.f32.partialorder %v1399, 8.507059e+37
  %v1401 = vand.u32 %v1388, 2147483648
  %v1402 = vor.u32 1.1754944e-38, %v1401
  %v1403 = vsel %vm1400, %v1402, %v1398
  %v1404 = vmul.f32 1.0, %v1403
  %v1405 = vrcp.pop %v1389
  %v1406 = vmul.f32 %v1389, %v1405
  %v1407 = vsub.f32 1.0, %v1406
  %v1408 = vmul.f32 %v1405, %v1407
  %v1409 = vadd.f32 %v1405, %v1408
  %vm1410 = vweird.f32 %v1389
  %vm1411 = vweird.f32 %v1405
  %vm1412 = vmor %vm1410, %vm1411
  %v1413 = vsel %vm1412, %v1405, %v1409
  %v1414 = vand.u32 2147483647, %v1389
  %vm1415 = vcmp.eq.f32.partialorder %v1414, 8.507059e+37
  %v1416 = vand.u32 %v1389, 2147483648
  %v1417 = vor.u32 1.1754944e-38, %v1416
  %v1418 = vsel %vm1415, %v1417, %v1413
  %v1419 = vmul.f32 1.0, %v1418
  %v1420 = vadd.f32 %v1327, %v1362
  %v1421 = vadd.f32 %v1330, %v1364
  %v1422 = vxor.u32 %v1420, 2147483648
  %v1423 = vxor.u32 %v1421, 2147483648
  %v1424 = vmul.f32 %v1422, 1.442695
  %v1425 = vpow.pop %v1424
  %v1426 = vmul.f32 %v1423, 1.442695
  %v1427 = vpow.pop %v1426
  %v1428 = vadd.f32 %v1425, 1.0
  %v1429 = vadd.f32 %v1427, 1.0
  %v1430 = vrcp.pop %v1428
  %v1431 = vmul.f32 %v1428, %v1430
  %v1432 = vsub.f32 1.0, %v1431
  %v1433 = vmul.f32 %v1430, %v1432
  %v1434 = vadd.f32 %v1430, %v1433
  %vm1435 = vweird.f32 %v1428
  %vm1436 = vweird.f32 %v1430
  %vm1437 = vmor %vm1435, %vm1436
  %v1438 = vsel %vm1437, %v1430, %v1434
  %v1439 = vand.u32 2147483647, %v1428
  %vm1440 = vcmp.eq.f32.partialorder %v1439, 8.507059e+37
  %v1441 = vand.u32 %v1428, 2147483648
  %v1442 = vor.u32 1.1754944e-38, %v1441
  %v1443 = vsel %vm1440, %v1442, %v1438
  %v1444 = vmul.f32 1.0, %v1443
  %v1445 = vrcp.pop %v1429
  %v1446 = vmul.f32 %v1429, %v1445
  %v1447 = vsub.f32 1.0, %v1446
  %v1448 = vmul.f32 %v1445, %v1447
  %v1449 = vadd.f32 %v1445, %v1448
  %vm1450 = vweird.f32 %v1429
  %vm1451 = vweird.f32 %v1445
  %vm1452 = vmor %vm1450, %vm1451
  %v1453 = vsel %vm1452, %v1445, %v1449
  %v1454 = vand.u32 2147483647, %v1429
  %vm1455 = vcmp.eq.f32.partialorder %v1454, 8.507059e+37
  %v1456 = vand.u32 %v1429, 2147483648
  %v1457 = vor.u32 1.1754944e-38, %v1456
  %v1458 = vsel %vm1455, %v1457, %v1453
  %v1459 = vmul.f32 1.0, %v1458
  %v1460 = vadd.f32 %v1376, %v991
  %v1461 = vadd.f32 %v1378, %v991
  %v1462 = vmul.f32 %v1404, %v1460
  %v1463 = vmul.f32 %v1419, %v1461
  %v1464 = vadd.f32 %v1328, %v1462
  %v1465 = vadd.f32 %v1331, %v1463
  %v1466 = vtanh.pop %v1464
  %v1467 = vtanh.pop %v1465
  %v1468 = vsub.f32 1.0, %v1444
  %v1469 = vsub.f32 1.0, %v1459
  %v1470 = vmul.f32 %v1468, %v1466
  %v1471 = vmul.f32 %v1469, %v1467
  %v1472 = vmul.f32 %v1444, %v1318
  %v1473 = vmul.f32 %v1459, %v1319
  %v1474 = vadd.f32 %v1470, %v1472
  %v1475 = vadd.f32 %v1471, %v1473
  %v1476 = vpack.c.bf16 %v1474, %v1474
  %v1477 = vpack.c.bf16 %v1475, %v1475
  %s1478 = scalar_lea.vmem [#allocation4], 24
  %1479 = vst [vmem:[%s1478] sm:$0xf] %v1476
  %1480 = vst [vmem:[%s1478 + $0x4] sm:$0xf] %v1477
  %s1481 = scalar_lea.vmem [#allocation3], 192
  %v1482 = vld [vmem:[%s1481] sm:$0xff]
  %v1483 = vld [vmem:[%s1481 + $0x8] sm:$0xff]
  %v1484 = vld [vmem:[%s1481 + $0x10] sm:$0xff]
  %v1485 = vld [vmem:[%s1481 + $0x18] sm:$0xff]
  %v1486 = vld [vmem:[%s1481 + $0x20] sm:$0xff]
  %v1487 = vld [vmem:[%s1481 + $0x28] sm:$0xff]
  %v1490 = vunpack.c.l.b16 %v1476
  %v1491 = vunpack.c.l.b16 %v1477
  %v1492 = vpack.c.b16 %v1491, %v1490
  %1494 = vmatpush.bf16.msra.mxu0 %v841
  %1495 = vmatpush.bf16.msra.mxu0 %v838
  %1496 = vmatpush.bf16.msra.mxu0 %v835
  %1497 = vmatpush.bf16.msra.mxu0 %v832
  %1498 = vmatpush.bf16.msra.mxu0 %v829
  %1499 = vmatpush.bf16.msra.mxu0 %v826
  %1500 = vmatpush.bf16.msra.mxu0 %v823
  %1501 = vmatpush.bf16.msra.mxu0 %v820
  %1502 = vmatmul.bf16.gmra.mxu0 %v1492
  %v1503 = vpop.f32.mrf.mxu0
  %v1504 = vadd.f32 0.0, %v1503
  %v1505 = vpop.f32.mrf.mxu0
  %v1506 = vadd.f32 0.0, %v1505
  %1507 = vdwg.mxu0
  %1508 = vmatpush.bf16.msra.mxu0 %v842
  %1509 = vmatpush.bf16.msra.mxu0 %v839
  %1510 = vmatpush.bf16.msra.mxu0 %v836
  %1511 = vmatpush.bf16.msra.mxu0 %v833
  %1512 = vmatpush.bf16.msra.mxu0 %v830
  %1513 = vmatpush.bf16.msra.mxu0 %v827
  %1514 = vmatpush.bf16.msra.mxu0 %v824
  %1515 = vmatpush.bf16.msra.mxu0 %v821
  %1516 = vmatmul.bf16.gmra.mxu0 %v1492
  %v1517 = vpop.f32.mrf.mxu0
  %v1518 = vadd.f32 0.0, %v1517
  %v1519 = vpop.f32.mrf.mxu0
  %v1520 = vadd.f32 0.0, %v1519
  %1521 = vdwg.mxu0
  %1522 = vmatpush.bf16.msra.mxu0 %v843
  %1523 = vmatpush.bf16.msra.mxu0 %v840
  %1524 = vmatpush.bf16.msra.mxu0 %v837
  %1525 = vmatpush.bf16.msra.mxu0 %v834
  %1526 = vmatpush.bf16.msra.mxu0 %v831
  %1527 = vmatpush.bf16.msra.mxu0 %v828
  %1528 = vmatpush.bf16.msra.mxu0 %v825
  %1529 = vmatpush.bf16.msra.mxu0 %v822
  %1530 = vmatmul.bf16.gmra.mxu0 %v1492
  %v1531 = vpop.f32.mrf.mxu0
  %v1532 = vadd.f32 0.0, %v1531
  %v1533 = vpop.f32.mrf.mxu0
  %v1534 = vadd.f32 0.0, %v1533
  %1535 = vdwg.mxu0
  %v1536 = vadd.f32 %v1482, %v1504
  %v1537 = vadd.f32 %v1485, %v1506
  %v1538 = vxor.u32 %v1536, 2147483648
  %v1539 = vxor.u32 %v1537, 2147483648
  %v1540 = vmul.f32 %v1538, 1.442695
  %v1541 = vpow.pop %v1540
  %v1542 = vmul.f32 %v1539, 1.442695
  %v1543 = vpow.pop %v1542
  %v1544 = vadd.f32 %v1541, 1.0
  %v1545 = vadd.f32 %v1543, 1.0
  %v1546 = vrcp.pop %v1544
  %v1547 = vmul.f32 %v1544, %v1546
  %v1548 = vsub.f32 1.0, %v1547
  %v1549 = vmul.f32 %v1546, %v1548
  %v1550 = vadd.f32 %v1546, %v1549
  %vm1551 = vweird.f32 %v1544
  %vm1552 = vweird.f32 %v1546
  %vm1553 = vmor %vm1551, %vm1552
  %v1554 = vsel %vm1553, %v1546, %v1550
  %v1555 = vand.u32 2147483647, %v1544
  %vm1556 = vcmp.eq.f32.partialorder %v1555, 8.507059e+37
  %v1557 = vand.u32 %v1544, 2147483648
  %v1558 = vor.u32 1.1754944e-38, %v1557
  %v1559 = vsel %vm1556, %v1558, %v1554
  %v1560 = vmul.f32 1.0, %v1559
  %v1561 = vrcp.pop %v1545
  %v1562 = vmul.f32 %v1545, %v1561
  %v1563 = vsub.f32 1.0, %v1562
  %v1564 = vmul.f32 %v1561, %v1563
  %v1565 = vadd.f32 %v1561, %v1564
  %vm1566 = vweird.f32 %v1545
  %vm1567 = vweird.f32 %v1561
  %vm1568 = vmor %vm1566, %vm1567
  %v1569 = vsel %vm1568, %v1561, %v1565
  %v1570 = vand.u32 2147483647, %v1545
  %vm1571 = vcmp.eq.f32.partialorder %v1570, 8.507059e+37
  %v1572 = vand.u32 %v1545, 2147483648
  %v1573 = vor.u32 1.1754944e-38, %v1572
  %v1574 = vsel %vm1571, %v1573, %v1569
  %v1575 = vmul.f32 1.0, %v1574
  %v1576 = vadd.f32 %v1483, %v1518
  %v1577 = vadd.f32 %v1486, %v1520
  %v1578 = vxor.u32 %v1576, 2147483648
  %v1579 = vxor.u32 %v1577, 2147483648
  %v1580 = vmul.f32 %v1578, 1.442695
  %v1581 = vpow.pop %v1580
  %v1582 = vmul.f32 %v1579, 1.442695
  %v1583 = vpow.pop %v1582
  %v1584 = vadd.f32 %v1581, 1.0
  %v1585 = vadd.f32 %v1583, 1.0
  %v1586 = vrcp.pop %v1584
  %v1587 = vmul.f32 %v1584, %v1586
  %v1588 = vsub.f32 1.0, %v1587
  %v1589 = vmul.f32 %v1586, %v1588
  %v1590 = vadd.f32 %v1586, %v1589
  %vm1591 = vweird.f32 %v1584
  %vm1592 = vweird.f32 %v1586
  %vm1593 = vmor %vm1591, %vm1592
  %v1594 = vsel %vm1593, %v1586, %v1590
  %v1595 = vand.u32 2147483647, %v1584
  %vm1596 = vcmp.eq.f32.partialorder %v1595, 8.507059e+37
  %v1597 = vand.u32 %v1584, 2147483648
  %v1598 = vor.u32 1.1754944e-38, %v1597
  %v1599 = vsel %vm1596, %v1598, %v1594
  %v1600 = vmul.f32 1.0, %v1599
  %v1601 = vrcp.pop %v1585
  %v1602 = vmul.f32 %v1585, %v1601
  %v1603 = vsub.f32 1.0, %v1602
  %v1604 = vmul.f32 %v1601, %v1603
  %v1605 = vadd.f32 %v1601, %v1604
  %vm1606 = vweird.f32 %v1585
  %vm1607 = vweird.f32 %v1601
  %vm1608 = vmor %vm1606, %vm1607
  %v1609 = vsel %vm1608, %v1601, %v1605
  %v1610 = vand.u32 2147483647, %v1585
  %vm1611 = vcmp.eq.f32.partialorder %v1610, 8.507059e+37
  %v1612 = vand.u32 %v1585, 2147483648
  %v1613 = vor.u32 1.1754944e-38, %v1612
  %v1614 = vsel %vm1611, %v1613, %v1609
  %v1615 = vmul.f32 1.0, %v1614
  %v1616 = vadd.f32 %v1532, %v991
  %v1617 = vadd.f32 %v1534, %v991
  %v1618 = vmul.f32 %v1560, %v1616
  %v1619 = vmul.f32 %v1575, %v1617
  %v1620 = vadd.f32 %v1484, %v1618
  %v1621 = vadd.f32 %v1487, %v1619
  %v1622 = vtanh.pop %v1620
  %v1623 = vtanh.pop %v1621
  %v1624 = vsub.f32 1.0, %v1600
  %v1625 = vsub.f32 1.0, %v1615
  %v1626 = vmul.f32 %v1624, %v1622
  %v1627 = vmul.f32 %v1625, %v1623
  %v1628 = vmul.f32 %v1600, %v1474
  %v1629 = vmul.f32 %v1615, %v1475
  %v1630 = vadd.f32 %v1626, %v1628
  %v1631 = vadd.f32 %v1627, %v1629
  %v1632 = vpack.c.bf16 %v1630, %v1630
  %v1633 = vpack.c.bf16 %v1631, %v1631
  %s1634 = scalar_lea.vmem [#allocation4], 32
  %1635 = vst [vmem:[%s1634] sm:$0xf] %v1632
  %1636 = vst [vmem:[%s1634 + $0x4] sm:$0xf] %v1633
  %s1637 = scalar_lea.vmem [#allocation3], 240
  %v1638 = vld [vmem:[%s1637] sm:$0xff]
  %v1639 = vld [vmem:[%s1637 + $0x8] sm:$0xff]
  %v1640 = vld [vmem:[%s1637 + $0x10] sm:$0xff]
  %v1641 = vld [vmem:[%s1637 + $0x18] sm:$0xff]
  %v1642 = vld [vmem:[%s1637 + $0x20] sm:$0xff]
  %v1643 = vld [vmem:[%s1637 + $0x28] sm:$0xff]
  %v1646 = vunpack.c.l.b16 %v1632
  %v1647 = vunpack.c.l.b16 %v1633
  %v1648 = vpack.c.b16 %v1647, %v1646
  %1650 = vmatpush.bf16.msra.mxu0 %v841
  %1651 = vmatpush.bf16.msra.mxu0 %v838
  %1652 = vmatpush.bf16.msra.mxu0 %v835
  %1653 = vmatpush.bf16.msra.mxu0 %v832
  %1654 = vmatpush.bf16.msra.mxu0 %v829
  %1655 = vmatpush.bf16.msra.mxu0 %v826
  %1656 = vmatpush.bf16.msra.mxu0 %v823
  %1657 = vmatpush.bf16.msra.mxu0 %v820
  %1658 = vmatmul.bf16.gmra.mxu0 %v1648
  %v1659 = vpop.f32.mrf.mxu0
  %v1660 = vadd.f32 0.0, %v1659
  %v1661 = vpop.f32.mrf.mxu0
  %v1662 = vadd.f32 0.0, %v1661
  %1663 = vdwg.mxu0
  %1664 = vmatpush.bf16.msra.mxu0 %v842
  %1665 = vmatpush.bf16.msra.mxu0 %v839
  %1666 = vmatpush.bf16.msra.mxu0 %v836
  %1667 = vmatpush.bf16.msra.mxu0 %v833
  %1668 = vmatpush.bf16.msra.mxu0 %v830
  %1669 = vmatpush.bf16.msra.mxu0 %v827
  %1670 = vmatpush.bf16.msra.mxu0 %v824
  %1671 = vmatpush.bf16.msra.mxu0 %v821
  %1672 = vmatmul.bf16.gmra.mxu0 %v1648
  %v1673 = vpop.f32.mrf.mxu0
  %v1674 = vadd.f32 0.0, %v1673
  %v1675 = vpop.f32.mrf.mxu0
  %v1676 = vadd.f32 0.0, %v1675
  %1677 = vdwg.mxu0
  %1678 = vmatpush.bf16.msra.mxu0 %v843
  %1679 = vmatpush.bf16.msra.mxu0 %v840
  %1680 = vmatpush.bf16.msra.mxu0 %v837
  %1681 = vmatpush.bf16.msra.mxu0 %v834
  %1682 = vmatpush.bf16.msra.mxu0 %v831
  %1683 = vmatpush.bf16.msra.mxu0 %v828
  %1684 = vmatpush.bf16.msra.mxu0 %v825
  %1685 = vmatpush.bf16.msra.mxu0 %v822
  %1686 = vmatmul.bf16.gmra.mxu0 %v1648
  %v1687 = vpop.f32.mrf.mxu0
  %v1688 = vadd.f32 0.0, %v1687
  %v1689 = vpop.f32.mrf.mxu0
  %v1690 = vadd.f32 0.0, %v1689
  %1691 = vdwg.mxu0
  %v1692 = vadd.f32 %v1638, %v1660
  %v1693 = vadd.f32 %v1641, %v1662
  %v1694 = vxor.u32 %v1692, 2147483648
  %v1695 = vxor.u32 %v1693, 2147483648
  %v1696 = vmul.f32 %v1694, 1.442695
  %v1697 = vpow.pop %v1696
  %v1698 = vmul.f32 %v1695, 1.442695
  %v1699 = vpow.pop %v1698
  %v1700 = vadd.f32 %v1697, 1.0
  %v1701 = vadd.f32 %v1699, 1.0
  %v1702 = vrcp.pop %v1700
  %v1703 = vmul.f32 %v1700, %v1702
  %v1704 = vsub.f32 1.0, %v1703
  %v1705 = vmul.f32 %v1702, %v1704
  %v1706 = vadd.f32 %v1702, %v1705
  %vm1707 = vweird.f32 %v1700
  %vm1708 = vweird.f32 %v1702
  %vm1709 = vmor %vm1707, %vm1708
  %v1710 = vsel %vm1709, %v1702, %v1706
  %v1711 = vand.u32 2147483647, %v1700
  %vm1712 = vcmp.eq.f32.partialorder %v1711, 8.507059e+37
  %v1713 = vand.u32 %v1700, 2147483648
  %v1714 = vor.u32 1.1754944e-38, %v1713
  %v1715 = vsel %vm1712, %v1714, %v1710
  %v1716 = vmul.f32 1.0, %v1715
  %v1717 = vrcp.pop %v1701
  %v1718 = vmul.f32 %v1701, %v1717
  %v1719 = vsub.f32 1.0, %v1718
  %v1720 = vmul.f32 %v1717, %v1719
  %v1721 = vadd.f32 %v1717, %v1720
  %vm1722 = vweird.f32 %v1701
  %vm1723 = vweird.f32 %v1717
  %vm1724 = vmor %vm1722, %vm1723
  %v1725 = vsel %vm1724, %v1717, %v1721
  %v1726 = vand.u32 2147483647, %v1701
  %vm1727 = vcmp.eq.f32.partialorder %v1726, 8.507059e+37
  %v1728 = vand.u32 %v1701, 2147483648
  %v1729 = vor.u32 1.1754944e-38, %v1728
  %v1730 = vsel %vm1727, %v1729, %v1725
  %v1731 = vmul.f32 1.0, %v1730
  %v1732 = vadd.f32 %v1639, %v1674
  %v1733 = vadd.f32 %v1642, %v1676
  %v1734 = vxor.u32 %v1732, 2147483648
  %v1735 = vxor.u32 %v1733, 2147483648
  %v1736 = vmul.f32 %v1734, 1.442695
  %v1737 = vpow.pop %v1736
  %v1738 = vmul.f32 %v1735, 1.442695
  %v1739 = vpow.pop %v1738
  %v1740 = vadd.f32 %v1737, 1.0
  %v1741 = vadd.f32 %v1739, 1.0
  %v1742 = vrcp.pop %v1740
  %v1743 = vmul.f32 %v1740, %v1742
  %v1744 = vsub.f32 1.0, %v1743
  %v1745 = vmul.f32 %v1742, %v1744
  %v1746 = vadd.f32 %v1742, %v1745
  %vm1747 = vweird.f32 %v1740
  %vm1748 = vweird.f32 %v1742
  %vm1749 = vmor %vm1747, %vm1748
  %v1750 = vsel %vm1749, %v1742, %v1746
  %v1751 = vand.u32 2147483647, %v1740
  %vm1752 = vcmp.eq.f32.partialorder %v1751, 8.507059e+37
  %v1753 = vand.u32 %v1740, 2147483648
  %v1754 = vor.u32 1.1754944e-38, %v1753
  %v1755 = vsel %vm1752, %v1754, %v1750
  %v1756 = vmul.f32 1.0, %v1755
  %v1757 = vrcp.pop %v1741
  %v1758 = vmul.f32 %v1741, %v1757
  %v1759 = vsub.f32 1.0, %v1758
  %v1760 = vmul.f32 %v1757, %v1759
  %v1761 = vadd.f32 %v1757, %v1760
  %vm1762 = vweird.f32 %v1741
  %vm1763 = vweird.f32 %v1757
  %vm1764 = vmor %vm1762, %vm1763
  %v1765 = vsel %vm1764, %v1757, %v1761
  %v1766 = vand.u32 2147483647, %v1741
  %vm1767 = vcmp.eq.f32.partialorder %v1766, 8.507059e+37
  %v1768 = vand.u32 %v1741, 2147483648
  %v1769 = vor.u32 1.1754944e-38, %v1768
  %v1770 = vsel %vm1767, %v1769, %v1765
  %v1771 = vmul.f32 1.0, %v1770
  %v1772 = vadd.f32 %v1688, %v991
  %v1773 = vadd.f32 %v1690, %v991
  %v1774 = vmul.f32 %v1716, %v1772
  %v1775 = vmul.f32 %v1731, %v1773
  %v1776 = vadd.f32 %v1640, %v1774
  %v1777 = vadd.f32 %v1643, %v1775
  %v1778 = vtanh.pop %v1776
  %v1779 = vtanh.pop %v1777
  %v1780 = vsub.f32 1.0, %v1756
  %v1781 = vsub.f32 1.0, %v1771
  %v1782 = vmul.f32 %v1780, %v1778
  %v1783 = vmul.f32 %v1781, %v1779
  %v1784 = vmul.f32 %v1756, %v1630
  %v1785 = vmul.f32 %v1771, %v1631
  %v1786 = vadd.f32 %v1782, %v1784
  %v1787 = vadd.f32 %v1783, %v1785
  %v1788 = vpack.c.bf16 %v1786, %v1786
  %v1789 = vpack.c.bf16 %v1787, %v1787
  %s1790 = scalar_lea.vmem [#allocation4], 40
  %1791 = vst [vmem:[%s1790] sm:$0xf] %v1788
  %1792 = vst [vmem:[%s1790 + $0x4] sm:$0xf] %v1789
  %s1793 = scalar_lea.vmem [#allocation3], 288
  %v1794 = vld [vmem:[%s1793] sm:$0xff]
  %v1795 = vld [vmem:[%s1793 + $0x8] sm:$0xff]
  %v1796 = vld [vmem:[%s1793 + $0x10] sm:$0xff]
  %v1797 = vld [vmem:[%s1793 + $0x18] sm:$0xff]
  %v1798 = vld [vmem:[%s1793 + $0x20] sm:$0xff]
  %v1799 = vld [vmem:[%s1793 + $0x28] sm:$0xff]
  %v1802 = vunpack.c.l.b16 %v1788
  %v1803 = vunpack.c.l.b16 %v1789
  %v1804 = vpack.c.b16 %v1803, %v1802
  %1806 = vmatpush.bf16.msra.mxu0 %v841
  %1807 = vmatpush.bf16.msra.mxu0 %v838
  %1808 = vmatpush.bf16.msra.mxu0 %v835
  %1809 = vmatpush.bf16.msra.mxu0 %v832
  %1810 = vmatpush.bf16.msra.mxu0 %v829
  %1811 = vmatpush.bf16.msra.mxu0 %v826
  %1812 = vmatpush.bf16.msra.mxu0 %v823
  %1813 = vmatpush.bf16.msra.mxu0 %v820
  %1814 = vmatmul.bf16.gmra.mxu0 %v1804
  %v1815 = vpop.f32.mrf.mxu0
  %v1816 = vadd.f32 0.0, %v1815
  %v1817 = vpop.f32.mrf.mxu0
  %v1818 = vadd.f32 0.0, %v1817
  %1819 = vdwg.mxu0
  %1820 = vmatpush.bf16.msra.mxu0 %v842
  %1821 = vmatpush.bf16.msra.mxu0 %v839
  %1822 = vmatpush.bf16.msra.mxu0 %v836
  %1823 = vmatpush.bf16.msra.mxu0 %v833
  %1824 = vmatpush.bf16.msra.mxu0 %v830
  %1825 = vmatpush.bf16.msra.mxu0 %v827
  %1826 = vmatpush.bf16.msra.mxu0 %v824
  %1827 = vmatpush.bf16.msra.mxu0 %v821
  %1828 = vmatmul.bf16.gmra.mxu0 %v1804
  %v1829 = vpop.f32.mrf.mxu0
  %v1830 = vadd.f32 0.0, %v1829
  %v1831 = vpop.f32.mrf.mxu0
  %v1832 = vadd.f32 0.0, %v1831
  %1833 = vdwg.mxu0
  %1834 = vmatpush.bf16.msra.mxu0 %v843
  %1835 = vmatpush.bf16.msra.mxu0 %v840
  %1836 = vmatpush.bf16.msra.mxu0 %v837
  %1837 = vmatpush.bf16.msra.mxu0 %v834
  %1838 = vmatpush.bf16.msra.mxu0 %v831
  %1839 = vmatpush.bf16.msra.mxu0 %v828
  %1840 = vmatpush.bf16.msra.mxu0 %v825
  %1841 = vmatpush.bf16.msra.mxu0 %v822
  %1842 = vmatmul.bf16.gmra.mxu0 %v1804
  %v1843 = vpop.f32.mrf.mxu0
  %v1844 = vadd.f32 0.0, %v1843
  %v1845 = vpop.f32.mrf.mxu0
  %v1846 = vadd.f32 0.0, %v1845
  %1847 = vdwg.mxu0
  %v1848 = vadd.f32 %v1794, %v1816
  %v1849 = vadd.f32 %v1797, %v1818
  %v1850 = vxor.u32 %v1848, 2147483648
  %v1851 = vxor.u32 %v1849, 2147483648
  %v1852 = vmul.f32 %v1850, 1.442695
  %v1853 = vpow.pop %v1852
  %v1854 = vmul.f32 %v1851, 1.442695
  %v1855 = vpow.pop %v1854
  %v1856 = vadd.f32 %v1853, 1.0
  %v1857 = vadd.f32 %v1855, 1.0
  %v1858 = vrcp.pop %v1856
  %v1859 = vmul.f32 %v1856, %v1858
  %v1860 = vsub.f32 1.0, %v1859
  %v1861 = vmul.f32 %v1858, %v1860
  %v1862 = vadd.f32 %v1858, %v1861
  %vm1863 = vweird.f32 %v1856
  %vm1864 = vweird.f32 %v1858
  %vm1865 = vmor %vm1863, %vm1864
  %v1866 = vsel %vm1865, %v1858, %v1862
  %v1867 = vand.u32 2147483647, %v1856
  %vm1868 = vcmp.eq.f32.partialorder %v1867, 8.507059e+37
  %v1869 = vand.u32 %v1856, 2147483648
  %v1870 = vor.u32 1.1754944e-38, %v1869
  %v1871 = vsel %vm1868, %v1870, %v1866
  %v1872 = vmul.f32 1.0, %v1871
  %v1873 = vrcp.pop %v1857
  %v1874 = vmul.f32 %v1857, %v1873
  %v1875 = vsub.f32 1.0, %v1874
  %v1876 = vmul.f32 %v1873, %v1875
  %v1877 = vadd.f32 %v1873, %v1876
  %vm1878 = vweird.f32 %v1857
  %vm1879 = vweird.f32 %v1873
  %vm1880 = vmor %vm1878, %vm1879
  %v1881 = vsel %vm1880, %v1873, %v1877
  %v1882 = vand.u32 2147483647, %v1857
  %vm1883 = vcmp.eq.f32.partialorder %v1882, 8.507059e+37
  %v1884 = vand.u32 %v1857, 2147483648
  %v1885 = vor.u32 1.1754944e-38, %v1884
  %v1886 = vsel %vm1883, %v1885, %v1881
  %v1887 = vmul.f32 1.0, %v1886
  %v1888 = vadd.f32 %v1795, %v1830
  %v1889 = vadd.f32 %v1798, %v1832
  %v1890 = vxor.u32 %v1888, 2147483648
  %v1891 = vxor.u32 %v1889, 2147483648
  %v1892 = vmul.f32 %v1890, 1.442695
  %v1893 = vpow.pop %v1892
  %v1894 = vmul.f32 %v1891, 1.442695
  %v1895 = vpow.pop %v1894
  %v1896 = vadd.f32 %v1893, 1.0
  %v1897 = vadd.f32 %v1895, 1.0
  %v1898 = vrcp.pop %v1896
  %v1899 = vmul.f32 %v1896, %v1898
  %v1900 = vsub.f32 1.0, %v1899
  %v1901 = vmul.f32 %v1898, %v1900
  %v1902 = vadd.f32 %v1898, %v1901
  %vm1903 = vweird.f32 %v1896
  %vm1904 = vweird.f32 %v1898
  %vm1905 = vmor %vm1903, %vm1904
  %v1906 = vsel %vm1905, %v1898, %v1902
  %v1907 = vand.u32 2147483647, %v1896
  %vm1908 = vcmp.eq.f32.partialorder %v1907, 8.507059e+37
  %v1909 = vand.u32 %v1896, 2147483648
  %v1910 = vor.u32 1.1754944e-38, %v1909
  %v1911 = vsel %vm1908, %v1910, %v1906
  %v1912 = vmul.f32 1.0, %v1911
  %v1913 = vrcp.pop %v1897
  %v1914 = vmul.f32 %v1897, %v1913
  %v1915 = vsub.f32 1.0, %v1914
  %v1916 = vmul.f32 %v1913, %v1915
  %v1917 = vadd.f32 %v1913, %v1916
  %vm1918 = vweird.f32 %v1897
  %vm1919 = vweird.f32 %v1913
  %vm1920 = vmor %vm1918, %vm1919
  %v1921 = vsel %vm1920, %v1913, %v1917
  %v1922 = vand.u32 2147483647, %v1897
  %vm1923 = vcmp.eq.f32.partialorder %v1922, 8.507059e+37
  %v1924 = vand.u32 %v1897, 2147483648
  %v1925 = vor.u32 1.1754944e-38, %v1924
  %v1926 = vsel %vm1923, %v1925, %v1921
  %v1927 = vmul.f32 1.0, %v1926
  %v1928 = vadd.f32 %v1844, %v991
  %v1929 = vadd.f32 %v1846, %v991
  %v1930 = vmul.f32 %v1872, %v1928
  %v1931 = vmul.f32 %v1887, %v1929
  %v1932 = vadd.f32 %v1796, %v1930
  %v1933 = vadd.f32 %v1799, %v1931
  %v1934 = vtanh.pop %v1932
  %v1935 = vtanh.pop %v1933
  %v1936 = vsub.f32 1.0, %v1912
  %v1937 = vsub.f32 1.0, %v1927
  %v1938 = vmul.f32 %v1936, %v1934
  %v1939 = vmul.f32 %v1937, %v1935
  %v1940 = vmul.f32 %v1912, %v1786
  %v1941 = vmul.f32 %v1927, %v1787
  %v1942 = vadd.f32 %v1938, %v1940
  %v1943 = vadd.f32 %v1939, %v1941
  %v1944 = vpack.c.bf16 %v1942, %v1942
  %v1945 = vpack.c.bf16 %v1943, %v1943
  %s1946 = scalar_lea.vmem [#allocation4], 48
  %1947 = vst [vmem:[%s1946] sm:$0xf] %v1944
  %1948 = vst [vmem:[%s1946 + $0x4] sm:$0xf] %v1945
  %s1949 = scalar_lea.vmem [#allocation3], 336
  %v1950 = vld [vmem:[%s1949] sm:$0xff]
  %v1951 = vld [vmem:[%s1949 + $0x8] sm:$0xff]
  %v1952 = vld [vmem:[%s1949 + $0x10] sm:$0xff]
  %v1953 = vld [vmem:[%s1949 + $0x18] sm:$0xff]
  %v1954 = vld [vmem:[%s1949 + $0x20] sm:$0xff]
  %v1955 = vld [vmem:[%s1949 + $0x28] sm:$0xff]
  %v1958 = vunpack.c.l.b16 %v1944
  %v1959 = vunpack.c.l.b16 %v1945
  %v1960 = vpack.c.b16 %v1959, %v1958
  %1962 = vmatpush.bf16.msra.mxu0 %v841
  %1963 = vmatpush.bf16.msra.mxu0 %v838
  %1964 = vmatpush.bf16.msra.mxu0 %v835
  %1965 = vmatpush.bf16.msra.mxu0 %v832
  %1966 = vmatpush.bf16.msra.mxu0 %v829
  %1967 = vmatpush.bf16.msra.mxu0 %v826
  %1968 = vmatpush.bf16.msra.mxu0 %v823
  %1969 = vmatpush.bf16.msra.mxu0 %v820
  %1970 = vmatmul.bf16.gmra.mxu0 %v1960
  %v1971 = vpop.f32.mrf.mxu0
  %v1972 = vadd.f32 0.0, %v1971
  %v1973 = vpop.f32.mrf.mxu0
  %v1974 = vadd.f32 0.0, %v1973
  %1975 = vdwg.mxu0
  %1976 = vmatpush.bf16.msra.mxu0 %v842
  %1977 = vmatpush.bf16.msra.mxu0 %v839
  %1978 = vmatpush.bf16.msra.mxu0 %v836
  %1979 = vmatpush.bf16.msra.mxu0 %v833
  %1980 = vmatpush.bf16.msra.mxu0 %v830
  %1981 = vmatpush.bf16.msra.mxu0 %v827
  %1982 = vmatpush.bf16.msra.mxu0 %v824
  %1983 = vmatpush.bf16.msra.mxu0 %v821
  %1984 = vmatmul.bf16.gmra.mxu0 %v1960
  %v1985 = vpop.f32.mrf.mxu0
  %v1986 = vadd.f32 0.0, %v1985
  %v1987 = vpop.f32.mrf.mxu0
  %v1988 = vadd.f32 0.0, %v1987
  %1989 = vdwg.mxu0
  %1990 = vmatpush.bf16.msra.mxu0 %v843
  %1991 = vmatpush.bf16.msra.mxu0 %v840
  %1992 = vmatpush.bf16.msra.mxu0 %v837
  %1993 = vmatpush.bf16.msra.mxu0 %v834
  %1994 = vmatpush.bf16.msra.mxu0 %v831
  %1995 = vmatpush.bf16.msra.mxu0 %v828
  %1996 = vmatpush.bf16.msra.mxu0 %v825
  %1997 = vmatpush.bf16.msra.mxu0 %v822
  %1998 = vmatmul.bf16.gmra.mxu0 %v1960
  %v1999 = vpop.f32.mrf.mxu0
  %v2000 = vadd.f32 0.0, %v1999
  %v2001 = vpop.f32.mrf.mxu0
  %v2002 = vadd.f32 0.0, %v2001
  %2003 = vdwg.mxu0
  %v2004 = vadd.f32 %v1950, %v1972
  %v2005 = vadd.f32 %v1953, %v1974
  %v2006 = vxor.u32 %v2004, 2147483648
  %v2007 = vxor.u32 %v2005, 2147483648
  %v2008 = vmul.f32 %v2006, 1.442695
  %v2009 = vpow.pop %v2008
  %v2010 = vmul.f32 %v2007, 1.442695
  %v2011 = vpow.pop %v2010
  %v2012 = vadd.f32 %v2009, 1.0
  %v2013 = vadd.f32 %v2011, 1.0
  %v2014 = vrcp.pop %v2012
  %v2015 = vmul.f32 %v2012, %v2014
  %v2016 = vsub.f32 1.0, %v2015
  %v2017 = vmul.f32 %v2014, %v2016
  %v2018 = vadd.f32 %v2014, %v2017
  %vm2019 = vweird.f32 %v2012
  %vm2020 = vweird.f32 %v2014
  %vm2021 = vmor %vm2019, %vm2020
  %v2022 = vsel %vm2021, %v2014, %v2018
  %v2023 = vand.u32 2147483647, %v2012
  %vm2024 = vcmp.eq.f32.partialorder %v2023, 8.507059e+37
  %v2025 = vand.u32 %v2012, 2147483648
  %v2026 = vor.u32 1.1754944e-38, %v2025
  %v2027 = vsel %vm2024, %v2026, %v2022
  %v2028 = vmul.f32 1.0, %v2027
  %v2029 = vrcp.pop %v2013
  %v2030 = vmul.f32 %v2013, %v2029
  %v2031 = vsub.f32 1.0, %v2030
  %v2032 = vmul.f32 %v2029, %v2031
  %v2033 = vadd.f32 %v2029, %v2032
  %vm2034 = vweird.f32 %v2013
  %vm2035 = vweird.f32 %v2029
  %vm2036 = vmor %vm2034, %vm2035
  %v2037 = vsel %vm2036, %v2029, %v2033
  %v2038 = vand.u32 2147483647, %v2013
  %vm2039 = vcmp.eq.f32.partialorder %v2038, 8.507059e+37
  %v2040 = vand.u32 %v2013, 2147483648
  %v2041 = vor.u32 1.1754944e-38, %v2040
  %v2042 = vsel %vm2039, %v2041, %v2037
  %v2043 = vmul.f32 1.0, %v2042
  %v2044 = vadd.f32 %v1951, %v1986
  %v2045 = vadd.f32 %v1954, %v1988
  %v2046 = vxor.u32 %v2044, 2147483648
  %v2047 = vxor.u32 %v2045, 2147483648
  %v2048 = vmul.f32 %v2046, 1.442695
  %v2049 = vpow.pop %v2048
  %v2050 = vmul.f32 %v2047, 1.442695
  %v2051 = vpow.pop %v2050
  %v2052 = vadd.f32 %v2049, 1.0
  %v2053 = vadd.f32 %v2051, 1.0
  %v2054 = vrcp.pop %v2052
  %v2055 = vmul.f32 %v2052, %v2054
  %v2056 = vsub.f32 1.0, %v2055
  %v2057 = vmul.f32 %v2054, %v2056
  %v2058 = vadd.f32 %v2054, %v2057
  %vm2059 = vweird.f32 %v2052
  %vm2060 = vweird.f32 %v2054
  %vm2061 = vmor %vm2059, %vm2060
  %v2062 = vsel %vm2061, %v2054, %v2058
  %v2063 = vand.u32 2147483647, %v2052
  %vm2064 = vcmp.eq.f32.partialorder %v2063, 8.507059e+37
  %v2065 = vand.u32 %v2052, 2147483648
  %v2066 = vor.u32 1.1754944e-38, %v2065
  %v2067 = vsel %vm2064, %v2066, %v2062
  %v2068 = vmul.f32 1.0, %v2067
  %v2069 = vrcp.pop %v2053
  %v2070 = vmul.f32 %v2053, %v2069
  %v2071 = vsub.f32 1.0, %v2070
  %v2072 = vmul.f32 %v2069, %v2071
  %v2073 = vadd.f32 %v2069, %v2072
  %vm2074 = vweird.f32 %v2053
  %vm2075 = vweird.f32 %v2069
  %vm2076 = vmor %vm2074, %vm2075
  %v2077 = vsel %vm2076, %v2069, %v2073
  %v2078 = vand.u32 2147483647, %v2053
  %vm2079 = vcmp.eq.f32.partialorder %v2078, 8.507059e+37
  %v2080 = vand.u32 %v2053, 2147483648
  %v2081 = vor.u32 1.1754944e-38, %v2080
  %v2082 = vsel %vm2079, %v2081, %v2077
  %v2083 = vmul.f32 1.0, %v2082
  %v2084 = vadd.f32 %v2000, %v991
  %v2085 = vadd.f32 %v2002, %v991
  %v2086 = vmul.f32 %v2028, %v2084
  %v2087 = vmul.f32 %v2043, %v2085
  %v2088 = vadd.f32 %v1952, %v2086
  %v2089 = vadd.f32 %v1955, %v2087
  %v2090 = vtanh.pop %v2088
  %v2091 = vtanh.pop %v2089
  %v2092 = vsub.f32 1.0, %v2068
  %v2093 = vsub.f32 1.0, %v2083
  %v2094 = vmul.f32 %v2092, %v2090
  %v2095 = vmul.f32 %v2093, %v2091
  %v2096 = vmul.f32 %v2068, %v1942
  %v2097 = vmul.f32 %v2083, %v1943
  %v2098 = vadd.f32 %v2094, %v2096
  %v2099 = vadd.f32 %v2095, %v2097
  %v2100 = vpack.c.bf16 %v2098, %v2098
  %v2101 = vpack.c.bf16 %v2099, %v2099
  %s2102 = scalar_lea.vmem [#allocation4], 56
  %2103 = vst [vmem:[%s2102] sm:$0xf] %v2100
  %2104 = vst [vmem:[%s2102 + $0x4] sm:$0xf] %v2101
  %s2105 = scalar_lea.vmem [#allocation3], 384
  %v2106 = vld [vmem:[%s2105] sm:$0xff]
  %v2107 = vld [vmem:[%s2105 + $0x8] sm:$0xff]
  %v2108 = vld [vmem:[%s2105 + $0x10] sm:$0xff]
  %v2109 = vld [vmem:[%s2105 + $0x18] sm:$0xff]
  %v2110 = vld [vmem:[%s2105 + $0x20] sm:$0xff]
  %v2111 = vld [vmem:[%s2105 + $0x28] sm:$0xff]
  %v2114 = vunpack.c.l.b16 %v2100
  %v2115 = vunpack.c.l.b16 %v2101
  %v2116 = vpack.c.b16 %v2115, %v2114
  %2118 = vmatpush.bf16.msra.mxu0 %v841
  %2119 = vmatpush.bf16.msra.mxu0 %v838
  %2120 = vmatpush.bf16.msra.mxu0 %v835
  %2121 = vmatpush.bf16.msra.mxu0 %v832
  %2122 = vmatpush.bf16.msra.mxu0 %v829
  %2123 = vmatpush.bf16.msra.mxu0 %v826
  %2124 = vmatpush.bf16.msra.mxu0 %v823
  %2125 = vmatpush.bf16.msra.mxu0 %v820
  %2126 = vmatmul.bf16.gmra.mxu0 %v2116
  %v2127 = vpop.f32.mrf.mxu0
  %v2128 = vadd.f32 0.0, %v2127
  %v2129 = vpop.f32.mrf.mxu0
  %v2130 = vadd.f32 0.0, %v2129
  %2131 = vdwg.mxu0
  %2132 = vmatpush.bf16.msra.mxu0 %v842
  %2133 = vmatpush.bf16.msra.mxu0 %v839
  %2134 = vmatpush.bf16.msra.mxu0 %v836
  %2135 = vmatpush.bf16.msra.mxu0 %v833
  %2136 = vmatpush.bf16.msra.mxu0 %v830
  %2137 = vmatpush.bf16.msra.mxu0 %v827
  %2138 = vmatpush.bf16.msra.mxu0 %v824
  %2139 = vmatpush.bf16.msra.mxu0 %v821
  %2140 = vmatmul.bf16.gmra.mxu0 %v2116
  %v2141 = vpop.f32.mrf.mxu0
  %v2142 = vadd.f32 0.0, %v2141
  %v2143 = vpop.f32.mrf.mxu0
  %v2144 = vadd.f32 0.0, %v2143
  %2145 = vdwg.mxu0
  %2146 = vmatpush.bf16.msra.mxu0 %v843
  %2147 = vmatpush.bf16.msra.mxu0 %v840
  %2148 = vmatpush.bf16.msra.mxu0 %v837
  %2149 = vmatpush.bf16.msra.mxu0 %v834
  %2150 = vmatpush.bf16.msra.mxu0 %v831
  %2151 = vmatpush.bf16.msra.mxu0 %v828
  %2152 = vmatpush.bf16.msra.mxu0 %v825
  %2153 = vmatpush.bf16.msra.mxu0 %v822
  %2154 = vmatmul.bf16.gmra.mxu0 %v2116
  %v2155 = vpop.f32.mrf.mxu0
  %v2156 = vadd.f32 0.0, %v2155
  %v2157 = vpop.f32.mrf.mxu0
  %v2158 = vadd.f32 0.0, %v2157
  %2159 = vdwg.mxu0
  %v2160 = vadd.f32 %v2106, %v2128
  %v2161 = vadd.f32 %v2109, %v2130
  %v2162 = vxor.u32 %v2160, 2147483648
  %v2163 = vxor.u32 %v2161, 2147483648
  %v2164 = vmul.f32 %v2162, 1.442695
  %v2165 = vpow.pop %v2164
  %v2166 = vmul.f32 %v2163, 1.442695
  %v2167 = vpow.pop %v2166
  %v2168 = vadd.f32 %v2165, 1.0
  %v2169 = vadd.f32 %v2167, 1.0
  %v2170 = vrcp.pop %v2168
  %v2171 = vmul.f32 %v2168, %v2170
  %v2172 = vsub.f32 1.0, %v2171
  %v2173 = vmul.f32 %v2170, %v2172
  %v2174 = vadd.f32 %v2170, %v2173
  %vm2175 = vweird.f32 %v2168
  %vm2176 = vweird.f32 %v2170
  %vm2177 = vmor %vm2175, %vm2176
  %v2178 = vsel %vm2177, %v2170, %v2174
  %v2179 = vand.u32 2147483647, %v2168
  %vm2180 = vcmp.eq.f32.partialorder %v2179, 8.507059e+37
  %v2181 = vand.u32 %v2168, 2147483648
  %v2182 = vor.u32 1.1754944e-38, %v2181
  %v2183 = vsel %vm2180, %v2182, %v2178
  %v2184 = vmul.f32 1.0, %v2183
  %v2185 = vrcp.pop %v2169
  %v2186 = vmul.f32 %v2169, %v2185
  %v2187 = vsub.f32 1.0, %v2186
  %v2188 = vmul.f32 %v2185, %v2187
  %v2189 = vadd.f32 %v2185, %v2188
  %vm2190 = vweird.f32 %v2169
  %vm2191 = vweird.f32 %v2185
  %vm2192 = vmor %vm2190, %vm2191
  %v2193 = vsel %vm2192, %v2185, %v2189
  %v2194 = vand.u32 2147483647, %v2169
  %vm2195 = vcmp.eq.f32.partialorder %v2194, 8.507059e+37
  %v2196 = vand.u32 %v2169, 2147483648
  %v2197 = vor.u32 1.1754944e-38, %v2196
  %v2198 = vsel %vm2195, %v2197, %v2193
  %v2199 = vmul.f32 1.0, %v2198
  %v2200 = vadd.f32 %v2107, %v2142
  %v2201 = vadd.f32 %v2110, %v2144
  %v2202 = vxor.u32 %v2200, 2147483648
  %v2203 = vxor.u32 %v2201, 2147483648
  %v2204 = vmul.f32 %v2202, 1.442695
  %v2205 = vpow.pop %v2204
  %v2206 = vmul.f32 %v2203, 1.442695
  %v2207 = vpow.pop %v2206
  %v2208 = vadd.f32 %v2205, 1.0
  %v2209 = vadd.f32 %v2207, 1.0
  %v2210 = vrcp.pop %v2208
  %v2211 = vmul.f32 %v2208, %v2210
  %v2212 = vsub.f32 1.0, %v2211
  %v2213 = vmul.f32 %v2210, %v2212
  %v2214 = vadd.f32 %v2210, %v2213
  %vm2215 = vweird.f32 %v2208
  %vm2216 = vweird.f32 %v2210
  %vm2217 = vmor %vm2215, %vm2216
  %v2218 = vsel %vm2217, %v2210, %v2214
  %v2219 = vand.u32 2147483647, %v2208
  %vm2220 = vcmp.eq.f32.partialorder %v2219, 8.507059e+37
  %v2221 = vand.u32 %v2208, 2147483648
  %v2222 = vor.u32 1.1754944e-38, %v2221
  %v2223 = vsel %vm2220, %v2222, %v2218
  %v2224 = vmul.f32 1.0, %v2223
  %v2225 = vrcp.pop %v2209
  %v2226 = vmul.f32 %v2209, %v2225
  %v2227 = vsub.f32 1.0, %v2226
  %v2228 = vmul.f32 %v2225, %v2227
  %v2229 = vadd.f32 %v2225, %v2228
  %vm2230 = vweird.f32 %v2209
  %vm2231 = vweird.f32 %v2225
  %vm2232 = vmor %vm2230, %vm2231
  %v2233 = vsel %vm2232, %v2225, %v2229
  %v2234 = vand.u32 2147483647, %v2209
  %vm2235 = vcmp.eq.f32.partialorder %v2234, 8.507059e+37
  %v2236 = vand.u32 %v2209, 2147483648
  %v2237 = vor.u32 1.1754944e-38, %v2236
  %v2238 = vsel %vm2235, %v2237, %v2233
  %v2239 = vmul.f32 1.0, %v2238
  %v2240 = vadd.f32 %v2156, %v991
  %v2241 = vadd.f32 %v2158, %v991
  %v2242 = vmul.f32 %v2184, %v2240
  %v2243 = vmul.f32 %v2199, %v2241
  %v2244 = vadd.f32 %v2108, %v2242
  %v2245 = vadd.f32 %v2111, %v2243
  %v2246 = vtanh.pop %v2244
  %v2247 = vtanh.pop %v2245
  %v2248 = vsub.f32 1.0, %v2224
  %v2249 = vsub.f32 1.0, %v2239
  %v2250 = vmul.f32 %v2248, %v2246
  %v2251 = vmul.f32 %v2249, %v2247
  %v2252 = vmul.f32 %v2224, %v2098
  %v2253 = vmul.f32 %v2239, %v2099
  %v2254 = vadd.f32 %v2250, %v2252
  %v2255 = vadd.f32 %v2251, %v2253
  %v2256 = vpack.c.bf16 %v2254, %v2254
  %v2257 = vpack.c.bf16 %v2255, %v2255
  %s2258 = scalar_lea.vmem [#allocation4], 64
  %2259 = vst [vmem:[%s2258] sm:$0xf] %v2256
  %2260 = vst [vmem:[%s2258 + $0x4] sm:$0xf] %v2257
  %s2261 = scalar_lea.vmem [#allocation3], 432
  %v2262 = vld [vmem:[%s2261] sm:$0xff]
  %v2263 = vld [vmem:[%s2261 + $0x8] sm:$0xff]
  %v2264 = vld [vmem:[%s2261 + $0x10] sm:$0xff]
  %v2265 = vld [vmem:[%s2261 + $0x18] sm:$0xff]
  %v2266 = vld [vmem:[%s2261 + $0x20] sm:$0xff]
  %v2267 = vld [vmem:[%s2261 + $0x28] sm:$0xff]
  %v2270 = vunpack.c.l.b16 %v2256
  %v2271 = vunpack.c.l.b16 %v2257
  %v2272 = vpack.c.b16 %v2271, %v2270
  %2274 = vmatpush.bf16.msra.mxu0 %v841
  %2275 = vmatpush.bf16.msra.mxu0 %v838
  %2276 = vmatpush.bf16.msra.mxu0 %v835
  %2277 = vmatpush.bf16.msra.mxu0 %v832
  %2278 = vmatpush.bf16.msra.mxu0 %v829
  %2279 = vmatpush.bf16.msra.mxu0 %v826
  %2280 = vmatpush.bf16.msra.mxu0 %v823
  %2281 = vmatpush.bf16.msra.mxu0 %v820
  %2282 = vmatmul.bf16.gmra.mxu0 %v2272
  %v2283 = vpop.f32.mrf.mxu0
  %v2284 = vadd.f32 0.0, %v2283
  %v2285 = vpop.f32.mrf.mxu0
  %v2286 = vadd.f32 0.0, %v2285
  %2287 = vdwg.mxu0
  %2288 = vmatpush.bf16.msra.mxu0 %v842
  %2289 = vmatpush.bf16.msra.mxu0 %v839
  %2290 = vmatpush.bf16.msra.mxu0 %v836
  %2291 = vmatpush.bf16.msra.mxu0 %v833
  %2292 = vmatpush.bf16.msra.mxu0 %v830
  %2293 = vmatpush.bf16.msra.mxu0 %v827
  %2294 = vmatpush.bf16.msra.mxu0 %v824
  %2295 = vmatpush.bf16.msra.mxu0 %v821
  %2296 = vmatmul.bf16.gmra.mxu0 %v2272
  %v2297 = vpop.f32.mrf.mxu0
  %v2298 = vadd.f32 0.0, %v2297
  %v2299 = vpop.f32.mrf.mxu0
  %v2300 = vadd.f32 0.0, %v2299
  %2301 = vdwg.mxu0
  %2302 = vmatpush.bf16.msra.mxu0 %v843
  %2303 = vmatpush.bf16.msra.mxu0 %v840
  %2304 = vmatpush.bf16.msra.mxu0 %v837
  %2305 = vmatpush.bf16.msra.mxu0 %v834
  %2306 = vmatpush.bf16.msra.mxu0 %v831
  %2307 = vmatpush.bf16.msra.mxu0 %v828
  %2308 = vmatpush.bf16.msra.mxu0 %v825
  %2309 = vmatpush.bf16.msra.mxu0 %v822
  %2310 = vmatmul.bf16.gmra.mxu0 %v2272
  %v2311 = vpop.f32.mrf.mxu0
  %v2312 = vadd.f32 0.0, %v2311
  %v2313 = vpop.f32.mrf.mxu0
  %v2314 = vadd.f32 0.0, %v2313
  %2315 = vdwg.mxu0
  %v2316 = vadd.f32 %v2262, %v2284
  %v2317 = vadd.f32 %v2265, %v2286
  %v2318 = vxor.u32 %v2316, 2147483648
  %v2319 = vxor.u32 %v2317, 2147483648
  %v2320 = vmul.f32 %v2318, 1.442695
  %v2321 = vpow.pop %v2320
  %v2322 = vmul.f32 %v2319, 1.442695
  %v2323 = vpow.pop %v2322
  %v2324 = vadd.f32 %v2321, 1.0
  %v2325 = vadd.f32 %v2323, 1.0
  %v2326 = vrcp.pop %v2324
  %v2327 = vmul.f32 %v2324, %v2326
  %v2328 = vsub.f32 1.0, %v2327
  %v2329 = vmul.f32 %v2326, %v2328
  %v2330 = vadd.f32 %v2326, %v2329
  %vm2331 = vweird.f32 %v2324
  %vm2332 = vweird.f32 %v2326
  %vm2333 = vmor %vm2331, %vm2332
  %v2334 = vsel %vm2333, %v2326, %v2330
  %v2335 = vand.u32 2147483647, %v2324
  %vm2336 = vcmp.eq.f32.partialorder %v2335, 8.507059e+37
  %v2337 = vand.u32 %v2324, 2147483648
  %v2338 = vor.u32 1.1754944e-38, %v2337
  %v2339 = vsel %vm2336, %v2338, %v2334
  %v2340 = vmul.f32 1.0, %v2339
  %v2341 = vrcp.pop %v2325
  %v2342 = vmul.f32 %v2325, %v2341
  %v2343 = vsub.f32 1.0, %v2342
  %v2344 = vmul.f32 %v2341, %v2343
  %v2345 = vadd.f32 %v2341, %v2344
  %vm2346 = vweird.f32 %v2325
  %vm2347 = vweird.f32 %v2341
  %vm2348 = vmor %vm2346, %vm2347
  %v2349 = vsel %vm2348, %v2341, %v2345
  %v2350 = vand.u32 2147483647, %v2325
  %vm2351 = vcmp.eq.f32.partialorder %v2350, 8.507059e+37
  %v2352 = vand.u32 %v2325, 2147483648
  %v2353 = vor.u32 1.1754944e-38, %v2352
  %v2354 = vsel %vm2351, %v2353, %v2349
  %v2355 = vmul.f32 1.0, %v2354
  %v2356 = vadd.f32 %v2263, %v2298
  %v2357 = vadd.f32 %v2266, %v2300
  %v2358 = vxor.u32 %v2356, 2147483648
  %v2359 = vxor.u32 %v2357, 2147483648
  %v2360 = vmul.f32 %v2358, 1.442695
  %v2361 = vpow.pop %v2360
  %v2362 = vmul.f32 %v2359, 1.442695
  %v2363 = vpow.pop %v2362
  %v2364 = vadd.f32 %v2361, 1.0
  %v2365 = vadd.f32 %v2363, 1.0
  %v2366 = vrcp.pop %v2364
  %v2367 = vmul.f32 %v2364, %v2366
  %v2368 = vsub.f32 1.0, %v2367
  %v2369 = vmul.f32 %v2366, %v2368
  %v2370 = vadd.f32 %v2366, %v2369
  %vm2371 = vweird.f32 %v2364
  %vm2372 = vweird.f32 %v2366
  %vm2373 = vmor %vm2371, %vm2372
  %v2374 = vsel %vm2373, %v2366, %v2370
  %v2375 = vand.u32 2147483647, %v2364
  %vm2376 = vcmp.eq.f32.partialorder %v2375, 8.507059e+37
  %v2377 = vand.u32 %v2364, 2147483648
  %v2378 = vor.u32 1.1754944e-38, %v2377
  %v2379 = vsel %vm2376, %v2378, %v2374
  %v2380 = vmul.f32 1.0, %v2379
  %v2381 = vrcp.pop %v2365
  %v2382 = vmul.f32 %v2365, %v2381
  %v2383 = vsub.f32 1.0, %v2382
  %v2384 = vmul.f32 %v2381, %v2383
  %v2385 = vadd.f32 %v2381, %v2384
  %vm2386 = vweird.f32 %v2365
  %vm2387 = vweird.f32 %v2381
  %vm2388 = vmor %vm2386, %vm2387
  %v2389 = vsel %vm2388, %v2381, %v2385
  %v2390 = vand.u32 2147483647, %v2365
  %vm2391 = vcmp.eq.f32.partialorder %v2390, 8.507059e+37
  %v2392 = vand.u32 %v2365, 2147483648
  %v2393 = vor.u32 1.1754944e-38, %v2392
  %v2394 = vsel %vm2391, %v2393, %v2389
  %v2395 = vmul.f32 1.0, %v2394
  %v2396 = vadd.f32 %v2312, %v991
  %v2397 = vadd.f32 %v2314, %v991
  %v2398 = vmul.f32 %v2340, %v2396
  %v2399 = vmul.f32 %v2355, %v2397
  %v2400 = vadd.f32 %v2264, %v2398
  %v2401 = vadd.f32 %v2267, %v2399
  %v2402 = vtanh.pop %v2400
  %v2403 = vtanh.pop %v2401
  %v2404 = vsub.f32 1.0, %v2380
  %v2405 = vsub.f32 1.0, %v2395
  %v2406 = vmul.f32 %v2404, %v2402
  %v2407 = vmul.f32 %v2405, %v2403
  %v2408 = vmul.f32 %v2380, %v2254
  %v2409 = vmul.f32 %v2395, %v2255
  %v2410 = vadd.f32 %v2406, %v2408
  %v2411 = vadd.f32 %v2407, %v2409
  %v2412 = vpack.c.bf16 %v2410, %v2410
  %v2413 = vpack.c.bf16 %v2411, %v2411
  %s2414 = scalar_lea.vmem [#allocation4], 72
  %2415 = vst [vmem:[%s2414] sm:$0xf] %v2412
  %2416 = vst [vmem:[%s2414 + $0x4] sm:$0xf] %v2413
  %s2417 = scalar_lea.vmem [#allocation3], 480
  %v2418 = vld [vmem:[%s2417] sm:$0xff]
  %v2419 = vld [vmem:[%s2417 + $0x8] sm:$0xff]
  %v2420 = vld [vmem:[%s2417 + $0x10] sm:$0xff]
  %v2421 = vld [vmem:[%s2417 + $0x18] sm:$0xff]
  %v2422 = vld [vmem:[%s2417 + $0x20] sm:$0xff]
  %v2423 = vld [vmem:[%s2417 + $0x28] sm:$0xff]
  %v2426 = vunpack.c.l.b16 %v2412
  %v2427 = vunpack.c.l.b16 %v2413
  %v2428 = vpack.c.b16 %v2427, %v2426
  %2430 = vmatpush.bf16.msra.mxu0 %v841
  %2431 = vmatpush.bf16.msra.mxu0 %v838
  %2432 = vmatpush.bf16.msra.mxu0 %v835
  %2433 = vmatpush.bf16.msra.mxu0 %v832
  %2434 = vmatpush.bf16.msra.mxu0 %v829
  %2435 = vmatpush.bf16.msra.mxu0 %v826
  %2436 = vmatpush.bf16.msra.mxu0 %v823
  %2437 = vmatpush.bf16.msra.mxu0 %v820
  %2438 = vmatmul.bf16.gmra.mxu0 %v2428
  %v2439 = vpop.f32.mrf.mxu0
  %v2440 = vadd.f32 0.0, %v2439
  %v2441 = vpop.f32.mrf.mxu0
  %v2442 = vadd.f32 0.0, %v2441
  %2443 = vdwg.mxu0
  %2444 = vmatpush.bf16.msra.mxu0 %v842
  %2445 = vmatpush.bf16.msra.mxu0 %v839
  %2446 = vmatpush.bf16.msra.mxu0 %v836
  %2447 = vmatpush.bf16.msra.mxu0 %v833
  %2448 = vmatpush.bf16.msra.mxu0 %v830
  %2449 = vmatpush.bf16.msra.mxu0 %v827
  %2450 = vmatpush.bf16.msra.mxu0 %v824
  %2451 = vmatpush.bf16.msra.mxu0 %v821
  %2452 = vmatmul.bf16.gmra.mxu0 %v2428
  %v2453 = vpop.f32.mrf.mxu0
  %v2454 = vadd.f32 0.0, %v2453
  %v2455 = vpop.f32.mrf.mxu0
  %v2456 = vadd.f32 0.0, %v2455
  %2457 = vdwg.mxu0
  %2458 = vmatpush.bf16.msra.mxu0 %v843
  %2459 = vmatpush.bf16.msra.mxu0 %v840
  %2460 = vmatpush.bf16.msra.mxu0 %v837
  %2461 = vmatpush.bf16.msra.mxu0 %v834
  %2462 = vmatpush.bf16.msra.mxu0 %v831
  %2463 = vmatpush.bf16.msra.mxu0 %v828
  %2464 = vmatpush.bf16.msra.mxu0 %v825
  %2465 = vmatpush.bf16.msra.mxu0 %v822
  %2466 = vmatmul.bf16.gmra.mxu0 %v2428
  %v2467 = vpop.f32.mrf.mxu0
  %v2468 = vadd.f32 0.0, %v2467
  %v2469 = vpop.f32.mrf.mxu0
  %v2470 = vadd.f32 0.0, %v2469
  %2471 = vdwg.mxu0
  %v2472 = vadd.f32 %v2418, %v2440
  %v2473 = vadd.f32 %v2421, %v2442
  %v2474 = vxor.u32 %v2472, 2147483648
  %v2475 = vxor.u32 %v2473, 2147483648
  %v2476 = vmul.f32 %v2474, 1.442695
  %v2477 = vpow.pop %v2476
  %v2478 = vmul.f32 %v2475, 1.442695
  %v2479 = vpow.pop %v2478
  %v2480 = vadd.f32 %v2477, 1.0
  %v2481 = vadd.f32 %v2479, 1.0
  %v2482 = vrcp.pop %v2480
  %v2483 = vmul.f32 %v2480, %v2482
  %v2484 = vsub.f32 1.0, %v2483
  %v2485 = vmul.f32 %v2482, %v2484
  %v2486 = vadd.f32 %v2482, %v2485
  %vm2487 = vweird.f32 %v2480
  %vm2488 = vweird.f32 %v2482
  %vm2489 = vmor %vm2487, %vm2488
  %v2490 = vsel %vm2489, %v2482, %v2486
  %v2491 = vand.u32 2147483647, %v2480
  %vm2492 = vcmp.eq.f32.partialorder %v2491, 8.507059e+37
  %v2493 = vand.u32 %v2480, 2147483648
  %v2494 = vor.u32 1.1754944e-38, %v2493
  %v2495 = vsel %vm2492, %v2494, %v2490
  %v2496 = vmul.f32 1.0, %v2495
  %v2497 = vrcp.pop %v2481
  %v2498 = vmul.f32 %v2481, %v2497
  %v2499 = vsub.f32 1.0, %v2498
  %v2500 = vmul.f32 %v2497, %v2499
  %v2501 = vadd.f32 %v2497, %v2500
  %vm2502 = vweird.f32 %v2481
  %vm2503 = vweird.f32 %v2497
  %vm2504 = vmor %vm2502, %vm2503
  %v2505 = vsel %vm2504, %v2497, %v2501
  %v2506 = vand.u32 2147483647, %v2481
  %vm2507 = vcmp.eq.f32.partialorder %v2506, 8.507059e+37
  %v2508 = vand.u32 %v2481, 2147483648
  %v2509 = vor.u32 1.1754944e-38, %v2508
  %v2510 = vsel %vm2507, %v2509, %v2505
  %v2511 = vmul.f32 1.0, %v2510
  %v2512 = vadd.f32 %v2419, %v2454
  %v2513 = vadd.f32 %v2422, %v2456
  %v2514 = vxor.u32 %v2512, 2147483648
  %v2515 = vxor.u32 %v2513, 2147483648
  %v2516 = vmul.f32 %v2514, 1.442695
  %v2517 = vpow.pop %v2516
  %v2518 = vmul.f32 %v2515, 1.442695
  %v2519 = vpow.pop %v2518
  %v2520 = vadd.f32 %v2517, 1.0
  %v2521 = vadd.f32 %v2519, 1.0
  %v2522 = vrcp.pop %v2520
  %v2523 = vmul.f32 %v2520, %v2522
  %v2524 = vsub.f32 1.0, %v2523
  %v2525 = vmul.f32 %v2522, %v2524
  %v2526 = vadd.f32 %v2522, %v2525
  %vm2527 = vweird.f32 %v2520
  %vm2528 = vweird.f32 %v2522
  %vm2529 = vmor %vm2527, %vm2528
  %v2530 = vsel %vm2529, %v2522, %v2526
  %v2531 = vand.u32 2147483647, %v2520
  %vm2532 = vcmp.eq.f32.partialorder %v2531, 8.507059e+37
  %v2533 = vand.u32 %v2520, 2147483648
  %v2534 = vor.u32 1.1754944e-38, %v2533
  %v2535 = vsel %vm2532, %v2534, %v2530
  %v2536 = vmul.f32 1.0, %v2535
  %v2537 = vrcp.pop %v2521
  %v2538 = vmul.f32 %v2521, %v2537
  %v2539 = vsub.f32 1.0, %v2538
  %v2540 = vmul.f32 %v2537, %v2539
  %v2541 = vadd.f32 %v2537, %v2540
  %vm2542 = vweird.f32 %v2521
  %vm2543 = vweird.f32 %v2537
  %vm2544 = vmor %vm2542, %vm2543
  %v2545 = vsel %vm2544, %v2537, %v2541
  %v2546 = vand.u32 2147483647, %v2521
  %vm2547 = vcmp.eq.f32.partialorder %v2546, 8.507059e+37
  %v2548 = vand.u32 %v2521, 2147483648
  %v2549 = vor.u32 1.1754944e-38, %v2548
  %v2550 = vsel %vm2547, %v2549, %v2545
  %v2551 = vmul.f32 1.0, %v2550
  %v2552 = vadd.f32 %v2468, %v991
  %v2553 = vadd.f32 %v2470, %v991
  %v2554 = vmul.f32 %v2496, %v2552
  %v2555 = vmul.f32 %v2511, %v2553
  %v2556 = vadd.f32 %v2420, %v2554
  %v2557 = vadd.f32 %v2423, %v2555
  %v2558 = vtanh.pop %v2556
  %v2559 = vtanh.pop %v2557
  %v2560 = vsub.f32 1.0, %v2536
  %v2561 = vsub.f32 1.0, %v2551
  %v2562 = vmul.f32 %v2560, %v2558
  %v2563 = vmul.f32 %v2561, %v2559
  %v2564 = vmul.f32 %v2536, %v2410
  %v2565 = vmul.f32 %v2551, %v2411
  %v2566 = vadd.f32 %v2562, %v2564
  %v2567 = vadd.f32 %v2563, %v2565
  %s2568 = smul.u32 0, 16
  %s2569 = sadd.s32 %s2568, 10
  %p2570 = scmp.lt.s32.totalorder %s2569, 10
  %s2571 = scalar_select %p2570, 1, 0
  %s2572 = scvt.s32.f32 %s2571
  %v2573 = vsub.f32 %v2566, %v2410
  %v2574 = vsub.f32 %v2567, %v2411
  %v2575 = vstv %s2572
  %v2576 = vmul.f32 %v2575, %v2573
  %v2577 = vmul.f32 %v2575, %v2574
  %v2578 = vadd.f32 %v2410, %v2576
  %v2579 = vadd.f32 %v2411, %v2577
  %v2580 = vpack.c.bf16 %v2578, %v2578
  %v2581 = vpack.c.bf16 %v2579, %v2579
  %s2582 = scalar_lea.vmem [#allocation4], 80
  %2583 = vst [vmem:[%s2582] sm:$0xf] %v2580
  %2584 = vst [vmem:[%s2582 + $0x4] sm:$0xf] %v2581
  %s2585 = scalar_lea.vmem [#allocation3], 528
  %v2586 = vld [vmem:[%s2585] sm:$0xff]
  %v2587 = vld [vmem:[%s2585 + $0x8] sm:$0xff]
  %v2588 = vld [vmem:[%s2585 + $0x10] sm:$0xff]
  %v2589 = vld [vmem:[%s2585 + $0x18] sm:$0xff]
  %v2590 = vld [vmem:[%s2585 + $0x20] sm:$0xff]
  %v2591 = vld [vmem:[%s2585 + $0x28] sm:$0xff]
  %v2594 = vunpack.c.l.b16 %v2580
  %v2595 = vunpack.c.l.b16 %v2581
  %v2596 = vpack.c.b16 %v2595, %v2594
  %2598 = vmatpush.bf16.msra.mxu0 %v841
  %2599 = vmatpush.bf16.msra.mxu0 %v838
  %2600 = vmatpush.bf16.msra.mxu0 %v835
  %2601 = vmatpush.bf16.msra.mxu0 %v832
  %2602 = vmatpush.bf16.msra.mxu0 %v829
  %2603 = vmatpush.bf16.msra.mxu0 %v826
  %2604 = vmatpush.bf16.msra.mxu0 %v823
  %2605 = vmatpush.bf16.msra.mxu0 %v820
  %2606 = vmatmul.bf16.gmra.mxu0 %v2596
  %v2607 = vpop.f32.mrf.mxu0
  %v2608 = vadd.f32 0.0, %v2607
  %v2609 = vpop.f32.mrf.mxu0
  %v2610 = vadd.f32 0.0, %v2609
  %2611 = vdwg.mxu0
  %2612 = vmatpush.bf16.msra.mxu0 %v842
  %2613 = vmatpush.bf16.msra.mxu0 %v839
  %2614 = vmatpush.bf16.msra.mxu0 %v836
  %2615 = vmatpush.bf16.msra.mxu0 %v833
  %2616 = vmatpush.bf16.msra.mxu0 %v830
  %2617 = vmatpush.bf16.msra.mxu0 %v827
  %2618 = vmatpush.bf16.msra.mxu0 %v824
  %2619 = vmatpush.bf16.msra.mxu0 %v821
  %2620 = vmatmul.bf16.gmra.mxu0 %v2596
  %v2621 = vpop.f32.mrf.mxu0
  %v2622 = vadd.f32 0.0, %v2621
  %v2623 = vpop.f32.mrf.mxu0
  %v2624 = vadd.f32 0.0, %v2623
  %2625 = vdwg.mxu0
  %2626 = vmatpush.bf16.msra.mxu0 %v843
  %2627 = vmatpush.bf16.msra.mxu0 %v840
  %2628 = vmatpush.bf16.msra.mxu0 %v837
  %2629 = vmatpush.bf16.msra.mxu0 %v834
  %2630 = vmatpush.bf16.msra.mxu0 %v831
  %2631 = vmatpush.bf16.msra.mxu0 %v828
  %2632 = vmatpush.bf16.msra.mxu0 %v825
  %2633 = vmatpush.bf16.msra.mxu0 %v822
  %2634 = vmatmul.bf16.gmra.mxu0 %v2596
  %v2635 = vpop.f32.mrf.mxu0
  %v2636 = vadd.f32 0.0, %v2635
  %v2637 = vpop.f32.mrf.mxu0
  %v2638 = vadd.f32 0.0, %v2637
  %2639 = vdwg.mxu0
  %v2640 = vadd.f32 %v2586, %v2608
  %v2641 = vadd.f32 %v2589, %v2610
  %v2642 = vxor.u32 %v2640, 2147483648
  %v2643 = vxor.u32 %v2641, 2147483648
  %v2644 = vmul.f32 %v2642, 1.442695
  %v2645 = vpow.pop %v2644
  %v2646 = vmul.f32 %v2643, 1.442695
  %v2647 = vpow.pop %v2646
  %v2648 = vadd.f32 %v2645, 1.0
  %v2649 = vadd.f32 %v2647, 1.0
  %v2650 = vrcp.pop %v2648
  %v2651 = vmul.f32 %v2648, %v2650
  %v2652 = vsub.f32 1.0, %v2651
  %v2653 = vmul.f32 %v2650, %v2652
  %v2654 = vadd.f32 %v2650, %v2653
  %vm2655 = vweird.f32 %v2648
  %vm2656 = vweird.f32 %v2650
  %vm2657 = vmor %vm2655, %vm2656
  %v2658 = vsel %vm2657, %v2650, %v2654
  %v2659 = vand.u32 2147483647, %v2648
  %vm2660 = vcmp.eq.f32.partialorder %v2659, 8.507059e+37
  %v2661 = vand.u32 %v2648, 2147483648
  %v2662 = vor.u32 1.1754944e-38, %v2661
  %v2663 = vsel %vm2660, %v2662, %v2658
  %v2664 = vmul.f32 1.0, %v2663
  %v2665 = vrcp.pop %v2649
  %v2666 = vmul.f32 %v2649, %v2665
  %v2667 = vsub.f32 1.0, %v2666
  %v2668 = vmul.f32 %v2665, %v2667
  %v2669 = vadd.f32 %v2665, %v2668
  %vm2670 = vweird.f32 %v2649
  %vm2671 = vweird.f32 %v2665
  %vm2672 = vmor %vm2670, %vm2671
  %v2673 = vsel %vm2672, %v2665, %v2669
  %v2674 = vand.u32 2147483647, %v2649
  %vm2675 = vcmp.eq.f32.partialorder %v2674, 8.507059e+37
  %v2676 = vand.u32 %v2649, 2147483648
  %v2677 = vor.u32 1.1754944e-38, %v2676
  %v2678 = vsel %vm2675, %v2677, %v2673
  %v2679 = vmul.f32 1.0, %v2678
  %v2680 = vadd.f32 %v2587, %v2622
  %v2681 = vadd.f32 %v2590, %v2624
  %v2682 = vxor.u32 %v2680, 2147483648
  %v2683 = vxor.u32 %v2681, 2147483648
  %v2684 = vmul.f32 %v2682, 1.442695
  %v2685 = vpow.pop %v2684
  %v2686 = vmul.f32 %v2683, 1.442695
  %v2687 = vpow.pop %v2686
  %v2688 = vadd.f32 %v2685, 1.0
  %v2689 = vadd.f32 %v2687, 1.0
  %v2690 = vrcp.pop %v2688
  %v2691 = vmul.f32 %v2688, %v2690
  %v2692 = vsub.f32 1.0, %v2691
  %v2693 = vmul.f32 %v2690, %v2692
  %v2694 = vadd.f32 %v2690, %v2693
  %vm2695 = vweird.f32 %v2688
  %vm2696 = vweird.f32 %v2690
  %vm2697 = vmor %vm2695, %vm2696
  %v2698 = vsel %vm2697, %v2690, %v2694
  %v2699 = vand.u32 2147483647, %v2688
  %vm2700 = vcmp.eq.f32.partialorder %v2699, 8.507059e+37
  %v2701 = vand.u32 %v2688, 2147483648
  %v2702 = vor.u32 1.1754944e-38, %v2701
  %v2703 = vsel %vm2700, %v2702, %v2698
  %v2704 = vmul.f32 1.0, %v2703
  %v2705 = vrcp.pop %v2689
  %v2706 = vmul.f32 %v2689, %v2705
  %v2707 = vsub.f32 1.0, %v2706
  %v2708 = vmul.f32 %v2705, %v2707
  %v2709 = vadd.f32 %v2705, %v2708
  %vm2710 = vweird.f32 %v2689
  %vm2711 = vweird.f32 %v2705
  %vm2712 = vmor %vm2710, %vm2711
  %v2713 = vsel %vm2712, %v2705, %v2709
  %v2714 = vand.u32 2147483647, %v2689
  %vm2715 = vcmp.eq.f32.partialorder %v2714, 8.507059e+37
  %v2716 = vand.u32 %v2689, 2147483648
  %v2717 = vor.u32 1.1754944e-38, %v2716
  %v2718 = vsel %vm2715, %v2717, %v2713
  %v2719 = vmul.f32 1.0, %v2718
  %v2720 = vadd.f32 %v2636, %v991
  %v2721 = vadd.f32 %v2638, %v991
  %v2722 = vmul.f32 %v2664, %v2720
  %v2723 = vmul.f32 %v2679, %v2721
  %v2724 = vadd.f32 %v2588, %v2722
  %v2725 = vadd.f32 %v2591, %v2723
  %v2726 = vtanh.pop %v2724
  %v2727 = vtanh.pop %v2725
  %v2728 = vsub.f32 1.0, %v2704
  %v2729 = vsub.f32 1.0, %v2719
  %v2730 = vmul.f32 %v2728, %v2726
  %v2731 = vmul.f32 %v2729, %v2727
  %v2732 = vmul.f32 %v2704, %v2578
  %v2733 = vmul.f32 %v2719, %v2579
  %v2734 = vadd.f32 %v2730, %v2732
  %v2735 = vadd.f32 %v2731, %v2733
  %s2736 = sadd.s32 %s2568, 11
  %p2737 = scmp.lt.s32.totalorder %s2736, 10
  %s2738 = scalar_select %p2737, 1, 0
  %s2739 = scvt.s32.f32 %s2738
  %v2740 = vsub.f32 %v2734, %v2578
  %v2741 = vsub.f32 %v2735, %v2579
  %v2742 = vstv %s2739
  %v2743 = vmul.f32 %v2742, %v2740
  %v2744 = vmul.f32 %v2742, %v2741
  %v2745 = vadd.f32 %v2578, %v2743
  %v2746 = vadd.f32 %v2579, %v2744
  %v2747 = vpack.c.bf16 %v2745, %v2745
  %v2748 = vpack.c.bf16 %v2746, %v2746
  %s2749 = scalar_lea.vmem [#allocation4], 88
  %2750 = vst [vmem:[%s2749] sm:$0xf] %v2747
  %2751 = vst [vmem:[%s2749 + $0x4] sm:$0xf] %v2748
  %s2752 = scalar_lea.vmem [#allocation3], 576
  %v2753 = vld [vmem:[%s2752] sm:$0xff]
  %v2754 = vld [vmem:[%s2752 + $0x8] sm:$0xff]
  %v2755 = vld [vmem:[%s2752 + $0x10] sm:$0xff]
  %v2756 = vld [vmem:[%s2752 + $0x18] sm:$0xff]
  %v2757 = vld [vmem:[%s2752 + $0x20] sm:$0xff]
  %v2758 = vld [vmem:[%s2752 + $0x28] sm:$0xff]
  %v2761 = vunpack.c.l.b16 %v2747
  %v2762 = vunpack.c.l.b16 %v2748
  %v2763 = vpack.c.b16 %v2762, %v2761
  %2765 = vmatpush.bf16.msra.mxu0 %v841
  %2766 = vmatpush.bf16.msra.mxu0 %v838
  %2767 = vmatpush.bf16.msra.mxu0 %v835
  %2768 = vmatpush.bf16.msra.mxu0 %v832
  %2769 = vmatpush.bf16.msra.mxu0 %v829
  %2770 = vmatpush.bf16.msra.mxu0 %v826
  %2771 = vmatpush.bf16.msra.mxu0 %v823
  %2772 = vmatpush.bf16.msra.mxu0 %v820
  %2773 = vmatmul.bf16.gmra.mxu0 %v2763
  %v2774 = vpop.f32.mrf.mxu0
  %v2775 = vadd.f32 0.0, %v2774
  %v2776 = vpop.f32.mrf.mxu0
  %v2777 = vadd.f32 0.0, %v2776
  %2778 = vdwg.mxu0
  %2779 = vmatpush.bf16.msra.mxu0 %v842
  %2780 = vmatpush.bf16.msra.mxu0 %v839
  %2781 = vmatpush.bf16.msra.mxu0 %v836
  %2782 = vmatpush.bf16.msra.mxu0 %v833
  %2783 = vmatpush.bf16.msra.mxu0 %v830
  %2784 = vmatpush.bf16.msra.mxu0 %v827
  %2785 = vmatpush.bf16.msra.mxu0 %v824
  %2786 = vmatpush.bf16.msra.mxu0 %v821
  %2787 = vmatmul.bf16.gmra.mxu0 %v2763
  %v2788 = vpop.f32.mrf.mxu0
  %v2789 = vadd.f32 0.0, %v2788
  %v2790 = vpop.f32.mrf.mxu0
  %v2791 = vadd.f32 0.0, %v2790
  %2792 = vdwg.mxu0
  %2793 = vmatpush.bf16.msra.mxu0 %v843
  %2794 = vmatpush.bf16.msra.mxu0 %v840
  %2795 = vmatpush.bf16.msra.mxu0 %v837
  %2796 = vmatpush.bf16.msra.mxu0 %v834
  %2797 = vmatpush.bf16.msra.mxu0 %v831
  %2798 = vmatpush.bf16.msra.mxu0 %v828
  %2799 = vmatpush.bf16.msra.mxu0 %v825
  %2800 = vmatpush.bf16.msra.mxu0 %v822
  %2801 = vmatmul.bf16.gmra.mxu0 %v2763
  %v2802 = vpop.f32.mrf.mxu0
  %v2803 = vadd.f32 0.0, %v2802
  %v2804 = vpop.f32.mrf.mxu0
  %v2805 = vadd.f32 0.0, %v2804
  %2806 = vdwg.mxu0
  %v2807 = vadd.f32 %v2753, %v2775
  %v2808 = vadd.f32 %v2756, %v2777
  %v2809 = vxor.u32 %v2807, 2147483648
  %v2810 = vxor.u32 %v2808, 2147483648
  %v2811 = vmul.f32 %v2809, 1.442695
  %v2812 = vpow.pop %v2811
  %v2813 = vmul.f32 %v2810, 1.442695
  %v2814 = vpow.pop %v2813
  %v2815 = vadd.f32 %v2812, 1.0
  %v2816 = vadd.f32 %v2814, 1.0
  %v2817 = vrcp.pop %v2815
  %v2818 = vmul.f32 %v2815, %v2817
  %v2819 = vsub.f32 1.0, %v2818
  %v2820 = vmul.f32 %v2817, %v2819
  %v2821 = vadd.f32 %v2817, %v2820
  %vm2822 = vweird.f32 %v2815
  %vm2823 = vweird.f32 %v2817
  %vm2824 = vmor %vm2822, %vm2823
  %v2825 = vsel %vm2824, %v2817, %v2821
  %v2826 = vand.u32 2147483647, %v2815
  %vm2827 = vcmp.eq.f32.partialorder %v2826, 8.507059e+37
  %v2828 = vand.u32 %v2815, 2147483648
  %v2829 = vor.u32 1.1754944e-38, %v2828
  %v2830 = vsel %vm2827, %v2829, %v2825
  %v2831 = vmul.f32 1.0, %v2830
  %v2832 = vrcp.pop %v2816
  %v2833 = vmul.f32 %v2816, %v2832
  %v2834 = vsub.f32 1.0, %v2833
  %v2835 = vmul.f32 %v2832, %v2834
  %v2836 = vadd.f32 %v2832, %v2835
  %vm2837 = vweird.f32 %v2816
  %vm2838 = vweird.f32 %v2832
  %vm2839 = vmor %vm2837, %vm2838
  %v2840 = vsel %vm2839, %v2832, %v2836
  %v2841 = vand.u32 2147483647, %v2816
  %vm2842 = vcmp.eq.f32.partialorder %v2841, 8.507059e+37
  %v2843 = vand.u32 %v2816, 2147483648
  %v2844 = vor.u32 1.1754944e-38, %v2843
  %v2845 = vsel %vm2842, %v2844, %v2840
  %v2846 = vmul.f32 1.0, %v2845
  %v2847 = vadd.f32 %v2754, %v2789
  %v2848 = vadd.f32 %v2757, %v2791
  %v2849 = vxor.u32 %v2847, 2147483648
  %v2850 = vxor.u32 %v2848, 2147483648
  %v2851 = vmul.f32 %v2849, 1.442695
  %v2852 = vpow.pop %v2851
  %v2853 = vmul.f32 %v2850, 1.442695
  %v2854 = vpow.pop %v2853
  %v2855 = vadd.f32 %v2852, 1.0
  %v2856 = vadd.f32 %v2854, 1.0
  %v2857 = vrcp.pop %v2855
  %v2858 = vmul.f32 %v2855, %v2857
  %v2859 = vsub.f32 1.0, %v2858
  %v2860 = vmul.f32 %v2857, %v2859
  %v2861 = vadd.f32 %v2857, %v2860
  %vm2862 = vweird.f32 %v2855
  %vm2863 = vweird.f32 %v2857
  %vm2864 = vmor %vm2862, %vm2863
  %v2865 = vsel %vm2864, %v2857, %v2861
  %v2866 = vand.u32 2147483647, %v2855
  %vm2867 = vcmp.eq.f32.partialorder %v2866, 8.507059e+37
  %v2868 = vand.u32 %v2855, 2147483648
  %v2869 = vor.u32 1.1754944e-38, %v2868
  %v2870 = vsel %vm2867, %v2869, %v2865
  %v2871 = vmul.f32 1.0, %v2870
  %v2872 = vrcp.pop %v2856
  %v2873 = vmul.f32 %v2856, %v2872
  %v2874 = vsub.f32 1.0, %v2873
  %v2875 = vmul.f32 %v2872, %v2874
  %v2876 = vadd.f32 %v2872, %v2875
  %vm2877 = vweird.f32 %v2856
  %vm2878 = vweird.f32 %v2872
  %vm2879 = vmor %vm2877, %vm2878
  %v2880 = vsel %vm2879, %v2872, %v2876
  %v2881 = vand.u32 2147483647, %v2856
  %vm2882 = vcmp.eq.f32.partialorder %v2881, 8.507059e+37
  %v2883 = vand.u32 %v2856, 2147483648
  %v2884 = vor.u32 1.1754944e-38, %v2883
  %v2885 = vsel %vm2882, %v2884, %v2880
  %v2886 = vmul.f32 1.0, %v2885
  %v2887 = vadd.f32 %v2803, %v991
  %v2888 = vadd.f32 %v2805, %v991
  %v2889 = vmul.f32 %v2831, %v2887
  %v2890 = vmul.f32 %v2846, %v2888
  %v2891 = vadd.f32 %v2755, %v2889
  %v2892 = vadd.f32 %v2758, %v2890
  %v2893 = vtanh.pop %v2891
  %v2894 = vtanh.pop %v2892
  %v2895 = vsub.f32 1.0, %v2871
  %v2896 = vsub.f32 1.0, %v2886
  %v2897 = vmul.f32 %v2895, %v2893
  %v2898 = vmul.f32 %v2896, %v2894
  %v2899 = vmul.f32 %v2871, %v2745
  %v2900 = vmul.f32 %v2886, %v2746
  %v2901 = vadd.f32 %v2897, %v2899
  %v2902 = vadd.f32 %v2898, %v2900
  %s2903 = sadd.s32 %s2568, 12
  %p2904 = scmp.lt.s32.totalorder %s2903, 10
  %s2905 = scalar_select %p2904, 1, 0
  %s2906 = scvt.s32.f32 %s2905
  %v2907 = vsub.f32 %v2901, %v2745
  %v2908 = vsub.f32 %v2902, %v2746
  %v2909 = vstv %s2906
  %v2910 = vmul.f32 %v2909, %v2907
  %v2911 = vmul.f32 %v2909, %v2908
  %v2912 = vadd.f32 %v2745, %v2910
  %v2913 = vadd.f32 %v2746, %v2911
  %v2914 = vpack.c.bf16 %v2912, %v2912
  %v2915 = vpack.c.bf16 %v2913, %v2913
  %s2916 = scalar_lea.vmem [#allocation4], 96
  %2917 = vst [vmem:[%s2916] sm:$0xf] %v2914
  %2918 = vst [vmem:[%s2916 + $0x4] sm:$0xf] %v2915
  %s2919 = scalar_lea.vmem [#allocation3], 624
  %v2920 = vld [vmem:[%s2919] sm:$0xff]
  %v2921 = vld [vmem:[%s2919 + $0x8] sm:$0xff]
  %v2922 = vld [vmem:[%s2919 + $0x10] sm:$0xff]
  %v2923 = vld [vmem:[%s2919 + $0x18] sm:$0xff]
  %v2924 = vld [vmem:[%s2919 + $0x20] sm:$0xff]
  %v2925 = vld [vmem:[%s2919 + $0x28] sm:$0xff]
  %v2928 = vunpack.c.l.b16 %v2914
  %v2929 = vunpack.c.l.b16 %v2915
  %v2930 = vpack.c.b16 %v2929, %v2928
  %2932 = vmatpush.bf16.msra.mxu0 %v841
  %2933 = vmatpush.bf16.msra.mxu0 %v838
  %2934 = vmatpush.bf16.msra.mxu0 %v835
  %2935 = vmatpush.bf16.msra.mxu0 %v832
  %2936 = vmatpush.bf16.msra.mxu0 %v829
  %2937 = vmatpush.bf16.msra.mxu0 %v826
  %2938 = vmatpush.bf16.msra.mxu0 %v823
  %2939 = vmatpush.bf16.msra.mxu0 %v820
  %2940 = vmatmul.bf16.gmra.mxu0 %v2930
  %v2941 = vpop.f32.mrf.mxu0
  %v2942 = vadd.f32 0.0, %v2941
  %v2943 = vpop.f32.mrf.mxu0
  %v2944 = vadd.f32 0.0, %v2943
  %2945 = vdwg.mxu0
  %2946 = vmatpush.bf16.msra.mxu0 %v842
  %2947 = vmatpush.bf16.msra.mxu0 %v839
  %2948 = vmatpush.bf16.msra.mxu0 %v836
  %2949 = vmatpush.bf16.msra.mxu0 %v833
  %2950 = vmatpush.bf16.msra.mxu0 %v830
  %2951 = vmatpush.bf16.msra.mxu0 %v827
  %2952 = vmatpush.bf16.msra.mxu0 %v824
  %2953 = vmatpush.bf16.msra.mxu0 %v821
  %2954 = vmatmul.bf16.gmra.mxu0 %v2930
  %v2955 = vpop.f32.mrf.mxu0
  %v2956 = vadd.f32 0.0, %v2955
  %v2957 = vpop.f32.mrf.mxu0
  %v2958 = vadd.f32 0.0, %v2957
  %2959 = vdwg.mxu0
  %2960 = vmatpush.bf16.msra.mxu0 %v843
  %2961 = vmatpush.bf16.msra.mxu0 %v840
  %2962 = vmatpush.bf16.msra.mxu0 %v837
  %2963 = vmatpush.bf16.msra.mxu0 %v834
  %2964 = vmatpush.bf16.msra.mxu0 %v831
  %2965 = vmatpush.bf16.msra.mxu0 %v828
  %2966 = vmatpush.bf16.msra.mxu0 %v825
  %2967 = vmatpush.bf16.msra.mxu0 %v822
  %2968 = vmatmul.bf16.gmra.mxu0 %v2930
  %v2969 = vpop.f32.mrf.mxu0
  %v2970 = vadd.f32 0.0, %v2969
  %v2971 = vpop.f32.mrf.mxu0
  %v2972 = vadd.f32 0.0, %v2971
  %2973 = vdwg.mxu0
  %v2974 = vadd.f32 %v2920, %v2942
  %v2975 = vadd.f32 %v2923, %v2944
  %v2976 = vxor.u32 %v2974, 2147483648
  %v2977 = vxor.u32 %v2975, 2147483648
  %v2978 = vmul.f32 %v2976, 1.442695
  %v2979 = vpow.pop %v2978
  %v2980 = vmul.f32 %v2977, 1.442695
  %v2981 = vpow.pop %v2980
  %v2982 = vadd.f32 %v2979, 1.0
  %v2983 = vadd.f32 %v2981, 1.0
  %v2984 = vrcp.pop %v2982
  %v2985 = vmul.f32 %v2982, %v2984
  %v2986 = vsub.f32 1.0, %v2985
  %v2987 = vmul.f32 %v2984, %v2986
  %v2988 = vadd.f32 %v2984, %v2987
  %vm2989 = vweird.f32 %v2982
  %vm2990 = vweird.f32 %v2984
  %vm2991 = vmor %vm2989, %vm2990
  %v2992 = vsel %vm2991, %v2984, %v2988
  %v2993 = vand.u32 2147483647, %v2982
  %vm2994 = vcmp.eq.f32.partialorder %v2993, 8.507059e+37
  %v2995 = vand.u32 %v2982, 2147483648
  %v2996 = vor.u32 1.1754944e-38, %v2995
  %v2997 = vsel %vm2994, %v2996, %v2992
  %v2998 = vmul.f32 1.0, %v2997
  %v2999 = vrcp.pop %v2983
  %v3000 = vmul.f32 %v2983, %v2999
  %v3001 = vsub.f32 1.0, %v3000
  %v3002 = vmul.f32 %v2999, %v3001
  %v3003 = vadd.f32 %v2999, %v3002
  %vm3004 = vweird.f32 %v2983
  %vm3005 = vweird.f32 %v2999
  %vm3006 = vmor %vm3004, %vm3005
  %v3007 = vsel %vm3006, %v2999, %v3003
  %v3008 = vand.u32 2147483647, %v2983
  %vm3009 = vcmp.eq.f32.partialorder %v3008, 8.507059e+37
  %v3010 = vand.u32 %v2983, 2147483648
  %v3011 = vor.u32 1.1754944e-38, %v3010
  %v3012 = vsel %vm3009, %v3011, %v3007
  %v3013 = vmul.f32 1.0, %v3012
  %v3014 = vadd.f32 %v2921, %v2956
  %v3015 = vadd.f32 %v2924, %v2958
  %v3016 = vxor.u32 %v3014, 2147483648
  %v3017 = vxor.u32 %v3015, 2147483648
  %v3018 = vmul.f32 %v3016, 1.442695
  %v3019 = vpow.pop %v3018
  %v3020 = vmul.f32 %v3017, 1.442695
  %v3021 = vpow.pop %v3020
  %v3022 = vadd.f32 %v3019, 1.0
  %v3023 = vadd.f32 %v3021, 1.0
  %v3024 = vrcp.pop %v3022
  %v3025 = vmul.f32 %v3022, %v3024
  %v3026 = vsub.f32 1.0, %v3025
  %v3027 = vmul.f32 %v3024, %v3026
  %v3028 = vadd.f32 %v3024, %v3027
  %vm3029 = vweird.f32 %v3022
  %vm3030 = vweird.f32 %v3024
  %vm3031 = vmor %vm3029, %vm3030
  %v3032 = vsel %vm3031, %v3024, %v3028
  %v3033 = vand.u32 2147483647, %v3022
  %vm3034 = vcmp.eq.f32.partialorder %v3033, 8.507059e+37
  %v3035 = vand.u32 %v3022, 2147483648
  %v3036 = vor.u32 1.1754944e-38, %v3035
  %v3037 = vsel %vm3034, %v3036, %v3032
  %v3038 = vmul.f32 1.0, %v3037
  %v3039 = vrcp.pop %v3023
  %v3040 = vmul.f32 %v3023, %v3039
  %v3041 = vsub.f32 1.0, %v3040
  %v3042 = vmul.f32 %v3039, %v3041
  %v3043 = vadd.f32 %v3039, %v3042
  %vm3044 = vweird.f32 %v3023
  %vm3045 = vweird.f32 %v3039
  %vm3046 = vmor %vm3044, %vm3045
  %v3047 = vsel %vm3046, %v3039, %v3043
  %v3048 = vand.u32 2147483647, %v3023
  %vm3049 = vcmp.eq.f32.partialorder %v3048, 8.507059e+37
  %v3050 = vand.u32 %v3023, 2147483648
  %v3051 = vor.u32 1.1754944e-38, %v3050
  %v3052 = vsel %vm3049, %v3051, %v3047
  %v3053 = vmul.f32 1.0, %v3052
  %v3054 = vadd.f32 %v2970, %v991
  %v3055 = vadd.f32 %v2972, %v991
  %v3056 = vmul.f32 %v2998, %v3054
  %v3057 = vmul.f32 %v3013, %v3055
  %v3058 = vadd.f32 %v2922, %v3056
  %v3059 = vadd.f32 %v2925, %v3057
  %v3060 = vtanh.pop %v3058
  %v3061 = vtanh.pop %v3059
  %v3062 = vsub.f32 1.0, %v3038
  %v3063 = vsub.f32 1.0, %v3053
  %v3064 = vmul.f32 %v3062, %v3060
  %v3065 = vmul.f32 %v3063, %v3061
  %v3066 = vmul.f32 %v3038, %v2912
  %v3067 = vmul.f32 %v3053, %v2913
  %v3068 = vadd.f32 %v3064, %v3066
  %v3069 = vadd.f32 %v3065, %v3067
  %s3070 = sadd.s32 %s2568, 13
  %p3071 = scmp.lt.s32.totalorder %s3070, 10
  %s3072 = scalar_select %p3071, 1, 0
  %s3073 = scvt.s32.f32 %s3072
  %v3074 = vsub.f32 %v3068, %v2912
  %v3075 = vsub.f32 %v3069, %v2913
  %v3076 = vstv %s3073
  %v3077 = vmul.f32 %v3076, %v3074
  %v3078 = vmul.f32 %v3076, %v3075
  %v3079 = vadd.f32 %v2912, %v3077
  %v3080 = vadd.f32 %v2913, %v3078
  %v3081 = vpack.c.bf16 %v3079, %v3079
  %v3082 = vpack.c.bf16 %v3080, %v3080
  %s3083 = scalar_lea.vmem [#allocation4], 104
  %3084 = vst [vmem:[%s3083] sm:$0xf] %v3081
  %3085 = vst [vmem:[%s3083 + $0x4] sm:$0xf] %v3082
  %s3086 = scalar_lea.vmem [#allocation3], 672
  %v3087 = vld [vmem:[%s3086] sm:$0xff]
  %v3088 = vld [vmem:[%s3086 + $0x8] sm:$0xff]
  %v3089 = vld [vmem:[%s3086 + $0x10] sm:$0xff]
  %v3090 = vld [vmem:[%s3086 + $0x18] sm:$0xff]
  %v3091 = vld [vmem:[%s3086 + $0x20] sm:$0xff]
  %v3092 = vld [vmem:[%s3086 + $0x28] sm:$0xff]
  %v3095 = vunpack.c.l.b16 %v3081
  %v3096 = vunpack.c.l.b16 %v3082
  %v3097 = vpack.c.b16 %v3096, %v3095
  %3099 = vmatpush.bf16.msra.mxu0 %v841
  %3100 = vmatpush.bf16.msra.mxu0 %v838
  %3101 = vmatpush.bf16.msra.mxu0 %v835
  %3102 = vmatpush.bf16.msra.mxu0 %v832
  %3103 = vmatpush.bf16.msra.mxu0 %v829
  %3104 = vmatpush.bf16.msra.mxu0 %v826
  %3105 = vmatpush.bf16.msra.mxu0 %v823
  %3106 = vmatpush.bf16.msra.mxu0 %v820
  %3107 = vmatmul.bf16.gmra.mxu0 %v3097
  %v3108 = vpop.f32.mrf.mxu0
  %v3109 = vadd.f32 0.0, %v3108
  %v3110 = vpop.f32.mrf.mxu0
  %v3111 = vadd.f32 0.0, %v3110
  %3112 = vdwg.mxu0
  %3113 = vmatpush.bf16.msra.mxu0 %v842
  %3114 = vmatpush.bf16.msra.mxu0 %v839
  %3115 = vmatpush.bf16.msra.mxu0 %v836
  %3116 = vmatpush.bf16.msra.mxu0 %v833
  %3117 = vmatpush.bf16.msra.mxu0 %v830
  %3118 = vmatpush.bf16.msra.mxu0 %v827
  %3119 = vmatpush.bf16.msra.mxu0 %v824
  %3120 = vmatpush.bf16.msra.mxu0 %v821
  %3121 = vmatmul.bf16.gmra.mxu0 %v3097
  %v3122 = vpop.f32.mrf.mxu0
  %v3123 = vadd.f32 0.0, %v3122
  %v3124 = vpop.f32.mrf.mxu0
  %v3125 = vadd.f32 0.0, %v3124
  %3126 = vdwg.mxu0
  %3127 = vmatpush.bf16.msra.mxu0 %v843
  %3128 = vmatpush.bf16.msra.mxu0 %v840
  %3129 = vmatpush.bf16.msra.mxu0 %v837
  %3130 = vmatpush.bf16.msra.mxu0 %v834
  %3131 = vmatpush.bf16.msra.mxu0 %v831
  %3132 = vmatpush.bf16.msra.mxu0 %v828
  %3133 = vmatpush.bf16.msra.mxu0 %v825
  %3134 = vmatpush.bf16.msra.mxu0 %v822
  %3135 = vmatmul.bf16.gmra.mxu0 %v3097
  %v3136 = vpop.f32.mrf.mxu0
  %v3137 = vadd.f32 0.0, %v3136
  %v3138 = vpop.f32.mrf.mxu0
  %v3139 = vadd.f32 0.0, %v3138
  %3140 = vdwg.mxu0
  %v3141 = vadd.f32 %v3087, %v3109
  %v3142 = vadd.f32 %v3090, %v3111
  %v3143 = vxor.u32 %v3141, 2147483648
  %v3144 = vxor.u32 %v3142, 2147483648
  %v3145 = vmul.f32 %v3143, 1.442695
  %v3146 = vpow.pop %v3145
  %v3147 = vmul.f32 %v3144, 1.442695
  %v3148 = vpow.pop %v3147
  %v3149 = vadd.f32 %v3146, 1.0
  %v3150 = vadd.f32 %v3148, 1.0
  %v3151 = vrcp.pop %v3149
  %v3152 = vmul.f32 %v3149, %v3151
  %v3153 = vsub.f32 1.0, %v3152
  %v3154 = vmul.f32 %v3151, %v3153
  %v3155 = vadd.f32 %v3151, %v3154
  %vm3156 = vweird.f32 %v3149
  %vm3157 = vweird.f32 %v3151
  %vm3158 = vmor %vm3156, %vm3157
  %v3159 = vsel %vm3158, %v3151, %v3155
  %v3160 = vand.u32 2147483647, %v3149
  %vm3161 = vcmp.eq.f32.partialorder %v3160, 8.507059e+37
  %v3162 = vand.u32 %v3149, 2147483648
  %v3163 = vor.u32 1.1754944e-38, %v3162
  %v3164 = vsel %vm3161, %v3163, %v3159
  %v3165 = vmul.f32 1.0, %v3164
  %v3166 = vrcp.pop %v3150
  %v3167 = vmul.f32 %v3150, %v3166
  %v3168 = vsub.f32 1.0, %v3167
  %v3169 = vmul.f32 %v3166, %v3168
  %v3170 = vadd.f32 %v3166, %v3169
  %vm3171 = vweird.f32 %v3150
  %vm3172 = vweird.f32 %v3166
  %vm3173 = vmor %vm3171, %vm3172
  %v3174 = vsel %vm3173, %v3166, %v3170
  %v3175 = vand.u32 2147483647, %v3150
  %vm3176 = vcmp.eq.f32.partialorder %v3175, 8.507059e+37
  %v3177 = vand.u32 %v3150, 2147483648
  %v3178 = vor.u32 1.1754944e-38, %v3177
  %v3179 = vsel %vm3176, %v3178, %v3174
  %v3180 = vmul.f32 1.0, %v3179
  %v3181 = vadd.f32 %v3088, %v3123
  %v3182 = vadd.f32 %v3091, %v3125
  %v3183 = vxor.u32 %v3181, 2147483648
  %v3184 = vxor.u32 %v3182, 2147483648
  %v3185 = vmul.f32 %v3183, 1.442695
  %v3186 = vpow.pop %v3185
  %v3187 = vmul.f32 %v3184, 1.442695
  %v3188 = vpow.pop %v3187
  %v3189 = vadd.f32 %v3186, 1.0
  %v3190 = vadd.f32 %v3188, 1.0
  %v3191 = vrcp.pop %v3189
  %v3192 = vmul.f32 %v3189, %v3191
  %v3193 = vsub.f32 1.0, %v3192
  %v3194 = vmul.f32 %v3191, %v3193
  %v3195 = vadd.f32 %v3191, %v3194
  %vm3196 = vweird.f32 %v3189
  %vm3197 = vweird.f32 %v3191
  %vm3198 = vmor %vm3196, %vm3197
  %v3199 = vsel %vm3198, %v3191, %v3195
  %v3200 = vand.u32 2147483647, %v3189
  %vm3201 = vcmp.eq.f32.partialorder %v3200, 8.507059e+37
  %v3202 = vand.u32 %v3189, 2147483648
  %v3203 = vor.u32 1.1754944e-38, %v3202
  %v3204 = vsel %vm3201, %v3203, %v3199
  %v3205 = vmul.f32 1.0, %v3204
  %v3206 = vrcp.pop %v3190
  %v3207 = vmul.f32 %v3190, %v3206
  %v3208 = vsub.f32 1.0, %v3207
  %v3209 = vmul.f32 %v3206, %v3208
  %v3210 = vadd.f32 %v3206, %v3209
  %vm3211 = vweird.f32 %v3190
  %vm3212 = vweird.f32 %v3206
  %vm3213 = vmor %vm3211, %vm3212
  %v3214 = vsel %vm3213, %v3206, %v3210
  %v3215 = vand.u32 2147483647, %v3190
  %vm3216 = vcmp.eq.f32.partialorder %v3215, 8.507059e+37
  %v3217 = vand.u32 %v3190, 2147483648
  %v3218 = vor.u32 1.1754944e-38, %v3217
  %v3219 = vsel %vm3216, %v3218, %v3214
  %v3220 = vmul.f32 1.0, %v3219
  %v3221 = vadd.f32 %v3137, %v991
  %v3222 = vadd.f32 %v3139, %v991
  %v3223 = vmul.f32 %v3165, %v3221
  %v3224 = vmul.f32 %v3180, %v3222
  %v3225 = vadd.f32 %v3089, %v3223
  %v3226 = vadd.f32 %v3092, %v3224
  %v3227 = vtanh.pop %v3225
  %v3228 = vtanh.pop %v3226
  %v3229 = vsub.f32 1.0, %v3205
  %v3230 = vsub.f32 1.0, %v3220
  %v3231 = vmul.f32 %v3229, %v3227
  %v3232 = vmul.f32 %v3230, %v3228
  %v3233 = vmul.f32 %v3205, %v3079
  %v3234 = vmul.f32 %v3220, %v3080
  %v3235 = vadd.f32 %v3231, %v3233
  %v3236 = vadd.f32 %v3232, %v3234
  %s3237 = sadd.s32 %s2568, 14
  %p3238 = scmp.lt.s32.totalorder %s3237, 10
  %s3239 = scalar_select %p3238, 1, 0
  %s3240 = scvt.s32.f32 %s3239
  %v3241 = vsub.f32 %v3235, %v3079
  %v3242 = vsub.f32 %v3236, %v3080
  %v3243 = vstv %s3240
  %v3244 = vmul.f32 %v3243, %v3241
  %v3245 = vmul.f32 %v3243, %v3242
  %v3246 = vadd.f32 %v3079, %v3244
  %v3247 = vadd.f32 %v3080, %v3245
  %v3248 = vpack.c.bf16 %v3246, %v3246
  %v3249 = vpack.c.bf16 %v3247, %v3247
  %s3250 = scalar_lea.vmem [#allocation4], 112
  %3251 = vst [vmem:[%s3250] sm:$0xf] %v3248
  %3252 = vst [vmem:[%s3250 + $0x4] sm:$0xf] %v3249
  %s3253 = scalar_lea.vmem [#allocation3], 720
  %v3254 = vld [vmem:[%s3253] sm:$0xff]
  %v3255 = vld [vmem:[%s3253 + $0x8] sm:$0xff]
  %v3256 = vld [vmem:[%s3253 + $0x10] sm:$0xff]
  %v3257 = vld [vmem:[%s3253 + $0x18] sm:$0xff]
  %v3258 = vld [vmem:[%s3253 + $0x20] sm:$0xff]
  %v3259 = vld [vmem:[%s3253 + $0x28] sm:$0xff]
  %v3262 = vunpack.c.l.b16 %v3248
  %v3263 = vunpack.c.l.b16 %v3249
  %v3264 = vpack.c.b16 %v3263, %v3262
  %3266 = vmatpush.bf16.msra.mxu0 %v841
  %3267 = vmatpush.bf16.msra.mxu0 %v838
  %3268 = vmatpush.bf16.msra.mxu0 %v835
  %3269 = vmatpush.bf16.msra.mxu0 %v832
  %3270 = vmatpush.bf16.msra.mxu0 %v829
  %3271 = vmatpush.bf16.msra.mxu0 %v826
  %3272 = vmatpush.bf16.msra.mxu0 %v823
  %3273 = vmatpush.bf16.msra.mxu0 %v820
  %3274 = vmatmul.bf16.gmra.mxu0 %v3264
  %v3275 = vpop.f32.mrf.mxu0
  %v3276 = vadd.f32 0.0, %v3275
  %v3277 = vpop.f32.mrf.mxu0
  %v3278 = vadd.f32 0.0, %v3277
  %3279 = vdwg.mxu0
  %3280 = vmatpush.bf16.msra.mxu0 %v842
  %3281 = vmatpush.bf16.msra.mxu0 %v839
  %3282 = vmatpush.bf16.msra.mxu0 %v836
  %3283 = vmatpush.bf16.msra.mxu0 %v833
  %3284 = vmatpush.bf16.msra.mxu0 %v830
  %3285 = vmatpush.bf16.msra.mxu0 %v827
  %3286 = vmatpush.bf16.msra.mxu0 %v824
  %3287 = vmatpush.bf16.msra.mxu0 %v821
  %3288 = vmatmul.bf16.gmra.mxu0 %v3264
  %v3289 = vpop.f32.mrf.mxu0
  %v3290 = vadd.f32 0.0, %v3289
  %v3291 = vpop.f32.mrf.mxu0
  %v3292 = vadd.f32 0.0, %v3291
  %3293 = vdwg.mxu0
  %3294 = vmatpush.bf16.msra.mxu0 %v843
  %3295 = vmatpush.bf16.msra.mxu0 %v840
  %3296 = vmatpush.bf16.msra.mxu0 %v837
  %3297 = vmatpush.bf16.msra.mxu0 %v834
  %3298 = vmatpush.bf16.msra.mxu0 %v831
  %3299 = vmatpush.bf16.msra.mxu0 %v828
  %3300 = vmatpush.bf16.msra.mxu0 %v825
  %3301 = vmatpush.bf16.msra.mxu0 %v822
  %3302 = vmatmul.bf16.gmra.mxu0 %v3264
  %v3303 = vpop.f32.mrf.mxu0
  %v3304 = vadd.f32 0.0, %v3303
  %v3305 = vpop.f32.mrf.mxu0
  %v3306 = vadd.f32 0.0, %v3305
  %3307 = vdwg.mxu0
  %v3308 = vadd.f32 %v3254, %v3276
  %v3309 = vadd.f32 %v3257, %v3278
  %v3310 = vxor.u32 %v3308, 2147483648
  %v3311 = vxor.u32 %v3309, 2147483648
  %v3312 = vmul.f32 %v3310, 1.442695
  %v3313 = vpow.pop %v3312
  %v3314 = vmul.f32 %v3311, 1.442695
  %v3315 = vpow.pop %v3314
  %v3316 = vadd.f32 %v3313, 1.0
  %v3317 = vadd.f32 %v3315, 1.0
  %v3318 = vrcp.pop %v3316
  %v3319 = vmul.f32 %v3316, %v3318
  %v3320 = vsub.f32 1.0, %v3319
  %v3321 = vmul.f32 %v3318, %v3320
  %v3322 = vadd.f32 %v3318, %v3321
  %vm3323 = vweird.f32 %v3316
  %vm3324 = vweird.f32 %v3318
  %vm3325 = vmor %vm3323, %vm3324
  %v3326 = vsel %vm3325, %v3318, %v3322
  %v3327 = vand.u32 2147483647, %v3316
  %vm3328 = vcmp.eq.f32.partialorder %v3327, 8.507059e+37
  %v3329 = vand.u32 %v3316, 2147483648
  %v3330 = vor.u32 1.1754944e-38, %v3329
  %v3331 = vsel %vm3328, %v3330, %v3326
  %v3332 = vmul.f32 1.0, %v3331
  %v3333 = vrcp.pop %v3317
  %v3334 = vmul.f32 %v3317, %v3333
  %v3335 = vsub.f32 1.0, %v3334
  %v3336 = vmul.f32 %v3333, %v3335
  %v3337 = vadd.f32 %v3333, %v3336
  %vm3338 = vweird.f32 %v3317
  %vm3339 = vweird.f32 %v3333
  %vm3340 = vmor %vm3338, %vm3339
  %v3341 = vsel %vm3340, %v3333, %v3337
  %v3342 = vand.u32 2147483647, %v3317
  %vm3343 = vcmp.eq.f32.partialorder %v3342, 8.507059e+37
  %v3344 = vand.u32 %v3317, 2147483648
  %v3345 = vor.u32 1.1754944e-38, %v3344
  %v3346 = vsel %vm3343, %v3345, %v3341
  %v3347 = vmul.f32 1.0, %v3346
  %v3348 = vadd.f32 %v3255, %v3290
  %v3349 = vadd.f32 %v3258, %v3292
  %v3350 = vxor.u32 %v3348, 2147483648
  %v3351 = vxor.u32 %v3349, 2147483648
  %v3352 = vmul.f32 %v3350, 1.442695
  %v3353 = vpow.pop %v3352
  %v3354 = vmul.f32 %v3351, 1.442695
  %v3355 = vpow.pop %v3354
  %v3356 = vadd.f32 %v3353, 1.0
  %v3357 = vadd.f32 %v3355, 1.0
  %v3358 = vrcp.pop %v3356
  %v3359 = vmul.f32 %v3356, %v3358
  %v3360 = vsub.f32 1.0, %v3359
  %v3361 = vmul.f32 %v3358, %v3360
  %v3362 = vadd.f32 %v3358, %v3361
  %vm3363 = vweird.f32 %v3356
  %vm3364 = vweird.f32 %v3358
  %vm3365 = vmor %vm3363, %vm3364
  %v3366 = vsel %vm3365, %v3358, %v3362
  %v3367 = vand.u32 2147483647, %v3356
  %vm3368 = vcmp.eq.f32.partialorder %v3367, 8.507059e+37
  %v3369 = vand.u32 %v3356, 2147483648
  %v3370 = vor.u32 1.1754944e-38, %v3369
  %v3371 = vsel %vm3368, %v3370, %v3366
  %v3372 = vmul.f32 1.0, %v3371
  %v3373 = vrcp.pop %v3357
  %v3374 = vmul.f32 %v3357, %v3373
  %v3375 = vsub.f32 1.0, %v3374
  %v3376 = vmul.f32 %v3373, %v3375
  %v3377 = vadd.f32 %v3373, %v3376
  %vm3378 = vweird.f32 %v3357
  %vm3379 = vweird.f32 %v3373
  %vm3380 = vmor %vm3378, %vm3379
  %v3381 = vsel %vm3380, %v3373, %v3377
  %v3382 = vand.u32 2147483647, %v3357
  %vm3383 = vcmp.eq.f32.partialorder %v3382, 8.507059e+37
  %v3384 = vand.u32 %v3357, 2147483648
  %v3385 = vor.u32 1.1754944e-38, %v3384
  %v3386 = vsel %vm3383, %v3385, %v3381
  %v3387 = vmul.f32 1.0, %v3386
  %v3388 = vadd.f32 %v3304, %v991
  %v3389 = vadd.f32 %v3306, %v991
  %v3390 = vmul.f32 %v3332, %v3388
  %v3391 = vmul.f32 %v3347, %v3389
  %v3392 = vadd.f32 %v3256, %v3390
  %v3393 = vadd.f32 %v3259, %v3391
  %v3394 = vtanh.pop %v3392
  %v3395 = vtanh.pop %v3393
  %v3396 = vsub.f32 1.0, %v3372
  %v3397 = vsub.f32 1.0, %v3387
  %v3398 = vmul.f32 %v3396, %v3394
  %v3399 = vmul.f32 %v3397, %v3395
  %v3400 = vmul.f32 %v3372, %v3246
  %v3401 = vmul.f32 %v3387, %v3247
  %v3402 = vadd.f32 %v3398, %v3400
  %v3403 = vadd.f32 %v3399, %v3401
  %s3404 = sadd.s32 %s2568, 15
  %p3405 = scmp.lt.s32.totalorder %s3404, 10
  %s3406 = scalar_select %p3405, 1, 0
  %s3407 = scvt.s32.f32 %s3406
  %v3408 = vsub.f32 %v3402, %v3246
  %v3409 = vsub.f32 %v3403, %v3247
  %v3410 = vstv %s3407
  %v3411 = vmul.f32 %v3410, %v3408
  %v3412 = vmul.f32 %v3410, %v3409
  %v3413 = vadd.f32 %v3246, %v3411
  %v3414 = vadd.f32 %v3247, %v3412
  %v3415 = vpack.c.bf16 %v3413, %v3413
  %v3416 = vpack.c.bf16 %v3414, %v3414
  %s3417 = scalar_lea.vmem [#allocation4], 120
  %3418 = vst [vmem:[%s3417] sm:$0xf] %v3415
  %3419 = vst [vmem:[%s3417 + $0x4] sm:$0xf] %v3416
  %3420 = vst [vmem:[#allocation2] sm:$0xff] %v3413
  %3421 = vst [vmem:[#allocation2 + $0x8] sm:$0xff] %v3414
  %v3422 = vld [vmem:[#allocation4] sm:$0xf]
  %v3423 = vld [vmem:[#allocation4 + $0x4] sm:$0xf]
  %v3424 = vld [vmem:[#allocation4 + $0x8] sm:$0xf]
  %v3425 = vld [vmem:[#allocation4 + $0xc] sm:$0xf]
  %v3426 = vld [vmem:[#allocation4 + $0x10] sm:$0xf]
  %v3427 = vld [vmem:[#allocation4 + $0x14] sm:$0xf]
  %v3428 = vld [vmem:[#allocation4 + $0x18] sm:$0xf]
  %v3429 = vld [vmem:[#allocation4 + $0x1c] sm:$0xf]
  %v3430 = vld [vmem:[#allocation4 + $0x20] sm:$0xf]
  %v3431 = vld [vmem:[#allocation4 + $0x24] sm:$0xf]
  %v3432 = vld [vmem:[#allocation4 + $0x28] sm:$0xf]
  %v3433 = vld [vmem:[#allocation4 + $0x2c] sm:$0xf]
  %v3434 = vld [vmem:[#allocation4 + $0x30] sm:$0xf]
  %v3435 = vld [vmem:[#allocation4 + $0x34] sm:$0xf]
  %v3436 = vld [vmem:[#allocation4 + $0x38] sm:$0xf]
  %v3437 = vld [vmem:[#allocation4 + $0x3c] sm:$0xf]
  %v3438 = vld [vmem:[#allocation4 + $0x40] sm:$0xf]
  %v3439 = vld [vmem:[#allocation4 + $0x44] sm:$0xf]
  %v3440 = vld [vmem:[#allocation4 + $0x48] sm:$0xf]
  %v3441 = vld [vmem:[#allocation4 + $0x4c] sm:$0xf]
  %v3442 = vld [vmem:[#allocation4 + $0x50] sm:$0xf]
  %v3443 = vld [vmem:[#allocation4 + $0x54] sm:$0xf]
  %v3444 = vld [vmem:[#allocation4 + $0x58] sm:$0xf]
  %v3445 = vld [vmem:[#allocation4 + $0x5c] sm:$0xf]
  %v3446 = vld [vmem:[#allocation4 + $0x60] sm:$0xf]
  %v3447 = vld [vmem:[#allocation4 + $0x64] sm:$0xf]
  %v3448 = vld [vmem:[#allocation4 + $0x68] sm:$0xf]
  %v3449 = vld [vmem:[#allocation4 + $0x6c] sm:$0xf]
  %v3450 = vld [vmem:[#allocation4 + $0x70] sm:$0xf]
  %v3451 = vld [vmem:[#allocation4 + $0x74] sm:$0xf]
  %v3452 = vld [vmem:[#allocation4 + $0x78] sm:$0xf]
  %v3453 = vld [vmem:[#allocation4 + $0x7c] sm:$0xf]
  %v3454 = vld [vmem:[%s2] sm:$0xff]
  %v3455 = vld [vmem:[%s2 + $0x8] sm:$0xf]
  %v3456 = vld [vmem:[%s2 + $0xc] sm:$0xff]
  %v3457 = vld [vmem:[%s2 + $0x14] sm:$0xf]
  %v3458 = vld [vmem:[%s2 + $0x18] sm:$0xff]
  %v3459 = vld [vmem:[%s2 + $0x20] sm:$0xf]
  %v3460 = vld [vmem:[%s2 + $0x24] sm:$0xff]
  %v3461 = vld [vmem:[%s2 + $0x2c] sm:$0xf]
  %v3462 = vld [vmem:[%s2 + $0x30] sm:$0xff]
  %v3463 = vld [vmem:[%s2 + $0x38] sm:$0xf]
  %v3464 = vld [vmem:[%s2 + $0x3c] sm:$0xff]
  %v3465 = vld [vmem:[%s2 + $0x44] sm:$0xf]
  %v3466 = vld [vmem:[%s2 + $0x48] sm:$0xff]
  %v3467 = vld [vmem:[%s2 + $0x50] sm:$0xf]
  %v3468 = vld [vmem:[%s2 + $0x54] sm:$0xff]
  %v3469 = vld [vmem:[%s2 + $0x5c] sm:$0xf]
  %v3470 = vld [vmem:[%s2 + $0x60] sm:$0xff]
  %v3471 = vld [vmem:[%s2 + $0x68] sm:$0xf]
  %v3472 = vld [vmem:[%s2 + $0x6c] sm:$0xff]
  %v3473 = vld [vmem:[%s2 + $0x74] sm:$0xf]
  %v3474 = vld [vmem:[%s2 + $0x78] sm:$0xff]
  %v3475 = vld [vmem:[%s2 + $0x80] sm:$0xf]
  %v3476 = vld [vmem:[%s2 + $0x84] sm:$0xff]
  %v3477 = vld [vmem:[%s2 + $0x8c] sm:$0xf]
  %v3478 = vld [vmem:[%s2 + $0x90] sm:$0xff]
  %v3479 = vld [vmem:[%s2 + $0x98] sm:$0xf]
  %v3480 = vld [vmem:[%s2 + $0x9c] sm:$0xff]
  %v3481 = vld [vmem:[%s2 + $0xa4] sm:$0xf]
  %v3482 = vld [vmem:[%s2 + $0xa8] sm:$0xff]
  %v3483 = vld [vmem:[%s2 + $0xb0] sm:$0xf]
  %v3484 = vld [vmem:[%s2 + $0xb4] sm:$0xff]
  %v3485 = vld [vmem:[%s2 + $0xbc] sm:$0xf]
  %s3486 = scalar_lea.vmem %s4, 3
  %v3487 = vld [vmem:[%s3486] sm:$0x7]
  %v3489 = vperm.slane %v3487, 0
  %v3490 = vperm.slane %v3487, 1
  %v3491 = vperm.slane %v3487, 2
  %v3527 = vunpack.c.l.b16 %v3422
  %v3528 = vunpack.c.l.b16 %v3423
  %v3529 = vunpack.c.l.b16 %v3424
  %v3530 = vunpack.c.l.b16 %v3425
  %v3531 = vunpack.c.l.b16 %v3426
  %v3532 = vunpack.c.l.b16 %v3427
  %v3533 = vunpack.c.l.b16 %v3428
  %v3534 = vunpack.c.l.b16 %v3429
  %v3535 = vunpack.c.l.b16 %v3430
  %v3536 = vunpack.c.l.b16 %v3431
  %v3537 = vunpack.c.l.b16 %v3432
  %v3538 = vunpack.c.l.b16 %v3433
  %v3539 = vunpack.c.l.b16 %v3434
  %v3540 = vunpack.c.l.b16 %v3435
  %v3541 = vunpack.c.l.b16 %v3436
  %v3542 = vunpack.c.l.b16 %v3437
  %v3543 = vunpack.c.l.b16 %v3438
  %v3544 = vunpack.c.l.b16 %v3439
  %v3545 = vunpack.c.l.b16 %v3440
  %v3546 = vunpack.c.l.b16 %v3441
  %v3547 = vunpack.c.l.b16 %v3442
  %v3548 = vunpack.c.l.b16 %v3443
  %v3549 = vunpack.c.l.b16 %v3444
  %v3550 = vunpack.c.l.b16 %v3445
  %v3551 = vunpack.c.l.b16 %v3446
  %v3552 = vunpack.c.l.b16 %v3447
  %v3553 = vunpack.c.l.b16 %v3448
  %v3554 = vunpack.c.l.b16 %v3449
  %v3555 = vunpack.c.l.b16 %v3450
  %v3556 = vunpack.c.l.b16 %v3451
  %v3557 = vunpack.c.l.b16 %v3452
  %v3558 = vunpack.c.l.b16 %v3453
  %v3559 = vpack.c.b16 %v3528, %v3527
  %v3560 = vpack.c.b16 %v3530, %v3529
  %v3561 = vpack.c.b16 %v3532, %v3531
  %v3562 = vpack.c.b16 %v3534, %v3533
  %v3563 = vpack.c.b16 %v3536, %v3535
  %v3564 = vpack.c.b16 %v3538, %v3537
  %v3565 = vpack.c.b16 %v3540, %v3539
  %v3566 = vpack.c.b16 %v3542, %v3541
  %v3567 = vpack.c.b16 %v3544, %v3543
  %v3568 = vpack.c.b16 %v3546, %v3545
  %v3569 = vpack.c.b16 %v3548, %v3547
  %v3570 = vpack.c.b16 %v3550, %v3549
  %v3571 = vpack.c.b16 %v3552, %v3551
  %v3572 = vpack.c.b16 %v3554, %v3553
  %v3573 = vpack.c.b16 %v3556, %v3555
  %v3574 = vpack.c.b16 %v3558, %v3557
  %v3623 = vunpack.c.l.b16 %v3454
  %v3624 = vunpack.c.h.b16 %v3454
  %v3625 = vunpack.c.l.b16 %v3455
  %v3626 = vunpack.c.l.b16 %v3456
  %v3627 = vunpack.c.h.b16 %v3456
  %v3628 = vunpack.c.l.b16 %v3457
  %v3629 = vunpack.c.l.b16 %v3458
  %v3630 = vunpack.c.h.b16 %v3458
  %v3631 = vunpack.c.l.b16 %v3459
  %v3632 = vunpack.c.l.b16 %v3460
  %v3633 = vunpack.c.h.b16 %v3460
  %v3634 = vunpack.c.l.b16 %v3461
  %v3635 = vunpack.c.l.b16 %v3462
  %v3636 = vunpack.c.h.b16 %v3462
  %v3637 = vunpack.c.l.b16 %v3463
  %v3638 = vunpack.c.l.b16 %v3464
  %v3639 = vunpack.c.h.b16 %v3464
  %v3640 = vunpack.c.l.b16 %v3465
  %v3641 = vunpack.c.l.b16 %v3466
  %v3642 = vunpack.c.h.b16 %v3466
  %v3643 = vunpack.c.l.b16 %v3467
  %v3644 = vunpack.c.l.b16 %v3468
  %v3645 = vunpack.c.h.b16 %v3468
  %v3646 = vunpack.c.l.b16 %v3469
  %v3647 = vunpack.c.l.b16 %v3470
  %v3648 = vunpack.c.h.b16 %v3470
  %v3649 = vunpack.c.l.b16 %v3471
  %v3650 = vunpack.c.l.b16 %v3472
  %v3651 = vunpack.c.h.b16 %v3472
  %v3652 = vunpack.c.l.b16 %v3473
  %v3653 = vunpack.c.l.b16 %v3474
  %v3654 = vunpack.c.h.b16 %v3474
  %v3655 = vunpack.c.l.b16 %v3475
  %v3656 = vunpack.c.l.b16 %v3476
  %v3657 = vunpack.c.h.b16 %v3476
  %v3658 = vunpack.c.l.b16 %v3477
  %v3659 = vunpack.c.l.b16 %v3478
  %v3660 = vunpack.c.h.b16 %v3478
  %v3661 = vunpack.c.l.b16 %v3479
  %v3662 = vunpack.c.l.b16 %v3480
  %v3663 = vunpack.c.h.b16 %v3480
  %v3664 = vunpack.c.l.b16 %v3481
  %v3665 = vunpack.c.l.b16 %v3482
  %v3666 = vunpack.c.h.b16 %v3482
  %v3667 = vunpack.c.l.b16 %v3483
  %v3668 = vunpack.c.l.b16 %v3484
  %v3669 = vunpack.c.h.b16 %v3484
  %v3670 = vunpack.c.l.b16 %v3485
  %v3671 = vpack.c.b16 %v3626, %v3623
  %v3672 = vpack.c.b16 %v3627, %v3624
  %v3673 = vpack.c.b16 %v3628, %v3625
  %v3674 = vpack.c.b16 %v3632, %v3629
  %v3675 = vpack.c.b16 %v3633, %v3630
  %v3676 = vpack.c.b16 %v3634, %v3631
  %v3677 = vpack.c.b16 %v3638, %v3635
  %v3678 = vpack.c.b16 %v3639, %v3636
  %v3679 = vpack.c.b16 %v3640, %v3637
  %v3680 = vpack.c.b16 %v3644, %v3641
  %v3681 = vpack.c.b16 %v3645, %v3642
  %v3682 = vpack.c.b16 %v3646, %v3643
  %v3683 = vpack.c.b16 %v3650, %v3647
  %v3684 = vpack.c.b16 %v3651, %v3648
  %v3685 = vpack.c.b16 %v3652, %v3649
  %v3686 = vpack.c.b16 %v3656, %v3653
  %v3687 = vpack.c.b16 %v3657, %v3654
  %v3688 = vpack.c.b16 %v3658, %v3655
  %v3689 = vpack.c.b16 %v3662, %v3659
  %v3690 = vpack.c.b16 %v3663, %v3660
  %v3691 = vpack.c.b16 %v3664, %v3661
  %v3692 = vpack.c.b16 %v3668, %v3665
  %v3693 = vpack.c.b16 %v3669, %v3666
  %v3694 = vpack.c.b16 %v3670, %v3667
  %3719 = vmatpush.bf16.msra.mxu0 %v3692
  %3720 = vmatpush.bf16.msra.mxu0 %v3689
  %3721 = vmatpush.bf16.msra.mxu0 %v3686
  %3722 = vmatpush.bf16.msra.mxu0 %v3683
  %3723 = vmatpush.bf16.msra.mxu0 %v3680
  %3724 = vmatpush.bf16.msra.mxu0 %v3677
  %3725 = vmatpush.bf16.msra.mxu0 %v3674
  %3726 = vmatpush.bf16.msra.mxu0 %v3671
  %3727 = vmatmul.bf16.gmra.mxu0 %v3559
  %v3728 = vpop.f32.mrf.mxu0
  %v3729 = vadd.f32 %v3489, %v3728
  %v3730 = vpop.f32.mrf.mxu0
  %v3731 = vadd.f32 %v3489, %v3730
  %3732 = vmatmul.bf16.gmra.mxu0 %v3560
  %v3733 = vpop.f32.mrf.mxu0
  %v3734 = vadd.f32 %v3489, %v3733
  %v3735 = vpop.f32.mrf.mxu0
  %v3736 = vadd.f32 %v3489, %v3735
  %3737 = vmatmul.bf16.gmra.mxu0 %v3561
  %v3738 = vpop.f32.mrf.mxu0
  %v3739 = vadd.f32 %v3489, %v3738
  %v3740 = vpop.f32.mrf.mxu0
  %v3741 = vadd.f32 %v3489, %v3740
  %3742 = vmatmul.bf16.gmra.mxu0 %v3562
  %v3743 = vpop.f32.mrf.mxu0
  %v3744 = vadd.f32 %v3489, %v3743
  %v3745 = vpop.f32.mrf.mxu0
  %v3746 = vadd.f32 %v3489, %v3745
  %3747 = vmatmul.bf16.gmra.mxu0 %v3563
  %v3748 = vpop.f32.mrf.mxu0
  %v3749 = vadd.f32 %v3489, %v3748
  %v3750 = vpop.f32.mrf.mxu0
  %v3751 = vadd.f32 %v3489, %v3750
  %3752 = vmatmul.bf16.gmra.mxu0 %v3564
  %v3753 = vpop.f32.mrf.mxu0
  %v3754 = vadd.f32 %v3489, %v3753
  %v3755 = vpop.f32.mrf.mxu0
  %v3756 = vadd.f32 %v3489, %v3755
  %3757 = vmatmul.bf16.gmra.mxu0 %v3565
  %v3758 = vpop.f32.mrf.mxu0
  %v3759 = vadd.f32 %v3489, %v3758
  %v3760 = vpop.f32.mrf.mxu0
  %v3761 = vadd.f32 %v3489, %v3760
  %3762 = vmatmul.bf16.gmra.mxu0 %v3566
  %v3763 = vpop.f32.mrf.mxu0
  %v3764 = vadd.f32 %v3489, %v3763
  %v3765 = vpop.f32.mrf.mxu0
  %v3766 = vadd.f32 %v3489, %v3765
  %3767 = vmatmul.bf16.gmra.mxu0 %v3567
  %v3768 = vpop.f32.mrf.mxu0
  %v3769 = vadd.f32 %v3489, %v3768
  %v3770 = vpop.f32.mrf.mxu0
  %v3771 = vadd.f32 %v3489, %v3770
  %3772 = vmatmul.bf16.gmra.mxu0 %v3568
  %v3773 = vpop.f32.mrf.mxu0
  %v3774 = vadd.f32 %v3489, %v3773
  %v3775 = vpop.f32.mrf.mxu0
  %v3776 = vadd.f32 %v3489, %v3775
  %3777 = vmatmul.bf16.gmra.mxu0 %v3569
  %v3778 = vpop.f32.mrf.mxu0
  %v3779 = vadd.f32 %v3489, %v3778
  %v3780 = vpop.f32.mrf.mxu0
  %v3781 = vadd.f32 %v3489, %v3780
  %3782 = vmatmul.bf16.gmra.mxu0 %v3570
  %v3783 = vpop.f32.mrf.mxu0
  %v3784 = vadd.f32 %v3489, %v3783
  %v3785 = vpop.f32.mrf.mxu0
  %v3786 = vadd.f32 %v3489, %v3785
  %3787 = vmatmul.bf16.gmra.mxu0 %v3571
  %v3788 = vpop.f32.mrf.mxu0
  %v3789 = vadd.f32 %v3489, %v3788
  %v3790 = vpop.f32.mrf.mxu0
  %v3791 = vadd.f32 %v3489, %v3790
  %3792 = vmatmul.bf16.gmra.mxu0 %v3572
  %v3793 = vpop.f32.mrf.mxu0
  %v3794 = vadd.f32 %v3489, %v3793
  %v3795 = vpop.f32.mrf.mxu0
  %v3796 = vadd.f32 %v3489, %v3795
  %3797 = vmatmul.bf16.gmra.mxu0 %v3573
  %v3798 = vpop.f32.mrf.mxu0
  %v3799 = vadd.f32 %v3489, %v3798
  %v3800 = vpop.f32.mrf.mxu0
  %v3801 = vadd.f32 %v3489, %v3800
  %3802 = vmatmul.bf16.gmra.mxu0 %v3574
  %v3803 = vpop.f32.mrf.mxu0
  %v3804 = vadd.f32 %v3489, %v3803
  %v3805 = vpop.f32.mrf.mxu0
  %v3806 = vadd.f32 %v3489, %v3805
  %3807 = vdwg.mxu0
  %3808 = vmatpush.bf16.msra.mxu0 %v3693
  %3809 = vmatpush.bf16.msra.mxu0 %v3690
  %3810 = vmatpush.bf16.msra.mxu0 %v3687
  %3811 = vmatpush.bf16.msra.mxu0 %v3684
  %3812 = vmatpush.bf16.msra.mxu0 %v3681
  %3813 = vmatpush.bf16.msra.mxu0 %v3678
  %3814 = vmatpush.bf16.msra.mxu0 %v3675
  %3815 = vmatpush.bf16.msra.mxu0 %v3672
  %3816 = vmatmul.bf16.gmra.mxu0 %v3559
  %v3817 = vpop.f32.mrf.mxu0
  %v3818 = vadd.f32 %v3490, %v3817
  %v3819 = vpop.f32.mrf.mxu0
  %v3820 = vadd.f32 %v3490, %v3819
  %3821 = vmatmul.bf16.gmra.mxu0 %v3560
  %v3822 = vpop.f32.mrf.mxu0
  %v3823 = vadd.f32 %v3490, %v3822
  %v3824 = vpop.f32.mrf.mxu0
  %v3825 = vadd.f32 %v3490, %v3824
  %3826 = vmatmul.bf16.gmra.mxu0 %v3561
  %v3827 = vpop.f32.mrf.mxu0
  %v3828 = vadd.f32 %v3490, %v3827
  %v3829 = vpop.f32.mrf.mxu0
  %v3830 = vadd.f32 %v3490, %v3829
  %3831 = vmatmul.bf16.gmra.mxu0 %v3562
  %v3832 = vpop.f32.mrf.mxu0
  %v3833 = vadd.f32 %v3490, %v3832
  %v3834 = vpop.f32.mrf.mxu0
  %v3835 = vadd.f32 %v3490, %v3834
  %3836 = vmatmul.bf16.gmra.mxu0 %v3563
  %v3837 = vpop.f32.mrf.mxu0
  %v3838 = vadd.f32 %v3490, %v3837
  %v3839 = vpop.f32.mrf.mxu0
  %v3840 = vadd.f32 %v3490, %v3839
  %3841 = vmatmul.bf16.gmra.mxu0 %v3564
  %v3842 = vpop.f32.mrf.mxu0
  %v3843 = vadd.f32 %v3490, %v3842
  %v3844 = vpop.f32.mrf.mxu0
  %v3845 = vadd.f32 %v3490, %v3844
  %3846 = vmatmul.bf16.gmra.mxu0 %v3565
  %v3847 = vpop.f32.mrf.mxu0
  %v3848 = vadd.f32 %v3490, %v3847
  %v3849 = vpop.f32.mrf.mxu0
  %v3850 = vadd.f32 %v3490, %v3849
  %3851 = vmatmul.bf16.gmra.mxu0 %v3566
  %v3852 = vpop.f32.mrf.mxu0
  %v3853 = vadd.f32 %v3490, %v3852
  %v3854 = vpop.f32.mrf.mxu0
  %v3855 = vadd.f32 %v3490, %v3854
  %3856 = vmatmul.bf16.gmra.mxu0 %v3567
  %v3857 = vpop.f32.mrf.mxu0
  %v3858 = vadd.f32 %v3490, %v3857
  %v3859 = vpop.f32.mrf.mxu0
  %v3860 = vadd.f32 %v3490, %v3859
  %3861 = vmatmul.bf16.gmra.mxu0 %v3568
  %v3862 = vpop.f32.mrf.mxu0
  %v3863 = vadd.f32 %v3490, %v3862
  %v3864 = vpop.f32.mrf.mxu0
  %v3865 = vadd.f32 %v3490, %v3864
  %3866 = vmatmul.bf16.gmra.mxu0 %v3569
  %v3867 = vpop.f32.mrf.mxu0
  %v3868 = vadd.f32 %v3490, %v3867
  %v3869 = vpop.f32.mrf.mxu0
  %v3870 = vadd.f32 %v3490, %v3869
  %3871 = vmatmul.bf16.gmra.mxu0 %v3570
  %v3872 = vpop.f32.mrf.mxu0
  %v3873 = vadd.f32 %v3490, %v3872
  %v3874 = vpop.f32.mrf.mxu0
  %v3875 = vadd.f32 %v3490, %v3874
  %3876 = vmatmul.bf16.gmra.mxu0 %v3571
  %v3877 = vpop.f32.mrf.mxu0
  %v3878 = vadd.f32 %v3490, %v3877
  %v3879 = vpop.f32.mrf.mxu0
  %v3880 = vadd.f32 %v3490, %v3879
  %3881 = vmatmul.bf16.gmra.mxu0 %v3572
  %v3882 = vpop.f32.mrf.mxu0
  %v3883 = vadd.f32 %v3490, %v3882
  %v3884 = vpop.f32.mrf.mxu0
  %v3885 = vadd.f32 %v3490, %v3884
  %3886 = vmatmul.bf16.gmra.mxu0 %v3573
  %v3887 = vpop.f32.mrf.mxu0
  %v3888 = vadd.f32 %v3490, %v3887
  %v3889 = vpop.f32.mrf.mxu0
  %v3890 = vadd.f32 %v3490, %v3889
  %3891 = vmatmul.bf16.gmra.mxu0 %v3574
  %v3892 = vpop.f32.mrf.mxu0
  %v3893 = vadd.f32 %v3490, %v3892
  %v3894 = vpop.f32.mrf.mxu0
  %v3895 = vadd.f32 %v3490, %v3894
  %3896 = vdwg.mxu0
  %3897 = vmatpush.bf16.msra.mxu0 %v3694
  %3898 = vmatpush.bf16.msra.mxu0 %v3691
  %3899 = vmatpush.bf16.msra.mxu0 %v3688
  %3900 = vmatpush.bf16.msra.mxu0 %v3685
  %3901 = vmatpush.bf16.msra.mxu0 %v3682
  %3902 = vmatpush.bf16.msra.mxu0 %v3679
  %3903 = vmatpush.bf16.msra.mxu0 %v3676
  %3904 = vmatpush.bf16.msra.mxu0 %v3673
  %3905 = vmatmul.bf16.gmra.mxu0 %v3559
  %v3906 = vpop.f32.mrf.mxu0
  %v3907 = vadd.f32 %v3491, %v3906
  %v3908 = vpop.f32.mrf.mxu0
  %v3909 = vadd.f32 %v3491, %v3908
  %3910 = vmatmul.bf16.gmra.mxu0 %v3560
  %v3911 = vpop.f32.mrf.mxu0
  %v3912 = vadd.f32 %v3491, %v3911
  %v3913 = vpop.f32.mrf.mxu0
  %v3914 = vadd.f32 %v3491, %v3913
  %3915 = vmatmul.bf16.gmra.mxu0 %v3561
  %v3916 = vpop.f32.mrf.mxu0
  %v3917 = vadd.f32 %v3491, %v3916
  %v3918 = vpop.f32.mrf.mxu0
  %v3919 = vadd.f32 %v3491, %v3918
  %3920 = vmatmul.bf16.gmra.mxu0 %v3562
  %v3921 = vpop.f32.mrf.mxu0
  %v3922 = vadd.f32 %v3491, %v3921
  %v3923 = vpop.f32.mrf.mxu0
  %v3924 = vadd.f32 %v3491, %v3923
  %3925 = vmatmul.bf16.gmra.mxu0 %v3563
  %v3926 = vpop.f32.mrf.mxu0
  %v3927 = vadd.f32 %v3491, %v3926
  %v3928 = vpop.f32.mrf.mxu0
  %v3929 = vadd.f32 %v3491, %v3928
  %3930 = vmatmul.bf16.gmra.mxu0 %v3564
  %v3931 = vpop.f32.mrf.mxu0
  %v3932 = vadd.f32 %v3491, %v3931
  %v3933 = vpop.f32.mrf.mxu0
  %v3934 = vadd.f32 %v3491, %v3933
  %3935 = vmatmul.bf16.gmra.mxu0 %v3565
  %v3936 = vpop.f32.mrf.mxu0
  %v3937 = vadd.f32 %v3491, %v3936
  %v3938 = vpop.f32.mrf.mxu0
  %v3939 = vadd.f32 %v3491, %v3938
  %3940 = vmatmul.bf16.gmra.mxu0 %v3566
  %v3941 = vpop.f32.mrf.mxu0
  %v3942 = vadd.f32 %v3491, %v3941
  %v3943 = vpop.f32.mrf.mxu0
  %v3944 = vadd.f32 %v3491, %v3943
  %3945 = vmatmul.bf16.gmra.mxu0 %v3567
  %v3946 = vpop.f32.mrf.mxu0
  %v3947 = vadd.f32 %v3491, %v3946
  %v3948 = vpop.f32.mrf.mxu0
  %v3949 = vadd.f32 %v3491, %v3948
  %3950 = vmatmul.bf16.gmra.mxu0 %v3568
  %v3951 = vpop.f32.mrf.mxu0
  %v3952 = vadd.f32 %v3491, %v3951
  %v3953 = vpop.f32.mrf.mxu0
  %v3954 = vadd.f32 %v3491, %v3953
  %3955 = vmatmul.bf16.gmra.mxu0 %v3569
  %v3956 = vpop.f32.mrf.mxu0
  %v3957 = vadd.f32 %v3491, %v3956
  %v3958 = vpop.f32.mrf.mxu0
  %v3959 = vadd.f32 %v3491, %v3958
  %3960 = vmatmul.bf16.gmra.mxu0 %v3570
  %v3961 = vpop.f32.mrf.mxu0
  %v3962 = vadd.f32 %v3491, %v3961
  %v3963 = vpop.f32.mrf.mxu0
  %v3964 = vadd.f32 %v3491, %v3963
  %3965 = vmatmul.bf16.gmra.mxu0 %v3571
  %v3966 = vpop.f32.mrf.mxu0
  %v3967 = vadd.f32 %v3491, %v3966
  %v3968 = vpop.f32.mrf.mxu0
  %v3969 = vadd.f32 %v3491, %v3968
  %3970 = vmatmul.bf16.gmra.mxu0 %v3572
  %v3971 = vpop.f32.mrf.mxu0
  %v3972 = vadd.f32 %v3491, %v3971
  %v3973 = vpop.f32.mrf.mxu0
  %v3974 = vadd.f32 %v3491, %v3973
  %3975 = vmatmul.bf16.gmra.mxu0 %v3573
  %v3976 = vpop.f32.mrf.mxu0
  %v3977 = vadd.f32 %v3491, %v3976
  %v3978 = vpop.f32.mrf.mxu0
  %v3979 = vadd.f32 %v3491, %v3978
  %3980 = vmatmul.bf16.gmra.mxu0 %v3574
  %v3981 = vpop.f32.mrf.mxu0
  %v3982 = vadd.f32 %v3491, %v3981
  %v3983 = vpop.f32.mrf.mxu0
  %v3984 = vadd.f32 %v3491, %v3983
  %3985 = vdwg.mxu0
  %3986 = vst [vmem:[#allocation3] sm:$0xff] %v3729
  %3987 = vst [vmem:[#allocation3 + $0x8] sm:$0xff] %v3818
  %3988 = vst [vmem:[#allocation3 + $0x10] sm:$0xff] %v3907
  %3989 = vst [vmem:[#allocation3 + $0x18] sm:$0xff] %v3731
  %3990 = vst [vmem:[#allocation3 + $0x20] sm:$0xff] %v3820
  %3991 = vst [vmem:[#allocation3 + $0x28] sm:$0xff] %v3909
  %3992 = vst [vmem:[#allocation3 + $0x30] sm:$0xff] %v3734
  %3993 = vst [vmem:[#allocation3 + $0x38] sm:$0xff] %v3823
  %3994 = vst [vmem:[#allocation3 + $0x40] sm:$0xff] %v3912
  %3995 = vst [vmem:[#allocation3 + $0x48] sm:$0xff] %v3736
  %3996 = vst [vmem:[#allocation3 + $0x50] sm:$0xff] %v3825
  %3997 = vst [vmem:[#allocation3 + $0x58] sm:$0xff] %v3914
  %3998 = vst [vmem:[#allocation3 + $0x60] sm:$0xff] %v3739
  %3999 = vst [vmem:[#allocation3 + $0x68] sm:$0xff] %v3828
  %4000 = vst [vmem:[#allocation3 + $0x70] sm:$0xff] %v3917
  %4001 = vst [vmem:[#allocation3 + $0x78] sm:$0xff] %v3741
  %4002 = vst [vmem:[#allocation3 + $0x80] sm:$0xff] %v3830
  %4003 = vst [vmem:[#allocation3 + $0x88] sm:$0xff] %v3919
  %4004 = vst [vmem:[#allocation3 + $0x90] sm:$0xff] %v3744
  %4005 = vst [vmem:[#allocation3 + $0x98] sm:$0xff] %v3833
  %4006 = vst [vmem:[#allocation3 + $0xa0] sm:$0xff] %v3922
  %4007 = vst [vmem:[#allocation3 + $0xa8] sm:$0xff] %v3746
  %4008 = vst [vmem:[#allocation3 + $0xb0] sm:$0xff] %v3835
  %4009 = vst [vmem:[#allocation3 + $0xb8] sm:$0xff] %v3924
  %4010 = vst [vmem:[#allocation3 + $0xc0] sm:$0xff] %v3749
  %4011 = vst [vmem:[#allocation3 + $0xc8] sm:$0xff] %v3838
  %4012 = vst [vmem:[#allocation3 + $0xd0] sm:$0xff] %v3927
  %4013 = vst [vmem:[#allocation3 + $0xd8] sm:$0xff] %v3751
  %4014 = vst [vmem:[#allocation3 + $0xe0] sm:$0xff] %v3840
  %4015 = vst [vmem:[#allocation3 + $0xe8] sm:$0xff] %v3929
  %4016 = vst [vmem:[#allocation3 + $0xf0] sm:$0xff] %v3754
  %4017 = vst [vmem:[#allocation3 + $0xf8] sm:$0xff] %v3843
  %4018 = vst [vmem:[#allocation3 + $0x100] sm:$0xff] %v3932
  %4019 = vst [vmem:[#allocation3 + $0x108] sm:$0xff] %v3756
  %4020 = vst [vmem:[#allocation3 + $0x110] sm:$0xff] %v3845
  %4021 = vst [vmem:[#allocation3 + $0x118] sm:$0xff] %v3934
  %4022 = vst [vmem:[#allocation3 + $0x120] sm:$0xff] %v3759
  %4023 = vst [vmem:[#allocation3 + $0x128] sm:$0xff] %v3848
  %4024 = vst [vmem:[#allocation3 + $0x130] sm:$0xff] %v3937
  %4025 = vst [vmem:[#allocation3 + $0x138] sm:$0xff] %v3761
  %4026 = vst [vmem:[#allocation3 + $0x140] sm:$0xff] %v3850
  %4027 = vst [vmem:[#allocation3 + $0x148] sm:$0xff] %v3939
  %4028 = vst [vmem:[#allocation3 + $0x150] sm:$0xff] %v3764
  %4029 = vst [vmem:[#allocation3 + $0x158] sm:$0xff] %v3853
  %4030 = vst [vmem:[#allocation3 + $0x160] sm:$0xff] %v3942
  %4031 = vst [vmem:[#allocation3 + $0x168] sm:$0xff] %v3766
  %4032 = vst [vmem:[#allocation3 + $0x170] sm:$0xff] %v3855
  %4033 = vst [vmem:[#allocation3 + $0x178] sm:$0xff] %v3944
  %4034 = vst [vmem:[#allocation3 + $0x180] sm:$0xff] %v3769
  %4035 = vst [vmem:[#allocation3 + $0x188] sm:$0xff] %v3858
  %4036 = vst [vmem:[#allocation3 + $0x190] sm:$0xff] %v3947
  %4037 = vst [vmem:[#allocation3 + $0x198] sm:$0xff] %v3771
  %4038 = vst [vmem:[#allocation3 + $0x1a0] sm:$0xff] %v3860
  %4039 = vst [vmem:[#allocation3 + $0x1a8] sm:$0xff] %v3949
  %4040 = vst [vmem:[#allocation3 + $0x1b0] sm:$0xff] %v3774
  %4041 = vst [vmem:[#allocation3 + $0x1b8] sm:$0xff] %v3863
  %4042 = vst [vmem:[#allocation3 + $0x1c0] sm:$0xff] %v3952
  %4043 = vst [vmem:[#allocation3 + $0x1c8] sm:$0xff] %v3776
  %4044 = vst [vmem:[#allocation3 + $0x1d0] sm:$0xff] %v3865
  %4045 = vst [vmem:[#allocation3 + $0x1d8] sm:$0xff] %v3954
  %4046 = vst [vmem:[#allocation3 + $0x1e0] sm:$0xff] %v3779
  %4047 = vst [vmem:[#allocation3 + $0x1e8] sm:$0xff] %v3868
  %4048 = vst [vmem:[#allocation3 + $0x1f0] sm:$0xff] %v3957
  %4049 = vst [vmem:[#allocation3 + $0x1f8] sm:$0xff] %v3781
  %4050 = vst [vmem:[#allocation3 + $0x200] sm:$0xff] %v3870
  %4051 = vst [vmem:[#allocation3 + $0x208] sm:$0xff] %v3959
  %4052 = vst [vmem:[#allocation3 + $0x210] sm:$0xff] %v3784
  %4053 = vst [vmem:[#allocation3 + $0x218] sm:$0xff] %v3873
  %4054 = vst [vmem:[#allocation3 + $0x220] sm:$0xff] %v3962
  %4055 = vst [vmem:[#allocation3 + $0x228] sm:$0xff] %v3786
  %4056 = vst [vmem:[#allocation3 + $0x230] sm:$0xff] %v3875
  %4057 = vst [vmem:[#allocation3 + $0x238] sm:$0xff] %v3964
  %4058 = vst [vmem:[#allocation3 + $0x240] sm:$0xff] %v3789
  %4059 = vst [vmem:[#allocation3 + $0x248] sm:$0xff] %v3878
  %4060 = vst [vmem:[#allocation3 + $0x250] sm:$0xff] %v3967
  %4061 = vst [vmem:[#allocation3 + $0x258] sm:$0xff] %v3791
  %4062 = vst [vmem:[#allocation3 + $0x260] sm:$0xff] %v3880
  %4063 = vst [vmem:[#allocation3 + $0x268] sm:$0xff] %v3969
  %4064 = vst [vmem:[#allocation3 + $0x270] sm:$0xff] %v3794
  %4065 = vst [vmem:[#allocation3 + $0x278] sm:$0xff] %v3883
  %4066 = vst [vmem:[#allocation3 + $0x280] sm:$0xff] %v3972
  %4067 = vst [vmem:[#allocation3 + $0x288] sm:$0xff] %v3796
  %4068 = vst [vmem:[#allocation3 + $0x290] sm:$0xff] %v3885
  %4069 = vst [vmem:[#allocation3 + $0x298] sm:$0xff] %v3974
  %4070 = vst [vmem:[#allocation3 + $0x2a0] sm:$0xff] %v3799
  %4071 = vst [vmem:[#allocation3 + $0x2a8] sm:$0xff] %v3888
  %4072 = vst [vmem:[#allocation3 + $0x2b0] sm:$0xff] %v3977
  %4073 = vst [vmem:[#allocation3 + $0x2b8] sm:$0xff] %v3801
  %4074 = vst [vmem:[#allocation3 + $0x2c0] sm:$0xff] %v3890
  %4075 = vst [vmem:[#allocation3 + $0x2c8] sm:$0xff] %v3979
  %4076 = vst [vmem:[#allocation3 + $0x2d0] sm:$0xff] %v3804
  %4077 = vst [vmem:[#allocation3 + $0x2d8] sm:$0xff] %v3893
  %4078 = vst [vmem:[#allocation3 + $0x2e0] sm:$0xff] %v3982
  %4079 = vst [vmem:[#allocation3 + $0x2e8] sm:$0xff] %v3806
  %4080 = vst [vmem:[#allocation3 + $0x2f0] sm:$0xff] %v3895
  %4081 = vst [vmem:[#allocation3 + $0x2f8] sm:$0xff] %v3984
  %s4082 = scalar_lea.vmem %s3, 192
  %v4083 = vld [vmem:[%s4082] sm:$0xff]
  %v4084 = vld [vmem:[%s4082 + $0x8] sm:$0xf]
  %v4085 = vld [vmem:[%s4082 + $0xc] sm:$0xff]
  %v4086 = vld [vmem:[%s4082 + $0x14] sm:$0xf]
  %v4087 = vld [vmem:[%s4082 + $0x18] sm:$0xff]
  %v4088 = vld [vmem:[%s4082 + $0x20] sm:$0xf]
  %v4089 = vld [vmem:[%s4082 + $0x24] sm:$0xff]
  %v4090 = vld [vmem:[%s4082 + $0x2c] sm:$0xf]
  %v4091 = vld [vmem:[%s4082 + $0x30] sm:$0xff]
  %v4092 = vld [vmem:[%s4082 + $0x38] sm:$0xf]
  %v4093 = vld [vmem:[%s4082 + $0x3c] sm:$0xff]
  %v4094 = vld [vmem:[%s4082 + $0x44] sm:$0xf]
  %v4095 = vld [vmem:[%s4082 + $0x48] sm:$0xff]
  %v4096 = vld [vmem:[%s4082 + $0x50] sm:$0xf]
  %v4097 = vld [vmem:[%s4082 + $0x54] sm:$0xff]
  %v4098 = vld [vmem:[%s4082 + $0x5c] sm:$0xf]
  %v4099 = vld [vmem:[%s4082 + $0x60] sm:$0xff]
  %v4100 = vld [vmem:[%s4082 + $0x68] sm:$0xf]
  %v4101 = vld [vmem:[%s4082 + $0x6c] sm:$0xff]
  %v4102 = vld [vmem:[%s4082 + $0x74] sm:$0xf]
  %v4103 = vld [vmem:[%s4082 + $0x78] sm:$0xff]
  %v4104 = vld [vmem:[%s4082 + $0x80] sm:$0xf]
  %v4105 = vld [vmem:[%s4082 + $0x84] sm:$0xff]
  %v4106 = vld [vmem:[%s4082 + $0x8c] sm:$0xf]
  %v4107 = vld [vmem:[%s4082 + $0x90] sm:$0xff]
  %v4108 = vld [vmem:[%s4082 + $0x98] sm:$0xf]
  %v4109 = vld [vmem:[%s4082 + $0x9c] sm:$0xff]
  %v4110 = vld [vmem:[%s4082 + $0xa4] sm:$0xf]
  %v4111 = vld [vmem:[%s4082 + $0xa8] sm:$0xff]
  %v4112 = vld [vmem:[%s4082 + $0xb0] sm:$0xf]
  %v4113 = vld [vmem:[%s4082 + $0xb4] sm:$0xff]
  %v4114 = vld [vmem:[%s4082 + $0xbc] sm:$0xf]
  %s4115 = scalar_lea.vmem %s5, 1
  %v4116 = vld [vmem:[%s4115] sm:$0x1]
  %s4117 = scalar_lea.vmem [#allocation2], 16
  %v4118 = vld [vmem:[%s4117] sm:$0xff]
  %v4119 = vld [vmem:[%s4117 + $0x8] sm:$0xff]
  %v4120 = vld [vmem:[#allocation3] sm:$0xff]
  %v4121 = vld [vmem:[#allocation3 + $0x8] sm:$0xff]
  %v4122 = vld [vmem:[#allocation3 + $0x10] sm:$0xff]
  %v4123 = vld [vmem:[#allocation3 + $0x18] sm:$0xff]
  %v4124 = vld [vmem:[#allocation3 + $0x20] sm:$0xff]
  %v4125 = vld [vmem:[#allocation3 + $0x28] sm:$0xff]
  %v4126 = vpack.c.bf16 %v4119, %v4118
  %v4159 = vunpack.c.l.b16 %v4083
  %v4160 = vunpack.c.h.b16 %v4083
  %v4161 = vunpack.c.l.b16 %v4084
  %v4162 = vunpack.c.l.b16 %v4085
  %v4163 = vunpack.c.h.b16 %v4085
  %v4164 = vunpack.c.l.b16 %v4086
  %v4165 = vunpack.c.l.b16 %v4087
  %v4166 = vunpack.c.h.b16 %v4087
  %v4167 = vunpack.c.l.b16 %v4088
  %v4168 = vunpack.c.l.b16 %v4089
  %v4169 = vunpack.c.h.b16 %v4089
  %v4170 = vunpack.c.l.b16 %v4090
  %v4171 = vunpack.c.l.b16 %v4091
  %v4172 = vunpack.c.h.b16 %v4091
  %v4173 = vunpack.c.l.b16 %v4092
  %v4174 = vunpack.c.l.b16 %v4093
  %v4175 = vunpack.c.h.b16 %v4093
  %v4176 = vunpack.c.l.b16 %v4094
  %v4177 = vunpack.c.l.b16 %v4095
  %v4178 = vunpack.c.h.b16 %v4095
  %v4179 = vunpack.c.l.b16 %v4096
  %v4180 = vunpack.c.l.b16 %v4097
  %v4181 = vunpack.c.h.b16 %v4097
  %v4182 = vunpack.c.l.b16 %v4098
  %v4183 = vunpack.c.l.b16 %v4099
  %v4184 = vunpack.c.h.b16 %v4099
  %v4185 = vunpack.c.l.b16 %v4100
  %v4186 = vunpack.c.l.b16 %v4101
  %v4187 = vunpack.c.h.b16 %v4101
  %v4188 = vunpack.c.l.b16 %v4102
  %v4189 = vunpack.c.l.b16 %v4103
  %v4190 = vunpack.c.h.b16 %v4103
  %v4191 = vunpack.c.l.b16 %v4104
  %v4192 = vunpack.c.l.b16 %v4105
  %v4193 = vunpack.c.h.b16 %v4105
  %v4194 = vunpack.c.l.b16 %v4106
  %v4195 = vunpack.c.l.b16 %v4107
  %v4196 = vunpack.c.h.b16 %v4107
  %v4197 = vunpack.c.l.b16 %v4108
  %v4198 = vunpack.c.l.b16 %v4109
  %v4199 = vunpack.c.h.b16 %v4109
  %v4200 = vunpack.c.l.b16 %v4110
  %v4201 = vunpack.c.l.b16 %v4111
  %v4202 = vunpack.c.h.b16 %v4111
  %v4203 = vunpack.c.l.b16 %v4112
  %v4204 = vunpack.c.l.b16 %v4113
  %v4205 = vunpack.c.h.b16 %v4113
  %v4206 = vunpack.c.l.b16 %v4114
  %v4207 = vpack.c.b16 %v4162, %v4159
  %v4208 = vpack.c.b16 %v4163, %v4160
  %v4209 = vpack.c.b16 %v4164, %v4161
  %v4210 = vpack.c.b16 %v4168, %v4165
  %v4211 = vpack.c.b16 %v4169, %v4166
  %v4212 = vpack.c.b16 %v4170, %v4167
  %v4213 = vpack.c.b16 %v4174, %v4171
  %v4214 = vpack.c.b16 %v4175, %v4172
  %v4215 = vpack.c.b16 %v4176, %v4173
  %v4216 = vpack.c.b16 %v4180, %v4177
  %v4217 = vpack.c.b16 %v4181, %v4178
  %v4218 = vpack.c.b16 %v4182, %v4179
  %v4219 = vpack.c.b16 %v4186, %v4183
  %v4220 = vpack.c.b16 %v4187, %v4184
  %v4221 = vpack.c.b16 %v4188, %v4185
  %v4222 = vpack.c.b16 %v4192, %v4189
  %v4223 = vpack.c.b16 %v4193, %v4190
  %v4224 = vpack.c.b16 %v4194, %v4191
  %v4225 = vpack.c.b16 %v4198, %v4195
  %v4226 = vpack.c.b16 %v4199, %v4196
  %v4227 = vpack.c.b16 %v4200, %v4197
  %v4228 = vpack.c.b16 %v4204, %v4201
  %v4229 = vpack.c.b16 %v4205, %v4202
  %v4230 = vpack.c.b16 %v4206, %v4203
  %4255 = vmatpush.bf16.msra.mxu0 %v4228
  %4256 = vmatpush.bf16.msra.mxu0 %v4225
  %4257 = vmatpush.bf16.msra.mxu0 %v4222
  %4258 = vmatpush.bf16.msra.mxu0 %v4219
  %4259 = vmatpush.bf16.msra.mxu0 %v4216
  %4260 = vmatpush.bf16.msra.mxu0 %v4213
  %4261 = vmatpush.bf16.msra.mxu0 %v4210
  %4262 = vmatpush.bf16.msra.mxu0 %v4207
  %4263 = vmatmul.bf16.gmra.mxu0 %v4126
  %v4264 = vpop.f32.mrf.mxu0
  %v4265 = vadd.f32 0.0, %v4264
  %v4266 = vpop.f32.mrf.mxu0
  %v4267 = vadd.f32 0.0, %v4266
  %4268 = vdwg.mxu0
  %4269 = vmatpush.bf16.msra.mxu0 %v4229
  %4270 = vmatpush.bf16.msra.mxu0 %v4226
  %4271 = vmatpush.bf16.msra.mxu0 %v4223
  %4272 = vmatpush.bf16.msra.mxu0 %v4220
  %4273 = vmatpush.bf16.msra.mxu0 %v4217
  %4274 = vmatpush.bf16.msra.mxu0 %v4214
  %4275 = vmatpush.bf16.msra.mxu0 %v4211
  %4276 = vmatpush.bf16.msra.mxu0 %v4208
  %4277 = vmatmul.bf16.gmra.mxu0 %v4126
  %v4278 = vpop.f32.mrf.mxu0
  %v4279 = vadd.f32 0.0, %v4278
  %v4280 = vpop.f32.mrf.mxu0
  %v4281 = vadd.f32 0.0, %v4280
  %4282 = vdwg.mxu0
  %4283 = vmatpush.bf16.msra.mxu0 %v4230
  %4284 = vmatpush.bf16.msra.mxu0 %v4227
  %4285 = vmatpush.bf16.msra.mxu0 %v4224
  %4286 = vmatpush.bf16.msra.mxu0 %v4221
  %4287 = vmatpush.bf16.msra.mxu0 %v4218
  %4288 = vmatpush.bf16.msra.mxu0 %v4215
  %4289 = vmatpush.bf16.msra.mxu0 %v4212
  %4290 = vmatpush.bf16.msra.mxu0 %v4209
  %4291 = vmatmul.bf16.gmra.mxu0 %v4126
  %v4292 = vpop.f32.mrf.mxu0
  %v4293 = vadd.f32 0.0, %v4292
  %v4294 = vpop.f32.mrf.mxu0
  %v4295 = vadd.f32 0.0, %v4294
  %4296 = vdwg.mxu0
  %v4297 = vadd.f32 %v4120, %v4265
  %v4298 = vadd.f32 %v4123, %v4267
  %v4299 = vxor.u32 %v4297, 2147483648
  %v4300 = vxor.u32 %v4298, 2147483648
  %v4301 = vmul.f32 %v4299, 1.442695
  %v4302 = vpow.pop %v4301
  %v4303 = vmul.f32 %v4300, 1.442695
  %v4304 = vpow.pop %v4303
  %v4305 = vadd.f32 %v4302, 1.0
  %v4306 = vadd.f32 %v4304, 1.0
  %v4307 = vrcp.pop %v4305
  %v4308 = vmul.f32 %v4305, %v4307
  %v4309 = vsub.f32 1.0, %v4308
  %v4310 = vmul.f32 %v4307, %v4309
  %v4311 = vadd.f32 %v4307, %v4310
  %vm4312 = vweird.f32 %v4305
  %vm4313 = vweird.f32 %v4307
  %vm4314 = vmor %vm4312, %vm4313
  %v4315 = vsel %vm4314, %v4307, %v4311
  %v4316 = vand.u32 2147483647, %v4305
  %vm4317 = vcmp.eq.f32.partialorder %v4316, 8.507059e+37
  %v4318 = vand.u32 %v4305, 2147483648
  %v4319 = vor.u32 1.1754944e-38, %v4318
  %v4320 = vsel %vm4317, %v4319, %v4315
  %v4321 = vmul.f32 1.0, %v4320
  %v4322 = vrcp.pop %v4306
  %v4323 = vmul.f32 %v4306, %v4322
  %v4324 = vsub.f32 1.0, %v4323
  %v4325 = vmul.f32 %v4322, %v4324
  %v4326 = vadd.f32 %v4322, %v4325
  %vm4327 = vweird.f32 %v4306
  %vm4328 = vweird.f32 %v4322
  %vm4329 = vmor %vm4327, %vm4328
  %v4330 = vsel %vm4329, %v4322, %v4326
  %v4331 = vand.u32 2147483647, %v4306
  %vm4332 = vcmp.eq.f32.partialorder %v4331, 8.507059e+37
  %v4333 = vand.u32 %v4306, 2147483648
  %v4334 = vor.u32 1.1754944e-38, %v4333
  %v4335 = vsel %vm4332, %v4334, %v4330
  %v4336 = vmul.f32 1.0, %v4335
  %v4337 = vadd.f32 %v4121, %v4279
  %v4338 = vadd.f32 %v4124, %v4281
  %v4339 = vxor.u32 %v4337, 2147483648
  %v4340 = vxor.u32 %v4338, 2147483648
  %v4341 = vmul.f32 %v4339, 1.442695
  %v4342 = vpow.pop %v4341
  %v4343 = vmul.f32 %v4340, 1.442695
  %v4344 = vpow.pop %v4343
  %v4345 = vadd.f32 %v4342, 1.0
  %v4346 = vadd.f32 %v4344, 1.0
  %v4347 = vrcp.pop %v4345
  %v4348 = vmul.f32 %v4345, %v4347
  %v4349 = vsub.f32 1.0, %v4348
  %v4350 = vmul.f32 %v4347, %v4349
  %v4351 = vadd.f32 %v4347, %v4350
  %vm4352 = vweird.f32 %v4345
  %vm4353 = vweird.f32 %v4347
  %vm4354 = vmor %vm4352, %vm4353
  %v4355 = vsel %vm4354, %v4347, %v4351
  %v4356 = vand.u32 2147483647, %v4345
  %vm4357 = vcmp.eq.f32.partialorder %v4356, 8.507059e+37
  %v4358 = vand.u32 %v4345, 2147483648
  %v4359 = vor.u32 1.1754944e-38, %v4358
  %v4360 = vsel %vm4357, %v4359, %v4355
  %v4361 = vmul.f32 1.0, %v4360
  %v4362 = vrcp.pop %v4346
  %v4363 = vmul.f32 %v4346, %v4362
  %v4364 = vsub.f32 1.0, %v4363
  %v4365 = vmul.f32 %v4362, %v4364
  %v4366 = vadd.f32 %v4362, %v4365
  %vm4367 = vweird.f32 %v4346
  %vm4368 = vweird.f32 %v4362
  %vm4369 = vmor %vm4367, %vm4368
  %v4370 = vsel %vm4369, %v4362, %v4366
  %v4371 = vand.u32 2147483647, %v4346
  %vm4372 = vcmp.eq.f32.partialorder %v4371, 8.507059e+37
  %v4373 = vand.u32 %v4346, 2147483648
  %v4374 = vor.u32 1.1754944e-38, %v4373
  %v4375 = vsel %vm4372, %v4374, %v4370
  %v4376 = vmul.f32 1.0, %v4375
  %v4378 = vperm.slane %v4116, 0
  %v4380 = vadd.f32 %v4293, %v4378
  %v4381 = vadd.f32 %v4295, %v4378
  %v4382 = vmul.f32 %v4321, %v4380
  %v4383 = vmul.f32 %v4336, %v4381
  %v4384 = vadd.f32 %v4122, %v4382
  %v4385 = vadd.f32 %v4125, %v4383
  %v4386 = vtanh.pop %v4384
  %v4387 = vtanh.pop %v4385
  %v4388 = vsub.f32 1.0, %v4361
  %v4389 = vsub.f32 1.0, %v4376
  %v4390 = vmul.f32 %v4388, %v4386
  %v4391 = vmul.f32 %v4389, %v4387
  %v4392 = vmul.f32 %v4361, %v4118
  %v4393 = vmul.f32 %v4376, %v4119
  %v4394 = vadd.f32 %v4390, %v4392
  %v4395 = vadd.f32 %v4391, %v4393
  %v4396 = vld [vmem:[%s1013] sm:$0xff]
  %v4397 = vld [vmem:[%s1013 + $0x8] sm:$0xff]
  %v4398 = vld [vmem:[%s1013 + $0x10] sm:$0xff]
  %v4399 = vld [vmem:[%s1013 + $0x18] sm:$0xff]
  %v4400 = vld [vmem:[%s1013 + $0x20] sm:$0xff]
  %v4401 = vld [vmem:[%s1013 + $0x28] sm:$0xff]
  %v4402 = vpack.c.bf16 %v4395, %v4394
  %4403 = vmatpush.bf16.msra.mxu0 %v4228
  %4404 = vmatpush.bf16.msra.mxu0 %v4225
  %4405 = vmatpush.bf16.msra.mxu0 %v4222
  %4406 = vmatpush.bf16.msra.mxu0 %v4219
  %4407 = vmatpush.bf16.msra.mxu0 %v4216
  %4408 = vmatpush.bf16.msra.mxu0 %v4213
  %4409 = vmatpush.bf16.msra.mxu0 %v4210
  %4410 = vmatpush.bf16.msra.mxu0 %v4207
  %4411 = vmatmul.bf16.gmra.mxu0 %v4402
  %v4412 = vpop.f32.mrf.mxu0
  %v4413 = vadd.f32 0.0, %v4412
  %v4414 = vpop.f32.mrf.mxu0
  %v4415 = vadd.f32 0.0, %v4414
  %4416 = vdwg.mxu0
  %4417 = vmatpush.bf16.msra.mxu0 %v4229
  %4418 = vmatpush.bf16.msra.mxu0 %v4226
  %4419 = vmatpush.bf16.msra.mxu0 %v4223
  %4420 = vmatpush.bf16.msra.mxu0 %v4220
  %4421 = vmatpush.bf16.msra.mxu0 %v4217
  %4422 = vmatpush.bf16.msra.mxu0 %v4214
  %4423 = vmatpush.bf16.msra.mxu0 %v4211
  %4424 = vmatpush.bf16.msra.mxu0 %v4208
  %4425 = vmatmul.bf16.gmra.mxu0 %v4402
  %v4426 = vpop.f32.mrf.mxu0
  %v4427 = vadd.f32 0.0, %v4426
  %v4428 = vpop.f32.mrf.mxu0
  %v4429 = vadd.f32 0.0, %v4428
  %4430 = vdwg.mxu0
  %4431 = vmatpush.bf16.msra.mxu0 %v4230
  %4432 = vmatpush.bf16.msra.mxu0 %v4227
  %4433 = vmatpush.bf16.msra.mxu0 %v4224
  %4434 = vmatpush.bf16.msra.mxu0 %v4221
  %4435 = vmatpush.bf16.msra.mxu0 %v4218
  %4436 = vmatpush.bf16.msra.mxu0 %v4215
  %4437 = vmatpush.bf16.msra.mxu0 %v4212
  %4438 = vmatpush.bf16.msra.mxu0 %v4209
  %4439 = vmatmul.bf16.gmra.mxu0 %v4402
  %v4440 = vpop.f32.mrf.mxu0
  %v4441 = vadd.f32 0.0, %v4440
  %v4442 = vpop.f32.mrf.mxu0
  %v4443 = vadd.f32 0.0, %v4442
  %4444 = vdwg.mxu0
  %v4445 = vadd.f32 %v4396, %v4413
  %v4446 = vadd.f32 %v4399, %v4415
  %v4447 = vxor.u32 %v4445, 2147483648
  %v4448 = vxor.u32 %v4446, 2147483648
  %v4449 = vmul.f32 %v4447, 1.442695
  %v4450 = vpow.pop %v4449
  %v4451 = vmul.f32 %v4448, 1.442695
  %v4452 = vpow.pop %v4451
  %v4453 = vadd.f32 %v4450, 1.0
  %v4454 = vadd.f32 %v4452, 1.0
  %v4455 = vrcp.pop %v4453
  %v4456 = vmul.f32 %v4453, %v4455
  %v4457 = vsub.f32 1.0, %v4456
  %v4458 = vmul.f32 %v4455, %v4457
  %v4459 = vadd.f32 %v4455, %v4458
  %vm4460 = vweird.f32 %v4453
  %vm4461 = vweird.f32 %v4455
  %vm4462 = vmor %vm4460, %vm4461
  %v4463 = vsel %vm4462, %v4455, %v4459
  %v4464 = vand.u32 2147483647, %v4453
  %vm4465 = vcmp.eq.f32.partialorder %v4464, 8.507059e+37
  %v4466 = vand.u32 %v4453, 2147483648
  %v4467 = vor.u32 1.1754944e-38, %v4466
  %v4468 = vsel %vm4465, %v4467, %v4463
  %v4469 = vmul.f32 1.0, %v4468
  %v4470 = vrcp.pop %v4454
  %v4471 = vmul.f32 %v4454, %v4470
  %v4472 = vsub.f32 1.0, %v4471
  %v4473 = vmul.f32 %v4470, %v4472
  %v4474 = vadd.f32 %v4470, %v4473
  %vm4475 = vweird.f32 %v4454
  %vm4476 = vweird.f32 %v4470
  %vm4477 = vmor %vm4475, %vm4476
  %v4478 = vsel %vm4477, %v4470, %v4474
  %v4479 = vand.u32 2147483647, %v4454
  %vm4480 = vcmp.eq.f32.partialorder %v4479, 8.507059e+37
  %v4481 = vand.u32 %v4454, 2147483648
  %v4482 = vor.u32 1.1754944e-38, %v4481
  %v4483 = vsel %vm4480, %v4482, %v4478
  %v4484 = vmul.f32 1.0, %v4483
  %v4485 = vadd.f32 %v4397, %v4427
  %v4486 = vadd.f32 %v4400, %v4429
  %v4487 = vxor.u32 %v4485, 2147483648
  %v4488 = vxor.u32 %v4486, 2147483648
  %v4489 = vmul.f32 %v4487, 1.442695
  %v4490 = vpow.pop %v4489
  %v4491 = vmul.f32 %v4488, 1.442695
  %v4492 = vpow.pop %v4491
  %v4493 = vadd.f32 %v4490, 1.0
  %v4494 = vadd.f32 %v4492, 1.0
  %v4495 = vrcp.pop %v4493
  %v4496 = vmul.f32 %v4493, %v4495
  %v4497 = vsub.f32 1.0, %v4496
  %v4498 = vmul.f32 %v4495, %v4497
  %v4499 = vadd.f32 %v4495, %v4498
  %vm4500 = vweird.f32 %v4493
  %vm4501 = vweird.f32 %v4495
  %vm4502 = vmor %vm4500, %vm4501
  %v4503 = vsel %vm4502, %v4495, %v4499
  %v4504 = vand.u32 2147483647, %v4493
  %vm4505 = vcmp.eq.f32.partialorder %v4504, 8.507059e+37
  %v4506 = vand.u32 %v4493, 2147483648
  %v4507 = vor.u32 1.1754944e-38, %v4506
  %v4508 = vsel %vm4505, %v4507, %v4503
  %v4509 = vmul.f32 1.0, %v4508
  %v4510 = vrcp.pop %v4494
  %v4511 = vmul.f32 %v4494, %v4510
  %v4512 = vsub.f32 1.0, %v4511
  %v4513 = vmul.f32 %v4510, %v4512
  %v4514 = vadd.f32 %v4510, %v4513
  %vm4515 = vweird.f32 %v4494
  %vm4516 = vweird.f32 %v4510
  %vm4517 = vmor %vm4515, %vm4516
  %v4518 = vsel %vm4517, %v4510, %v4514
  %v4519 = vand.u32 2147483647, %v4494
  %vm4520 = vcmp.eq.f32.partialorder %v4519, 8.507059e+37
  %v4521 = vand.u32 %v4494, 2147483648
  %v4522 = vor.u32 1.1754944e-38, %v4521
  %v4523 = vsel %vm4520, %v4522, %v4518
  %v4524 = vmul.f32 1.0, %v4523
  %v4525 = vadd.f32 %v4441, %v4378
  %v4526 = vadd.f32 %v4443, %v4378
  %v4527 = vmul.f32 %v4469, %v4525
  %v4528 = vmul.f32 %v4484, %v4526
  %v4529 = vadd.f32 %v4398, %v4527
  %v4530 = vadd.f32 %v4401, %v4528
  %v4531 = vtanh.pop %v4529
  %v4532 = vtanh.pop %v4530
  %v4533 = vsub.f32 1.0, %v4509
  %v4534 = vsub.f32 1.0, %v4524
  %v4535 = vmul.f32 %v4533, %v4531
  %v4536 = vmul.f32 %v4534, %v4532
  %v4537 = vmul.f32 %v4509, %v4394
  %v4538 = vmul.f32 %v4524, %v4395
  %v4539 = vadd.f32 %v4535, %v4537
  %v4540 = vadd.f32 %v4536, %v4538
  %v4541 = vld [vmem:[%s1169] sm:$0xff]
  %v4542 = vld [vmem:[%s1169 + $0x8] sm:$0xff]
  %v4543 = vld [vmem:[%s1169 + $0x10] sm:$0xff]
  %v4544 = vld [vmem:[%s1169 + $0x18] sm:$0xff]
  %v4545 = vld [vmem:[%s1169 + $0x20] sm:$0xff]
  %v4546 = vld [vmem:[%s1169 + $0x28] sm:$0xff]
  %v4547 = vpack.c.bf16 %v4540, %v4539
  %4548 = vmatpush.bf16.msra.mxu0 %v4228
  %4549 = vmatpush.bf16.msra.mxu0 %v4225
  %4550 = vmatpush.bf16.msra.mxu0 %v4222
  %4551 = vmatpush.bf16.msra.mxu0 %v4219
  %4552 = vmatpush.bf16.msra.mxu0 %v4216
  %4553 = vmatpush.bf16.msra.mxu0 %v4213
  %4554 = vmatpush.bf16.msra.mxu0 %v4210
  %4555 = vmatpush.bf16.msra.mxu0 %v4207
  %4556 = vmatmul.bf16.gmra.mxu0 %v4547
  %v4557 = vpop.f32.mrf.mxu0
  %v4558 = vadd.f32 0.0, %v4557
  %v4559 = vpop.f32.mrf.mxu0
  %v4560 = vadd.f32 0.0, %v4559
  %4561 = vdwg.mxu0
  %4562 = vmatpush.bf16.msra.mxu0 %v4229
  %4563 = vmatpush.bf16.msra.mxu0 %v4226
  %4564 = vmatpush.bf16.msra.mxu0 %v4223
  %4565 = vmatpush.bf16.msra.mxu0 %v4220
  %4566 = vmatpush.bf16.msra.mxu0 %v4217
  %4567 = vmatpush.bf16.msra.mxu0 %v4214
  %4568 = vmatpush.bf16.msra.mxu0 %v4211
  %4569 = vmatpush.bf16.msra.mxu0 %v4208
  %4570 = vmatmul.bf16.gmra.mxu0 %v4547
  %v4571 = vpop.f32.mrf.mxu0
  %v4572 = vadd.f32 0.0, %v4571
  %v4573 = vpop.f32.mrf.mxu0
  %v4574 = vadd.f32 0.0, %v4573
  %4575 = vdwg.mxu0
  %4576 = vmatpush.bf16.msra.mxu0 %v4230
  %4577 = vmatpush.bf16.msra.mxu0 %v4227
  %4578 = vmatpush.bf16.msra.mxu0 %v4224
  %4579 = vmatpush.bf16.msra.mxu0 %v4221
  %4580 = vmatpush.bf16.msra.mxu0 %v4218
  %4581 = vmatpush.bf16.msra.mxu0 %v4215
  %4582 = vmatpush.bf16.msra.mxu0 %v4212
  %4583 = vmatpush.bf16.msra.mxu0 %v4209
  %4584 = vmatmul.bf16.gmra.mxu0 %v4547
  %v4585 = vpop.f32.mrf.mxu0
  %v4586 = vadd.f32 0.0, %v4585
  %v4587 = vpop.f32.mrf.mxu0
  %v4588 = vadd.f32 0.0, %v4587
  %4589 = vdwg.mxu0
  %v4590 = vadd.f32 %v4541, %v4558
  %v4591 = vadd.f32 %v4544, %v4560
  %v4592 = vxor.u32 %v4590, 2147483648
  %v4593 = vxor.u32 %v4591, 2147483648
  %v4594 = vmul.f32 %v4592, 1.442695
  %v4595 = vpow.pop %v4594
  %v4596 = vmul.f32 %v4593, 1.442695
  %v4597 = vpow.pop %v4596
  %v4598 = vadd.f32 %v4595, 1.0
  %v4599 = vadd.f32 %v4597, 1.0
  %v4600 = vrcp.pop %v4598
  %v4601 = vmul.f32 %v4598, %v4600
  %v4602 = vsub.f32 1.0, %v4601
  %v4603 = vmul.f32 %v4600, %v4602
  %v4604 = vadd.f32 %v4600, %v4603
  %vm4605 = vweird.f32 %v4598
  %vm4606 = vweird.f32 %v4600
  %vm4607 = vmor %vm4605, %vm4606
  %v4608 = vsel %vm4607, %v4600, %v4604
  %v4609 = vand.u32 2147483647, %v4598
  %vm4610 = vcmp.eq.f32.partialorder %v4609, 8.507059e+37
  %v4611 = vand.u32 %v4598, 2147483648
  %v4612 = vor.u32 1.1754944e-38, %v4611
  %v4613 = vsel %vm4610, %v4612, %v4608
  %v4614 = vmul.f32 1.0, %v4613
  %v4615 = vrcp.pop %v4599
  %v4616 = vmul.f32 %v4599, %v4615
  %v4617 = vsub.f32 1.0, %v4616
  %v4618 = vmul.f32 %v4615, %v4617
  %v4619 = vadd.f32 %v4615, %v4618
  %vm4620 = vweird.f32 %v4599
  %vm4621 = vweird.f32 %v4615
  %vm4622 = vmor %vm4620, %vm4621
  %v4623 = vsel %vm4622, %v4615, %v4619
  %v4624 = vand.u32 2147483647, %v4599
  %vm4625 = vcmp.eq.f32.partialorder %v4624, 8.507059e+37
  %v4626 = vand.u32 %v4599, 2147483648
  %v4627 = vor.u32 1.1754944e-38, %v4626
  %v4628 = vsel %vm4625, %v4627, %v4623
  %v4629 = vmul.f32 1.0, %v4628
  %v4630 = vadd.f32 %v4542, %v4572
  %v4631 = vadd.f32 %v4545, %v4574
  %v4632 = vxor.u32 %v4630, 2147483648
  %v4633 = vxor.u32 %v4631, 2147483648
  %v4634 = vmul.f32 %v4632, 1.442695
  %v4635 = vpow.pop %v4634
  %v4636 = vmul.f32 %v4633, 1.442695
  %v4637 = vpow.pop %v4636
  %v4638 = vadd.f32 %v4635, 1.0
  %v4639 = vadd.f32 %v4637, 1.0
  %v4640 = vrcp.pop %v4638
  %v4641 = vmul.f32 %v4638, %v4640
  %v4642 = vsub.f32 1.0, %v4641
  %v4643 = vmul.f32 %v4640, %v4642
  %v4644 = vadd.f32 %v4640, %v4643
  %vm4645 = vweird.f32 %v4638
  %vm4646 = vweird.f32 %v4640
  %vm4647 = vmor %vm4645, %vm4646
  %v4648 = vsel %vm4647, %v4640, %v4644
  %v4649 = vand.u32 2147483647, %v4638
  %vm4650 = vcmp.eq.f32.partialorder %v4649, 8.507059e+37
  %v4651 = vand.u32 %v4638, 2147483648
  %v4652 = vor.u32 1.1754944e-38, %v4651
  %v4653 = vsel %vm4650, %v4652, %v4648
  %v4654 = vmul.f32 1.0, %v4653
  %v4655 = vrcp.pop %v4639
  %v4656 = vmul.f32 %v4639, %v4655
  %v4657 = vsub.f32 1.0, %v4656
  %v4658 = vmul.f32 %v4655, %v4657
  %v4659 = vadd.f32 %v4655, %v4658
  %vm4660 = vweird.f32 %v4639
  %vm4661 = vweird.f32 %v4655
  %vm4662 = vmor %vm4660, %vm4661
  %v4663 = vsel %vm4662, %v4655, %v4659
  %v4664 = vand.u32 2147483647, %v4639
  %vm4665 = vcmp.eq.f32.partialorder %v4664, 8.507059e+37
  %v4666 = vand.u32 %v4639, 2147483648
  %v4667 = vor.u32 1.1754944e-38, %v4666
  %v4668 = vsel %vm4665, %v4667, %v4663
  %v4669 = vmul.f32 1.0, %v4668
  %v4670 = vadd.f32 %v4586, %v4378
  %v4671 = vadd.f32 %v4588, %v4378
  %v4672 = vmul.f32 %v4614, %v4670
  %v4673 = vmul.f32 %v4629, %v4671
  %v4674 = vadd.f32 %v4543, %v4672
  %v4675 = vadd.f32 %v4546, %v4673
  %v4676 = vtanh.pop %v4674
  %v4677 = vtanh.pop %v4675
  %v4678 = vsub.f32 1.0, %v4654
  %v4679 = vsub.f32 1.0, %v4669
  %v4680 = vmul.f32 %v4678, %v4676
  %v4681 = vmul.f32 %v4679, %v4677
  %v4682 = vmul.f32 %v4654, %v4539
  %v4683 = vmul.f32 %v4669, %v4540
  %v4684 = vadd.f32 %v4680, %v4682
  %v4685 = vadd.f32 %v4681, %v4683
  %v4686 = vld [vmem:[%s1325] sm:$0xff]
  %v4687 = vld [vmem:[%s1325 + $0x8] sm:$0xff]
  %v4688 = vld [vmem:[%s1325 + $0x10] sm:$0xff]
  %v4689 = vld [vmem:[%s1325 + $0x18] sm:$0xff]
  %v4690 = vld [vmem:[%s1325 + $0x20] sm:$0xff]
  %v4691 = vld [vmem:[%s1325 + $0x28] sm:$0xff]
  %v4692 = vpack.c.bf16 %v4685, %v4684
  %4693 = vmatpush.bf16.msra.mxu0 %v4228
  %4694 = vmatpush.bf16.msra.mxu0 %v4225
  %4695 = vmatpush.bf16.msra.mxu0 %v4222
  %4696 = vmatpush.bf16.msra.mxu0 %v4219
  %4697 = vmatpush.bf16.msra.mxu0 %v4216
  %4698 = vmatpush.bf16.msra.mxu0 %v4213
  %4699 = vmatpush.bf16.msra.mxu0 %v4210
  %4700 = vmatpush.bf16.msra.mxu0 %v4207
  %4701 = vmatmul.bf16.gmra.mxu0 %v4692
  %v4702 = vpop.f32.mrf.mxu0
  %v4703 = vadd.f32 0.0, %v4702
  %v4704 = vpop.f32.mrf.mxu0
  %v4705 = vadd.f32 0.0, %v4704
  %4706 = vdwg.mxu0
  %4707 = vmatpush.bf16.msra.mxu0 %v4229
  %4708 = vmatpush.bf16.msra.mxu0 %v4226
  %4709 = vmatpush.bf16.msra.mxu0 %v4223
  %4710 = vmatpush.bf16.msra.mxu0 %v4220
  %4711 = vmatpush.bf16.msra.mxu0 %v4217
  %4712 = vmatpush.bf16.msra.mxu0 %v4214
  %4713 = vmatpush.bf16.msra.mxu0 %v4211
  %4714 = vmatpush.bf16.msra.mxu0 %v4208
  %4715 = vmatmul.bf16.gmra.mxu0 %v4692
  %v4716 = vpop.f32.mrf.mxu0
  %v4717 = vadd.f32 0.0, %v4716
  %v4718 = vpop.f32.mrf.mxu0
  %v4719 = vadd.f32 0.0, %v4718
  %4720 = vdwg.mxu0
  %4721 = vmatpush.bf16.msra.mxu0 %v4230
  %4722 = vmatpush.bf16.msra.mxu0 %v4227
  %4723 = vmatpush.bf16.msra.mxu0 %v4224
  %4724 = vmatpush.bf16.msra.mxu0 %v4221
  %4725 = vmatpush.bf16.msra.mxu0 %v4218
  %4726 = vmatpush.bf16.msra.mxu0 %v4215
  %4727 = vmatpush.bf16.msra.mxu0 %v4212
  %4728 = vmatpush.bf16.msra.mxu0 %v4209
  %4729 = vmatmul.bf16.gmra.mxu0 %v4692
  %v4730 = vpop.f32.mrf.mxu0
  %v4731 = vadd.f32 0.0, %v4730
  %v4732 = vpop.f32.mrf.mxu0
  %v4733 = vadd.f32 0.0, %v4732
  %4734 = vdwg.mxu0
  %v4735 = vadd.f32 %v4686, %v4703
  %v4736 = vadd.f32 %v4689, %v4705
  %v4737 = vxor.u32 %v4735, 2147483648
  %v4738 = vxor.u32 %v4736, 2147483648
  %v4739 = vmul.f32 %v4737, 1.442695
  %v4740 = vpow.pop %v4739
  %v4741 = vmul.f32 %v4738, 1.442695
  %v4742 = vpow.pop %v4741
  %v4743 = vadd.f32 %v4740, 1.0
  %v4744 = vadd.f32 %v4742, 1.0
  %v4745 = vrcp.pop %v4743
  %v4746 = vmul.f32 %v4743, %v4745
  %v4747 = vsub.f32 1.0, %v4746
  %v4748 = vmul.f32 %v4745, %v4747
  %v4749 = vadd.f32 %v4745, %v4748
  %vm4750 = vweird.f32 %v4743
  %vm4751 = vweird.f32 %v4745
  %vm4752 = vmor %vm4750, %vm4751
  %v4753 = vsel %vm4752, %v4745, %v4749
  %v4754 = vand.u32 2147483647, %v4743
  %vm4755 = vcmp.eq.f32.partialorder %v4754, 8.507059e+37
  %v4756 = vand.u32 %v4743, 2147483648
  %v4757 = vor.u32 1.1754944e-38, %v4756
  %v4758 = vsel %vm4755, %v4757, %v4753
  %v4759 = vmul.f32 1.0, %v4758
  %v4760 = vrcp.pop %v4744
  %v4761 = vmul.f32 %v4744, %v4760
  %v4762 = vsub.f32 1.0, %v4761
  %v4763 = vmul.f32 %v4760, %v4762
  %v4764 = vadd.f32 %v4760, %v4763
  %vm4765 = vweird.f32 %v4744
  %vm4766 = vweird.f32 %v4760
  %vm4767 = vmor %vm4765, %vm4766
  %v4768 = vsel %vm4767, %v4760, %v4764
  %v4769 = vand.u32 2147483647, %v4744
  %vm4770 = vcmp.eq.f32.partialorder %v4769, 8.507059e+37
  %v4771 = vand.u32 %v4744, 2147483648
  %v4772 = vor.u32 1.1754944e-38, %v4771
  %v4773 = vsel %vm4770, %v4772, %v4768
  %v4774 = vmul.f32 1.0, %v4773
  %v4775 = vadd.f32 %v4687, %v4717
  %v4776 = vadd.f32 %v4690, %v4719
  %v4777 = vxor.u32 %v4775, 2147483648
  %v4778 = vxor.u32 %v4776, 2147483648
  %v4779 = vmul.f32 %v4777, 1.442695
  %v4780 = vpow.pop %v4779
  %v4781 = vmul.f32 %v4778, 1.442695
  %v4782 = vpow.pop %v4781
  %v4783 = vadd.f32 %v4780, 1.0
  %v4784 = vadd.f32 %v4782, 1.0
  %v4785 = vrcp.pop %v4783
  %v4786 = vmul.f32 %v4783, %v4785
  %v4787 = vsub.f32 1.0, %v4786
  %v4788 = vmul.f32 %v4785, %v4787
  %v4789 = vadd.f32 %v4785, %v4788
  %vm4790 = vweird.f32 %v4783
  %vm4791 = vweird.f32 %v4785
  %vm4792 = vmor %vm4790, %vm4791
  %v4793 = vsel %vm4792, %v4785, %v4789
  %v4794 = vand.u32 2147483647, %v4783
  %vm4795 = vcmp.eq.f32.partialorder %v4794, 8.507059e+37
  %v4796 = vand.u32 %v4783, 2147483648
  %v4797 = vor.u32 1.1754944e-38, %v4796
  %v4798 = vsel %vm4795, %v4797, %v4793
  %v4799 = vmul.f32 1.0, %v4798
  %v4800 = vrcp.pop %v4784
  %v4801 = vmul.f32 %v4784, %v4800
  %v4802 = vsub.f32 1.0, %v4801
  %v4803 = vmul.f32 %v4800, %v4802
  %v4804 = vadd.f32 %v4800, %v4803
  %vm4805 = vweird.f32 %v4784
  %vm4806 = vweird.f32 %v4800
  %vm4807 = vmor %vm4805, %vm4806
  %v4808 = vsel %vm4807, %v4800, %v4804
  %v4809 = vand.u32 2147483647, %v4784
  %vm4810 = vcmp.eq.f32.partialorder %v4809, 8.507059e+37
  %v4811 = vand.u32 %v4784, 2147483648
  %v4812 = vor.u32 1.1754944e-38, %v4811
  %v4813 = vsel %vm4810, %v4812, %v4808
  %v4814 = vmul.f32 1.0, %v4813
  %v4815 = vadd.f32 %v4731, %v4378
  %v4816 = vadd.f32 %v4733, %v4378
  %v4817 = vmul.f32 %v4759, %v4815
  %v4818 = vmul.f32 %v4774, %v4816
  %v4819 = vadd.f32 %v4688, %v4817
  %v4820 = vadd.f32 %v4691, %v4818
  %v4821 = vtanh.pop %v4819
  %v4822 = vtanh.pop %v4820
  %v4823 = vsub.f32 1.0, %v4799
  %v4824 = vsub.f32 1.0, %v4814
  %v4825 = vmul.f32 %v4823, %v4821
  %v4826 = vmul.f32 %v4824, %v4822
  %v4827 = vmul.f32 %v4799, %v4684
  %v4828 = vmul.f32 %v4814, %v4685
  %v4829 = vadd.f32 %v4825, %v4827
  %v4830 = vadd.f32 %v4826, %v4828
  %v4831 = vld [vmem:[%s1481] sm:$0xff]
  %v4832 = vld [vmem:[%s1481 + $0x8] sm:$0xff]
  %v4833 = vld [vmem:[%s1481 + $0x10] sm:$0xff]
  %v4834 = vld [vmem:[%s1481 + $0x18] sm:$0xff]
  %v4835 = vld [vmem:[%s1481 + $0x20] sm:$0xff]
  %v4836 = vld [vmem:[%s1481 + $0x28] sm:$0xff]
  %v4837 = vpack.c.bf16 %v4830, %v4829
  %4838 = vmatpush.bf16.msra.mxu0 %v4228
  %4839 = vmatpush.bf16.msra.mxu0 %v4225
  %4840 = vmatpush.bf16.msra.mxu0 %v4222
  %4841 = vmatpush.bf16.msra.mxu0 %v4219
  %4842 = vmatpush.bf16.msra.mxu0 %v4216
  %4843 = vmatpush.bf16.msra.mxu0 %v4213
  %4844 = vmatpush.bf16.msra.mxu0 %v4210
  %4845 = vmatpush.bf16.msra.mxu0 %v4207
  %4846 = vmatmul.bf16.gmra.mxu0 %v4837
  %v4847 = vpop.f32.mrf.mxu0
  %v4848 = vadd.f32 0.0, %v4847
  %v4849 = vpop.f32.mrf.mxu0
  %v4850 = vadd.f32 0.0, %v4849
  %4851 = vdwg.mxu0
  %4852 = vmatpush.bf16.msra.mxu0 %v4229
  %4853 = vmatpush.bf16.msra.mxu0 %v4226
  %4854 = vmatpush.bf16.msra.mxu0 %v4223
  %4855 = vmatpush.bf16.msra.mxu0 %v4220
  %4856 = vmatpush.bf16.msra.mxu0 %v4217
  %4857 = vmatpush.bf16.msra.mxu0 %v4214
  %4858 = vmatpush.bf16.msra.mxu0 %v4211
  %4859 = vmatpush.bf16.msra.mxu0 %v4208
  %4860 = vmatmul.bf16.gmra.mxu0 %v4837
  %v4861 = vpop.f32.mrf.mxu0
  %v4862 = vadd.f32 0.0, %v4861
  %v4863 = vpop.f32.mrf.mxu0
  %v4864 = vadd.f32 0.0, %v4863
  %4865 = vdwg.mxu0
  %4866 = vmatpush.bf16.msra.mxu0 %v4230
  %4867 = vmatpush.bf16.msra.mxu0 %v4227
  %4868 = vmatpush.bf16.msra.mxu0 %v4224
  %4869 = vmatpush.bf16.msra.mxu0 %v4221
  %4870 = vmatpush.bf16.msra.mxu0 %v4218
  %4871 = vmatpush.bf16.msra.mxu0 %v4215
  %4872 = vmatpush.bf16.msra.mxu0 %v4212
  %4873 = vmatpush.bf16.msra.mxu0 %v4209
  %4874 = vmatmul.bf16.gmra.mxu0 %v4837
  %v4875 = vpop.f32.mrf.mxu0
  %v4876 = vadd.f32 0.0, %v4875
  %v4877 = vpop.f32.mrf.mxu0
  %v4878 = vadd.f32 0.0, %v4877
  %4879 = vdwg.mxu0
  %v4880 = vadd.f32 %v4831, %v4848
  %v4881 = vadd.f32 %v4834, %v4850
  %v4882 = vxor.u32 %v4880, 2147483648
  %v4883 = vxor.u32 %v4881, 2147483648
  %v4884 = vmul.f32 %v4882, 1.442695
  %v4885 = vpow.pop %v4884
  %v4886 = vmul.f32 %v4883, 1.442695
  %v4887 = vpow.pop %v4886
  %v4888 = vadd.f32 %v4885, 1.0
  %v4889 = vadd.f32 %v4887, 1.0
  %v4890 = vrcp.pop %v4888
  %v4891 = vmul.f32 %v4888, %v4890
  %v4892 = vsub.f32 1.0, %v4891
  %v4893 = vmul.f32 %v4890, %v4892
  %v4894 = vadd.f32 %v4890, %v4893
  %vm4895 = vweird.f32 %v4888
  %vm4896 = vweird.f32 %v4890
  %vm4897 = vmor %vm4895, %vm4896
  %v4898 = vsel %vm4897, %v4890, %v4894
  %v4899 = vand.u32 2147483647, %v4888
  %vm4900 = vcmp.eq.f32.partialorder %v4899, 8.507059e+37
  %v4901 = vand.u32 %v4888, 2147483648
  %v4902 = vor.u32 1.1754944e-38, %v4901
  %v4903 = vsel %vm4900, %v4902, %v4898
  %v4904 = vmul.f32 1.0, %v4903
  %v4905 = vrcp.pop %v4889
  %v4906 = vmul.f32 %v4889, %v4905
  %v4907 = vsub.f32 1.0, %v4906
  %v4908 = vmul.f32 %v4905, %v4907
  %v4909 = vadd.f32 %v4905, %v4908
  %vm4910 = vweird.f32 %v4889
  %vm4911 = vweird.f32 %v4905
  %vm4912 = vmor %vm4910, %vm4911
  %v4913 = vsel %vm4912, %v4905, %v4909
  %v4914 = vand.u32 2147483647, %v4889
  %vm4915 = vcmp.eq.f32.partialorder %v4914, 8.507059e+37
  %v4916 = vand.u32 %v4889, 2147483648
  %v4917 = vor.u32 1.1754944e-38, %v4916
  %v4918 = vsel %vm4915, %v4917, %v4913
  %v4919 = vmul.f32 1.0, %v4918
  %v4920 = vadd.f32 %v4832, %v4862
  %v4921 = vadd.f32 %v4835, %v4864
  %v4922 = vxor.u32 %v4920, 2147483648
  %v4923 = vxor.u32 %v4921, 2147483648
  %v4924 = vmul.f32 %v4922, 1.442695
  %v4925 = vpow.pop %v4924
  %v4926 = vmul.f32 %v4923, 1.442695
  %v4927 = vpow.pop %v4926
  %v4928 = vadd.f32 %v4925, 1.0
  %v4929 = vadd.f32 %v4927, 1.0
  %v4930 = vrcp.pop %v4928
  %v4931 = vmul.f32 %v4928, %v4930
  %v4932 = vsub.f32 1.0, %v4931
  %v4933 = vmul.f32 %v4930, %v4932
  %v4934 = vadd.f32 %v4930, %v4933
  %vm4935 = vweird.f32 %v4928
  %vm4936 = vweird.f32 %v4930
  %vm4937 = vmor %vm4935, %vm4936
  %v4938 = vsel %vm4937, %v4930, %v4934
  %v4939 = vand.u32 2147483647, %v4928
  %vm4940 = vcmp.eq.f32.partialorder %v4939, 8.507059e+37
  %v4941 = vand.u32 %v4928, 2147483648
  %v4942 = vor.u32 1.1754944e-38, %v4941
  %v4943 = vsel %vm4940, %v4942, %v4938
  %v4944 = vmul.f32 1.0, %v4943
  %v4945 = vrcp.pop %v4929
  %v4946 = vmul.f32 %v4929, %v4945
  %v4947 = vsub.f32 1.0, %v4946
  %v4948 = vmul.f32 %v4945, %v4947
  %v4949 = vadd.f32 %v4945, %v4948
  %vm4950 = vweird.f32 %v4929
  %vm4951 = vweird.f32 %v4945
  %vm4952 = vmor %vm4950, %vm4951
  %v4953 = vsel %vm4952, %v4945, %v4949
  %v4954 = vand.u32 2147483647, %v4929
  %vm4955 = vcmp.eq.f32.partialorder %v4954, 8.507059e+37
  %v4956 = vand.u32 %v4929, 2147483648
  %v4957 = vor.u32 1.1754944e-38, %v4956
  %v4958 = vsel %vm4955, %v4957, %v4953
  %v4959 = vmul.f32 1.0, %v4958
  %v4960 = vadd.f32 %v4876, %v4378
  %v4961 = vadd.f32 %v4878, %v4378
  %v4962 = vmul.f32 %v4904, %v4960
  %v4963 = vmul.f32 %v4919, %v4961
  %v4964 = vadd.f32 %v4833, %v4962
  %v4965 = vadd.f32 %v4836, %v4963
  %v4966 = vtanh.pop %v4964
  %v4967 = vtanh.pop %v4965
  %v4968 = vsub.f32 1.0, %v4944
  %v4969 = vsub.f32 1.0, %v4959
  %v4970 = vmul.f32 %v4968, %v4966
  %v4971 = vmul.f32 %v4969, %v4967
  %v4972 = vmul.f32 %v4944, %v4829
  %v4973 = vmul.f32 %v4959, %v4830
  %v4974 = vadd.f32 %v4970, %v4972
  %v4975 = vadd.f32 %v4971, %v4973
  %v4976 = vld [vmem:[%s1637] sm:$0xff]
  %v4977 = vld [vmem:[%s1637 + $0x8] sm:$0xff]
  %v4978 = vld [vmem:[%s1637 + $0x10] sm:$0xff]
  %v4979 = vld [vmem:[%s1637 + $0x18] sm:$0xff]
  %v4980 = vld [vmem:[%s1637 + $0x20] sm:$0xff]
  %v4981 = vld [vmem:[%s1637 + $0x28] sm:$0xff]
  %v4982 = vpack.c.bf16 %v4975, %v4974
  %4983 = vmatpush.bf16.msra.mxu0 %v4228
  %4984 = vmatpush.bf16.msra.mxu0 %v4225
  %4985 = vmatpush.bf16.msra.mxu0 %v4222
  %4986 = vmatpush.bf16.msra.mxu0 %v4219
  %4987 = vmatpush.bf16.msra.mxu0 %v4216
  %4988 = vmatpush.bf16.msra.mxu0 %v4213
  %4989 = vmatpush.bf16.msra.mxu0 %v4210
  %4990 = vmatpush.bf16.msra.mxu0 %v4207
  %4991 = vmatmul.bf16.gmra.mxu0 %v4982
  %v4992 = vpop.f32.mrf.mxu0
  %v4993 = vadd.f32 0.0, %v4992
  %v4994 = vpop.f32.mrf.mxu0
  %v4995 = vadd.f32 0.0, %v4994
  %4996 = vdwg.mxu0
  %4997 = vmatpush.bf16.msra.mxu0 %v4229
  %4998 = vmatpush.bf16.msra.mxu0 %v4226
  %4999 = vmatpush.bf16.msra.mxu0 %v4223
  %5000 = vmatpush.bf16.msra.mxu0 %v4220
  %5001 = vmatpush.bf16.msra.mxu0 %v4217
  %5002 = vmatpush.bf16.msra.mxu0 %v4214
  %5003 = vmatpush.bf16.msra.mxu0 %v4211
  %5004 = vmatpush.bf16.msra.mxu0 %v4208
  %5005 = vmatmul.bf16.gmra.mxu0 %v4982
  %v5006 = vpop.f32.mrf.mxu0
  %v5007 = vadd.f32 0.0, %v5006
  %v5008 = vpop.f32.mrf.mxu0
  %v5009 = vadd.f32 0.0, %v5008
  %5010 = vdwg.mxu0
  %5011 = vmatpush.bf16.msra.mxu0 %v4230
  %5012 = vmatpush.bf16.msra.mxu0 %v4227
  %5013 = vmatpush.bf16.msra.mxu0 %v4224
  %5014 = vmatpush.bf16.msra.mxu0 %v4221
  %5015 = vmatpush.bf16.msra.mxu0 %v4218
  %5016 = vmatpush.bf16.msra.mxu0 %v4215
  %5017 = vmatpush.bf16.msra.mxu0 %v4212
  %5018 = vmatpush.bf16.msra.mxu0 %v4209
  %5019 = vmatmul.bf16.gmra.mxu0 %v4982
  %v5020 = vpop.f32.mrf.mxu0
  %v5021 = vadd.f32 0.0, %v5020
  %v5022 = vpop.f32.mrf.mxu0
  %v5023 = vadd.f32 0.0, %v5022
  %5024 = vdwg.mxu0
  %v5025 = vadd.f32 %v4976, %v4993
  %v5026 = vadd.f32 %v4979, %v4995
  %v5027 = vxor.u32 %v5025, 2147483648
  %v5028 = vxor.u32 %v5026, 2147483648
  %v5029 = vmul.f32 %v5027, 1.442695
  %v5030 = vpow.pop %v5029
  %v5031 = vmul.f32 %v5028, 1.442695
  %v5032 = vpow.pop %v5031
  %v5033 = vadd.f32 %v5030, 1.0
  %v5034 = vadd.f32 %v5032, 1.0
  %v5035 = vrcp.pop %v5033
  %v5036 = vmul.f32 %v5033, %v5035
  %v5037 = vsub.f32 1.0, %v5036
  %v5038 = vmul.f32 %v5035, %v5037
  %v5039 = vadd.f32 %v5035, %v5038
  %vm5040 = vweird.f32 %v5033
  %vm5041 = vweird.f32 %v5035
  %vm5042 = vmor %vm5040, %vm5041
  %v5043 = vsel %vm5042, %v5035, %v5039
  %v5044 = vand.u32 2147483647, %v5033
  %vm5045 = vcmp.eq.f32.partialorder %v5044, 8.507059e+37
  %v5046 = vand.u32 %v5033, 2147483648
  %v5047 = vor.u32 1.1754944e-38, %v5046
  %v5048 = vsel %vm5045, %v5047, %v5043
  %v5049 = vmul.f32 1.0, %v5048
  %v5050 = vrcp.pop %v5034
  %v5051 = vmul.f32 %v5034, %v5050
  %v5052 = vsub.f32 1.0, %v5051
  %v5053 = vmul.f32 %v5050, %v5052
  %v5054 = vadd.f32 %v5050, %v5053
  %vm5055 = vweird.f32 %v5034
  %vm5056 = vweird.f32 %v5050
  %vm5057 = vmor %vm5055, %vm5056
  %v5058 = vsel %vm5057, %v5050, %v5054
  %v5059 = vand.u32 2147483647, %v5034
  %vm5060 = vcmp.eq.f32.partialorder %v5059, 8.507059e+37
  %v5061 = vand.u32 %v5034, 2147483648
  %v5062 = vor.u32 1.1754944e-38, %v5061
  %v5063 = vsel %vm5060, %v5062, %v5058
  %v5064 = vmul.f32 1.0, %v5063
  %v5065 = vadd.f32 %v4977, %v5007
  %v5066 = vadd.f32 %v4980, %v5009
  %v5067 = vxor.u32 %v5065, 2147483648
  %v5068 = vxor.u32 %v5066, 2147483648
  %v5069 = vmul.f32 %v5067, 1.442695
  %v5070 = vpow.pop %v5069
  %v5071 = vmul.f32 %v5068, 1.442695
  %v5072 = vpow.pop %v5071
  %v5073 = vadd.f32 %v5070, 1.0
  %v5074 = vadd.f32 %v5072, 1.0
  %v5075 = vrcp.pop %v5073
  %v5076 = vmul.f32 %v5073, %v5075
  %v5077 = vsub.f32 1.0, %v5076
  %v5078 = vmul.f32 %v5075, %v5077
  %v5079 = vadd.f32 %v5075, %v5078
  %vm5080 = vweird.f32 %v5073
  %vm5081 = vweird.f32 %v5075
  %vm5082 = vmor %vm5080, %vm5081
  %v5083 = vsel %vm5082, %v5075, %v5079
  %v5084 = vand.u32 2147483647, %v5073
  %vm5085 = vcmp.eq.f32.partialorder %v5084, 8.507059e+37
  %v5086 = vand.u32 %v5073, 2147483648
  %v5087 = vor.u32 1.1754944e-38, %v5086
  %v5088 = vsel %vm5085, %v5087, %v5083
  %v5089 = vmul.f32 1.0, %v5088
  %v5090 = vrcp.pop %v5074
  %v5091 = vmul.f32 %v5074, %v5090
  %v5092 = vsub.f32 1.0, %v5091
  %v5093 = vmul.f32 %v5090, %v5092
  %v5094 = vadd.f32 %v5090, %v5093
  %vm5095 = vweird.f32 %v5074
  %vm5096 = vweird.f32 %v5090
  %vm5097 = vmor %vm5095, %vm5096
  %v5098 = vsel %vm5097, %v5090, %v5094
  %v5099 = vand.u32 2147483647, %v5074
  %vm5100 = vcmp.eq.f32.partialorder %v5099, 8.507059e+37
  %v5101 = vand.u32 %v5074, 2147483648
  %v5102 = vor.u32 1.1754944e-38, %v5101
  %v5103 = vsel %vm5100, %v5102, %v5098
  %v5104 = vmul.f32 1.0, %v5103
  %v5105 = vadd.f32 %v5021, %v4378
  %v5106 = vadd.f32 %v5023, %v4378
  %v5107 = vmul.f32 %v5049, %v5105
  %v5108 = vmul.f32 %v5064, %v5106
  %v5109 = vadd.f32 %v4978, %v5107
  %v5110 = vadd.f32 %v4981, %v5108
  %v5111 = vtanh.pop %v5109
  %v5112 = vtanh.pop %v5110
  %v5113 = vsub.f32 1.0, %v5089
  %v5114 = vsub.f32 1.0, %v5104
  %v5115 = vmul.f32 %v5113, %v5111
  %v5116 = vmul.f32 %v5114, %v5112
  %v5117 = vmul.f32 %v5089, %v4974
  %v5118 = vmul.f32 %v5104, %v4975
  %v5119 = vadd.f32 %v5115, %v5117
  %v5120 = vadd.f32 %v5116, %v5118
  %v5121 = vld [vmem:[%s1793] sm:$0xff]
  %v5122 = vld [vmem:[%s1793 + $0x8] sm:$0xff]
  %v5123 = vld [vmem:[%s1793 + $0x10] sm:$0xff]
  %v5124 = vld [vmem:[%s1793 + $0x18] sm:$0xff]
  %v5125 = vld [vmem:[%s1793 + $0x20] sm:$0xff]
  %v5126 = vld [vmem:[%s1793 + $0x28] sm:$0xff]
  %v5127 = vpack.c.bf16 %v5120, %v5119
  %5128 = vmatpush.bf16.msra.mxu0 %v4228
  %5129 = vmatpush.bf16.msra.mxu0 %v4225
  %5130 = vmatpush.bf16.msra.mxu0 %v4222
  %5131 = vmatpush.bf16.msra.mxu0 %v4219
  %5132 = vmatpush.bf16.msra.mxu0 %v4216
  %5133 = vmatpush.bf16.msra.mxu0 %v4213
  %5134 = vmatpush.bf16.msra.mxu0 %v4210
  %5135 = vmatpush.bf16.msra.mxu0 %v4207
  %5136 = vmatmul.bf16.gmra.mxu0 %v5127
  %v5137 = vpop.f32.mrf.mxu0
  %v5138 = vadd.f32 0.0, %v5137
  %v5139 = vpop.f32.mrf.mxu0
  %v5140 = vadd.f32 0.0, %v5139
  %5141 = vdwg.mxu0
  %5142 = vmatpush.bf16.msra.mxu0 %v4229
  %5143 = vmatpush.bf16.msra.mxu0 %v4226
  %5144 = vmatpush.bf16.msra.mxu0 %v4223
  %5145 = vmatpush.bf16.msra.mxu0 %v4220
  %5146 = vmatpush.bf16.msra.mxu0 %v4217
  %5147 = vmatpush.bf16.msra.mxu0 %v4214
  %5148 = vmatpush.bf16.msra.mxu0 %v4211
  %5149 = vmatpush.bf16.msra.mxu0 %v4208
  %5150 = vmatmul.bf16.gmra.mxu0 %v5127
  %v5151 = vpop.f32.mrf.mxu0
  %v5152 = vadd.f32 0.0, %v5151
  %v5153 = vpop.f32.mrf.mxu0
  %v5154 = vadd.f32 0.0, %v5153
  %5155 = vdwg.mxu0
  %5156 = vmatpush.bf16.msra.mxu0 %v4230
  %5157 = vmatpush.bf16.msra.mxu0 %v4227
  %5158 = vmatpush.bf16.msra.mxu0 %v4224
  %5159 = vmatpush.bf16.msra.mxu0 %v4221
  %5160 = vmatpush.bf16.msra.mxu0 %v4218
  %5161 = vmatpush.bf16.msra.mxu0 %v4215
  %5162 = vmatpush.bf16.msra.mxu0 %v4212
  %5163 = vmatpush.bf16.msra.mxu0 %v4209
  %5164 = vmatmul.bf16.gmra.mxu0 %v5127
  %v5165 = vpop.f32.mrf.mxu0
  %v5166 = vadd.f32 0.0, %v5165
  %v5167 = vpop.f32.mrf.mxu0
  %v5168 = vadd.f32 0.0, %v5167
  %5169 = vdwg.mxu0
  %v5170 = vadd.f32 %v5121, %v5138
  %v5171 = vadd.f32 %v5124, %v5140
  %v5172 = vxor.u32 %v5170, 2147483648
  %v5173 = vxor.u32 %v5171, 2147483648
  %v5174 = vmul.f32 %v5172, 1.442695
  %v5175 = vpow.pop %v5174
  %v5176 = vmul.f32 %v5173, 1.442695
  %v5177 = vpow.pop %v5176
  %v5178 = vadd.f32 %v5175, 1.0
  %v5179 = vadd.f32 %v5177, 1.0
  %v5180 = vrcp.pop %v5178
  %v5181 = vmul.f32 %v5178, %v5180
  %v5182 = vsub.f32 1.0, %v5181
  %v5183 = vmul.f32 %v5180, %v5182
  %v5184 = vadd.f32 %v5180, %v5183
  %vm5185 = vweird.f32 %v5178
  %vm5186 = vweird.f32 %v5180
  %vm5187 = vmor %vm5185, %vm5186
  %v5188 = vsel %vm5187, %v5180, %v5184
  %v5189 = vand.u32 2147483647, %v5178
  %vm5190 = vcmp.eq.f32.partialorder %v5189, 8.507059e+37
  %v5191 = vand.u32 %v5178, 2147483648
  %v5192 = vor.u32 1.1754944e-38, %v5191
  %v5193 = vsel %vm5190, %v5192, %v5188
  %v5194 = vmul.f32 1.0, %v5193
  %v5195 = vrcp.pop %v5179
  %v5196 = vmul.f32 %v5179, %v5195
  %v5197 = vsub.f32 1.0, %v5196
  %v5198 = vmul.f32 %v5195, %v5197
  %v5199 = vadd.f32 %v5195, %v5198
  %vm5200 = vweird.f32 %v5179
  %vm5201 = vweird.f32 %v5195
  %vm5202 = vmor %vm5200, %vm5201
  %v5203 = vsel %vm5202, %v5195, %v5199
  %v5204 = vand.u32 2147483647, %v5179
  %vm5205 = vcmp.eq.f32.partialorder %v5204, 8.507059e+37
  %v5206 = vand.u32 %v5179, 2147483648
  %v5207 = vor.u32 1.1754944e-38, %v5206
  %v5208 = vsel %vm5205, %v5207, %v5203
  %v5209 = vmul.f32 1.0, %v5208
  %v5210 = vadd.f32 %v5122, %v5152
  %v5211 = vadd.f32 %v5125, %v5154
  %v5212 = vxor.u32 %v5210, 2147483648
  %v5213 = vxor.u32 %v5211, 2147483648
  %v5214 = vmul.f32 %v5212, 1.442695
  %v5215 = vpow.pop %v5214
  %v5216 = vmul.f32 %v5213, 1.442695
  %v5217 = vpow.pop %v5216
  %v5218 = vadd.f32 %v5215, 1.0
  %v5219 = vadd.f32 %v5217, 1.0
  %v5220 = vrcp.pop %v5218
  %v5221 = vmul.f32 %v5218, %v5220
  %v5222 = vsub.f32 1.0, %v5221
  %v5223 = vmul.f32 %v5220, %v5222
  %v5224 = vadd.f32 %v5220, %v5223
  %vm5225 = vweird.f32 %v5218
  %vm5226 = vweird.f32 %v5220
  %vm5227 = vmor %vm5225, %vm5226
  %v5228 = vsel %vm5227, %v5220, %v5224
  %v5229 = vand.u32 2147483647, %v5218
  %vm5230 = vcmp.eq.f32.partialorder %v5229, 8.507059e+37
  %v5231 = vand.u32 %v5218, 2147483648
  %v5232 = vor.u32 1.1754944e-38, %v5231
  %v5233 = vsel %vm5230, %v5232, %v5228
  %v5234 = vmul.f32 1.0, %v5233
  %v5235 = vrcp.pop %v5219
  %v5236 = vmul.f32 %v5219, %v5235
  %v5237 = vsub.f32 1.0, %v5236
  %v5238 = vmul.f32 %v5235, %v5237
  %v5239 = vadd.f32 %v5235, %v5238
  %vm5240 = vweird.f32 %v5219
  %vm5241 = vweird.f32 %v5235
  %vm5242 = vmor %vm5240, %vm5241
  %v5243 = vsel %vm5242, %v5235, %v5239
  %v5244 = vand.u32 2147483647, %v5219
  %vm5245 = vcmp.eq.f32.partialorder %v5244, 8.507059e+37
  %v5246 = vand.u32 %v5219, 2147483648
  %v5247 = vor.u32 1.1754944e-38, %v5246
  %v5248 = vsel %vm5245, %v5247, %v5243
  %v5249 = vmul.f32 1.0, %v5248
  %v5250 = vadd.f32 %v5166, %v4378
  %v5251 = vadd.f32 %v5168, %v4378
  %v5252 = vmul.f32 %v5194, %v5250
  %v5253 = vmul.f32 %v5209, %v5251
  %v5254 = vadd.f32 %v5123, %v5252
  %v5255 = vadd.f32 %v5126, %v5253
  %v5256 = vtanh.pop %v5254
  %v5257 = vtanh.pop %v5255
  %v5258 = vsub.f32 1.0, %v5234
  %v5259 = vsub.f32 1.0, %v5249
  %v5260 = vmul.f32 %v5258, %v5256
  %v5261 = vmul.f32 %v5259, %v5257
  %v5262 = vmul.f32 %v5234, %v5119
  %v5263 = vmul.f32 %v5249, %v5120
  %v5264 = vadd.f32 %v5260, %v5262
  %v5265 = vadd.f32 %v5261, %v5263
  %v5266 = vld [vmem:[%s1949] sm:$0xff]
  %v5267 = vld [vmem:[%s1949 + $0x8] sm:$0xff]
  %v5268 = vld [vmem:[%s1949 + $0x10] sm:$0xff]
  %v5269 = vld [vmem:[%s1949 + $0x18] sm:$0xff]
  %v5270 = vld [vmem:[%s1949 + $0x20] sm:$0xff]
  %v5271 = vld [vmem:[%s1949 + $0x28] sm:$0xff]
  %v5272 = vpack.c.bf16 %v5265, %v5264
  %5273 = vmatpush.bf16.msra.mxu0 %v4228
  %5274 = vmatpush.bf16.msra.mxu0 %v4225
  %5275 = vmatpush.bf16.msra.mxu0 %v4222
  %5276 = vmatpush.bf16.msra.mxu0 %v4219
  %5277 = vmatpush.bf16.msra.mxu0 %v4216
  %5278 = vmatpush.bf16.msra.mxu0 %v4213
  %5279 = vmatpush.bf16.msra.mxu0 %v4210
  %5280 = vmatpush.bf16.msra.mxu0 %v4207
  %5281 = vmatmul.bf16.gmra.mxu0 %v5272
  %v5282 = vpop.f32.mrf.mxu0
  %v5283 = vadd.f32 0.0, %v5282
  %v5284 = vpop.f32.mrf.mxu0
  %v5285 = vadd.f32 0.0, %v5284
  %5286 = vdwg.mxu0
  %5287 = vmatpush.bf16.msra.mxu0 %v4229
  %5288 = vmatpush.bf16.msra.mxu0 %v4226
  %5289 = vmatpush.bf16.msra.mxu0 %v4223
  %5290 = vmatpush.bf16.msra.mxu0 %v4220
  %5291 = vmatpush.bf16.msra.mxu0 %v4217
  %5292 = vmatpush.bf16.msra.mxu0 %v4214
  %5293 = vmatpush.bf16.msra.mxu0 %v4211
  %5294 = vmatpush.bf16.msra.mxu0 %v4208
  %5295 = vmatmul.bf16.gmra.mxu0 %v5272
  %v5296 = vpop.f32.mrf.mxu0
  %v5297 = vadd.f32 0.0, %v5296
  %v5298 = vpop.f32.mrf.mxu0
  %v5299 = vadd.f32 0.0, %v5298
  %5300 = vdwg.mxu0
  %5301 = vmatpush.bf16.msra.mxu0 %v4230
  %5302 = vmatpush.bf16.msra.mxu0 %v4227
  %5303 = vmatpush.bf16.msra.mxu0 %v4224
  %5304 = vmatpush.bf16.msra.mxu0 %v4221
  %5305 = vmatpush.bf16.msra.mxu0 %v4218
  %5306 = vmatpush.bf16.msra.mxu0 %v4215
  %5307 = vmatpush.bf16.msra.mxu0 %v4212
  %5308 = vmatpush.bf16.msra.mxu0 %v4209
  %5309 = vmatmul.bf16.gmra.mxu0 %v5272
  %v5310 = vpop.f32.mrf.mxu0
  %v5311 = vadd.f32 0.0, %v5310
  %v5312 = vpop.f32.mrf.mxu0
  %v5313 = vadd.f32 0.0, %v5312
  %5314 = vdwg.mxu0
  %v5315 = vadd.f32 %v5266, %v5283
  %v5316 = vadd.f32 %v5269, %v5285
  %v5317 = vxor.u32 %v5315, 2147483648
  %v5318 = vxor.u32 %v5316, 2147483648
  %v5319 = vmul.f32 %v5317, 1.442695
  %v5320 = vpow.pop %v5319
  %v5321 = vmul.f32 %v5318, 1.442695
  %v5322 = vpow.pop %v5321
  %v5323 = vadd.f32 %v5320, 1.0
  %v5324 = vadd.f32 %v5322, 1.0
  %v5325 = vrcp.pop %v5323
  %v5326 = vmul.f32 %v5323, %v5325
  %v5327 = vsub.f32 1.0, %v5326
  %v5328 = vmul.f32 %v5325, %v5327
  %v5329 = vadd.f32 %v5325, %v5328
  %vm5330 = vweird.f32 %v5323
  %vm5331 = vweird.f32 %v5325
  %vm5332 = vmor %vm5330, %vm5331
  %v5333 = vsel %vm5332, %v5325, %v5329
  %v5334 = vand.u32 2147483647, %v5323
  %vm5335 = vcmp.eq.f32.partialorder %v5334, 8.507059e+37
  %v5336 = vand.u32 %v5323, 2147483648
  %v5337 = vor.u32 1.1754944e-38, %v5336
  %v5338 = vsel %vm5335, %v5337, %v5333
  %v5339 = vmul.f32 1.0, %v5338
  %v5340 = vrcp.pop %v5324
  %v5341 = vmul.f32 %v5324, %v5340
  %v5342 = vsub.f32 1.0, %v5341
  %v5343 = vmul.f32 %v5340, %v5342
  %v5344 = vadd.f32 %v5340, %v5343
  %vm5345 = vweird.f32 %v5324
  %vm5346 = vweird.f32 %v5340
  %vm5347 = vmor %vm5345, %vm5346
  %v5348 = vsel %vm5347, %v5340, %v5344
  %v5349 = vand.u32 2147483647, %v5324
  %vm5350 = vcmp.eq.f32.partialorder %v5349, 8.507059e+37
  %v5351 = vand.u32 %v5324, 2147483648
  %v5352 = vor.u32 1.1754944e-38, %v5351
  %v5353 = vsel %vm5350, %v5352, %v5348
  %v5354 = vmul.f32 1.0, %v5353
  %v5355 = vadd.f32 %v5267, %v5297
  %v5356 = vadd.f32 %v5270, %v5299
  %v5357 = vxor.u32 %v5355, 2147483648
  %v5358 = vxor.u32 %v5356, 2147483648
  %v5359 = vmul.f32 %v5357, 1.442695
  %v5360 = vpow.pop %v5359
  %v5361 = vmul.f32 %v5358, 1.442695
  %v5362 = vpow.pop %v5361
  %v5363 = vadd.f32 %v5360, 1.0
  %v5364 = vadd.f32 %v5362, 1.0
  %v5365 = vrcp.pop %v5363
  %v5366 = vmul.f32 %v5363, %v5365
  %v5367 = vsub.f32 1.0, %v5366
  %v5368 = vmul.f32 %v5365, %v5367
  %v5369 = vadd.f32 %v5365, %v5368
  %vm5370 = vweird.f32 %v5363
  %vm5371 = vweird.f32 %v5365
  %vm5372 = vmor %vm5370, %vm5371
  %v5373 = vsel %vm5372, %v5365, %v5369
  %v5374 = vand.u32 2147483647, %v5363
  %vm5375 = vcmp.eq.f32.partialorder %v5374, 8.507059e+37
  %v5376 = vand.u32 %v5363, 2147483648
  %v5377 = vor.u32 1.1754944e-38, %v5376
  %v5378 = vsel %vm5375, %v5377, %v5373
  %v5379 = vmul.f32 1.0, %v5378
  %v5380 = vrcp.pop %v5364
  %v5381 = vmul.f32 %v5364, %v5380
  %v5382 = vsub.f32 1.0, %v5381
  %v5383 = vmul.f32 %v5380, %v5382
  %v5384 = vadd.f32 %v5380, %v5383
  %vm5385 = vweird.f32 %v5364
  %vm5386 = vweird.f32 %v5380
  %vm5387 = vmor %vm5385, %vm5386
  %v5388 = vsel %vm5387, %v5380, %v5384
  %v5389 = vand.u32 2147483647, %v5364
  %vm5390 = vcmp.eq.f32.partialorder %v5389, 8.507059e+37
  %v5391 = vand.u32 %v5364, 2147483648
  %v5392 = vor.u32 1.1754944e-38, %v5391
  %v5393 = vsel %vm5390, %v5392, %v5388
  %v5394 = vmul.f32 1.0, %v5393
  %v5395 = vadd.f32 %v5311, %v4378
  %v5396 = vadd.f32 %v5313, %v4378
  %v5397 = vmul.f32 %v5339, %v5395
  %v5398 = vmul.f32 %v5354, %v5396
  %v5399 = vadd.f32 %v5268, %v5397
  %v5400 = vadd.f32 %v5271, %v5398
  %v5401 = vtanh.pop %v5399
  %v5402 = vtanh.pop %v5400
  %v5403 = vsub.f32 1.0, %v5379
  %v5404 = vsub.f32 1.0, %v5394
  %v5405 = vmul.f32 %v5403, %v5401
  %v5406 = vmul.f32 %v5404, %v5402
  %v5407 = vmul.f32 %v5379, %v5264
  %v5408 = vmul.f32 %v5394, %v5265
  %v5409 = vadd.f32 %v5405, %v5407
  %v5410 = vadd.f32 %v5406, %v5408
  %v5411 = vld [vmem:[%s2105] sm:$0xff]
  %v5412 = vld [vmem:[%s2105 + $0x8] sm:$0xff]
  %v5413 = vld [vmem:[%s2105 + $0x10] sm:$0xff]
  %v5414 = vld [vmem:[%s2105 + $0x18] sm:$0xff]
  %v5415 = vld [vmem:[%s2105 + $0x20] sm:$0xff]
  %v5416 = vld [vmem:[%s2105 + $0x28] sm:$0xff]
  %v5417 = vpack.c.bf16 %v5410, %v5409
  %5418 = vmatpush.bf16.msra.mxu0 %v4228
  %5419 = vmatpush.bf16.msra.mxu0 %v4225
  %5420 = vmatpush.bf16.msra.mxu0 %v4222
  %5421 = vmatpush.bf16.msra.mxu0 %v4219
  %5422 = vmatpush.bf16.msra.mxu0 %v4216
  %5423 = vmatpush.bf16.msra.mxu0 %v4213
  %5424 = vmatpush.bf16.msra.mxu0 %v4210
  %5425 = vmatpush.bf16.msra.mxu0 %v4207
  %5426 = vmatmul.bf16.gmra.mxu0 %v5417
  %v5427 = vpop.f32.mrf.mxu0
  %v5428 = vadd.f32 0.0, %v5427
  %v5429 = vpop.f32.mrf.mxu0
  %v5430 = vadd.f32 0.0, %v5429
  %5431 = vdwg.mxu0
  %5432 = vmatpush.bf16.msra.mxu0 %v4229
  %5433 = vmatpush.bf16.msra.mxu0 %v4226
  %5434 = vmatpush.bf16.msra.mxu0 %v4223
  %5435 = vmatpush.bf16.msra.mxu0 %v4220
  %5436 = vmatpush.bf16.msra.mxu0 %v4217
  %5437 = vmatpush.bf16.msra.mxu0 %v4214
  %5438 = vmatpush.bf16.msra.mxu0 %v4211
  %5439 = vmatpush.bf16.msra.mxu0 %v4208
  %5440 = vmatmul.bf16.gmra.mxu0 %v5417
  %v5441 = vpop.f32.mrf.mxu0
  %v5442 = vadd.f32 0.0, %v5441
  %v5443 = vpop.f32.mrf.mxu0
  %v5444 = vadd.f32 0.0, %v5443
  %5445 = vdwg.mxu0
  %5446 = vmatpush.bf16.msra.mxu0 %v4230
  %5447 = vmatpush.bf16.msra.mxu0 %v4227
  %5448 = vmatpush.bf16.msra.mxu0 %v4224
  %5449 = vmatpush.bf16.msra.mxu0 %v4221
  %5450 = vmatpush.bf16.msra.mxu0 %v4218
  %5451 = vmatpush.bf16.msra.mxu0 %v4215
  %5452 = vmatpush.bf16.msra.mxu0 %v4212
  %5453 = vmatpush.bf16.msra.mxu0 %v4209
  %5454 = vmatmul.bf16.gmra.mxu0 %v5417
  %v5455 = vpop.f32.mrf.mxu0
  %v5456 = vadd.f32 0.0, %v5455
  %v5457 = vpop.f32.mrf.mxu0
  %v5458 = vadd.f32 0.0, %v5457
  %5459 = vdwg.mxu0
  %v5460 = vadd.f32 %v5411, %v5428
  %v5461 = vadd.f32 %v5414, %v5430
  %v5462 = vxor.u32 %v5460, 2147483648
  %v5463 = vxor.u32 %v5461, 2147483648
  %v5464 = vmul.f32 %v5462, 1.442695
  %v5465 = vpow.pop %v5464
  %v5466 = vmul.f32 %v5463, 1.442695
  %v5467 = vpow.pop %v5466
  %v5468 = vadd.f32 %v5465, 1.0
  %v5469 = vadd.f32 %v5467, 1.0
  %v5470 = vrcp.pop %v5468
  %v5471 = vmul.f32 %v5468, %v5470
  %v5472 = vsub.f32 1.0, %v5471
  %v5473 = vmul.f32 %v5470, %v5472
  %v5474 = vadd.f32 %v5470, %v5473
  %vm5475 = vweird.f32 %v5468
  %vm5476 = vweird.f32 %v5470
  %vm5477 = vmor %vm5475, %vm5476
  %v5478 = vsel %vm5477, %v5470, %v5474
  %v5479 = vand.u32 2147483647, %v5468
  %vm5480 = vcmp.eq.f32.partialorder %v5479, 8.507059e+37
  %v5481 = vand.u32 %v5468, 2147483648
  %v5482 = vor.u32 1.1754944e-38, %v5481
  %v5483 = vsel %vm5480, %v5482, %v5478
  %v5484 = vmul.f32 1.0, %v5483
  %v5485 = vrcp.pop %v5469
  %v5486 = vmul.f32 %v5469, %v5485
  %v5487 = vsub.f32 1.0, %v5486
  %v5488 = vmul.f32 %v5485, %v5487
  %v5489 = vadd.f32 %v5485, %v5488
  %vm5490 = vweird.f32 %v5469
  %vm5491 = vweird.f32 %v5485
  %vm5492 = vmor %vm5490, %vm5491
  %v5493 = vsel %vm5492, %v5485, %v5489
  %v5494 = vand.u32 2147483647, %v5469
  %vm5495 = vcmp.eq.f32.partialorder %v5494, 8.507059e+37
  %v5496 = vand.u32 %v5469, 2147483648
  %v5497 = vor.u32 1.1754944e-38, %v5496
  %v5498 = vsel %vm5495, %v5497, %v5493
  %v5499 = vmul.f32 1.0, %v5498
  %v5500 = vadd.f32 %v5412, %v5442
  %v5501 = vadd.f32 %v5415, %v5444
  %v5502 = vxor.u32 %v5500, 2147483648
  %v5503 = vxor.u32 %v5501, 2147483648
  %v5504 = vmul.f32 %v5502, 1.442695
  %v5505 = vpow.pop %v5504
  %v5506 = vmul.f32 %v5503, 1.442695
  %v5507 = vpow.pop %v5506
  %v5508 = vadd.f32 %v5505, 1.0
  %v5509 = vadd.f32 %v5507, 1.0
  %v5510 = vrcp.pop %v5508
  %v5511 = vmul.f32 %v5508, %v5510
  %v5512 = vsub.f32 1.0, %v5511
  %v5513 = vmul.f32 %v5510, %v5512
  %v5514 = vadd.f32 %v5510, %v5513
  %vm5515 = vweird.f32 %v5508
  %vm5516 = vweird.f32 %v5510
  %vm5517 = vmor %vm5515, %vm5516
  %v5518 = vsel %vm5517, %v5510, %v5514
  %v5519 = vand.u32 2147483647, %v5508
  %vm5520 = vcmp.eq.f32.partialorder %v5519, 8.507059e+37
  %v5521 = vand.u32 %v5508, 2147483648
  %v5522 = vor.u32 1.1754944e-38, %v5521
  %v5523 = vsel %vm5520, %v5522, %v5518
  %v5524 = vmul.f32 1.0, %v5523
  %v5525 = vrcp.pop %v5509
  %v5526 = vmul.f32 %v5509, %v5525
  %v5527 = vsub.f32 1.0, %v5526
  %v5528 = vmul.f32 %v5525, %v5527
  %v5529 = vadd.f32 %v5525, %v5528
  %vm5530 = vweird.f32 %v5509
  %vm5531 = vweird.f32 %v5525
  %vm5532 = vmor %vm5530, %vm5531
  %v5533 = vsel %vm5532, %v5525, %v5529
  %v5534 = vand.u32 2147483647, %v5509
  %vm5535 = vcmp.eq.f32.partialorder %v5534, 8.507059e+37
  %v5536 = vand.u32 %v5509, 2147483648
  %v5537 = vor.u32 1.1754944e-38, %v5536
  %v5538 = vsel %vm5535, %v5537, %v5533
  %v5539 = vmul.f32 1.0, %v5538
  %v5540 = vadd.f32 %v5456, %v4378
  %v5541 = vadd.f32 %v5458, %v4378
  %v5542 = vmul.f32 %v5484, %v5540
  %v5543 = vmul.f32 %v5499, %v5541
  %v5544 = vadd.f32 %v5413, %v5542
  %v5545 = vadd.f32 %v5416, %v5543
  %v5546 = vtanh.pop %v5544
  %v5547 = vtanh.pop %v5545
  %v5548 = vsub.f32 1.0, %v5524
  %v5549 = vsub.f32 1.0, %v5539
  %v5550 = vmul.f32 %v5548, %v5546
  %v5551 = vmul.f32 %v5549, %v5547
  %v5552 = vmul.f32 %v5524, %v5409
  %v5553 = vmul.f32 %v5539, %v5410
  %v5554 = vadd.f32 %v5550, %v5552
  %v5555 = vadd.f32 %v5551, %v5553
  %v5556 = vld [vmem:[%s2261] sm:$0xff]
  %v5557 = vld [vmem:[%s2261 + $0x8] sm:$0xff]
  %v5558 = vld [vmem:[%s2261 + $0x10] sm:$0xff]
  %v5559 = vld [vmem:[%s2261 + $0x18] sm:$0xff]
  %v5560 = vld [vmem:[%s2261 + $0x20] sm:$0xff]
  %v5561 = vld [vmem:[%s2261 + $0x28] sm:$0xff]
  %v5562 = vpack.c.bf16 %v5555, %v5554
  %5563 = vmatpush.bf16.msra.mxu0 %v4228
  %5564 = vmatpush.bf16.msra.mxu0 %v4225
  %5565 = vmatpush.bf16.msra.mxu0 %v4222
  %5566 = vmatpush.bf16.msra.mxu0 %v4219
  %5567 = vmatpush.bf16.msra.mxu0 %v4216
  %5568 = vmatpush.bf16.msra.mxu0 %v4213
  %5569 = vmatpush.bf16.msra.mxu0 %v4210
  %5570 = vmatpush.bf16.msra.mxu0 %v4207
  %5571 = vmatmul.bf16.gmra.mxu0 %v5562
  %v5572 = vpop.f32.mrf.mxu0
  %v5573 = vadd.f32 0.0, %v5572
  %v5574 = vpop.f32.mrf.mxu0
  %v5575 = vadd.f32 0.0, %v5574
  %5576 = vdwg.mxu0
  %5577 = vmatpush.bf16.msra.mxu0 %v4229
  %5578 = vmatpush.bf16.msra.mxu0 %v4226
  %5579 = vmatpush.bf16.msra.mxu0 %v4223
  %5580 = vmatpush.bf16.msra.mxu0 %v4220
  %5581 = vmatpush.bf16.msra.mxu0 %v4217
  %5582 = vmatpush.bf16.msra.mxu0 %v4214
  %5583 = vmatpush.bf16.msra.mxu0 %v4211
  %5584 = vmatpush.bf16.msra.mxu0 %v4208
  %5585 = vmatmul.bf16.gmra.mxu0 %v5562
  %v5586 = vpop.f32.mrf.mxu0
  %v5587 = vadd.f32 0.0, %v5586
  %v5588 = vpop.f32.mrf.mxu0
  %v5589 = vadd.f32 0.0, %v5588
  %5590 = vdwg.mxu0
  %5591 = vmatpush.bf16.msra.mxu0 %v4230
  %5592 = vmatpush.bf16.msra.mxu0 %v4227
  %5593 = vmatpush.bf16.msra.mxu0 %v4224
  %5594 = vmatpush.bf16.msra.mxu0 %v4221
  %5595 = vmatpush.bf16.msra.mxu0 %v4218
  %5596 = vmatpush.bf16.msra.mxu0 %v4215
  %5597 = vmatpush.bf16.msra.mxu0 %v4212
  %5598 = vmatpush.bf16.msra.mxu0 %v4209
  %5599 = vmatmul.bf16.gmra.mxu0 %v5562
  %v5600 = vpop.f32.mrf.mxu0
  %v5601 = vadd.f32 0.0, %v5600
  %v5602 = vpop.f32.mrf.mxu0
  %v5603 = vadd.f32 0.0, %v5602
  %5604 = vdwg.mxu0
  %v5605 = vadd.f32 %v5556, %v5573
  %v5606 = vadd.f32 %v5559, %v5575
  %v5607 = vxor.u32 %v5605, 2147483648
  %v5608 = vxor.u32 %v5606, 2147483648
  %v5609 = vmul.f32 %v5607, 1.442695
  %v5610 = vpow.pop %v5609
  %v5611 = vmul.f32 %v5608, 1.442695
  %v5612 = vpow.pop %v5611
  %v5613 = vadd.f32 %v5610, 1.0
  %v5614 = vadd.f32 %v5612, 1.0
  %v5615 = vrcp.pop %v5613
  %v5616 = vmul.f32 %v5613, %v5615
  %v5617 = vsub.f32 1.0, %v5616
  %v5618 = vmul.f32 %v5615, %v5617
  %v5619 = vadd.f32 %v5615, %v5618
  %vm5620 = vweird.f32 %v5613
  %vm5621 = vweird.f32 %v5615
  %vm5622 = vmor %vm5620, %vm5621
  %v5623 = vsel %vm5622, %v5615, %v5619
  %v5624 = vand.u32 2147483647, %v5613
  %vm5625 = vcmp.eq.f32.partialorder %v5624, 8.507059e+37
  %v5626 = vand.u32 %v5613, 2147483648
  %v5627 = vor.u32 1.1754944e-38, %v5626
  %v5628 = vsel %vm5625, %v5627, %v5623
  %v5629 = vmul.f32 1.0, %v5628
  %v5630 = vrcp.pop %v5614
  %v5631 = vmul.f32 %v5614, %v5630
  %v5632 = vsub.f32 1.0, %v5631
  %v5633 = vmul.f32 %v5630, %v5632
  %v5634 = vadd.f32 %v5630, %v5633
  %vm5635 = vweird.f32 %v5614
  %vm5636 = vweird.f32 %v5630
  %vm5637 = vmor %vm5635, %vm5636
  %v5638 = vsel %vm5637, %v5630, %v5634
  %v5639 = vand.u32 2147483647, %v5614
  %vm5640 = vcmp.eq.f32.partialorder %v5639, 8.507059e+37
  %v5641 = vand.u32 %v5614, 2147483648
  %v5642 = vor.u32 1.1754944e-38, %v5641
  %v5643 = vsel %vm5640, %v5642, %v5638
  %v5644 = vmul.f32 1.0, %v5643
  %v5645 = vadd.f32 %v5557, %v5587
  %v5646 = vadd.f32 %v5560, %v5589
  %v5647 = vxor.u32 %v5645, 2147483648
  %v5648 = vxor.u32 %v5646, 2147483648
  %v5649 = vmul.f32 %v5647, 1.442695
  %v5650 = vpow.pop %v5649
  %v5651 = vmul.f32 %v5648, 1.442695
  %v5652 = vpow.pop %v5651
  %v5653 = vadd.f32 %v5650, 1.0
  %v5654 = vadd.f32 %v5652, 1.0
  %v5655 = vrcp.pop %v5653
  %v5656 = vmul.f32 %v5653, %v5655
  %v5657 = vsub.f32 1.0, %v5656
  %v5658 = vmul.f32 %v5655, %v5657
  %v5659 = vadd.f32 %v5655, %v5658
  %vm5660 = vweird.f32 %v5653
  %vm5661 = vweird.f32 %v5655
  %vm5662 = vmor %vm5660, %vm5661
  %v5663 = vsel %vm5662, %v5655, %v5659
  %v5664 = vand.u32 2147483647, %v5653
  %vm5665 = vcmp.eq.f32.partialorder %v5664, 8.507059e+37
  %v5666 = vand.u32 %v5653, 2147483648
  %v5667 = vor.u32 1.1754944e-38, %v5666
  %v5668 = vsel %vm5665, %v5667, %v5663
  %v5669 = vmul.f32 1.0, %v5668
  %v5670 = vrcp.pop %v5654
  %v5671 = vmul.f32 %v5654, %v5670
  %v5672 = vsub.f32 1.0, %v5671
  %v5673 = vmul.f32 %v5670, %v5672
  %v5674 = vadd.f32 %v5670, %v5673
  %vm5675 = vweird.f32 %v5654
  %vm5676 = vweird.f32 %v5670
  %vm5677 = vmor %vm5675, %vm5676
  %v5678 = vsel %vm5677, %v5670, %v5674
  %v5679 = vand.u32 2147483647, %v5654
  %vm5680 = vcmp.eq.f32.partialorder %v5679, 8.507059e+37
  %v5681 = vand.u32 %v5654, 2147483648
  %v5682 = vor.u32 1.1754944e-38, %v5681
  %v5683 = vsel %vm5680, %v5682, %v5678
  %v5684 = vmul.f32 1.0, %v5683
  %v5685 = vadd.f32 %v5601, %v4378
  %v5686 = vadd.f32 %v5603, %v4378
  %v5687 = vmul.f32 %v5629, %v5685
  %v5688 = vmul.f32 %v5644, %v5686
  %v5689 = vadd.f32 %v5558, %v5687
  %v5690 = vadd.f32 %v5561, %v5688
  %v5691 = vtanh.pop %v5689
  %v5692 = vtanh.pop %v5690
  %v5693 = vsub.f32 1.0, %v5669
  %v5694 = vsub.f32 1.0, %v5684
  %v5695 = vmul.f32 %v5693, %v5691
  %v5696 = vmul.f32 %v5694, %v5692
  %v5697 = vmul.f32 %v5669, %v5554
  %v5698 = vmul.f32 %v5684, %v5555
  %v5699 = vadd.f32 %v5695, %v5697
  %v5700 = vadd.f32 %v5696, %v5698
  %v5701 = vld [vmem:[%s2417] sm:$0xff]
  %v5702 = vld [vmem:[%s2417 + $0x8] sm:$0xff]
  %v5703 = vld [vmem:[%s2417 + $0x10] sm:$0xff]
  %v5704 = vld [vmem:[%s2417 + $0x18] sm:$0xff]
  %v5705 = vld [vmem:[%s2417 + $0x20] sm:$0xff]
  %v5706 = vld [vmem:[%s2417 + $0x28] sm:$0xff]
  %v5707 = vpack.c.bf16 %v5700, %v5699
  %5708 = vmatpush.bf16.msra.mxu0 %v4228
  %5709 = vmatpush.bf16.msra.mxu0 %v4225
  %5710 = vmatpush.bf16.msra.mxu0 %v4222
  %5711 = vmatpush.bf16.msra.mxu0 %v4219
  %5712 = vmatpush.bf16.msra.mxu0 %v4216
  %5713 = vmatpush.bf16.msra.mxu0 %v4213
  %5714 = vmatpush.bf16.msra.mxu0 %v4210
  %5715 = vmatpush.bf16.msra.mxu0 %v4207
  %5716 = vmatmul.bf16.gmra.mxu0 %v5707
  %v5717 = vpop.f32.mrf.mxu0
  %v5718 = vadd.f32 0.0, %v5717
  %v5719 = vpop.f32.mrf.mxu0
  %v5720 = vadd.f32 0.0, %v5719
  %5721 = vdwg.mxu0
  %5722 = vmatpush.bf16.msra.mxu0 %v4229
  %5723 = vmatpush.bf16.msra.mxu0 %v4226
  %5724 = vmatpush.bf16.msra.mxu0 %v4223
  %5725 = vmatpush.bf16.msra.mxu0 %v4220
  %5726 = vmatpush.bf16.msra.mxu0 %v4217
  %5727 = vmatpush.bf16.msra.mxu0 %v4214
  %5728 = vmatpush.bf16.msra.mxu0 %v4211
  %5729 = vmatpush.bf16.msra.mxu0 %v4208
  %5730 = vmatmul.bf16.gmra.mxu0 %v5707
  %v5731 = vpop.f32.mrf.mxu0
  %v5732 = vadd.f32 0.0, %v5731
  %v5733 = vpop.f32.mrf.mxu0
  %v5734 = vadd.f32 0.0, %v5733
  %5735 = vdwg.mxu0
  %5736 = vmatpush.bf16.msra.mxu0 %v4230
  %5737 = vmatpush.bf16.msra.mxu0 %v4227
  %5738 = vmatpush.bf16.msra.mxu0 %v4224
  %5739 = vmatpush.bf16.msra.mxu0 %v4221
  %5740 = vmatpush.bf16.msra.mxu0 %v4218
  %5741 = vmatpush.bf16.msra.mxu0 %v4215
  %5742 = vmatpush.bf16.msra.mxu0 %v4212
  %5743 = vmatpush.bf16.msra.mxu0 %v4209
  %5744 = vmatmul.bf16.gmra.mxu0 %v5707
  %v5745 = vpop.f32.mrf.mxu0
  %v5746 = vadd.f32 0.0, %v5745
  %v5747 = vpop.f32.mrf.mxu0
  %v5748 = vadd.f32 0.0, %v5747
  %5749 = vdwg.mxu0
  %v5750 = vadd.f32 %v5701, %v5718
  %v5751 = vadd.f32 %v5704, %v5720
  %v5752 = vxor.u32 %v5750, 2147483648
  %v5753 = vxor.u32 %v5751, 2147483648
  %v5754 = vmul.f32 %v5752, 1.442695
  %v5755 = vpow.pop %v5754
  %v5756 = vmul.f32 %v5753, 1.442695
  %v5757 = vpow.pop %v5756
  %v5758 = vadd.f32 %v5755, 1.0
  %v5759 = vadd.f32 %v5757, 1.0
  %v5760 = vrcp.pop %v5758
  %v5761 = vmul.f32 %v5758, %v5760
  %v5762 = vsub.f32 1.0, %v5761
  %v5763 = vmul.f32 %v5760, %v5762
  %v5764 = vadd.f32 %v5760, %v5763
  %vm5765 = vweird.f32 %v5758
  %vm5766 = vweird.f32 %v5760
  %vm5767 = vmor %vm5765, %vm5766
  %v5768 = vsel %vm5767, %v5760, %v5764
  %v5769 = vand.u32 2147483647, %v5758
  %vm5770 = vcmp.eq.f32.partialorder %v5769, 8.507059e+37
  %v5771 = vand.u32 %v5758, 2147483648
  %v5772 = vor.u32 1.1754944e-38, %v5771
  %v5773 = vsel %vm5770, %v5772, %v5768
  %v5774 = vmul.f32 1.0, %v5773
  %v5775 = vrcp.pop %v5759
  %v5776 = vmul.f32 %v5759, %v5775
  %v5777 = vsub.f32 1.0, %v5776
  %v5778 = vmul.f32 %v5775, %v5777
  %v5779 = vadd.f32 %v5775, %v5778
  %vm5780 = vweird.f32 %v5759
  %vm5781 = vweird.f32 %v5775
  %vm5782 = vmor %vm5780, %vm5781
  %v5783 = vsel %vm5782, %v5775, %v5779
  %v5784 = vand.u32 2147483647, %v5759
  %vm5785 = vcmp.eq.f32.partialorder %v5784, 8.507059e+37
  %v5786 = vand.u32 %v5759, 2147483648
  %v5787 = vor.u32 1.1754944e-38, %v5786
  %v5788 = vsel %vm5785, %v5787, %v5783
  %v5789 = vmul.f32 1.0, %v5788
  %v5790 = vadd.f32 %v5702, %v5732
  %v5791 = vadd.f32 %v5705, %v5734
  %v5792 = vxor.u32 %v5790, 2147483648
  %v5793 = vxor.u32 %v5791, 2147483648
  %v5794 = vmul.f32 %v5792, 1.442695
  %v5795 = vpow.pop %v5794
  %v5796 = vmul.f32 %v5793, 1.442695
  %v5797 = vpow.pop %v5796
  %v5798 = vadd.f32 %v5795, 1.0
  %v5799 = vadd.f32 %v5797, 1.0
  %v5800 = vrcp.pop %v5798
  %v5801 = vmul.f32 %v5798, %v5800
  %v5802 = vsub.f32 1.0, %v5801
  %v5803 = vmul.f32 %v5800, %v5802
  %v5804 = vadd.f32 %v5800, %v5803
  %vm5805 = vweird.f32 %v5798
  %vm5806 = vweird.f32 %v5800
  %vm5807 = vmor %vm5805, %vm5806
  %v5808 = vsel %vm5807, %v5800, %v5804
  %v5809 = vand.u32 2147483647, %v5798
  %vm5810 = vcmp.eq.f32.partialorder %v5809, 8.507059e+37
  %v5811 = vand.u32 %v5798, 2147483648
  %v5812 = vor.u32 1.1754944e-38, %v5811
  %v5813 = vsel %vm5810, %v5812, %v5808
  %v5814 = vmul.f32 1.0, %v5813
  %v5815 = vrcp.pop %v5799
  %v5816 = vmul.f32 %v5799, %v5815
  %v5817 = vsub.f32 1.0, %v5816
  %v5818 = vmul.f32 %v5815, %v5817
  %v5819 = vadd.f32 %v5815, %v5818
  %vm5820 = vweird.f32 %v5799
  %vm5821 = vweird.f32 %v5815
  %vm5822 = vmor %vm5820, %vm5821
  %v5823 = vsel %vm5822, %v5815, %v5819
  %v5824 = vand.u32 2147483647, %v5799
  %vm5825 = vcmp.eq.f32.partialorder %v5824, 8.507059e+37
  %v5826 = vand.u32 %v5799, 2147483648
  %v5827 = vor.u32 1.1754944e-38, %v5826
  %v5828 = vsel %vm5825, %v5827, %v5823
  %v5829 = vmul.f32 1.0, %v5828
  %v5830 = vadd.f32 %v5746, %v4378
  %v5831 = vadd.f32 %v5748, %v4378
  %v5832 = vmul.f32 %v5774, %v5830
  %v5833 = vmul.f32 %v5789, %v5831
  %v5834 = vadd.f32 %v5703, %v5832
  %v5835 = vadd.f32 %v5706, %v5833
  %v5836 = vtanh.pop %v5834
  %v5837 = vtanh.pop %v5835
  %v5838 = vsub.f32 1.0, %v5814
  %v5839 = vsub.f32 1.0, %v5829
  %v5840 = vmul.f32 %v5838, %v5836
  %v5841 = vmul.f32 %v5839, %v5837
  %v5842 = vmul.f32 %v5814, %v5699
  %v5843 = vmul.f32 %v5829, %v5700
  %v5844 = vadd.f32 %v5840, %v5842
  %v5845 = vadd.f32 %v5841, %v5843
  %v5846 = vsub.f32 %v5844, %v5699
  %v5847 = vsub.f32 %v5845, %v5700
  %v5848 = vmul.f32 %v2575, %v5846
  %v5849 = vmul.f32 %v2575, %v5847
  %v5850 = vadd.f32 %v5699, %v5848
  %v5851 = vadd.f32 %v5700, %v5849
  %v5852 = vld [vmem:[%s2585] sm:$0xff]
  %v5853 = vld [vmem:[%s2585 + $0x8] sm:$0xff]
  %v5854 = vld [vmem:[%s2585 + $0x10] sm:$0xff]
  %v5855 = vld [vmem:[%s2585 + $0x18] sm:$0xff]
  %v5856 = vld [vmem:[%s2585 + $0x20] sm:$0xff]
  %v5857 = vld [vmem:[%s2585 + $0x28] sm:$0xff]
  %v5858 = vpack.c.bf16 %v5851, %v5850
  %5859 = vmatpush.bf16.msra.mxu0 %v4228
  %5860 = vmatpush.bf16.msra.mxu0 %v4225
  %5861 = vmatpush.bf16.msra.mxu0 %v4222
  %5862 = vmatpush.bf16.msra.mxu0 %v4219
  %5863 = vmatpush.bf16.msra.mxu0 %v4216
  %5864 = vmatpush.bf16.msra.mxu0 %v4213
  %5865 = vmatpush.bf16.msra.mxu0 %v4210
  %5866 = vmatpush.bf16.msra.mxu0 %v4207
  %5867 = vmatmul.bf16.gmra.mxu0 %v5858
  %v5868 = vpop.f32.mrf.mxu0
  %v5869 = vadd.f32 0.0, %v5868
  %v5870 = vpop.f32.mrf.mxu0
  %v5871 = vadd.f32 0.0, %v5870
  %5872 = vdwg.mxu0
  %5873 = vmatpush.bf16.msra.mxu0 %v4229
  %5874 = vmatpush.bf16.msra.mxu0 %v4226
  %5875 = vmatpush.bf16.msra.mxu0 %v4223
  %5876 = vmatpush.bf16.msra.mxu0 %v4220
  %5877 = vmatpush.bf16.msra.mxu0 %v4217
  %5878 = vmatpush.bf16.msra.mxu0 %v4214
  %5879 = vmatpush.bf16.msra.mxu0 %v4211
  %5880 = vmatpush.bf16.msra.mxu0 %v4208
  %5881 = vmatmul.bf16.gmra.mxu0 %v5858
  %v5882 = vpop.f32.mrf.mxu0
  %v5883 = vadd.f32 0.0, %v5882
  %v5884 = vpop.f32.mrf.mxu0
  %v5885 = vadd.f32 0.0, %v5884
  %5886 = vdwg.mxu0
  %5887 = vmatpush.bf16.msra.mxu0 %v4230
  %5888 = vmatpush.bf16.msra.mxu0 %v4227
  %5889 = vmatpush.bf16.msra.mxu0 %v4224
  %5890 = vmatpush.bf16.msra.mxu0 %v4221
  %5891 = vmatpush.bf16.msra.mxu0 %v4218
  %5892 = vmatpush.bf16.msra.mxu0 %v4215
  %5893 = vmatpush.bf16.msra.mxu0 %v4212
  %5894 = vmatpush.bf16.msra.mxu0 %v4209
  %5895 = vmatmul.bf16.gmra.mxu0 %v5858
  %v5896 = vpop.f32.mrf.mxu0
  %v5897 = vadd.f32 0.0, %v5896
  %v5898 = vpop.f32.mrf.mxu0
  %v5899 = vadd.f32 0.0, %v5898
  %5900 = vdwg.mxu0
  %v5901 = vadd.f32 %v5852, %v5869
  %v5902 = vadd.f32 %v5855, %v5871
  %v5903 = vxor.u32 %v5901, 2147483648
  %v5904 = vxor.u32 %v5902, 2147483648
  %v5905 = vmul.f32 %v5903, 1.442695
  %v5906 = vpow.pop %v5905
  %v5907 = vmul.f32 %v5904, 1.442695
  %v5908 = vpow.pop %v5907
  %v5909 = vadd.f32 %v5906, 1.0
  %v5910 = vadd.f32 %v5908, 1.0
  %v5911 = vrcp.pop %v5909
  %v5912 = vmul.f32 %v5909, %v5911
  %v5913 = vsub.f32 1.0, %v5912
  %v5914 = vmul.f32 %v5911, %v5913
  %v5915 = vadd.f32 %v5911, %v5914
  %vm5916 = vweird.f32 %v5909
  %vm5917 = vweird.f32 %v5911
  %vm5918 = vmor %vm5916, %vm5917
  %v5919 = vsel %vm5918, %v5911, %v5915
  %v5920 = vand.u32 2147483647, %v5909
  %vm5921 = vcmp.eq.f32.partialorder %v5920, 8.507059e+37
  %v5922 = vand.u32 %v5909, 2147483648
  %v5923 = vor.u32 1.1754944e-38, %v5922
  %v5924 = vsel %vm5921, %v5923, %v5919
  %v5925 = vmul.f32 1.0, %v5924
  %v5926 = vrcp.pop %v5910
  %v5927 = vmul.f32 %v5910, %v5926
  %v5928 = vsub.f32 1.0, %v5927
  %v5929 = vmul.f32 %v5926, %v5928
  %v5930 = vadd.f32 %v5926, %v5929
  %vm5931 = vweird.f32 %v5910
  %vm5932 = vweird.f32 %v5926
  %vm5933 = vmor %vm5931, %vm5932
  %v5934 = vsel %vm5933, %v5926, %v5930
  %v5935 = vand.u32 2147483647, %v5910
  %vm5936 = vcmp.eq.f32.partialorder %v5935, 8.507059e+37
  %v5937 = vand.u32 %v5910, 2147483648
  %v5938 = vor.u32 1.1754944e-38, %v5937
  %v5939 = vsel %vm5936, %v5938, %v5934
  %v5940 = vmul.f32 1.0, %v5939
  %v5941 = vadd.f32 %v5853, %v5883
  %v5942 = vadd.f32 %v5856, %v5885
  %v5943 = vxor.u32 %v5941, 2147483648
  %v5944 = vxor.u32 %v5942, 2147483648
  %v5945 = vmul.f32 %v5943, 1.442695
  %v5946 = vpow.pop %v5945
  %v5947 = vmul.f32 %v5944, 1.442695
  %v5948 = vpow.pop %v5947
  %v5949 = vadd.f32 %v5946, 1.0
  %v5950 = vadd.f32 %v5948, 1.0
  %v5951 = vrcp.pop %v5949
  %v5952 = vmul.f32 %v5949, %v5951
  %v5953 = vsub.f32 1.0, %v5952
  %v5954 = vmul.f32 %v5951, %v5953
  %v5955 = vadd.f32 %v5951, %v5954
  %vm5956 = vweird.f32 %v5949
  %vm5957 = vweird.f32 %v5951
  %vm5958 = vmor %vm5956, %vm5957
  %v5959 = vsel %vm5958, %v5951, %v5955
  %v5960 = vand.u32 2147483647, %v5949
  %vm5961 = vcmp.eq.f32.partialorder %v5960, 8.507059e+37
  %v5962 = vand.u32 %v5949, 2147483648
  %v5963 = vor.u32 1.1754944e-38, %v5962
  %v5964 = vsel %vm5961, %v5963, %v5959
  %v5965 = vmul.f32 1.0, %v5964
  %v5966 = vrcp.pop %v5950
  %v5967 = vmul.f32 %v5950, %v5966
  %v5968 = vsub.f32 1.0, %v5967
  %v5969 = vmul.f32 %v5966, %v5968
  %v5970 = vadd.f32 %v5966, %v5969
  %vm5971 = vweird.f32 %v5950
  %vm5972 = vweird.f32 %v5966
  %vm5973 = vmor %vm5971, %vm5972
  %v5974 = vsel %vm5973, %v5966, %v5970
  %v5975 = vand.u32 2147483647, %v5950
  %vm5976 = vcmp.eq.f32.partialorder %v5975, 8.507059e+37
  %v5977 = vand.u32 %v5950, 2147483648
  %v5978 = vor.u32 1.1754944e-38, %v5977
  %v5979 = vsel %vm5976, %v5978, %v5974
  %v5980 = vmul.f32 1.0, %v5979
  %v5981 = vadd.f32 %v5897, %v4378
  %v5982 = vadd.f32 %v5899, %v4378
  %v5983 = vmul.f32 %v5925, %v5981
  %v5984 = vmul.f32 %v5940, %v5982
  %v5985 = vadd.f32 %v5854, %v5983
  %v5986 = vadd.f32 %v5857, %v5984
  %v5987 = vtanh.pop %v5985
  %v5988 = vtanh.pop %v5986
  %v5989 = vsub.f32 1.0, %v5965
  %v5990 = vsub.f32 1.0, %v5980
  %v5991 = vmul.f32 %v5989, %v5987
  %v5992 = vmul.f32 %v5990, %v5988
  %v5993 = vmul.f32 %v5965, %v5850
  %v5994 = vmul.f32 %v5980, %v5851
  %v5995 = vadd.f32 %v5991, %v5993
  %v5996 = vadd.f32 %v5992, %v5994
  %v5997 = vsub.f32 %v5995, %v5850
  %v5998 = vsub.f32 %v5996, %v5851
  %v5999 = vmul.f32 %v2742, %v5997
  %v6000 = vmul.f32 %v2742, %v5998
  %v6001 = vadd.f32 %v5850, %v5999
  %v6002 = vadd.f32 %v5851, %v6000
  %v6003 = vld [vmem:[%s2752] sm:$0xff]
  %v6004 = vld [vmem:[%s2752 + $0x8] sm:$0xff]
  %v6005 = vld [vmem:[%s2752 + $0x10] sm:$0xff]
  %v6006 = vld [vmem:[%s2752 + $0x18] sm:$0xff]
  %v6007 = vld [vmem:[%s2752 + $0x20] sm:$0xff]
  %v6008 = vld [vmem:[%s2752 + $0x28] sm:$0xff]
  %v6009 = vpack.c.bf16 %v6002, %v6001
  %6010 = vmatpush.bf16.msra.mxu0 %v4228
  %6011 = vmatpush.bf16.msra.mxu0 %v4225
  %6012 = vmatpush.bf16.msra.mxu0 %v4222
  %6013 = vmatpush.bf16.msra.mxu0 %v4219
  %6014 = vmatpush.bf16.msra.mxu0 %v4216
  %6015 = vmatpush.bf16.msra.mxu0 %v4213
  %6016 = vmatpush.bf16.msra.mxu0 %v4210
  %6017 = vmatpush.bf16.msra.mxu0 %v4207
  %6018 = vmatmul.bf16.gmra.mxu0 %v6009
  %v6019 = vpop.f32.mrf.mxu0
  %v6020 = vadd.f32 0.0, %v6019
  %v6021 = vpop.f32.mrf.mxu0
  %v6022 = vadd.f32 0.0, %v6021
  %6023 = vdwg.mxu0
  %6024 = vmatpush.bf16.msra.mxu0 %v4229
  %6025 = vmatpush.bf16.msra.mxu0 %v4226
  %6026 = vmatpush.bf16.msra.mxu0 %v4223
  %6027 = vmatpush.bf16.msra.mxu0 %v4220
  %6028 = vmatpush.bf16.msra.mxu0 %v4217
  %6029 = vmatpush.bf16.msra.mxu0 %v4214
  %6030 = vmatpush.bf16.msra.mxu0 %v4211
  %6031 = vmatpush.bf16.msra.mxu0 %v4208
  %6032 = vmatmul.bf16.gmra.mxu0 %v6009
  %v6033 = vpop.f32.mrf.mxu0
  %v6034 = vadd.f32 0.0, %v6033
  %v6035 = vpop.f32.mrf.mxu0
  %v6036 = vadd.f32 0.0, %v6035
  %6037 = vdwg.mxu0
  %6038 = vmatpush.bf16.msra.mxu0 %v4230
  %6039 = vmatpush.bf16.msra.mxu0 %v4227
  %6040 = vmatpush.bf16.msra.mxu0 %v4224
  %6041 = vmatpush.bf16.msra.mxu0 %v4221
  %6042 = vmatpush.bf16.msra.mxu0 %v4218
  %6043 = vmatpush.bf16.msra.mxu0 %v4215
  %6044 = vmatpush.bf16.msra.mxu0 %v4212
  %6045 = vmatpush.bf16.msra.mxu0 %v4209
  %6046 = vmatmul.bf16.gmra.mxu0 %v6009
  %v6047 = vpop.f32.mrf.mxu0
  %v6048 = vadd.f32 0.0, %v6047
  %v6049 = vpop.f32.mrf.mxu0
  %v6050 = vadd.f32 0.0, %v6049
  %6051 = vdwg.mxu0
  %v6052 = vadd.f32 %v6003, %v6020
  %v6053 = vadd.f32 %v6006, %v6022
  %v6054 = vxor.u32 %v6052, 2147483648
  %v6055 = vxor.u32 %v6053, 2147483648
  %v6056 = vmul.f32 %v6054, 1.442695
  %v6057 = vpow.pop %v6056
  %v6058 = vmul.f32 %v6055, 1.442695
  %v6059 = vpow.pop %v6058
  %v6060 = vadd.f32 %v6057, 1.0
  %v6061 = vadd.f32 %v6059, 1.0
  %v6062 = vrcp.pop %v6060
  %v6063 = vmul.f32 %v6060, %v6062
  %v6064 = vsub.f32 1.0, %v6063
  %v6065 = vmul.f32 %v6062, %v6064
  %v6066 = vadd.f32 %v6062, %v6065
  %vm6067 = vweird.f32 %v6060
  %vm6068 = vweird.f32 %v6062
  %vm6069 = vmor %vm6067, %vm6068
  %v6070 = vsel %vm6069, %v6062, %v6066
  %v6071 = vand.u32 2147483647, %v6060
  %vm6072 = vcmp.eq.f32.partialorder %v6071, 8.507059e+37
  %v6073 = vand.u32 %v6060, 2147483648
  %v6074 = vor.u32 1.1754944e-38, %v6073
  %v6075 = vsel %vm6072, %v6074, %v6070
  %v6076 = vmul.f32 1.0, %v6075
  %v6077 = vrcp.pop %v6061
  %v6078 = vmul.f32 %v6061, %v6077
  %v6079 = vsub.f32 1.0, %v6078
  %v6080 = vmul.f32 %v6077, %v6079
  %v6081 = vadd.f32 %v6077, %v6080
  %vm6082 = vweird.f32 %v6061
  %vm6083 = vweird.f32 %v6077
  %vm6084 = vmor %vm6082, %vm6083
  %v6085 = vsel %vm6084, %v6077, %v6081
  %v6086 = vand.u32 2147483647, %v6061
  %vm6087 = vcmp.eq.f32.partialorder %v6086, 8.507059e+37
  %v6088 = vand.u32 %v6061, 2147483648
  %v6089 = vor.u32 1.1754944e-38, %v6088
  %v6090 = vsel %vm6087, %v6089, %v6085
  %v6091 = vmul.f32 1.0, %v6090
  %v6092 = vadd.f32 %v6004, %v6034
  %v6093 = vadd.f32 %v6007, %v6036
  %v6094 = vxor.u32 %v6092, 2147483648
  %v6095 = vxor.u32 %v6093, 2147483648
  %v6096 = vmul.f32 %v6094, 1.442695
  %v6097 = vpow.pop %v6096
  %v6098 = vmul.f32 %v6095, 1.442695
  %v6099 = vpow.pop %v6098
  %v6100 = vadd.f32 %v6097, 1.0
  %v6101 = vadd.f32 %v6099, 1.0
  %v6102 = vrcp.pop %v6100
  %v6103 = vmul.f32 %v6100, %v6102
  %v6104 = vsub.f32 1.0, %v6103
  %v6105 = vmul.f32 %v6102, %v6104
  %v6106 = vadd.f32 %v6102, %v6105
  %vm6107 = vweird.f32 %v6100
  %vm6108 = vweird.f32 %v6102
  %vm6109 = vmor %vm6107, %vm6108
  %v6110 = vsel %vm6109, %v6102, %v6106
  %v6111 = vand.u32 2147483647, %v6100
  %vm6112 = vcmp.eq.f32.partialorder %v6111, 8.507059e+37
  %v6113 = vand.u32 %v6100, 2147483648
  %v6114 = vor.u32 1.1754944e-38, %v6113
  %v6115 = vsel %vm6112, %v6114, %v6110
  %v6116 = vmul.f32 1.0, %v6115
  %v6117 = vrcp.pop %v6101
  %v6118 = vmul.f32 %v6101, %v6117
  %v6119 = vsub.f32 1.0, %v6118
  %v6120 = vmul.f32 %v6117, %v6119
  %v6121 = vadd.f32 %v6117, %v6120
  %vm6122 = vweird.f32 %v6101
  %vm6123 = vweird.f32 %v6117
  %vm6124 = vmor %vm6122, %vm6123
  %v6125 = vsel %vm6124, %v6117, %v6121
  %v6126 = vand.u32 2147483647, %v6101
  %vm6127 = vcmp.eq.f32.partialorder %v6126, 8.507059e+37
  %v6128 = vand.u32 %v6101, 2147483648
  %v6129 = vor.u32 1.1754944e-38, %v6128
  %v6130 = vsel %vm6127, %v6129, %v6125
  %v6131 = vmul.f32 1.0, %v6130
  %v6132 = vadd.f32 %v6048, %v4378
  %v6133 = vadd.f32 %v6050, %v4378
  %v6134 = vmul.f32 %v6076, %v6132
  %v6135 = vmul.f32 %v6091, %v6133
  %v6136 = vadd.f32 %v6005, %v6134
  %v6137 = vadd.f32 %v6008, %v6135
  %v6138 = vtanh.pop %v6136
  %v6139 = vtanh.pop %v6137
  %v6140 = vsub.f32 1.0, %v6116
  %v6141 = vsub.f32 1.0, %v6131
  %v6142 = vmul.f32 %v6140, %v6138
  %v6143 = vmul.f32 %v6141, %v6139
  %v6144 = vmul.f32 %v6116, %v6001
  %v6145 = vmul.f32 %v6131, %v6002
  %v6146 = vadd.f32 %v6142, %v6144
  %v6147 = vadd.f32 %v6143, %v6145
  %v6148 = vsub.f32 %v6146, %v6001
  %v6149 = vsub.f32 %v6147, %v6002
  %v6150 = vmul.f32 %v2909, %v6148
  %v6151 = vmul.f32 %v2909, %v6149
  %v6152 = vadd.f32 %v6001, %v6150
  %v6153 = vadd.f32 %v6002, %v6151
  %v6154 = vld [vmem:[%s2919] sm:$0xff]
  %v6155 = vld [vmem:[%s2919 + $0x8] sm:$0xff]
  %v6156 = vld [vmem:[%s2919 + $0x10] sm:$0xff]
  %v6157 = vld [vmem:[%s2919 + $0x18] sm:$0xff]
  %v6158 = vld [vmem:[%s2919 + $0x20] sm:$0xff]
  %v6159 = vld [vmem:[%s2919 + $0x28] sm:$0xff]
  %v6160 = vpack.c.bf16 %v6153, %v6152
  %6161 = vmatpush.bf16.msra.mxu0 %v4228
  %6162 = vmatpush.bf16.msra.mxu0 %v4225
  %6163 = vmatpush.bf16.msra.mxu0 %v4222
  %6164 = vmatpush.bf16.msra.mxu0 %v4219
  %6165 = vmatpush.bf16.msra.mxu0 %v4216
  %6166 = vmatpush.bf16.msra.mxu0 %v4213
  %6167 = vmatpush.bf16.msra.mxu0 %v4210
  %6168 = vmatpush.bf16.msra.mxu0 %v4207
  %6169 = vmatmul.bf16.gmra.mxu0 %v6160
  %v6170 = vpop.f32.mrf.mxu0
  %v6171 = vadd.f32 0.0, %v6170
  %v6172 = vpop.f32.mrf.mxu0
  %v6173 = vadd.f32 0.0, %v6172
  %6174 = vdwg.mxu0
  %6175 = vmatpush.bf16.msra.mxu0 %v4229
  %6176 = vmatpush.bf16.msra.mxu0 %v4226
  %6177 = vmatpush.bf16.msra.mxu0 %v4223
  %6178 = vmatpush.bf16.msra.mxu0 %v4220
  %6179 = vmatpush.bf16.msra.mxu0 %v4217
  %6180 = vmatpush.bf16.msra.mxu0 %v4214
  %6181 = vmatpush.bf16.msra.mxu0 %v4211
  %6182 = vmatpush.bf16.msra.mxu0 %v4208
  %6183 = vmatmul.bf16.gmra.mxu0 %v6160
  %v6184 = vpop.f32.mrf.mxu0
  %v6185 = vadd.f32 0.0, %v6184
  %v6186 = vpop.f32.mrf.mxu0
  %v6187 = vadd.f32 0.0, %v6186
  %6188 = vdwg.mxu0
  %6189 = vmatpush.bf16.msra.mxu0 %v4230
  %6190 = vmatpush.bf16.msra.mxu0 %v4227
  %6191 = vmatpush.bf16.msra.mxu0 %v4224
  %6192 = vmatpush.bf16.msra.mxu0 %v4221
  %6193 = vmatpush.bf16.msra.mxu0 %v4218
  %6194 = vmatpush.bf16.msra.mxu0 %v4215
  %6195 = vmatpush.bf16.msra.mxu0 %v4212
  %6196 = vmatpush.bf16.msra.mxu0 %v4209
  %6197 = vmatmul.bf16.gmra.mxu0 %v6160
  %v6198 = vpop.f32.mrf.mxu0
  %v6199 = vadd.f32 0.0, %v6198
  %v6200 = vpop.f32.mrf.mxu0
  %v6201 = vadd.f32 0.0, %v6200
  %6202 = vdwg.mxu0
  %v6203 = vadd.f32 %v6154, %v6171
  %v6204 = vadd.f32 %v6157, %v6173
  %v6205 = vxor.u32 %v6203, 2147483648
  %v6206 = vxor.u32 %v6204, 2147483648
  %v6207 = vmul.f32 %v6205, 1.442695
  %v6208 = vpow.pop %v6207
  %v6209 = vmul.f32 %v6206, 1.442695
  %v6210 = vpow.pop %v6209
  %v6211 = vadd.f32 %v6208, 1.0
  %v6212 = vadd.f32 %v6210, 1.0
  %v6213 = vrcp.pop %v6211
  %v6214 = vmul.f32 %v6211, %v6213
  %v6215 = vsub.f32 1.0, %v6214
  %v6216 = vmul.f32 %v6213, %v6215
  %v6217 = vadd.f32 %v6213, %v6216
  %vm6218 = vweird.f32 %v6211
  %vm6219 = vweird.f32 %v6213
  %vm6220 = vmor %vm6218, %vm6219
  %v6221 = vsel %vm6220, %v6213, %v6217
  %v6222 = vand.u32 2147483647, %v6211
  %vm6223 = vcmp.eq.f32.partialorder %v6222, 8.507059e+37
  %v6224 = vand.u32 %v6211, 2147483648
  %v6225 = vor.u32 1.1754944e-38, %v6224
  %v6226 = vsel %vm6223, %v6225, %v6221
  %v6227 = vmul.f32 1.0, %v6226
  %v6228 = vrcp.pop %v6212
  %v6229 = vmul.f32 %v6212, %v6228
  %v6230 = vsub.f32 1.0, %v6229
  %v6231 = vmul.f32 %v6228, %v6230
  %v6232 = vadd.f32 %v6228, %v6231
  %vm6233 = vweird.f32 %v6212
  %vm6234 = vweird.f32 %v6228
  %vm6235 = vmor %vm6233, %vm6234
  %v6236 = vsel %vm6235, %v6228, %v6232
  %v6237 = vand.u32 2147483647, %v6212
  %vm6238 = vcmp.eq.f32.partialorder %v6237, 8.507059e+37
  %v6239 = vand.u32 %v6212, 2147483648
  %v6240 = vor.u32 1.1754944e-38, %v6239
  %v6241 = vsel %vm6238, %v6240, %v6236
  %v6242 = vmul.f32 1.0, %v6241
  %v6243 = vadd.f32 %v6155, %v6185
  %v6244 = vadd.f32 %v6158, %v6187
  %v6245 = vxor.u32 %v6243, 2147483648
  %v6246 = vxor.u32 %v6244, 2147483648
  %v6247 = vmul.f32 %v6245, 1.442695
  %v6248 = vpow.pop %v6247
  %v6249 = vmul.f32 %v6246, 1.442695
  %v6250 = vpow.pop %v6249
  %v6251 = vadd.f32 %v6248, 1.0
  %v6252 = vadd.f32 %v6250, 1.0
  %v6253 = vrcp.pop %v6251
  %v6254 = vmul.f32 %v6251, %v6253
  %v6255 = vsub.f32 1.0, %v6254
  %v6256 = vmul.f32 %v6253, %v6255
  %v6257 = vadd.f32 %v6253, %v6256
  %vm6258 = vweird.f32 %v6251
  %vm6259 = vweird.f32 %v6253
  %vm6260 = vmor %vm6258, %vm6259
  %v6261 = vsel %vm6260, %v6253, %v6257
  %v6262 = vand.u32 2147483647, %v6251
  %vm6263 = vcmp.eq.f32.partialorder %v6262, 8.507059e+37
  %v6264 = vand.u32 %v6251, 2147483648
  %v6265 = vor.u32 1.1754944e-38, %v6264
  %v6266 = vsel %vm6263, %v6265, %v6261
  %v6267 = vmul.f32 1.0, %v6266
  %v6268 = vrcp.pop %v6252
  %v6269 = vmul.f32 %v6252, %v6268
  %v6270 = vsub.f32 1.0, %v6269
  %v6271 = vmul.f32 %v6268, %v6270
  %v6272 = vadd.f32 %v6268, %v6271
  %vm6273 = vweird.f32 %v6252
  %vm6274 = vweird.f32 %v6268
  %vm6275 = vmor %vm6273, %vm6274
  %v6276 = vsel %vm6275, %v6268, %v6272
  %v6277 = vand.u32 2147483647, %v6252
  %vm6278 = vcmp.eq.f32.partialorder %v6277, 8.507059e+37
  %v6279 = vand.u32 %v6252, 2147483648
  %v6280 = vor.u32 1.1754944e-38, %v6279
  %v6281 = vsel %vm6278, %v6280, %v6276
  %v6282 = vmul.f32 1.0, %v6281
  %v6283 = vadd.f32 %v6199, %v4378
  %v6284 = vadd.f32 %v6201, %v4378
  %v6285 = vmul.f32 %v6227, %v6283
  %v6286 = vmul.f32 %v6242, %v6284
  %v6287 = vadd.f32 %v6156, %v6285
  %v6288 = vadd.f32 %v6159, %v6286
  %v6289 = vtanh.pop %v6287
  %v6290 = vtanh.pop %v6288
  %v6291 = vsub.f32 1.0, %v6267
  %v6292 = vsub.f32 1.0, %v6282
  %v6293 = vmul.f32 %v6291, %v6289
  %v6294 = vmul.f32 %v6292, %v6290
  %v6295 = vmul.f32 %v6267, %v6152
  %v6296 = vmul.f32 %v6282, %v6153
  %v6297 = vadd.f32 %v6293, %v6295
  %v6298 = vadd.f32 %v6294, %v6296
  %v6299 = vsub.f32 %v6297, %v6152
  %v6300 = vsub.f32 %v6298, %v6153
  %v6301 = vmul.f32 %v3076, %v6299
  %v6302 = vmul.f32 %v3076, %v6300
  %v6303 = vadd.f32 %v6152, %v6301
  %v6304 = vadd.f32 %v6153, %v6302
  %v6305 = vld [vmem:[%s3086] sm:$0xff]
  %v6306 = vld [vmem:[%s3086 + $0x8] sm:$0xff]
  %v6307 = vld [vmem:[%s3086 + $0x10] sm:$0xff]
  %v6308 = vld [vmem:[%s3086 + $0x18] sm:$0xff]
  %v6309 = vld [vmem:[%s3086 + $0x20] sm:$0xff]
  %v6310 = vld [vmem:[%s3086 + $0x28] sm:$0xff]
  %v6311 = vpack.c.bf16 %v6304, %v6303
  %6312 = vmatpush.bf16.msra.mxu0 %v4228
  %6313 = vmatpush.bf16.msra.mxu0 %v4225
  %6314 = vmatpush.bf16.msra.mxu0 %v4222
  %6315 = vmatpush.bf16.msra.mxu0 %v4219
  %6316 = vmatpush.bf16.msra.mxu0 %v4216
  %6317 = vmatpush.bf16.msra.mxu0 %v4213
  %6318 = vmatpush.bf16.msra.mxu0 %v4210
  %6319 = vmatpush.bf16.msra.mxu0 %v4207
  %6320 = vmatmul.bf16.gmra.mxu0 %v6311
  %v6321 = vpop.f32.mrf.mxu0
  %v6322 = vadd.f32 0.0, %v6321
  %v6323 = vpop.f32.mrf.mxu0
  %v6324 = vadd.f32 0.0, %v6323
  %6325 = vdwg.mxu0
  %6326 = vmatpush.bf16.msra.mxu0 %v4229
  %6327 = vmatpush.bf16.msra.mxu0 %v4226
  %6328 = vmatpush.bf16.msra.mxu0 %v4223
  %6329 = vmatpush.bf16.msra.mxu0 %v4220
  %6330 = vmatpush.bf16.msra.mxu0 %v4217
  %6331 = vmatpush.bf16.msra.mxu0 %v4214
  %6332 = vmatpush.bf16.msra.mxu0 %v4211
  %6333 = vmatpush.bf16.msra.mxu0 %v4208
  %6334 = vmatmul.bf16.gmra.mxu0 %v6311
  %v6335 = vpop.f32.mrf.mxu0
  %v6336 = vadd.f32 0.0, %v6335
  %v6337 = vpop.f32.mrf.mxu0
  %v6338 = vadd.f32 0.0, %v6337
  %6339 = vdwg.mxu0
  %6340 = vmatpush.bf16.msra.mxu0 %v4230
  %6341 = vmatpush.bf16.msra.mxu0 %v4227
  %6342 = vmatpush.bf16.msra.mxu0 %v4224
  %6343 = vmatpush.bf16.msra.mxu0 %v4221
  %6344 = vmatpush.bf16.msra.mxu0 %v4218
  %6345 = vmatpush.bf16.msra.mxu0 %v4215
  %6346 = vmatpush.bf16.msra.mxu0 %v4212
  %6347 = vmatpush.bf16.msra.mxu0 %v4209
  %6348 = vmatmul.bf16.gmra.mxu0 %v6311
  %v6349 = vpop.f32.mrf.mxu0
  %v6350 = vadd.f32 0.0, %v6349
  %v6351 = vpop.f32.mrf.mxu0
  %v6352 = vadd.f32 0.0, %v6351
  %6353 = vdwg.mxu0
  %v6354 = vadd.f32 %v6305, %v6322
  %v6355 = vadd.f32 %v6308, %v6324
  %v6356 = vxor.u32 %v6354, 2147483648
  %v6357 = vxor.u32 %v6355, 2147483648
  %v6358 = vmul.f32 %v6356, 1.442695
  %v6359 = vpow.pop %v6358
  %v6360 = vmul.f32 %v6357, 1.442695
  %v6361 = vpow.pop %v6360
  %v6362 = vadd.f32 %v6359, 1.0
  %v6363 = vadd.f32 %v6361, 1.0
  %v6364 = vrcp.pop %v6362
  %v6365 = vmul.f32 %v6362, %v6364
  %v6366 = vsub.f32 1.0, %v6365
  %v6367 = vmul.f32 %v6364, %v6366
  %v6368 = vadd.f32 %v6364, %v6367
  %vm6369 = vweird.f32 %v6362
  %vm6370 = vweird.f32 %v6364
  %vm6371 = vmor %vm6369, %vm6370
  %v6372 = vsel %vm6371, %v6364, %v6368
  %v6373 = vand.u32 2147483647, %v6362
  %vm6374 = vcmp.eq.f32.partialorder %v6373, 8.507059e+37
  %v6375 = vand.u32 %v6362, 2147483648
  %v6376 = vor.u32 1.1754944e-38, %v6375
  %v6377 = vsel %vm6374, %v6376, %v6372
  %v6378 = vmul.f32 1.0, %v6377
  %v6379 = vrcp.pop %v6363
  %v6380 = vmul.f32 %v6363, %v6379
  %v6381 = vsub.f32 1.0, %v6380
  %v6382 = vmul.f32 %v6379, %v6381
  %v6383 = vadd.f32 %v6379, %v6382
  %vm6384 = vweird.f32 %v6363
  %vm6385 = vweird.f32 %v6379
  %vm6386 = vmor %vm6384, %vm6385
  %v6387 = vsel %vm6386, %v6379, %v6383
  %v6388 = vand.u32 2147483647, %v6363
  %vm6389 = vcmp.eq.f32.partialorder %v6388, 8.507059e+37
  %v6390 = vand.u32 %v6363, 2147483648
  %v6391 = vor.u32 1.1754944e-38, %v6390
  %v6392 = vsel %vm6389, %v6391, %v6387
  %v6393 = vmul.f32 1.0, %v6392
  %v6394 = vadd.f32 %v6306, %v6336
  %v6395 = vadd.f32 %v6309, %v6338
  %v6396 = vxor.u32 %v6394, 2147483648
  %v6397 = vxor.u32 %v6395, 2147483648
  %v6398 = vmul.f32 %v6396, 1.442695
  %v6399 = vpow.pop %v6398
  %v6400 = vmul.f32 %v6397, 1.442695
  %v6401 = vpow.pop %v6400
  %v6402 = vadd.f32 %v6399, 1.0
  %v6403 = vadd.f32 %v6401, 1.0
  %v6404 = vrcp.pop %v6402
  %v6405 = vmul.f32 %v6402, %v6404
  %v6406 = vsub.f32 1.0, %v6405
  %v6407 = vmul.f32 %v6404, %v6406
  %v6408 = vadd.f32 %v6404, %v6407
  %vm6409 = vweird.f32 %v6402
  %vm6410 = vweird.f32 %v6404
  %vm6411 = vmor %vm6409, %vm6410
  %v6412 = vsel %vm6411, %v6404, %v6408
  %v6413 = vand.u32 2147483647, %v6402
  %vm6414 = vcmp.eq.f32.partialorder %v6413, 8.507059e+37
  %v6415 = vand.u32 %v6402, 2147483648
  %v6416 = vor.u32 1.1754944e-38, %v6415
  %v6417 = vsel %vm6414, %v6416, %v6412
  %v6418 = vmul.f32 1.0, %v6417
  %v6419 = vrcp.pop %v6403
  %v6420 = vmul.f32 %v6403, %v6419
  %v6421 = vsub.f32 1.0, %v6420
  %v6422 = vmul.f32 %v6419, %v6421
  %v6423 = vadd.f32 %v6419, %v6422
  %vm6424 = vweird.f32 %v6403
  %vm6425 = vweird.f32 %v6419
  %vm6426 = vmor %vm6424, %vm6425
  %v6427 = vsel %vm6426, %v6419, %v6423
  %v6428 = vand.u32 2147483647, %v6403
  %vm6429 = vcmp.eq.f32.partialorder %v6428, 8.507059e+37
  %v6430 = vand.u32 %v6403, 2147483648
  %v6431 = vor.u32 1.1754944e-38, %v6430
  %v6432 = vsel %vm6429, %v6431, %v6427
  %v6433 = vmul.f32 1.0, %v6432
  %v6434 = vadd.f32 %v6350, %v4378
  %v6435 = vadd.f32 %v6352, %v4378
  %v6436 = vmul.f32 %v6378, %v6434
  %v6437 = vmul.f32 %v6393, %v6435
  %v6438 = vadd.f32 %v6307, %v6436
  %v6439 = vadd.f32 %v6310, %v6437
  %v6440 = vtanh.pop %v6438
  %v6441 = vtanh.pop %v6439
  %v6442 = vsub.f32 1.0, %v6418
  %v6443 = vsub.f32 1.0, %v6433
  %v6444 = vmul.f32 %v6442, %v6440
  %v6445 = vmul.f32 %v6443, %v6441
  %v6446 = vmul.f32 %v6418, %v6303
  %v6447 = vmul.f32 %v6433, %v6304
  %v6448 = vadd.f32 %v6444, %v6446
  %v6449 = vadd.f32 %v6445, %v6447
  %v6450 = vsub.f32 %v6448, %v6303
  %v6451 = vsub.f32 %v6449, %v6304
  %v6452 = vmul.f32 %v3243, %v6450
  %v6453 = vmul.f32 %v3243, %v6451
  %v6454 = vadd.f32 %v6303, %v6452
  %v6455 = vadd.f32 %v6304, %v6453
  %v6456 = vld [vmem:[%s3253] sm:$0xff]
  %v6457 = vld [vmem:[%s3253 + $0x8] sm:$0xff]
  %v6458 = vld [vmem:[%s3253 + $0x10] sm:$0xff]
  %v6459 = vld [vmem:[%s3253 + $0x18] sm:$0xff]
  %v6460 = vld [vmem:[%s3253 + $0x20] sm:$0xff]
  %v6461 = vld [vmem:[%s3253 + $0x28] sm:$0xff]
  %v6462 = vpack.c.bf16 %v6455, %v6454
  %6463 = vmatpush.bf16.msra.mxu0 %v4228
  %6464 = vmatpush.bf16.msra.mxu0 %v4225
  %6465 = vmatpush.bf16.msra.mxu0 %v4222
  %6466 = vmatpush.bf16.msra.mxu0 %v4219
  %6467 = vmatpush.bf16.msra.mxu0 %v4216
  %6468 = vmatpush.bf16.msra.mxu0 %v4213
  %6469 = vmatpush.bf16.msra.mxu0 %v4210
  %6470 = vmatpush.bf16.msra.mxu0 %v4207
  %6471 = vmatmul.bf16.gmra.mxu0 %v6462
  %v6472 = vpop.f32.mrf.mxu0
  %v6473 = vadd.f32 0.0, %v6472
  %v6474 = vpop.f32.mrf.mxu0
  %v6475 = vadd.f32 0.0, %v6474
  %6476 = vdwg.mxu0
  %6477 = vmatpush.bf16.msra.mxu0 %v4229
  %6478 = vmatpush.bf16.msra.mxu0 %v4226
  %6479 = vmatpush.bf16.msra.mxu0 %v4223
  %6480 = vmatpush.bf16.msra.mxu0 %v4220
  %6481 = vmatpush.bf16.msra.mxu0 %v4217
  %6482 = vmatpush.bf16.msra.mxu0 %v4214
  %6483 = vmatpush.bf16.msra.mxu0 %v4211
  %6484 = vmatpush.bf16.msra.mxu0 %v4208
  %6485 = vmatmul.bf16.gmra.mxu0 %v6462
  %v6486 = vpop.f32.mrf.mxu0
  %v6487 = vadd.f32 0.0, %v6486
  %v6488 = vpop.f32.mrf.mxu0
  %v6489 = vadd.f32 0.0, %v6488
  %6490 = vdwg.mxu0
  %6491 = vmatpush.bf16.msra.mxu0 %v4230
  %6492 = vmatpush.bf16.msra.mxu0 %v4227
  %6493 = vmatpush.bf16.msra.mxu0 %v4224
  %6494 = vmatpush.bf16.msra.mxu0 %v4221
  %6495 = vmatpush.bf16.msra.mxu0 %v4218
  %6496 = vmatpush.bf16.msra.mxu0 %v4215
  %6497 = vmatpush.bf16.msra.mxu0 %v4212
  %6498 = vmatpush.bf16.msra.mxu0 %v4209
  %6499 = vmatmul.bf16.gmra.mxu0 %v6462
  %v6500 = vpop.f32.mrf.mxu0
  %v6501 = vadd.f32 0.0, %v6500
  %v6502 = vpop.f32.mrf.mxu0
  %v6503 = vadd.f32 0.0, %v6502
  %6504 = vdwg.mxu0
  %v6505 = vadd.f32 %v6456, %v6473
  %v6506 = vadd.f32 %v6459, %v6475
  %v6507 = vxor.u32 %v6505, 2147483648
  %v6508 = vxor.u32 %v6506, 2147483648
  %v6509 = vmul.f32 %v6507, 1.442695
  %v6510 = vpow.pop %v6509
  %v6511 = vmul.f32 %v6508, 1.442695
  %v6512 = vpow.pop %v6511
  %v6513 = vadd.f32 %v6510, 1.0
  %v6514 = vadd.f32 %v6512, 1.0
  %v6515 = vrcp.pop %v6513
  %v6516 = vmul.f32 %v6513, %v6515
  %v6517 = vsub.f32 1.0, %v6516
  %v6518 = vmul.f32 %v6515, %v6517
  %v6519 = vadd.f32 %v6515, %v6518
  %vm6520 = vweird.f32 %v6513
  %vm6521 = vweird.f32 %v6515
  %vm6522 = vmor %vm6520, %vm6521
  %v6523 = vsel %vm6522, %v6515, %v6519
  %v6524 = vand.u32 2147483647, %v6513
  %vm6525 = vcmp.eq.f32.partialorder %v6524, 8.507059e+37
  %v6526 = vand.u32 %v6513, 2147483648
  %v6527 = vor.u32 1.1754944e-38, %v6526
  %v6528 = vsel %vm6525, %v6527, %v6523
  %v6529 = vmul.f32 1.0, %v6528
  %v6530 = vrcp.pop %v6514
  %v6531 = vmul.f32 %v6514, %v6530
  %v6532 = vsub.f32 1.0, %v6531
  %v6533 = vmul.f32 %v6530, %v6532
  %v6534 = vadd.f32 %v6530, %v6533
  %vm6535 = vweird.f32 %v6514
  %vm6536 = vweird.f32 %v6530
  %vm6537 = vmor %vm6535, %vm6536
  %v6538 = vsel %vm6537, %v6530, %v6534
  %v6539 = vand.u32 2147483647, %v6514
  %vm6540 = vcmp.eq.f32.partialorder %v6539, 8.507059e+37
  %v6541 = vand.u32 %v6514, 2147483648
  %v6542 = vor.u32 1.1754944e-38, %v6541
  %v6543 = vsel %vm6540, %v6542, %v6538
  %v6544 = vmul.f32 1.0, %v6543
  %v6545 = vadd.f32 %v6457, %v6487
  %v6546 = vadd.f32 %v6460, %v6489
  %v6547 = vxor.u32 %v6545, 2147483648
  %v6548 = vxor.u32 %v6546, 2147483648
  %v6549 = vmul.f32 %v6547, 1.442695
  %v6550 = vpow.pop %v6549
  %v6551 = vmul.f32 %v6548, 1.442695
  %v6552 = vpow.pop %v6551
  %v6553 = vadd.f32 %v6550, 1.0
  %v6554 = vadd.f32 %v6552, 1.0
  %v6555 = vrcp.pop %v6553
  %v6556 = vmul.f32 %v6553, %v6555
  %v6557 = vsub.f32 1.0, %v6556
  %v6558 = vmul.f32 %v6555, %v6557
  %v6559 = vadd.f32 %v6555, %v6558
  %vm6560 = vweird.f32 %v6553
  %vm6561 = vweird.f32 %v6555
  %vm6562 = vmor %vm6560, %vm6561
  %v6563 = vsel %vm6562, %v6555, %v6559
  %v6564 = vand.u32 2147483647, %v6553
  %vm6565 = vcmp.eq.f32.partialorder %v6564, 8.507059e+37
  %v6566 = vand.u32 %v6553, 2147483648
  %v6567 = vor.u32 1.1754944e-38, %v6566
  %v6568 = vsel %vm6565, %v6567, %v6563
  %v6569 = vmul.f32 1.0, %v6568
  %v6570 = vrcp.pop %v6554
  %v6571 = vmul.f32 %v6554, %v6570
  %v6572 = vsub.f32 1.0, %v6571
  %v6573 = vmul.f32 %v6570, %v6572
  %v6574 = vadd.f32 %v6570, %v6573
  %vm6575 = vweird.f32 %v6554
  %vm6576 = vweird.f32 %v6570
  %vm6577 = vmor %vm6575, %vm6576
  %v6578 = vsel %vm6577, %v6570, %v6574
  %v6579 = vand.u32 2147483647, %v6554
  %vm6580 = vcmp.eq.f32.partialorder %v6579, 8.507059e+37
  %v6581 = vand.u32 %v6554, 2147483648
  %v6582 = vor.u32 1.1754944e-38, %v6581
  %v6583 = vsel %vm6580, %v6582, %v6578
  %v6584 = vmul.f32 1.0, %v6583
  %v6585 = vadd.f32 %v6501, %v4378
  %v6586 = vadd.f32 %v6503, %v4378
  %v6587 = vmul.f32 %v6529, %v6585
  %v6588 = vmul.f32 %v6544, %v6586
  %v6589 = vadd.f32 %v6458, %v6587
  %v6590 = vadd.f32 %v6461, %v6588
  %v6591 = vtanh.pop %v6589
  %v6592 = vtanh.pop %v6590
  %v6593 = vsub.f32 1.0, %v6569
  %v6594 = vsub.f32 1.0, %v6584
  %v6595 = vmul.f32 %v6593, %v6591
  %v6596 = vmul.f32 %v6594, %v6592
  %v6597 = vmul.f32 %v6569, %v6454
  %v6598 = vmul.f32 %v6584, %v6455
  %v6599 = vadd.f32 %v6595, %v6597
  %v6600 = vadd.f32 %v6596, %v6598
  %v6601 = vsub.f32 %v6599, %v6454
  %v6602 = vsub.f32 %v6600, %v6455
  %v6603 = vmul.f32 %v3410, %v6601
  %v6604 = vmul.f32 %v3410, %v6602
  %v6605 = vadd.f32 %v6454, %v6603
  %v6606 = vadd.f32 %v6455, %v6604
  %6607 = vst [vmem:[%s4117] sm:$0xff] %v6605
  %6608 = vst [vmem:[%s4117 + $0x8] sm:$0xff] %v6606
  // Predicated region
  $region38: #{gru_classifier_forward.1} parent=0 // pred_check
    %p6609 = pneg %p31
  $region39: #{gru_classifier_forward.1} parent=0 // pred_check_branch
    %6611 = sbr.rel (%p6609) target = $region41
  $region40: #{gru_classifier_forward.1} parent=0 // pred_region
    %v6612 = vld [vmem:[%s4117] sm:$0xff]
    %v6613 = vld [vmem:[%s4117 + $0x8] sm:$0xff]
    %v6614 = vld [vmem:[%s6] sm:$0x1]
    %v6616 = vperm.slane %v6614, 0
    %v6618 = vmul.f32 %v6612, %v6616
    %v6619 = vmul.f32 %v6613, %v6616
    %6620 = vadd.xlane.f32.xlu0 %v6618
    %v6621 = vpop.xlane.xlu0 %6620
    %6622 = vadd.xlane.f32.xlu0 %v6619
    %v6623 = vpop.xlane.xlu0 %6622
    %v6624 = vld [vmem:[#allocation5] sm:$0x1]
    %v6626 = vperm.slane %v6624, 0
    %v6628 = vadd.f32 %v6621, %v6626
    %v6629 = vadd.f32 %v6623, %v6626
    %v6630 = vxor.u32 %v6628, 2147483648
    %v6631 = vxor.u32 %v6629, 2147483648
    %v6632 = vmul.f32 %v6630, 1.442695
    %v6633 = vpow.pop %v6632
    %v6634 = vmul.f32 %v6631, 1.442695
    %v6635 = vpow.pop %v6634
    %v6636 = vadd.f32 %v6633, 1.0
    %v6637 = vadd.f32 %v6635, 1.0
    %v6638 = vrcp.pop %v6636
    %v6639 = vmul.f32 %v6636, %v6638
    %v6640 = vsub.f32 1.0, %v6639
    %v6641 = vmul.f32 %v6638, %v6640
    %v6642 = vadd.f32 %v6638, %v6641
    %vm6643 = vweird.f32 %v6636
    %vm6644 = vweird.f32 %v6638
    %vm6645 = vmor %vm6643, %vm6644
    %v6646 = vsel %vm6645, %v6638, %v6642
    %v6647 = vand.u32 2147483647, %v6636
    %vm6648 = vcmp.eq.f32.partialorder %v6647, 8.507059e+37
    %v6649 = vand.u32 %v6636, 2147483648
    %v6650 = vor.u32 1.1754944e-38, %v6649
    %v6651 = vsel %vm6648, %v6650, %v6646
    %v6652 = vmul.f32 1.0, %v6651
    %v6653 = vrcp.pop %v6637
    %v6654 = vmul.f32 %v6637, %v6653
    %v6655 = vsub.f32 1.0, %v6654
    %v6656 = vmul.f32 %v6653, %v6655
    %v6657 = vadd.f32 %v6653, %v6656
    %vm6658 = vweird.f32 %v6637
    %vm6659 = vweird.f32 %v6653
    %vm6660 = vmor %vm6658, %vm6659
    %v6661 = vsel %vm6660, %v6653, %v6657
    %v6662 = vand.u32 2147483647, %v6637
    %vm6663 = vcmp.eq.f32.partialorder %v6662, 8.507059e+37
    %v6664 = vand.u32 %v6637, 2147483648
    %v6665 = vor.u32 1.1754944e-38, %v6664
    %v6666 = vsel %vm6663, %v6665, %v6661
    %v6667 = vmul.f32 1.0, %v6666
    %vm6668 = vcmask 7168
    %6669 = vst.msk [vmem:[%s8] sm:$0xff] %vm6668, %v6652
    %6670 = vst.msk [vmem:[%s8 + $0x8] sm:$0xff] %vm6668, %v6667
  $region41: #{gru_classifier_forward.1} parent=0 // pred_fallthru
    _
  // Predicated region
  $region42: #{gru_classifier_forward.1} parent=0 // pred_check
    _
  $region43: #{gru_classifier_forward.1} parent=0 // pred_check_branch
    %6672 = sbr.rel (0) target = $region45
  $region44: #{gru_classifier_forward.1} parent=0 // pred_region
    _
  $region45: #{gru_classifier_forward.1} parent=0 // pred_fallthru
    _
  // Predicated region
  $region46: #{gru_classifier_forward.1} parent=0 // pred_check
    _
  $region47: #{gru_classifier_forward.1} parent=0 // pred_check_branch
    %6674 = sbr.rel (0) target = $region49
  $region48: #{gru_classifier_forward.1} parent=0 // pred_region
    _
  $region49: #{gru_classifier_forward.1} parent=0 // pred_fallthru
    _

</llo_original>
